<compile_context>
chip_gen: v6e
topology: v6e:2x2x1
jax: 0.10.0
libtpu: 0.0.40
codegen_flags: <defaults>
</compile_context>

<pallas_src>
import jax
import jax.numpy as jnp
import numpy as np
from jax.experimental import pallas as pl
from jax.experimental.pallas import tpu as pltpu


# ---------------------------------------------------------------------------
# In-kernel helpers
# ---------------------------------------------------------------------------
def _zero_halo(ref):
    """Zero only the 1-pixel border of a (Hp, Wp, C) padded-activation scratch ref."""
    hp, wp, c = ref.shape
    ref[0:1, :, :] = jnp.zeros((1, wp, c), ref.dtype)
    ref[hp - 1:hp, :, :] = jnp.zeros((1, wp, c), ref.dtype)
    ref[:, 0:1, :] = jnp.zeros((hp, 1, c), ref.dtype)
    ref[:, wp - 1:wp, :] = jnp.zeros((hp, 1, c), ref.dtype)


def _conv3x3_taps(xpad_ref, w_ref, b_ref, H, W, Cin, Cout):
    """3x3 conv (input pre-padded by 1) + bias + ReLU, as 9 accumulating MXU dots.

    xpad_ref: (H+2, W+2, Cin) f32, w_ref: (9*Cin, Cout) bf16, b_ref: (1, Cout) f32.
    Returns (H*W, Cout) f32, rows in (h, w) row-major order.
    """
    acc = None
    for t in range(9):
        dy, dx = t // 3, t % 3
        tap = xpad_ref[dy:dy + H, dx:dx + W, :].reshape(H * W, Cin)
        part = jnp.dot(tap.astype(jnp.bfloat16),
                       w_ref[t * Cin:(t + 1) * Cin, :],
                       preferred_element_type=jnp.float32)
        acc = part if acc is None else acc + part
    return jnp.maximum(acc + b_ref[...], 0.0)


def _pool2x2(y, cbuf, hbuf, H, W, C):
    """2x2 max-pool of y=(H*W, C) f32 (rows (h, w) row-major) via leading-dim strided reads.

    Returns (H//2 * W//2, C) f32, rows in (hh, wh) row-major order.
    """
    Hh, Wh = H // 2, W // 2
    cbuf[...] = y.reshape(H, W, C)
    ph = jnp.maximum(cbuf[pl.ds(0, Hh, stride=2), :, :],     # even image rows
                     cbuf[pl.ds(1, Hh, stride=2), :, :])     # odd image rows
    hbuf[...] = ph.reshape(Hh * W, C)
    return jnp.maximum(hbuf[pl.ds(0, Hh * Wh, stride=2), :],  # even columns
                       hbuf[pl.ds(1, Hh * Wh, stride=2), :])  # odd columns


# ---------------------------------------------------------------------------
# Fused per-sample kernel (one grid step = one batch element)
# ---------------------------------------------------------------------------
def _cnn_kernel(patch1_ref, w1_ref, b1_ref, w2_ref, b2_ref, w3_ref, b3_ref,
                fw1_ref, fb1_ref, fw2_ref, fb2_ref, o_ref,
                xpad2, xpad3, cbuf1, cbuf2, cbuf3, hbuf1, hbuf2, hbuf3):
    f32 = jnp.float32
    bf16 = jnp.bfloat16

    # ---- layer 1: 32x32x3 -> 16x16x32 (im2col patch prepared in the wrapper) ----
    y1 = jnp.dot(patch1_ref[0], w1_ref[...], preferred_element_type=f32)   # (1024, 32)
    y1 = jnp.maximum(y1 + b1_ref[...], 0.0)
    p1 = _pool2x2(y1, cbuf1, hbuf1, 32, 32, 32)                            # (256, 32)

    _zero_halo(xpad2)
    xpad2[1:17, 1:17, :] = p1.reshape(16, 16, 32)

    # ---- layer 2: 16x16x32 -> 8x8x64 ----
    y2 = _conv3x3_taps(xpad2, w2_ref, b2_ref, 16, 16, 32, 64)              # (256, 64)
    p2 = _pool2x2(y2, cbuf2, hbuf2, 16, 16, 64)                            # (64, 64)

    _zero_halo(xpad3)
    xpad3[1:9, 1:9, :] = p2.reshape(8, 8, 64)

    # ---- layer 3: 8x8x64 -> 4x4x64 ----
    y3 = _conv3x3_taps(xpad3, w3_ref, b3_ref, 8, 8, 64, 64)                # (64, 64)
    p3 = _pool2x2(y3, cbuf3, hbuf3, 8, 8, 64)                              # (16, 64)

    # ---- fc1 + ReLU as 16 accumulating (1,64)@(64,64) dots (no flatten/store loop) ----
    p3b = p3.astype(bf16)
    h = None
    for s in range(16):
        part = jnp.dot(p3b[s:s + 1, :], fw1_ref[64 * s:64 * (s + 1), :],
                       preferred_element_type=f32)                          # (1, 64)
        h = part if h is None else h + part
    h = jnp.maximum(h + fb1_ref[...], 0.0)

    # ---- fc2 ----
    out = jnp.dot(h.astype(bf16), fw2_ref[...],
                  preferred_element_type=f32) + fb2_ref[...]                # (1, 10)
    o_ref[0] = out


# ---------------------------------------------------------------------------
# Wrappers: one-time weight re-layout + per-forward im2col + pallas_call
# ---------------------------------------------------------------------------
def prepare_params(params):
    """One-time re-layout of PyTorch-shaped parameters into kernel-ready (bf16) form."""
    bf16 = jnp.bfloat16

    def conv_w(w):  # (Cout, Cin, 3, 3) -> (9*Cin, Cout), row index = (3*dy+dx)*Cin + c
        cout, cin = w.shape[0], w.shape[1]
        return jnp.transpose(w, (2, 3, 1, 0)).reshape(9 * cin, cout)

    # conv1 weight: K padded 27 -> 32 to match the wrapper-side padded patch matrix.
    w1 = jnp.pad(conv_w(params["conv1_w"]), ((0, 5), (0, 0)))               # (32, 32)

    # fc1 consumes the NHWC flatten (h, w, c); PyTorch flattens NCHW (c, h, w).
    # Permute fc1's input rows once so no runtime activation transpose is needed.
    fw1 = jnp.transpose(params["fc1_w"].reshape(64, 64, 4, 4),
                        (2, 3, 1, 0)).reshape(1024, 64)

    return dict(
        w1=w1.astype(bf16), b1=params["conv1_b"].reshape(1, -1),
        w2=conv_w(params["conv2_w"]).astype(bf16), b2=params["conv2_b"].reshape(1, -1),
        w3=conv_w(params["conv3_w"]).astype(bf16), b3=params["conv3_b"].reshape(1, -1),
        fw1=fw1.astype(bf16), fb1=params["fc1_b"].reshape(1, -1),
        fw2=params["fc2_w"].T.astype(bf16), fb2=params["fc2_b"].reshape(1, -1),
    )


def _im2col_conv1(x_nchw):
    """Layer-1 im2col in XLA: NCHW (B,3,32,32) -> (B, 1024, 32) bf16 patch matrix."""
    B = x_nchw.shape[0]
    xp = jnp.pad(jnp.transpose(x_nchw, (0, 2, 3, 1)).astype(jnp.float32),
                 ((0, 0), (1, 1), (1, 1), (0, 0)))                          # (B,34,34,3)
    taps = [xp[:, dy:dy + 32, dx:dx + 32, :] for dy in range(3) for dx in range(3)]
    patch = jnp.concatenate(taps, axis=-1)                                  # (B,32,32,27)
    patch = jnp.pad(patch, ((0, 0), (0, 0), (0, 0), (0, 5)))                # K -> 32
    return patch.reshape(B, 32 * 32, 32).astype(jnp.bfloat16)


def _full_spec(shape):
    n = len(shape)
    return pl.BlockSpec(shape, lambda b, n=n: (0,) * n)


def simple_cnn_forward(x_nchw, kp):
    B = x_nchw.shape[0]
    f32 = jnp.float32
    patch1 = _im2col_conv1(x_nchw)                                          # (B,1024,32) bf16

    grid_spec = pltpu.PrefetchScalarGridSpec(
        num_scalar_prefetch=0,
        grid=(B,),
        in_specs=[
            pl.BlockSpec((1, 1024, 32), lambda b: (b, 0, 0)),  # per-sample conv1 patch
            _full_spec((32, 32)),   _full_spec((1, 32)),       # w1, b1
            _full_spec((288, 64)),  _full_spec((1, 64)),       # w2, b2
            _full_spec((576, 64)),  _full_spec((1, 64)),       # w3, b3
            _full_spec((1024, 64)), _full_spec((1, 64)),       # fw1, fb1
            _full_spec((64, 10)),   _full_spec((1, 10)),       # fw2, fb2
        ],
        out_specs=pl.BlockSpec((1, 1, 10), lambda b: (b, 0, 0)),
        scratch_shapes=[
            pltpu.VMEM((18, 18, 32), f32),   # xpad2 (padded layer-2 input)
            pltpu.VMEM((10, 10, 64), f32),   # xpad3 (padded layer-3 input)
            pltpu.VMEM((32, 32, 32), f32),   # cbuf1 (conv1 output)
            pltpu.VMEM((16, 16, 64), f32),   # cbuf2
            pltpu.VMEM((8, 8, 64), f32),     # cbuf3
            pltpu.VMEM((16 * 32, 32), f32),  # hbuf1 (H-pooled rows)
            pltpu.VMEM((8 * 16, 64), f32),   # hbuf2
            pltpu.VMEM((4 * 8, 64), f32),    # hbuf3
        ],
    )

    out = pl.pallas_call(
        _cnn_kernel,
        out_shape=jax.ShapeDtypeStruct((B, 1, 10), f32),
        grid_spec=grid_spec,
        compiler_params=pltpu.CompilerParams(
            dimension_semantics=("parallel",),
            vmem_limit_bytes=32 * 1024 * 1024),
    )(patch1, kp["w1"], kp["b1"], kp["w2"], kp["b2"], kp["w3"], kp["b3"],
      kp["fw1"], kp["fb1"], kp["fw2"], kp["fb2"])
    return out.reshape(B, 10)


# ---------------------------------------------------------------------------
# Pure-JAX f32 reference (correctness check)
# ---------------------------------------------------------------------------
def reference_forward(x, params):
    h = x
    for i in (1, 2, 3):
        w, b = params[f"conv{i}_w"], params[f"conv{i}_b"]
        h = jax.lax.conv_general_dilated(
            h, w, (1, 1), ((1, 1), (1, 1)),
            dimension_numbers=("NCHW", "OIHW", "NCHW"))
        h = jnp.maximum(h + b[None, :, None, None], 0.0)
        h = jax.lax.reduce_window(h, -jnp.inf, jax.lax.max,
                                  (1, 1, 2, 2), (1, 1, 2, 2), "VALID")
    h = h.reshape(h.shape[0], -1)
    h = jnp.maximum(h @ params["fc1_w"].T + params["fc1_b"], 0.0)
    return h @ params["fc2_w"].T + params["fc2_b"]


# ---------------------------------------------------------------------------
# Deterministic synthetic parameters (shapes from SimpleCNN.__init__)
# ---------------------------------------------------------------------------
def init_params(key):
    ks = jax.random.split(key, 10)

    def w_init(k, shape, fan_in):
        return (jax.random.normal(k, shape, jnp.float32) / np.sqrt(fan_in)).astype(jnp.float32)

    return {
        "conv1_w": w_init(ks[0], (32, 3, 3, 3), 3 * 9),
        "conv1_b": w_init(ks[1], (32,), 3 * 9),
        "conv2_w": w_init(ks[2], (64, 32, 3, 3), 32 * 9),
        "conv2_b": w_init(ks[3], (64,), 32 * 9),
        "conv3_w": w_init(ks[4], (64, 64, 3, 3), 64 * 9),
        "conv3_b": w_init(ks[5], (64,), 64 * 9),
        "fc1_w": w_init(ks[6], (64, 64 * 4 * 4), 64 * 4 * 4),
        "fc1_b": w_init(ks[7], (64,), 64 * 4 * 4),
        "fc2_w": w_init(ks[8], (10, 64), 64),
        "fc2_b": w_init(ks[9], (10,), 64),
    }


if __name__ == "__main__":
    key = jax.random.PRNGKey(0)
    k_x, k_p = jax.random.split(key)
    # Input implied by the module: 3 channels, 32x32 spatial (-> 64*4*4 after 3 pools).
    x = jax.random.normal(k_x, (2, 3, 32, 32), jnp.float32)
    params = init_params(k_p)

    kparams = prepare_params(params)          # one-time weight re-layout (not per-forward)
    fwd = jax.jit(simple_cnn_forward)
    out = jax.block_until_ready(fwd(x, kparams))
    assert out.shape == (2, 10)

    ref = jax.block_until_ready(reference_forward(x, params))
    # Tolerance reflects bf16 MXU operands (f32 accumulation) vs the pure-f32 reference.
    np.testing.assert_allclose(np.asarray(out), np.asarray(ref), rtol=5e-2, atol=5e-2)

    print("KERNEL_OK")
</pallas_src>

<mosaic_0001>
module attributes {stable_mosaic.version = 11 : i64} {
  func.func @_cnn_kernel(%arg0: i32, %arg1: memref<1x1024x32xbf16, #tpu.memory_space<vmem>>, %arg2: memref<32x32xbf16, #tpu.memory_space<vmem>>, %arg3: memref<1x32xf32, #tpu.memory_space<vmem>>, %arg4: memref<288x64xbf16, #tpu.memory_space<vmem>>, %arg5: memref<1x64xf32, #tpu.memory_space<vmem>>, %arg6: memref<576x64xbf16, #tpu.memory_space<vmem>>, %arg7: memref<1x64xf32, #tpu.memory_space<vmem>>, %arg8: memref<1024x64xbf16, #tpu.memory_space<vmem>>, %arg9: memref<1x64xf32, #tpu.memory_space<vmem>>, %arg10: memref<64x10xbf16, #tpu.memory_space<vmem>>, %arg11: memref<1x10xf32, #tpu.memory_space<vmem>>, %arg12: memref<1x1x10xf32, #tpu.memory_space<vmem>>, %arg13: memref<18x18x32xf32, #tpu.memory_space<vmem>>, %arg14: memref<10x10x64xf32, #tpu.memory_space<vmem>>, %arg15: memref<32x32x32xf32, #tpu.memory_space<vmem>>, %arg16: memref<16x16x64xf32, #tpu.memory_space<vmem>>, %arg17: memref<8x8x64xf32, #tpu.memory_space<vmem>>, %arg18: memref<512x32xf32, #tpu.memory_space<vmem>>, %arg19: memref<128x64xf32, #tpu.memory_space<vmem>>, %arg20: memref<32x64xf32, #tpu.memory_space<vmem>>) attributes {dimension_semantics = [#tpu.dimension_semantics<parallel>], iteration_bounds = array<i64: 2>, scalar_prefetch = 0 : i64, scratch_operands = 8 : i64, tpu.core_type = #tpu.core_type<tc>, window_params = [{transform_indices = @transform_0, window_bounds = array<i64: 1, 1024, 32>}, {pipeline_mode = #tpu.pipeline_mode<synchronous>, transform_indices = @transform_1, window_bounds = array<i64: 32, 32>}, {pipeline_mode = #tpu.pipeline_mode<synchronous>, transform_indices = @transform_2, window_bounds = array<i64: 1, 32>}, {pipeline_mode = #tpu.pipeline_mode<synchronous>, transform_indices = @transform_3, window_bounds = array<i64: 288, 64>}, {pipeline_mode = #tpu.pipeline_mode<synchronous>, transform_indices = @transform_4, window_bounds = array<i64: 1, 64>}, {pipeline_mode = #tpu.pipeline_mode<synchronous>, transform_indices = @transform_5, window_bounds = array<i64: 576, 64>}, {pipeline_mode = #tpu.pipeline_mode<synchronous>, transform_indices = @transform_6, window_bounds = array<i64: 1, 64>}, {pipeline_mode = #tpu.pipeline_mode<synchronous>, transform_indices = @transform_7, window_bounds = array<i64: 1024, 64>}, {pipeline_mode = #tpu.pipeline_mode<synchronous>, transform_indices = @transform_8, window_bounds = array<i64: 1, 64>}, {pipeline_mode = #tpu.pipeline_mode<synchronous>, transform_indices = @transform_9, window_bounds = array<i64: 64, 10>}, {pipeline_mode = #tpu.pipeline_mode<synchronous>, transform_indices = @transform_10, window_bounds = array<i64: 1, 10>}, {transform_indices = @transform_11, window_bounds = array<i64: 1, 1, 10>}]} {
    %c0 = arith.constant 0 : index
    %c0_0 = arith.constant 0 : index
    %c0_1 = arith.constant 0 : index
    %0 = vector.load %arg1[%c0, %c0_0, %c0_1] : memref<1x1024x32xbf16, #tpu.memory_space<vmem>>, vector<1x1024x32xbf16>
    %1 = vector.shape_cast %0 : vector<1x1024x32xbf16> to vector<1024x32xbf16>
    %c0_2 = arith.constant 0 : index
    %c0_3 = arith.constant 0 : index
    %2 = vector.load %arg2[%c0_2, %c0_3] : memref<32x32xbf16, #tpu.memory_space<vmem>>, vector<32x32xbf16>
    %cst = arith.constant dense<0.000000e+00> : vector<1024x32xf32>
    %3 = tpu.matmul %1, %2, %cst {dimension_numbers = #tpu.dot_dimension_numbers<[1], [0], [0], [1], [0, 0, 1, 1], [], []>} : vector<1024x32xbf16>, vector<32x32xbf16>, vector<1024x32xf32> -> vector<1024x32xf32>
    %c0_4 = arith.constant 0 : index
    %c0_5 = arith.constant 0 : index
    %4 = vector.load %arg3[%c0_4, %c0_5] : memref<1x32xf32, #tpu.memory_space<vmem>>, vector<1x32xf32>
    %5 = vector.broadcast %4 : vector<1x32xf32> to vector<1024x32xf32>
    %6 = arith.addf %3, %5 : vector<1024x32xf32>
    %cst_6 = arith.constant 0.000000e+00 : f32
    %7 = vector.broadcast %cst_6 : f32 to vector<1024x32xf32>
    %8 = arith.maximumf %6, %7 : vector<1024x32xf32>
    %9 = vector.shape_cast %8 : vector<1024x32xf32> to vector<32x32x32xf32>
    %c0_7 = arith.constant 0 : index
    %c0_8 = arith.constant 0 : index
    %c0_9 = arith.constant 0 : index
    %10 = vector.load %arg15[%c0_7, %c0_8, %c0_9] : memref<32x32x32xf32, #tpu.memory_space<vmem>>, vector<32x32x32xf32>
    tpu.vector_store %arg15[%c0_7, %c0_8, %c0_9], %9 {strides = array<i32>} : memref<32x32x32xf32, #tpu.memory_space<vmem>>, vector<32x32x32xf32>,
    %c0_10 = arith.constant 0 : index
    %c0_11 = arith.constant 0 : index
    %c0_12 = arith.constant 0 : index
    %11 = tpu.strided_load %arg15[%c0_10, %c0_11, %c0_12] {strides = array<i32: 2, 1, 1>} : memref<32x32x32xf32, #tpu.memory_space<vmem>>, vector<16x32x32xf32>
    %c1 = arith.constant 1 : index
    %c0_13 = arith.constant 0 : index
    %c0_14 = arith.constant 0 : index
    %12 = tpu.strided_load %arg15[%c1, %c0_13, %c0_14] {strides = array<i32: 2, 1, 1>} : memref<32x32x32xf32, #tpu.memory_space<vmem>>, vector<16x32x32xf32>
    %13 = arith.maximumf %11, %12 : vector<16x32x32xf32>
    %14 = vector.shape_cast %13 : vector<16x32x32xf32> to vector<512x32xf32>
    %c0_15 = arith.constant 0 : index
    %c0_16 = arith.constant 0 : index
    %15 = vector.load %arg18[%c0_15, %c0_16] : memref<512x32xf32, #tpu.memory_space<vmem>>, vector<512x32xf32>
    tpu.vector_store %arg18[%c0_15, %c0_16], %14 {strides = array<i32>} : memref<512x32xf32, #tpu.memory_space<vmem>>, vector<512x32xf32>,
    %c0_17 = arith.constant 0 : index
    %c0_18 = arith.constant 0 : index
    %16 = tpu.strided_load %arg18[%c0_17, %c0_18] {strides = array<i32: 2, 1>} : memref<512x32xf32, #tpu.memory_space<vmem>>, vector<256x32xf32>
    %c1_19 = arith.constant 1 : index
    %c0_20 = arith.constant 0 : index
    %17 = tpu.strided_load %arg18[%c1_19, %c0_20] {strides = array<i32: 2, 1>} : memref<512x32xf32, #tpu.memory_space<vmem>>, vector<256x32xf32>
    %18 = arith.maximumf %16, %17 : vector<256x32xf32>
    %cst_21 = arith.constant 0.000000e+00 : f32
    %19 = vector.broadcast %cst_21 : f32 to vector<1x18x32xf32>
    %c0_22 = arith.constant 0 : index
    %c0_23 = arith.constant 0 : index
    %c0_24 = arith.constant 0 : index
    %20 = vector.load %arg13[%c0_22, %c0_23, %c0_24] : memref<18x18x32xf32, #tpu.memory_space<vmem>>, vector<1x18x32xf32>
    tpu.vector_store %arg13[%c0_22, %c0_23, %c0_24], %19 {strides = array<i32>} : memref<18x18x32xf32, #tpu.memory_space<vmem>>, vector<1x18x32xf32>,
    %cst_25 = arith.constant 0.000000e+00 : f32
    %21 = vector.broadcast %cst_25 : f32 to vector<1x18x32xf32>
    %c17 = arith.constant 17 : index
    %c0_26 = arith.constant 0 : index
    %c0_27 = arith.constant 0 : index
    %22 = vector.load %arg13[%c17, %c0_26, %c0_27] : memref<18x18x32xf32, #tpu.memory_space<vmem>>, vector<1x18x32xf32>
    tpu.vector_store %arg13[%c17, %c0_26, %c0_27], %21 {strides = array<i32>} : memref<18x18x32xf32, #tpu.memory_space<vmem>>, vector<1x18x32xf32>,
    %cst_28 = arith.constant 0.000000e+00 : f32
    %23 = vector.broadcast %cst_28 : f32 to vector<18x1x32xf32>
    %c0_29 = arith.constant 0 : index
    %c0_30 = arith.constant 0 : index
    %c0_31 = arith.constant 0 : index
    %24 = vector.load %arg13[%c0_29, %c0_30, %c0_31] : memref<18x18x32xf32, #tpu.memory_space<vmem>>, vector<18x1x32xf32>
    tpu.vector_store %arg13[%c0_29, %c0_30, %c0_31], %23 {strides = array<i32>} : memref<18x18x32xf32, #tpu.memory_space<vmem>>, vector<18x1x32xf32>,
    %cst_32 = arith.constant 0.000000e+00 : f32
    %25 = vector.broadcast %cst_32 : f32 to vector<18x1x32xf32>
    %c0_33 = arith.constant 0 : index
    %c17_34 = arith.constant 17 : index
    %c0_35 = arith.constant 0 : index
    %26 = vector.load %arg13[%c0_33, %c17_34, %c0_35] : memref<18x18x32xf32, #tpu.memory_space<vmem>>, vector<18x1x32xf32>
    tpu.vector_store %arg13[%c0_33, %c17_34, %c0_35], %25 {strides = array<i32>} : memref<18x18x32xf32, #tpu.memory_space<vmem>>, vector<18x1x32xf32>,
    %27 = vector.shape_cast %18 : vector<256x32xf32> to vector<16x16x32xf32>
    %c1_36 = arith.constant 1 : index
    %c1_37 = arith.constant 1 : index
    %c0_38 = arith.constant 0 : index
    %28 = vector.load %arg13[%c1_36, %c1_37, %c0_38] : memref<18x18x32xf32, #tpu.memory_space<vmem>>, vector<16x16x32xf32>
    tpu.vector_store %arg13[%c1_36, %c1_37, %c0_38], %27 {strides = array<i32>} : memref<18x18x32xf32, #tpu.memory_space<vmem>>, vector<16x16x32xf32>,
    %c0_39 = arith.constant 0 : index
    %c0_40 = arith.constant 0 : index
    %c0_41 = arith.constant 0 : index
    %29 = vector.load %arg13[%c0_39, %c0_40, %c0_41] : memref<18x18x32xf32, #tpu.memory_space<vmem>>, vector<16x16x32xf32>
    %30 = vector.shape_cast %29 : vector<16x16x32xf32> to vector<256x32xf32>
    %31 = arith.truncf %30 : vector<256x32xf32> to vector<256x32xbf16>
    %c0_42 = arith.constant 0 : index
    %c0_43 = arith.constant 0 : index
    %32 = vector.load %arg4[%c0_42, %c0_43] : memref<288x64xbf16, #tpu.memory_space<vmem>>, vector<32x64xbf16>
    %cst_44 = arith.constant dense<0.000000e+00> : vector<256x64xf32>
    %33 = tpu.matmul %31, %32, %cst_44 {dimension_numbers = #tpu.dot_dimension_numbers<[1], [0], [0], [1], [0, 0, 1, 1], [], []>} : vector<256x32xbf16>, vector<32x64xbf16>, vector<256x64xf32> -> vector<256x64xf32>
    %c0_45 = arith.constant 0 : index
    %c1_46 = arith.constant 1 : index
    %c0_47 = arith.constant 0 : index
    %34 = vector.load %arg13[%c0_45, %c1_46, %c0_47] : memref<18x18x32xf32, #tpu.memory_space<vmem>>, vector<16x16x32xf32>
    %35 = vector.shape_cast %34 : vector<16x16x32xf32> to vector<256x32xf32>
    %36 = arith.truncf %35 : vector<256x32xf32> to vector<256x32xbf16>
    %c32 = arith.constant 32 : index
    %c0_48 = arith.constant 0 : index
    %37 = vector.load %arg4[%c32, %c0_48] : memref<288x64xbf16, #tpu.memory_space<vmem>>, vector<32x64xbf16>
    %cst_49 = arith.constant dense<0.000000e+00> : vector<256x64xf32>
    %38 = tpu.matmul %36, %37, %cst_49 {dimension_numbers = #tpu.dot_dimension_numbers<[1], [0], [0], [1], [0, 0, 1, 1], [], []>} : vector<256x32xbf16>, vector<32x64xbf16>, vector<256x64xf32> -> vector<256x64xf32>
    %39 = arith.addf %33, %38 : vector<256x64xf32>
    %c0_50 = arith.constant 0 : index
    %c2 = arith.constant 2 : index
    %c0_51 = arith.constant 0 : index
    %40 = vector.load %arg13[%c0_50, %c2, %c0_51] : memref<18x18x32xf32, #tpu.memory_space<vmem>>, vector<16x16x32xf32>
    %41 = vector.shape_cast %40 : vector<16x16x32xf32> to vector<256x32xf32>
    %42 = arith.truncf %41 : vector<256x32xf32> to vector<256x32xbf16>
    %c64 = arith.constant 64 : index
    %c0_52 = arith.constant 0 : index
    %43 = vector.load %arg4[%c64, %c0_52] : memref<288x64xbf16, #tpu.memory_space<vmem>>, vector<32x64xbf16>
    %cst_53 = arith.constant dense<0.000000e+00> : vector<256x64xf32>
    %44 = tpu.matmul %42, %43, %cst_53 {dimension_numbers = #tpu.dot_dimension_numbers<[1], [0], [0], [1], [0, 0, 1, 1], [], []>} : vector<256x32xbf16>, vector<32x64xbf16>, vector<256x64xf32> -> vector<256x64xf32>
    %45 = arith.addf %39, %44 : vector<256x64xf32>
    %c1_54 = arith.constant 1 : index
    %c0_55 = arith.constant 0 : index
    %c0_56 = arith.constant 0 : index
    %46 = vector.load %arg13[%c1_54, %c0_55, %c0_56] : memref<18x18x32xf32, #tpu.memory_space<vmem>>, vector<16x16x32xf32>
    %47 = vector.shape_cast %46 : vector<16x16x32xf32> to vector<256x32xf32>
    %48 = arith.truncf %47 : vector<256x32xf32> to vector<256x32xbf16>
    %c96 = arith.constant 96 : index
    %c0_57 = arith.constant 0 : index
    %49 = vector.load %arg4[%c96, %c0_57] : memref<288x64xbf16, #tpu.memory_space<vmem>>, vector<32x64xbf16>
    %cst_58 = arith.constant dense<0.000000e+00> : vector<256x64xf32>
    %50 = tpu.matmul %48, %49, %cst_58 {dimension_numbers = #tpu.dot_dimension_numbers<[1], [0], [0], [1], [0, 0, 1, 1], [], []>} : vector<256x32xbf16>, vector<32x64xbf16>, vector<256x64xf32> -> vector<256x64xf32>
    %51 = arith.addf %45, %50 : vector<256x64xf32>
    %c1_59 = arith.constant 1 : index
    %c1_60 = arith.constant 1 : index
    %c0_61 = arith.constant 0 : index
    %52 = vector.load %arg13[%c1_59, %c1_60, %c0_61] : memref<18x18x32xf32, #tpu.memory_space<vmem>>, vector<16x16x32xf32>
    %53 = vector.shape_cast %52 : vector<16x16x32xf32> to vector<256x32xf32>
    %54 = arith.truncf %53 : vector<256x32xf32> to vector<256x32xbf16>
    %c128 = arith.constant 128 : index
    %c0_62 = arith.constant 0 : index
    %55 = vector.load %arg4[%c128, %c0_62] : memref<288x64xbf16, #tpu.memory_space<vmem>>, vector<32x64xbf16>
    %cst_63 = arith.constant dense<0.000000e+00> : vector<256x64xf32>
    %56 = tpu.matmul %54, %55, %cst_63 {dimension_numbers = #tpu.dot_dimension_numbers<[1], [0], [0], [1], [0, 0, 1, 1], [], []>} : vector<256x32xbf16>, vector<32x64xbf16>, vector<256x64xf32> -> vector<256x64xf32>
    %57 = arith.addf %51, %56 : vector<256x64xf32>
    %c1_64 = arith.constant 1 : index
    %c2_65 = arith.constant 2 : index
    %c0_66 = arith.constant 0 : index
    %58 = vector.load %arg13[%c1_64, %c2_65, %c0_66] : memref<18x18x32xf32, #tpu.memory_space<vmem>>, vector<16x16x32xf32>
    %59 = vector.shape_cast %58 : vector<16x16x32xf32> to vector<256x32xf32>
    %60 = arith.truncf %59 : vector<256x32xf32> to vector<256x32xbf16>
    %c160 = arith.constant 160 : index
    %c0_67 = arith.constant 0 : index
    %61 = vector.load %arg4[%c160, %c0_67] : memref<288x64xbf16, #tpu.memory_space<vmem>>, vector<32x64xbf16>
    %cst_68 = arith.constant dense<0.000000e+00> : vector<256x64xf32>
    %62 = tpu.matmul %60, %61, %cst_68 {dimension_numbers = #tpu.dot_dimension_numbers<[1], [0], [0], [1], [0, 0, 1, 1], [], []>} : vector<256x32xbf16>, vector<32x64xbf16>, vector<256x64xf32> -> vector<256x64xf32>
    %63 = arith.addf %57, %62 : vector<256x64xf32>
    %c2_69 = arith.constant 2 : index
    %c0_70 = arith.constant 0 : index
    %c0_71 = arith.constant 0 : index
    %64 = vector.load %arg13[%c2_69, %c0_70, %c0_71] : memref<18x18x32xf32, #tpu.memory_space<vmem>>, vector<16x16x32xf32>
    %65 = vector.shape_cast %64 : vector<16x16x32xf32> to vector<256x32xf32>
    %66 = arith.truncf %65 : vector<256x32xf32> to vector<256x32xbf16>
    %c192 = arith.constant 192 : index
    %c0_72 = arith.constant 0 : index
    %67 = vector.load %arg4[%c192, %c0_72] : memref<288x64xbf16, #tpu.memory_space<vmem>>, vector<32x64xbf16>
    %cst_73 = arith.constant dense<0.000000e+00> : vector<256x64xf32>
    %68 = tpu.matmul %66, %67, %cst_73 {dimension_numbers = #tpu.dot_dimension_numbers<[1], [0], [0], [1], [0, 0, 1, 1], [], []>} : vector<256x32xbf16>, vector<32x64xbf16>, vector<256x64xf32> -> vector<256x64xf32>
    %69 = arith.addf %63, %68 : vector<256x64xf32>
    %c2_74 = arith.constant 2 : index
    %c1_75 = arith.constant 1 : index
    %c0_76 = arith.constant 0 : index
    %70 = vector.load %arg13[%c2_74, %c1_75, %c0_76] : memref<18x18x32xf32, #tpu.memory_space<vmem>>, vector<16x16x32xf32>
    %71 = vector.shape_cast %70 : vector<16x16x32xf32> to vector<256x32xf32>
    %72 = arith.truncf %71 : vector<256x32xf32> to vector<256x32xbf16>
    %c224 = arith.constant 224 : index
    %c0_77 = arith.constant 0 : index
    %73 = vector.load %arg4[%c224, %c0_77] : memref<288x64xbf16, #tpu.memory_space<vmem>>, vector<32x64xbf16>
    %cst_78 = arith.constant dense<0.000000e+00> : vector<256x64xf32>
    %74 = tpu.matmul %72, %73, %cst_78 {dimension_numbers = #tpu.dot_dimension_numbers<[1], [0], [0], [1], [0, 0, 1, 1], [], []>} : vector<256x32xbf16>, vector<32x64xbf16>, vector<256x64xf32> -> vector<256x64xf32>
    %75 = arith.addf %69, %74 : vector<256x64xf32>
    %c2_79 = arith.constant 2 : index
    %c2_80 = arith.constant 2 : index
    %c0_81 = arith.constant 0 : index
    %76 = vector.load %arg13[%c2_79, %c2_80, %c0_81] : memref<18x18x32xf32, #tpu.memory_space<vmem>>, vector<16x16x32xf32>
    %77 = vector.shape_cast %76 : vector<16x16x32xf32> to vector<256x32xf32>
    %78 = arith.truncf %77 : vector<256x32xf32> to vector<256x32xbf16>
    %c256 = arith.constant 256 : index
    %c0_82 = arith.constant 0 : index
    %79 = vector.load %arg4[%c256, %c0_82] : memref<288x64xbf16, #tpu.memory_space<vmem>>, vector<32x64xbf16>
    %cst_83 = arith.constant dense<0.000000e+00> : vector<256x64xf32>
    %80 = tpu.matmul %78, %79, %cst_83 {dimension_numbers = #tpu.dot_dimension_numbers<[1], [0], [0], [1], [0, 0, 1, 1], [], []>} : vector<256x32xbf16>, vector<32x64xbf16>, vector<256x64xf32> -> vector<256x64xf32>
    %81 = arith.addf %75, %80 : vector<256x64xf32>
    %c0_84 = arith.constant 0 : index
    %c0_85 = arith.constant 0 : index
    %82 = vector.load %arg5[%c0_84, %c0_85] : memref<1x64xf32, #tpu.memory_space<vmem>>, vector<1x64xf32>
    %83 = vector.broadcast %82 : vector<1x64xf32> to vector<256x64xf32>
    %84 = arith.addf %81, %83 : vector<256x64xf32>
    %cst_86 = arith.constant 0.000000e+00 : f32
    %85 = vector.broadcast %cst_86 : f32 to vector<256x64xf32>
    %86 = arith.maximumf %84, %85 : vector<256x64xf32>
    %87 = vector.shape_cast %86 : vector<256x64xf32> to vector<16x16x64xf32>
    %c0_87 = arith.constant 0 : index
    %c0_88 = arith.constant 0 : index
    %c0_89 = arith.constant 0 : index
    %88 = vector.load %arg16[%c0_87, %c0_88, %c0_89] : memref<16x16x64xf32, #tpu.memory_space<vmem>>, vector<16x16x64xf32>
    tpu.vector_store %arg16[%c0_87, %c0_88, %c0_89], %87 {strides = array<i32>} : memref<16x16x64xf32, #tpu.memory_space<vmem>>, vector<16x16x64xf32>,
    %c0_90 = arith.constant 0 : index
    %c0_91 = arith.constant 0 : index
    %c0_92 = arith.constant 0 : index
    %89 = tpu.strided_load %arg16[%c0_90, %c0_91, %c0_92] {strides = array<i32: 2, 1, 1>} : memref<16x16x64xf32, #tpu.memory_space<vmem>>, vector<8x16x64xf32>
    %c1_93 = arith.constant 1 : index
    %c0_94 = arith.constant 0 : index
    %c0_95 = arith.constant 0 : index
    %90 = tpu.strided_load %arg16[%c1_93, %c0_94, %c0_95] {strides = array<i32: 2, 1, 1>} : memref<16x16x64xf32, #tpu.memory_space<vmem>>, vector<8x16x64xf32>
    %91 = arith.maximumf %89, %90 : vector<8x16x64xf32>
    %92 = vector.shape_cast %91 : vector<8x16x64xf32> to vector<128x64xf32>
    %c0_96 = arith.constant 0 : index
    %c0_97 = arith.constant 0 : index
    %93 = vector.load %arg19[%c0_96, %c0_97] : memref<128x64xf32, #tpu.memory_space<vmem>>, vector<128x64xf32>
    tpu.vector_store %arg19[%c0_96, %c0_97], %92 {strides = array<i32>} : memref<128x64xf32, #tpu.memory_space<vmem>>, vector<128x64xf32>,
    %c0_98 = arith.constant 0 : index
    %c0_99 = arith.constant 0 : index
    %94 = tpu.strided_load %arg19[%c0_98, %c0_99] {strides = array<i32: 2, 1>} : memref<128x64xf32, #tpu.memory_space<vmem>>, vector<64x64xf32>
    %c1_100 = arith.constant 1 : index
    %c0_101 = arith.constant 0 : index
    %95 = tpu.strided_load %arg19[%c1_100, %c0_101] {strides = array<i32: 2, 1>} : memref<128x64xf32, #tpu.memory_space<vmem>>, vector<64x64xf32>
    %96 = arith.maximumf %94, %95 : vector<64x64xf32>
    %cst_102 = arith.constant 0.000000e+00 : f32
    %97 = vector.broadcast %cst_102 : f32 to vector<1x10x64xf32>
    %c0_103 = arith.constant 0 : index
    %c0_104 = arith.constant 0 : index
    %c0_105 = arith.constant 0 : index
    %98 = vector.load %arg14[%c0_103, %c0_104, %c0_105] : memref<10x10x64xf32, #tpu.memory_space<vmem>>, vector<1x10x64xf32>
    tpu.vector_store %arg14[%c0_103, %c0_104, %c0_105], %97 {strides = array<i32>} : memref<10x10x64xf32, #tpu.memory_space<vmem>>, vector<1x10x64xf32>,
    %cst_106 = arith.constant 0.000000e+00 : f32
    %99 = vector.broadcast %cst_106 : f32 to vector<1x10x64xf32>
    %c9 = arith.constant 9 : index
    %c0_107 = arith.constant 0 : index
    %c0_108 = arith.constant 0 : index
    %100 = vector.load %arg14[%c9, %c0_107, %c0_108] : memref<10x10x64xf32, #tpu.memory_space<vmem>>, vector<1x10x64xf32>
    tpu.vector_store %arg14[%c9, %c0_107, %c0_108], %99 {strides = array<i32>} : memref<10x10x64xf32, #tpu.memory_space<vmem>>, vector<1x10x64xf32>,
    %cst_109 = arith.constant 0.000000e+00 : f32
    %101 = vector.broadcast %cst_109 : f32 to vector<10x1x64xf32>
    %c0_110 = arith.constant 0 : index
    %c0_111 = arith.constant 0 : index
    %c0_112 = arith.constant 0 : index
    %102 = vector.load %arg14[%c0_110, %c0_111, %c0_112] : memref<10x10x64xf32, #tpu.memory_space<vmem>>, vector<10x1x64xf32>
    tpu.vector_store %arg14[%c0_110, %c0_111, %c0_112], %101 {strides = array<i32>} : memref<10x10x64xf32, #tpu.memory_space<vmem>>, vector<10x1x64xf32>,
    %cst_113 = arith.constant 0.000000e+00 : f32
    %103 = vector.broadcast %cst_113 : f32 to vector<10x1x64xf32>
    %c0_114 = arith.constant 0 : index
    %c9_115 = arith.constant 9 : index
    %c0_116 = arith.constant 0 : index
    %104 = vector.load %arg14[%c0_114, %c9_115, %c0_116] : memref<10x10x64xf32, #tpu.memory_space<vmem>>, vector<10x1x64xf32>
    tpu.vector_store %arg14[%c0_114, %c9_115, %c0_116], %103 {strides = array<i32>} : memref<10x10x64xf32, #tpu.memory_space<vmem>>, vector<10x1x64xf32>,
    %105 = vector.shape_cast %96 : vector<64x64xf32> to vector<8x8x64xf32>
    %c1_117 = arith.constant 1 : index
    %c1_118 = arith.constant 1 : index
    %c0_119 = arith.constant 0 : index
    %106 = vector.load %arg14[%c1_117, %c1_118, %c0_119] : memref<10x10x64xf32, #tpu.memory_space<vmem>>, vector<8x8x64xf32>
    tpu.vector_store %arg14[%c1_117, %c1_118, %c0_119], %105 {strides = array<i32>} : memref<10x10x64xf32, #tpu.memory_space<vmem>>, vector<8x8x64xf32>,
    %c0_120 = arith.constant 0 : index
    %c0_121 = arith.constant 0 : index
    %c0_122 = arith.constant 0 : index
    %107 = vector.load %arg14[%c0_120, %c0_121, %c0_122] : memref<10x10x64xf32, #tpu.memory_space<vmem>>, vector<8x8x64xf32>
    %108 = vector.shape_cast %107 : vector<8x8x64xf32> to vector<64x64xf32>
    %109 = arith.truncf %108 : vector<64x64xf32> to vector<64x64xbf16>
    %c0_123 = arith.constant 0 : index
    %c0_124 = arith.constant 0 : index
    %110 = vector.load %arg6[%c0_123, %c0_124] : memref<576x64xbf16, #tpu.memory_space<vmem>>, vector<64x64xbf16>
    %cst_125 = arith.constant dense<0.000000e+00> : vector<64x64xf32>
    %111 = tpu.matmul %109, %110, %cst_125 {dimension_numbers = #tpu.dot_dimension_numbers<[1], [0], [0], [1], [0, 0, 1, 1], [], []>} : vector<64x64xbf16>, vector<64x64xbf16>, vector<64x64xf32> -> vector<64x64xf32>
    %c0_126 = arith.constant 0 : index
    %c1_127 = arith.constant 1 : index
    %c0_128 = arith.constant 0 : index
    %112 = vector.load %arg14[%c0_126, %c1_127, %c0_128] : memref<10x10x64xf32, #tpu.memory_space<vmem>>, vector<8x8x64xf32>
    %113 = vector.shape_cast %112 : vector<8x8x64xf32> to vector<64x64xf32>
    %114 = arith.truncf %113 : vector<64x64xf32> to vector<64x64xbf16>
    %c64_129 = arith.constant 64 : index
    %c0_130 = arith.constant 0 : index
    %115 = vector.load %arg6[%c64_129, %c0_130] : memref<576x64xbf16, #tpu.memory_space<vmem>>, vector<64x64xbf16>
    %cst_131 = arith.constant dense<0.000000e+00> : vector<64x64xf32>
    %116 = tpu.matmul %114, %115, %cst_131 {dimension_numbers = #tpu.dot_dimension_numbers<[1], [0], [0], [1], [0, 0, 1, 1], [], []>} : vector<64x64xbf16>, vector<64x64xbf16>, vector<64x64xf32> -> vector<64x64xf32>
    %117 = arith.addf %111, %116 : vector<64x64xf32>
    %c0_132 = arith.constant 0 : index
    %c2_133 = arith.constant 2 : index
    %c0_134 = arith.constant 0 : index
    %118 = vector.load %arg14[%c0_132, %c2_133, %c0_134] : memref<10x10x64xf32, #tpu.memory_space<vmem>>, vector<8x8x64xf32>
    %119 = vector.shape_cast %118 : vector<8x8x64xf32> to vector<64x64xf32>
    %120 = arith.truncf %119 : vector<64x64xf32> to vector<64x64xbf16>
    %c128_135 = arith.constant 128 : index
    %c0_136 = arith.constant 0 : index
    %121 = vector.load %arg6[%c128_135, %c0_136] : memref<576x64xbf16, #tpu.memory_space<vmem>>, vector<64x64xbf16>
    %cst_137 = arith.constant dense<0.000000e+00> : vector<64x64xf32>
    %122 = tpu.matmul %120, %121, %cst_137 {dimension_numbers = #tpu.dot_dimension_numbers<[1], [0], [0], [1], [0, 0, 1, 1], [], []>} : vector<64x64xbf16>, vector<64x64xbf16>, vector<64x64xf32> -> vector<64x64xf32>
    %123 = arith.addf %117, %122 : vector<64x64xf32>
    %c1_138 = arith.constant 1 : index
    %c0_139 = arith.constant 0 : index
    %c0_140 = arith.constant 0 : index
    %124 = vector.load %arg14[%c1_138, %c0_139, %c0_140] : memref<10x10x64xf32, #tpu.memory_space<vmem>>, vector<8x8x64xf32>
    %125 = vector.shape_cast %124 : vector<8x8x64xf32> to vector<64x64xf32>
    %126 = arith.truncf %125 : vector<64x64xf32> to vector<64x64xbf16>
    %c192_141 = arith.constant 192 : index
    %c0_142 = arith.constant 0 : index
    %127 = vector.load %arg6[%c192_141, %c0_142] : memref<576x64xbf16, #tpu.memory_space<vmem>>, vector<64x64xbf16>
    %cst_143 = arith.constant dense<0.000000e+00> : vector<64x64xf32>
    %128 = tpu.matmul %126, %127, %cst_143 {dimension_numbers = #tpu.dot_dimension_numbers<[1], [0], [0], [1], [0, 0, 1, 1], [], []>} : vector<64x64xbf16>, vector<64x64xbf16>, vector<64x64xf32> -> vector<64x64xf32>
    %129 = arith.addf %123, %128 : vector<64x64xf32>
    %c1_144 = arith.constant 1 : index
    %c1_145 = arith.constant 1 : index
    %c0_146 = arith.constant 0 : index
    %130 = vector.load %arg14[%c1_144, %c1_145, %c0_146] : memref<10x10x64xf32, #tpu.memory_space<vmem>>, vector<8x8x64xf32>
    %131 = vector.shape_cast %130 : vector<8x8x64xf32> to vector<64x64xf32>
    %132 = arith.truncf %131 : vector<64x64xf32> to vector<64x64xbf16>
    %c256_147 = arith.constant 256 : index
    %c0_148 = arith.constant 0 : index
    %133 = vector.load %arg6[%c256_147, %c0_148] : memref<576x64xbf16, #tpu.memory_space<vmem>>, vector<64x64xbf16>
    %cst_149 = arith.constant dense<0.000000e+00> : vector<64x64xf32>
    %134 = tpu.matmul %132, %133, %cst_149 {dimension_numbers = #tpu.dot_dimension_numbers<[1], [0], [0], [1], [0, 0, 1, 1], [], []>} : vector<64x64xbf16>, vector<64x64xbf16>, vector<64x64xf32> -> vector<64x64xf32>
    %135 = arith.addf %129, %134 : vector<64x64xf32>
    %c1_150 = arith.constant 1 : index
    %c2_151 = arith.constant 2 : index
    %c0_152 = arith.constant 0 : index
    %136 = vector.load %arg14[%c1_150, %c2_151, %c0_152] : memref<10x10x64xf32, #tpu.memory_space<vmem>>, vector<8x8x64xf32>
    %137 = vector.shape_cast %136 : vector<8x8x64xf32> to vector<64x64xf32>
    %138 = arith.truncf %137 : vector<64x64xf32> to vector<64x64xbf16>
    %c320 = arith.constant 320 : index
    %c0_153 = arith.constant 0 : index
    %139 = vector.load %arg6[%c320, %c0_153] : memref<576x64xbf16, #tpu.memory_space<vmem>>, vector<64x64xbf16>
    %cst_154 = arith.constant dense<0.000000e+00> : vector<64x64xf32>
    %140 = tpu.matmul %138, %139, %cst_154 {dimension_numbers = #tpu.dot_dimension_numbers<[1], [0], [0], [1], [0, 0, 1, 1], [], []>} : vector<64x64xbf16>, vector<64x64xbf16>, vector<64x64xf32> -> vector<64x64xf32>
    %141 = arith.addf %135, %140 : vector<64x64xf32>
    %c2_155 = arith.constant 2 : index
    %c0_156 = arith.constant 0 : index
    %c0_157 = arith.constant 0 : index
    %142 = vector.load %arg14[%c2_155, %c0_156, %c0_157] : memref<10x10x64xf32, #tpu.memory_space<vmem>>, vector<8x8x64xf32>
    %143 = vector.shape_cast %142 : vector<8x8x64xf32> to vector<64x64xf32>
    %144 = arith.truncf %143 : vector<64x64xf32> to vector<64x64xbf16>
    %c384 = arith.constant 384 : index
    %c0_158 = arith.constant 0 : index
    %145 = vector.load %arg6[%c384, %c0_158] : memref<576x64xbf16, #tpu.memory_space<vmem>>, vector<64x64xbf16>
    %cst_159 = arith.constant dense<0.000000e+00> : vector<64x64xf32>
    %146 = tpu.matmul %144, %145, %cst_159 {dimension_numbers = #tpu.dot_dimension_numbers<[1], [0], [0], [1], [0, 0, 1, 1], [], []>} : vector<64x64xbf16>, vector<64x64xbf16>, vector<64x64xf32> -> vector<64x64xf32>
    %147 = arith.addf %141, %146 : vector<64x64xf32>
    %c2_160 = arith.constant 2 : index
    %c1_161 = arith.constant 1 : index
    %c0_162 = arith.constant 0 : index
    %148 = vector.load %arg14[%c2_160, %c1_161, %c0_162] : memref<10x10x64xf32, #tpu.memory_space<vmem>>, vector<8x8x64xf32>
    %149 = vector.shape_cast %148 : vector<8x8x64xf32> to vector<64x64xf32>
    %150 = arith.truncf %149 : vector<64x64xf32> to vector<64x64xbf16>
    %c448 = arith.constant 448 : index
    %c0_163 = arith.constant 0 : index
    %151 = vector.load %arg6[%c448, %c0_163] : memref<576x64xbf16, #tpu.memory_space<vmem>>, vector<64x64xbf16>
    %cst_164 = arith.constant dense<0.000000e+00> : vector<64x64xf32>
    %152 = tpu.matmul %150, %151, %cst_164 {dimension_numbers = #tpu.dot_dimension_numbers<[1], [0], [0], [1], [0, 0, 1, 1], [], []>} : vector<64x64xbf16>, vector<64x64xbf16>, vector<64x64xf32> -> vector<64x64xf32>
    %153 = arith.addf %147, %152 : vector<64x64xf32>
    %c2_165 = arith.constant 2 : index
    %c2_166 = arith.constant 2 : index
    %c0_167 = arith.constant 0 : index
    %154 = vector.load %arg14[%c2_165, %c2_166, %c0_167] : memref<10x10x64xf32, #tpu.memory_space<vmem>>, vector<8x8x64xf32>
    %155 = vector.shape_cast %154 : vector<8x8x64xf32> to vector<64x64xf32>
    %156 = arith.truncf %155 : vector<64x64xf32> to vector<64x64xbf16>
    %c512 = arith.constant 512 : index
    %c0_168 = arith.constant 0 : index
    %157 = vector.load %arg6[%c512, %c0_168] : memref<576x64xbf16, #tpu.memory_space<vmem>>, vector<64x64xbf16>
    %cst_169 = arith.constant dense<0.000000e+00> : vector<64x64xf32>
    %158 = tpu.matmul %156, %157, %cst_169 {dimension_numbers = #tpu.dot_dimension_numbers<[1], [0], [0], [1], [0, 0, 1, 1], [], []>} : vector<64x64xbf16>, vector<64x64xbf16>, vector<64x64xf32> -> vector<64x64xf32>
    %159 = arith.addf %153, %158 : vector<64x64xf32>
    %c0_170 = arith.constant 0 : index
    %c0_171 = arith.constant 0 : index
    %160 = vector.load %arg7[%c0_170, %c0_171] : memref<1x64xf32, #tpu.memory_space<vmem>>, vector<1x64xf32>
    %161 = vector.broadcast %160 : vector<1x64xf32> to vector<64x64xf32>
    %162 = arith.addf %159, %161 : vector<64x64xf32>
    %cst_172 = arith.constant 0.000000e+00 : f32
    %163 = vector.broadcast %cst_172 : f32 to vector<64x64xf32>
    %164 = arith.maximumf %162, %163 : vector<64x64xf32>
    %165 = vector.shape_cast %164 : vector<64x64xf32> to vector<8x8x64xf32>
    %c0_173 = arith.constant 0 : index
    %c0_174 = arith.constant 0 : index
    %c0_175 = arith.constant 0 : index
    %166 = vector.load %arg17[%c0_173, %c0_174, %c0_175] : memref<8x8x64xf32, #tpu.memory_space<vmem>>, vector<8x8x64xf32>
    tpu.vector_store %arg17[%c0_173, %c0_174, %c0_175], %165 {strides = array<i32>} : memref<8x8x64xf32, #tpu.memory_space<vmem>>, vector<8x8x64xf32>,
    %c0_176 = arith.constant 0 : index
    %c0_177 = arith.constant 0 : index
    %c0_178 = arith.constant 0 : index
    %167 = tpu.strided_load %arg17[%c0_176, %c0_177, %c0_178] {strides = array<i32: 2, 1, 1>} : memref<8x8x64xf32, #tpu.memory_space<vmem>>, vector<4x8x64xf32>
    %c1_179 = arith.constant 1 : index
    %c0_180 = arith.constant 0 : index
    %c0_181 = arith.constant 0 : index
    %168 = tpu.strided_load %arg17[%c1_179, %c0_180, %c0_181] {strides = array<i32: 2, 1, 1>} : memref<8x8x64xf32, #tpu.memory_space<vmem>>, vector<4x8x64xf32>
    %169 = arith.maximumf %167, %168 : vector<4x8x64xf32>
    %170 = vector.shape_cast %169 : vector<4x8x64xf32> to vector<32x64xf32>
    %c0_182 = arith.constant 0 : index
    %c0_183 = arith.constant 0 : index
    %171 = vector.load %arg20[%c0_182, %c0_183] : memref<32x64xf32, #tpu.memory_space<vmem>>, vector<32x64xf32>
    tpu.vector_store %arg20[%c0_182, %c0_183], %170 {strides = array<i32>} : memref<32x64xf32, #tpu.memory_space<vmem>>, vector<32x64xf32>,
    %c0_184 = arith.constant 0 : index
    %c0_185 = arith.constant 0 : index
    %172 = tpu.strided_load %arg20[%c0_184, %c0_185] {strides = array<i32: 2, 1>} : memref<32x64xf32, #tpu.memory_space<vmem>>, vector<16x64xf32>
    %c1_186 = arith.constant 1 : index
    %c0_187 = arith.constant 0 : index
    %173 = tpu.strided_load %arg20[%c1_186, %c0_187] {strides = array<i32: 2, 1>} : memref<32x64xf32, #tpu.memory_space<vmem>>, vector<16x64xf32>
    %174 = arith.maximumf %172, %173 : vector<16x64xf32>
    %175 = arith.truncf %174 : vector<16x64xf32> to vector<16x64xbf16>
    %176 = vector.extract_strided_slice %175 {offsets = [0, 0], sizes = [1, 64], strides = [1, 1]} : vector<16x64xbf16> to vector<1x64xbf16>
    %c0_188 = arith.constant 0 : index
    %c0_189 = arith.constant 0 : index
    %177 = vector.load %arg8[%c0_188, %c0_189] : memref<1024x64xbf16, #tpu.memory_space<vmem>>, vector<64x64xbf16>
    %cst_190 = arith.constant dense<0.000000e+00> : vector<1x64xf32>
    %178 = tpu.matmul %176, %177, %cst_190 {dimension_numbers = #tpu.dot_dimension_numbers<[1], [0], [0], [1], [0, 0, 1, 1], [], []>} : vector<1x64xbf16>, vector<64x64xbf16>, vector<1x64xf32> -> vector<1x64xf32>
    %179 = vector.extract_strided_slice %175 {offsets = [1, 0], sizes = [1, 64], strides = [1, 1]} : vector<16x64xbf16> to vector<1x64xbf16>
    %c64_191 = arith.constant 64 : index
    %c0_192 = arith.constant 0 : index
    %180 = vector.load %arg8[%c64_191, %c0_192] : memref<1024x64xbf16, #tpu.memory_space<vmem>>, vector<64x64xbf16>
    %cst_193 = arith.constant dense<0.000000e+00> : vector<1x64xf32>
    %181 = tpu.matmul %179, %180, %cst_193 {dimension_numbers = #tpu.dot_dimension_numbers<[1], [0], [0], [1], [0, 0, 1, 1], [], []>} : vector<1x64xbf16>, vector<64x64xbf16>, vector<1x64xf32> -> vector<1x64xf32>
    %182 = arith.addf %178, %181 : vector<1x64xf32>
    %183 = vector.extract_strided_slice %175 {offsets = [2, 0], sizes = [1, 64], strides = [1, 1]} : vector<16x64xbf16> to vector<1x64xbf16>
    %c128_194 = arith.constant 128 : index
    %c0_195 = arith.constant 0 : index
    %184 = vector.load %arg8[%c128_194, %c0_195] : memref<1024x64xbf16, #tpu.memory_space<vmem>>, vector<64x64xbf16>
    %cst_196 = arith.constant dense<0.000000e+00> : vector<1x64xf32>
    %185 = tpu.matmul %183, %184, %cst_196 {dimension_numbers = #tpu.dot_dimension_numbers<[1], [0], [0], [1], [0, 0, 1, 1], [], []>} : vector<1x64xbf16>, vector<64x64xbf16>, vector<1x64xf32> -> vector<1x64xf32>
    %186 = arith.addf %182, %185 : vector<1x64xf32>
    %187 = vector.extract_strided_slice %175 {offsets = [3, 0], sizes = [1, 64], strides = [1, 1]} : vector<16x64xbf16> to vector<1x64xbf16>
    %c192_197 = arith.constant 192 : index
    %c0_198 = arith.constant 0 : index
    %188 = vector.load %arg8[%c192_197, %c0_198] : memref<1024x64xbf16, #tpu.memory_space<vmem>>, vector<64x64xbf16>
    %cst_199 = arith.constant dense<0.000000e+00> : vector<1x64xf32>
    %189 = tpu.matmul %187, %188, %cst_199 {dimension_numbers = #tpu.dot_dimension_numbers<[1], [0], [0], [1], [0, 0, 1, 1], [], []>} : vector<1x64xbf16>, vector<64x64xbf16>, vector<1x64xf32> -> vector<1x64xf32>
    %190 = arith.addf %186, %189 : vector<1x64xf32>
    %191 = vector.extract_strided_slice %175 {offsets = [4, 0], sizes = [1, 64], strides = [1, 1]} : vector<16x64xbf16> to vector<1x64xbf16>
    %c256_200 = arith.constant 256 : index
    %c0_201 = arith.constant 0 : index
    %192 = vector.load %arg8[%c256_200, %c0_201] : memref<1024x64xbf16, #tpu.memory_space<vmem>>, vector<64x64xbf16>
    %cst_202 = arith.constant dense<0.000000e+00> : vector<1x64xf32>
    %193 = tpu.matmul %191, %192, %cst_202 {dimension_numbers = #tpu.dot_dimension_numbers<[1], [0], [0], [1], [0, 0, 1, 1], [], []>} : vector<1x64xbf16>, vector<64x64xbf16>, vector<1x64xf32> -> vector<1x64xf32>
    %194 = arith.addf %190, %193 : vector<1x64xf32>
    %195 = vector.extract_strided_slice %175 {offsets = [5, 0], sizes = [1, 64], strides = [1, 1]} : vector<16x64xbf16> to vector<1x64xbf16>
    %c320_203 = arith.constant 320 : index
    %c0_204 = arith.constant 0 : index
    %196 = vector.load %arg8[%c320_203, %c0_204] : memref<1024x64xbf16, #tpu.memory_space<vmem>>, vector<64x64xbf16>
    %cst_205 = arith.constant dense<0.000000e+00> : vector<1x64xf32>
    %197 = tpu.matmul %195, %196, %cst_205 {dimension_numbers = #tpu.dot_dimension_numbers<[1], [0], [0], [1], [0, 0, 1, 1], [], []>} : vector<1x64xbf16>, vector<64x64xbf16>, vector<1x64xf32> -> vector<1x64xf32>
    %198 = arith.addf %194, %197 : vector<1x64xf32>
    %199 = vector.extract_strided_slice %175 {offsets = [6, 0], sizes = [1, 64], strides = [1, 1]} : vector<16x64xbf16> to vector<1x64xbf16>
    %c384_206 = arith.constant 384 : index
    %c0_207 = arith.constant 0 : index
    %200 = vector.load %arg8[%c384_206, %c0_207] : memref<1024x64xbf16, #tpu.memory_space<vmem>>, vector<64x64xbf16>
    %cst_208 = arith.constant dense<0.000000e+00> : vector<1x64xf32>
    %201 = tpu.matmul %199, %200, %cst_208 {dimension_numbers = #tpu.dot_dimension_numbers<[1], [0], [0], [1], [0, 0, 1, 1], [], []>} : vector<1x64xbf16>, vector<64x64xbf16>, vector<1x64xf32> -> vector<1x64xf32>
    %202 = arith.addf %198, %201 : vector<1x64xf32>
    %203 = vector.extract_strided_slice %175 {offsets = [7, 0], sizes = [1, 64], strides = [1, 1]} : vector<16x64xbf16> to vector<1x64xbf16>
    %c448_209 = arith.constant 448 : index
    %c0_210 = arith.constant 0 : index
    %204 = vector.load %arg8[%c448_209, %c0_210] : memref<1024x64xbf16, #tpu.memory_space<vmem>>, vector<64x64xbf16>
    %cst_211 = arith.constant dense<0.000000e+00> : vector<1x64xf32>
    %205 = tpu.matmul %203, %204, %cst_211 {dimension_numbers = #tpu.dot_dimension_numbers<[1], [0], [0], [1], [0, 0, 1, 1], [], []>} : vector<1x64xbf16>, vector<64x64xbf16>, vector<1x64xf32> -> vector<1x64xf32>
    %206 = arith.addf %202, %205 : vector<1x64xf32>
    %207 = vector.extract_strided_slice %175 {offsets = [8, 0], sizes = [1, 64], strides = [1, 1]} : vector<16x64xbf16> to vector<1x64xbf16>
    %c512_212 = arith.constant 512 : index
    %c0_213 = arith.constant 0 : index
    %208 = vector.load %arg8[%c512_212, %c0_213] : memref<1024x64xbf16, #tpu.memory_space<vmem>>, vector<64x64xbf16>
    %cst_214 = arith.constant dense<0.000000e+00> : vector<1x64xf32>
    %209 = tpu.matmul %207, %208, %cst_214 {dimension_numbers = #tpu.dot_dimension_numbers<[1], [0], [0], [1], [0, 0, 1, 1], [], []>} : vector<1x64xbf16>, vector<64x64xbf16>, vector<1x64xf32> -> vector<1x64xf32>
    %210 = arith.addf %206, %209 : vector<1x64xf32>
    %211 = vector.extract_strided_slice %175 {offsets = [9, 0], sizes = [1, 64], strides = [1, 1]} : vector<16x64xbf16> to vector<1x64xbf16>
    %c576 = arith.constant 576 : index
    %c0_215 = arith.constant 0 : index
    %212 = vector.load %arg8[%c576, %c0_215] : memref<1024x64xbf16, #tpu.memory_space<vmem>>, vector<64x64xbf16>
    %cst_216 = arith.constant dense<0.000000e+00> : vector<1x64xf32>
    %213 = tpu.matmul %211, %212, %cst_216 {dimension_numbers = #tpu.dot_dimension_numbers<[1], [0], [0], [1], [0, 0, 1, 1], [], []>} : vector<1x64xbf16>, vector<64x64xbf16>, vector<1x64xf32> -> vector<1x64xf32>
    %214 = arith.addf %210, %213 : vector<1x64xf32>
    %215 = vector.extract_strided_slice %175 {offsets = [10, 0], sizes = [1, 64], strides = [1, 1]} : vector<16x64xbf16> to vector<1x64xbf16>
    %c640 = arith.constant 640 : index
    %c0_217 = arith.constant 0 : index
    %216 = vector.load %arg8[%c640, %c0_217] : memref<1024x64xbf16, #tpu.memory_space<vmem>>, vector<64x64xbf16>
    %cst_218 = arith.constant dense<0.000000e+00> : vector<1x64xf32>
    %217 = tpu.matmul %215, %216, %cst_218 {dimension_numbers = #tpu.dot_dimension_numbers<[1], [0], [0], [1], [0, 0, 1, 1], [], []>} : vector<1x64xbf16>, vector<64x64xbf16>, vector<1x64xf32> -> vector<1x64xf32>
    %218 = arith.addf %214, %217 : vector<1x64xf32>
    %219 = vector.extract_strided_slice %175 {offsets = [11, 0], sizes = [1, 64], strides = [1, 1]} : vector<16x64xbf16> to vector<1x64xbf16>
    %c704 = arith.constant 704 : index
    %c0_219 = arith.constant 0 : index
    %220 = vector.load %arg8[%c704, %c0_219] : memref<1024x64xbf16, #tpu.memory_space<vmem>>, vector<64x64xbf16>
    %cst_220 = arith.constant dense<0.000000e+00> : vector<1x64xf32>
    %221 = tpu.matmul %219, %220, %cst_220 {dimension_numbers = #tpu.dot_dimension_numbers<[1], [0], [0], [1], [0, 0, 1, 1], [], []>} : vector<1x64xbf16>, vector<64x64xbf16>, vector<1x64xf32> -> vector<1x64xf32>
    %222 = arith.addf %218, %221 : vector<1x64xf32>
    %223 = vector.extract_strided_slice %175 {offsets = [12, 0], sizes = [1, 64], strides = [1, 1]} : vector<16x64xbf16> to vector<1x64xbf16>
    %c768 = arith.constant 768 : index
    %c0_221 = arith.constant 0 : index
    %224 = vector.load %arg8[%c768, %c0_221] : memref<1024x64xbf16, #tpu.memory_space<vmem>>, vector<64x64xbf16>
    %cst_222 = arith.constant dense<0.000000e+00> : vector<1x64xf32>
    %225 = tpu.matmul %223, %224, %cst_222 {dimension_numbers = #tpu.dot_dimension_numbers<[1], [0], [0], [1], [0, 0, 1, 1], [], []>} : vector<1x64xbf16>, vector<64x64xbf16>, vector<1x64xf32> -> vector<1x64xf32>
    %226 = arith.addf %222, %225 : vector<1x64xf32>
    %227 = vector.extract_strided_slice %175 {offsets = [13, 0], sizes = [1, 64], strides = [1, 1]} : vector<16x64xbf16> to vector<1x64xbf16>
    %c832 = arith.constant 832 : index
    %c0_223 = arith.constant 0 : index
    %228 = vector.load %arg8[%c832, %c0_223] : memref<1024x64xbf16, #tpu.memory_space<vmem>>, vector<64x64xbf16>
    %cst_224 = arith.constant dense<0.000000e+00> : vector<1x64xf32>
    %229 = tpu.matmul %227, %228, %cst_224 {dimension_numbers = #tpu.dot_dimension_numbers<[1], [0], [0], [1], [0, 0, 1, 1], [], []>} : vector<1x64xbf16>, vector<64x64xbf16>, vector<1x64xf32> -> vector<1x64xf32>
    %230 = arith.addf %226, %229 : vector<1x64xf32>
    %231 = vector.extract_strided_slice %175 {offsets = [14, 0], sizes = [1, 64], strides = [1, 1]} : vector<16x64xbf16> to vector<1x64xbf16>
    %c896 = arith.constant 896 : index
    %c0_225 = arith.constant 0 : index
    %232 = vector.load %arg8[%c896, %c0_225] : memref<1024x64xbf16, #tpu.memory_space<vmem>>, vector<64x64xbf16>
    %cst_226 = arith.constant dense<0.000000e+00> : vector<1x64xf32>
    %233 = tpu.matmul %231, %232, %cst_226 {dimension_numbers = #tpu.dot_dimension_numbers<[1], [0], [0], [1], [0, 0, 1, 1], [], []>} : vector<1x64xbf16>, vector<64x64xbf16>, vector<1x64xf32> -> vector<1x64xf32>
    %234 = arith.addf %230, %233 : vector<1x64xf32>
    %235 = vector.extract_strided_slice %175 {offsets = [15, 0], sizes = [1, 64], strides = [1, 1]} : vector<16x64xbf16> to vector<1x64xbf16>
    %c960 = arith.constant 960 : index
    %c0_227 = arith.constant 0 : index
    %236 = vector.load %arg8[%c960, %c0_227] : memref<1024x64xbf16, #tpu.memory_space<vmem>>, vector<64x64xbf16>
    %cst_228 = arith.constant dense<0.000000e+00> : vector<1x64xf32>
    %237 = tpu.matmul %235, %236, %cst_228 {dimension_numbers = #tpu.dot_dimension_numbers<[1], [0], [0], [1], [0, 0, 1, 1], [], []>} : vector<1x64xbf16>, vector<64x64xbf16>, vector<1x64xf32> -> vector<1x64xf32>
    %238 = arith.addf %234, %237 : vector<1x64xf32>
    %c0_229 = arith.constant 0 : index
    %c0_230 = arith.constant 0 : index
    %239 = vector.load %arg9[%c0_229, %c0_230] : memref<1x64xf32, #tpu.memory_space<vmem>>, vector<1x64xf32>
    %240 = arith.addf %238, %239 : vector<1x64xf32>
    %cst_231 = arith.constant 0.000000e+00 : f32
    %241 = vector.broadcast %cst_231 : f32 to vector<1x64xf32>
    %242 = arith.maximumf %240, %241 : vector<1x64xf32>
    %243 = arith.truncf %242 : vector<1x64xf32> to vector<1x64xbf16>
    %c0_232 = arith.constant 0 : index
    %c0_233 = arith.constant 0 : index
    %244 = vector.load %arg10[%c0_232, %c0_233] : memref<64x10xbf16, #tpu.memory_space<vmem>>, vector<64x10xbf16>
    %cst_234 = arith.constant dense<0.000000e+00> : vector<1x10xf32>
    %245 = tpu.matmul %243, %244, %cst_234 {dimension_numbers = #tpu.dot_dimension_numbers<[1], [0], [0], [1], [0, 0, 1, 1], [], []>} : vector<1x64xbf16>, vector<64x10xbf16>, vector<1x10xf32> -> vector<1x10xf32>
    %c0_235 = arith.constant 0 : index
    %c0_236 = arith.constant 0 : index
    %246 = vector.load %arg11[%c0_235, %c0_236] : memref<1x10xf32, #tpu.memory_space<vmem>>, vector<1x10xf32>
    %247 = arith.addf %245, %246 : vector<1x10xf32>
    %c0_237 = arith.constant 0 : index
    %c0_238 = arith.constant 0 : index
    %c0_239 = arith.constant 0 : index
    %248 = vector.load %arg12[%c0_237, %c0_238, %c0_239] : memref<1x1x10xf32, #tpu.memory_space<vmem>>, vector<1x1x10xf32>
    %249 = vector.shape_cast %248 : vector<1x1x10xf32> to vector<1x10xf32>
    %250 = vector.shape_cast %247 : vector<1x10xf32> to vector<1x1x10xf32>
    tpu.vector_store %arg12[%c0_237, %c0_238, %c0_239], %250 {strides = array<i32>} : memref<1x1x10xf32, #tpu.memory_space<vmem>>, vector<1x1x10xf32>,
    return
  }
  func.func @transform_0(%arg0: i32) -> (i32, i32, i32) {
    %c0_i32 = arith.constant 0 : i32
    %c0_i32_0 = arith.constant 0 : i32
    %c0_i32_1 = arith.constant 0 : i32
    return %arg0, %c0_i32, %c0_i32_0 : i32, i32, i32
  }
  func.func @transform_1(%arg0: i32) -> (i32, i32) {
    %c0_i32 = arith.constant 0 : i32
    %c0_i32_0 = arith.constant 0 : i32
    %c0_i32_1 = arith.constant 0 : i32
    return %c0_i32, %c0_i32_0 : i32, i32
  }
  func.func @transform_2(%arg0: i32) -> (i32, i32) {
    %c0_i32 = arith.constant 0 : i32
    %c0_i32_0 = arith.constant 0 : i32
    %c0_i32_1 = arith.constant 0 : i32
    return %c0_i32, %c0_i32_0 : i32, i32
  }
  func.func @transform_3(%arg0: i32) -> (i32, i32) {
    %c0_i32 = arith.constant 0 : i32
    %c0_i32_0 = arith.constant 0 : i32
    %c0_i32_1 = arith.constant 0 : i32
    return %c0_i32, %c0_i32_0 : i32, i32
  }
  func.func @transform_4(%arg0: i32) -> (i32, i32) {
    %c0_i32 = arith.constant 0 : i32
    %c0_i32_0 = arith.constant 0 : i32
    %c0_i32_1 = arith.constant 0 : i32
    return %c0_i32, %c0_i32_0 : i32, i32
  }
  func.func @transform_5(%arg0: i32) -> (i32, i32) {
    %c0_i32 = arith.constant 0 : i32
    %c0_i32_0 = arith.constant 0 : i32
    %c0_i32_1 = arith.constant 0 : i32
    return %c0_i32, %c0_i32_0 : i32, i32
  }
  func.func @transform_6(%arg0: i32) -> (i32, i32) {
    %c0_i32 = arith.constant 0 : i32
    %c0_i32_0 = arith.constant 0 : i32
    %c0_i32_1 = arith.constant 0 : i32
    return %c0_i32, %c0_i32_0 : i32, i32
  }
  func.func @transform_7(%arg0: i32) -> (i32, i32) {
    %c0_i32 = arith.constant 0 : i32
    %c0_i32_0 = arith.constant 0 : i32
    %c0_i32_1 = arith.constant 0 : i32
    return %c0_i32, %c0_i32_0 : i32, i32
  }
  func.func @transform_8(%arg0: i32) -> (i32, i32) {
    %c0_i32 = arith.constant 0 : i32
    %c0_i32_0 = arith.constant 0 : i32
    %c0_i32_1 = arith.constant 0 : i32
    return %c0_i32, %c0_i32_0 : i32, i32
  }
  func.func @transform_9(%arg0: i32) -> (i32, i32) {
    %c0_i32 = arith.constant 0 : i32
    %c0_i32_0 = arith.constant 0 : i32
    %c0_i32_1 = arith.constant 0 : i32
    return %c0_i32, %c0_i32_0 : i32, i32
  }
  func.func @transform_10(%arg0: i32) -> (i32, i32) {
    %c0_i32 = arith.constant 0 : i32
    %c0_i32_0 = arith.constant 0 : i32
    %c0_i32_1 = arith.constant 0 : i32
    return %c0_i32, %c0_i32_0 : i32, i32
  }
  func.func @transform_11(%arg0: i32) -> (i32, i32, i32) {
    %c0_i32 = arith.constant 0 : i32
    %c0_i32_0 = arith.constant 0 : i32
    %c0_i32_1 = arith.constant 0 : i32
    return %arg0, %c0_i32, %c0_i32_0 : i32, i32, i32
  }
}

</mosaic_0001>

<llo_original>
// kernel: simple_cnn_forward.1
$region0: #{simple_cnn_forward.1}
  #allocation0 [shape = 'u32[]', space=smem, size = 0x4, offset = 0x4, fixed_abs, tag = 'smem constant byte address 0x4 - core index']
  #allocation1 [shape = 'u32[144,128]{1,0:T(1,128)}', space=vmem, size = 0x12000, scoped, tag = 'internal scratch']
  #allocation2 [shape = 'f32[18,18,32]{2,1,0:T(8,128)}', space=vmem, size = 0x36000, scoped, tag = 'scratch operand']
  #allocation3 [shape = 'f32[10,10,64]{2,1,0:T(8,128)}', space=vmem, size = 0x14000, scoped, tag = 'scratch operand']
  #allocation4 [shape = 'f32[32,32,32]{2,1,0:T(8,128)}', space=vmem, size = 0x80000, scoped, tag = 'scratch operand']
  #allocation5 [shape = 'f32[16,16,64]{2,1,0:T(8,128)}', space=vmem, size = 0x20000, scoped, tag = 'scratch operand']
  #allocation6 [shape = 'f32[8,8,64]{2,1,0:T(8,128)}', space=vmem, size = 0x8000, scoped, tag = 'scratch operand']
  #allocation7 [shape = 'f32[512,32]{1,0:T(8,128)}', space=vmem, size = 0x40000, scoped, tag = 'scratch operand']
  #allocation8 [shape = 'f32[128,64]{1,0:T(8,128)}', space=vmem, size = 0x10000, scoped, tag = 'scratch operand']
  #allocation9 [shape = 'f32[32,64]{1,0:T(8,128)}', space=vmem, size = 0x4000, scoped, tag = 'scratch operand']
  %s0 = inlined_call_operand.vmem [shape: bf16[2,1024,32], index: 0, kind: input, shape index: {}]
  %s1 = inlined_call_operand.vmem [shape: bf16[32,32], index: 1, kind: input, shape index: {}]
  %s2 = inlined_call_operand.vmem [shape: f32[1,32], index: 2, kind: input, shape index: {}]
  %s3 = inlined_call_operand.vmem [shape: bf16[288,64], index: 3, kind: input, shape index: {}]
  %s4 = inlined_call_operand.vmem [shape: f32[1,64], index: 4, kind: input, shape index: {}]
  %s5 = inlined_call_operand.vmem [shape: bf16[576,64], index: 5, kind: input, shape index: {}]
  %s6 = inlined_call_operand.vmem [shape: f32[1,64], index: 6, kind: input, shape index: {}]
  %s7 = inlined_call_operand.vmem [shape: bf16[1024,64], index: 7, kind: input, shape index: {}]
  %s8 = inlined_call_operand.vmem [shape: f32[1,64], index: 8, kind: input, shape index: {}]
  %s9 = inlined_call_operand.vmem [shape: bf16[64,10], index: 9, kind: input, shape index: {}]
  %s10 = inlined_call_operand.vmem [shape: f32[1,10], index: 10, kind: input, shape index: {}]
  %s11 = inlined_call_operand.hbm [shape: f32[2,1,10], index: 11, kind: output, shape index: {}]
  %s12 = sld [smem:[#allocation0]]
  $region77: #{simple_cnn_forward.1} parent=0
    _
  %s14 = ssub.s32 1, %s12
  %s15 = scalar_select 0, %s14, %s12
  $region1: #{simple_cnn_forward.1} parent=0
    #allocation10 [shape = 'u8[1024]{0}', space=vmem, size = 0x400, scoped, tag = 'output window, operand 0']
    #allocation11 [shape = 's32[2]{0}', space=sflag, size = 0x8, scoped, tag = 'scoped memory for simple_cnn_forward.1']
    %16 = vsyncpa [#allocation11], 0
    %s17 = scalar_lea.sflag [#allocation11], 1
    %18 = vsyncpa %s17, 0
    loop: start=0, step=1, limit=4
    $region2: #{simple_cnn_forward.1} parent=1 // loop_pre_header
      _
    $region3: #{simple_cnn_forward.1} parent=1 // loop_header
      %s20 = sphi 0, %s24
      %p21 = scmp.ge.s32.totalorder %s20, 4
      %s30 = sphi 0, %s32
      %s33 = sphi 0, %s30
      %s34 = sphi 0, %s33
      %s50 = sphi 0, %s34
      %s54 = sphi 0, %s54
      %s56 = sphi 0, %s54
      %s57 = sphi 0, %s56
      %s71 = sphi 0, %s57
      %s75 = sphi 0, %s75
      %s77 = sphi 0, %s75
      %s78 = sphi 0, %s77
      %s92 = sphi 0, %s78
      %s96 = sphi 0, %s96
      %s98 = sphi 0, %s96
      %s99 = sphi 0, %s98
      %s113 = sphi 0, %s99
      %s117 = sphi 0, %s117
      %s119 = sphi 0, %s117
      %s120 = sphi 0, %s119
      %s134 = sphi 0, %s120
      %s138 = sphi 0, %s138
      %s140 = sphi 0, %s138
      %s141 = sphi 0, %s140
      %s155 = sphi 0, %s141
      %s159 = sphi 0, %s159
      %s161 = sphi 0, %s159
      %s162 = sphi 0, %s161
      %s176 = sphi 0, %s162
      %s180 = sphi 0, %s180
      %s182 = sphi 0, %s180
      %s183 = sphi 0, %s182
      %s197 = sphi 0, %s183
      %s201 = sphi 0, %s201
      %s203 = sphi 0, %s201
      %s204 = sphi 0, %s203
      %s218 = sphi 0, %s204
      %s222 = sphi 0, %s222
      %s224 = sphi 0, %s222
      %s225 = sphi 0, %s224
      %s239 = sphi 0, %s225
      %s243 = sphi 0, %s243
      %s245 = sphi 0, %s243
      %s246 = sphi 0, %s245
      %s260 = sphi 0, %s246
      %s266 = sphi 0, %s268
      %s269 = sphi 0, %s266
      %s270 = sphi 0, %s269
      %s286 = sphi 0, %s270
    $region4: #{simple_cnn_forward.1} parent=1 // loop_header_branch
      %23 = sbr.rel (%p21) target = $region8
    $region5: #{simple_cnn_forward.1} parent=1 // loop_body
      %s25 = ssub.s32 %s20, 1
      %s26 = ssub.s32 %s20, 2
      %s27 = sadd.s32 %s20, 1
      %s28 = ssub.s32 %s20, %s27
      %p29 = scmp.eq.s32.totalorder %s28, 0
      %s31 = sadd.s32 %s30, 1
      %s32 = scalar_select %p29, %s30, %s31
      %p35 = pneg %p29
      %p36 = scmp.eq.s32.totalorder %s20, 1
      %p37 = por %p35, %p36
      %p38 = scmp.ne.s32.totalorder %s30, %s33
      %p39 = scmp.eq.s32.totalorder %s20, 0
      %p40 = por %p38, %p39
      %p41 = scmp.ne.s32.totalorder %s30, %s33
      %p42 = scmp.eq.s32.totalorder %s25, 1
      %p43 = por %p41, %p42
      %p44 = scmp.ne.s32.totalorder %s33, %s34
      %p45 = scmp.eq.s32.totalorder %s25, 0
      %p46 = por %p44, %p45
      %p47 = scmp.ne.s32.totalorder %s33, %s34
      %p48 = scmp.eq.s32.totalorder %s26, 1
      %p49 = por %p47, %p48
      %p51 = scmp.ne.s32.totalorder %s34, %s50
      %p52 = scmp.eq.s32.totalorder %s26, 0
      %p53 = por %p51, %p52
      %s55 = sadd.s32 %s54, 1
      %p58 = scmp.eq.s32.totalorder %s20, 1
      %p59 = scmp.ne.s32.totalorder %s54, %s56
      %p60 = scmp.eq.s32.totalorder %s20, 0
      %p61 = por %p59, %p60
      %p62 = scmp.ne.s32.totalorder %s54, %s56
      %p63 = scmp.eq.s32.totalorder %s25, 1
      %p64 = por %p62, %p63
      %p65 = scmp.ne.s32.totalorder %s56, %s57
      %p66 = scmp.eq.s32.totalorder %s25, 0
      %p67 = por %p65, %p66
      %p68 = scmp.ne.s32.totalorder %s56, %s57
      %p69 = scmp.eq.s32.totalorder %s26, 1
      %p70 = por %p68, %p69
      %p72 = scmp.ne.s32.totalorder %s57, %s71
      %p73 = scmp.eq.s32.totalorder %s26, 0
      %p74 = por %p72, %p73
      %s76 = sadd.s32 %s75, 1
      %p79 = scmp.eq.s32.totalorder %s20, 1
      %p80 = scmp.ne.s32.totalorder %s75, %s77
      %p81 = scmp.eq.s32.totalorder %s20, 0
      %p82 = por %p80, %p81
      %p83 = scmp.ne.s32.totalorder %s75, %s77
      %p84 = scmp.eq.s32.totalorder %s25, 1
      %p85 = por %p83, %p84
      %p86 = scmp.ne.s32.totalorder %s77, %s78
      %p87 = scmp.eq.s32.totalorder %s25, 0
      %p88 = por %p86, %p87
      %p89 = scmp.ne.s32.totalorder %s77, %s78
      %p90 = scmp.eq.s32.totalorder %s26, 1
      %p91 = por %p89, %p90
      %p93 = scmp.ne.s32.totalorder %s78, %s92
      %p94 = scmp.eq.s32.totalorder %s26, 0
      %p95 = por %p93, %p94
      %s97 = sadd.s32 %s96, 1
      %p100 = scmp.eq.s32.totalorder %s20, 1
      %p101 = scmp.ne.s32.totalorder %s96, %s98
      %p102 = scmp.eq.s32.totalorder %s20, 0
      %p103 = por %p101, %p102
      %p104 = scmp.ne.s32.totalorder %s96, %s98
      %p105 = scmp.eq.s32.totalorder %s25, 1
      %p106 = por %p104, %p105
      %p107 = scmp.ne.s32.totalorder %s98, %s99
      %p108 = scmp.eq.s32.totalorder %s25, 0
      %p109 = por %p107, %p108
      %p110 = scmp.ne.s32.totalorder %s98, %s99
      %p111 = scmp.eq.s32.totalorder %s26, 1
      %p112 = por %p110, %p111
      %p114 = scmp.ne.s32.totalorder %s99, %s113
      %p115 = scmp.eq.s32.totalorder %s26, 0
      %p116 = por %p114, %p115
      %s118 = sadd.s32 %s117, 1
      %p121 = scmp.eq.s32.totalorder %s20, 1
      %p122 = scmp.ne.s32.totalorder %s117, %s119
      %p123 = scmp.eq.s32.totalorder %s20, 0
      %p124 = por %p122, %p123
      %p125 = scmp.ne.s32.totalorder %s117, %s119
      %p126 = scmp.eq.s32.totalorder %s25, 1
      %p127 = por %p125, %p126
      %p128 = scmp.ne.s32.totalorder %s119, %s120
      %p129 = scmp.eq.s32.totalorder %s25, 0
      %p130 = por %p128, %p129
      %p131 = scmp.ne.s32.totalorder %s119, %s120
      %p132 = scmp.eq.s32.totalorder %s26, 1
      %p133 = por %p131, %p132
      %p135 = scmp.ne.s32.totalorder %s120, %s134
      %p136 = scmp.eq.s32.totalorder %s26, 0
      %p137 = por %p135, %p136
      %s139 = sadd.s32 %s138, 1
      %p142 = scmp.eq.s32.totalorder %s20, 1
      %p143 = scmp.ne.s32.totalorder %s138, %s140
      %p144 = scmp.eq.s32.totalorder %s20, 0
      %p145 = por %p143, %p144
      %p146 = scmp.ne.s32.totalorder %s138, %s140
      %p147 = scmp.eq.s32.totalorder %s25, 1
      %p148 = por %p146, %p147
      %p149 = scmp.ne.s32.totalorder %s140, %s141
      %p150 = scmp.eq.s32.totalorder %s25, 0
      %p151 = por %p149, %p150
      %p152 = scmp.ne.s32.totalorder %s140, %s141
      %p153 = scmp.eq.s32.totalorder %s26, 1
      %p154 = por %p152, %p153
      %p156 = scmp.ne.s32.totalorder %s141, %s155
      %p157 = scmp.eq.s32.totalorder %s26, 0
      %p158 = por %p156, %p157
      %s160 = sadd.s32 %s159, 1
      %p163 = scmp.eq.s32.totalorder %s20, 1
      %p164 = scmp.ne.s32.totalorder %s159, %s161
      %p165 = scmp.eq.s32.totalorder %s20, 0
      %p166 = por %p164, %p165
      %p167 = scmp.ne.s32.totalorder %s159, %s161
      %p168 = scmp.eq.s32.totalorder %s25, 1
      %p169 = por %p167, %p168
      %p170 = scmp.ne.s32.totalorder %s161, %s162
      %p171 = scmp.eq.s32.totalorder %s25, 0
      %p172 = por %p170, %p171
      %p173 = scmp.ne.s32.totalorder %s161, %s162
      %p174 = scmp.eq.s32.totalorder %s26, 1
      %p175 = por %p173, %p174
      %p177 = scmp.ne.s32.totalorder %s162, %s176
      %p178 = scmp.eq.s32.totalorder %s26, 0
      %p179 = por %p177, %p178
      %s181 = sadd.s32 %s180, 1
      %p184 = scmp.eq.s32.totalorder %s20, 1
      %p185 = scmp.ne.s32.totalorder %s180, %s182
      %p186 = scmp.eq.s32.totalorder %s20, 0
      %p187 = por %p185, %p186
      %p188 = scmp.ne.s32.totalorder %s180, %s182
      %p189 = scmp.eq.s32.totalorder %s25, 1
      %p190 = por %p188, %p189
      %p191 = scmp.ne.s32.totalorder %s182, %s183
      %p192 = scmp.eq.s32.totalorder %s25, 0
      %p193 = por %p191, %p192
      %p194 = scmp.ne.s32.totalorder %s182, %s183
      %p195 = scmp.eq.s32.totalorder %s26, 1
      %p196 = por %p194, %p195
      %p198 = scmp.ne.s32.totalorder %s183, %s197
      %p199 = scmp.eq.s32.totalorder %s26, 0
      %p200 = por %p198, %p199
      %s202 = sadd.s32 %s201, 1
      %p205 = scmp.eq.s32.totalorder %s20, 1
      %p206 = scmp.ne.s32.totalorder %s201, %s203
      %p207 = scmp.eq.s32.totalorder %s20, 0
      %p208 = por %p206, %p207
      %p209 = scmp.ne.s32.totalorder %s201, %s203
      %p210 = scmp.eq.s32.totalorder %s25, 1
      %p211 = por %p209, %p210
      %p212 = scmp.ne.s32.totalorder %s203, %s204
      %p213 = scmp.eq.s32.totalorder %s25, 0
      %p214 = por %p212, %p213
      %p215 = scmp.ne.s32.totalorder %s203, %s204
      %p216 = scmp.eq.s32.totalorder %s26, 1
      %p217 = por %p215, %p216
      %p219 = scmp.ne.s32.totalorder %s204, %s218
      %p220 = scmp.eq.s32.totalorder %s26, 0
      %p221 = por %p219, %p220
      %s223 = sadd.s32 %s222, 1
      %p226 = scmp.eq.s32.totalorder %s20, 1
      %p227 = scmp.ne.s32.totalorder %s222, %s224
      %p228 = scmp.eq.s32.totalorder %s20, 0
      %p229 = por %p227, %p228
      %p230 = scmp.ne.s32.totalorder %s222, %s224
      %p231 = scmp.eq.s32.totalorder %s25, 1
      %p232 = por %p230, %p231
      %p233 = scmp.ne.s32.totalorder %s224, %s225
      %p234 = scmp.eq.s32.totalorder %s25, 0
      %p235 = por %p233, %p234
      %p236 = scmp.ne.s32.totalorder %s224, %s225
      %p237 = scmp.eq.s32.totalorder %s26, 1
      %p238 = por %p236, %p237
      %p240 = scmp.ne.s32.totalorder %s225, %s239
      %p241 = scmp.eq.s32.totalorder %s26, 0
      %p242 = por %p240, %p241
      %s244 = sadd.s32 %s243, 1
      %p247 = scmp.eq.s32.totalorder %s20, 1
      %p248 = scmp.ne.s32.totalorder %s243, %s245
      %p249 = scmp.eq.s32.totalorder %s20, 0
      %p250 = por %p248, %p249
      %p251 = scmp.ne.s32.totalorder %s243, %s245
      %p252 = scmp.eq.s32.totalorder %s25, 1
      %p253 = por %p251, %p252
      %p254 = scmp.ne.s32.totalorder %s245, %s246
      %p255 = scmp.eq.s32.totalorder %s25, 0
      %p256 = por %p254, %p255
      %p257 = scmp.ne.s32.totalorder %s245, %s246
      %p258 = scmp.eq.s32.totalorder %s26, 1
      %p259 = por %p257, %p258
      %p261 = scmp.ne.s32.totalorder %s246, %s260
      %p262 = scmp.eq.s32.totalorder %s26, 0
      %p263 = por %p261, %p262
      %s264 = ssub.s32 %s20, %s27
      %p265 = scmp.eq.s32.totalorder %s264, 0
      %s267 = sadd.s32 %s266, 1
      %s268 = scalar_select %p265, %s266, %s267
      %p271 = pneg %p265
      %p272 = scmp.eq.s32.totalorder %s20, 1
      %p273 = por %p271, %p272
      %p274 = scmp.ne.s32.totalorder %s266, %s269
      %p275 = scmp.eq.s32.totalorder %s20, 0
      %p276 = por %p274, %p275
      %p277 = scmp.ne.s32.totalorder %s266, %s269
      %p278 = scmp.eq.s32.totalorder %s25, 1
      %p279 = por %p277, %p278
      %p280 = scmp.ne.s32.totalorder %s269, %s270
      %p281 = scmp.eq.s32.totalorder %s25, 0
      %p282 = por %p280, %p281
      %p283 = scmp.ne.s32.totalorder %s269, %s270
      %p284 = scmp.eq.s32.totalorder %s26, 1
      %p285 = por %p283, %p284
      %p287 = scmp.ne.s32.totalorder %s270, %s286
      %p288 = scmp.eq.s32.totalorder %s26, 0
      %p289 = por %p287, %p288
      %p290 = scmp.le.s32.totalorder 1, %s20
      %p291 = scmp.lt.s32.totalorder %s20, 3
      %p292 = pnand %p290, %p291
      %p293 = pneg %p292
      // Predicated region
      $region9: #{simple_cnn_forward.1} parent=5 // pred_check
        _
      $region10: #{simple_cnn_forward.1} parent=5 // pred_check_branch
        %295 = sbr.rel (%p292) target = $region12
      $region11: #{simple_cnn_forward.1} parent=5 // pred_region
        %s296 = ssub.s32 %s20, 1
        // Predicated region
        $region13: #{simple_cnn_forward.1} parent=11 // pred_check
          %p297 = pneg %p67
        $region14: #{simple_cnn_forward.1} parent=11 // pred_check_branch
          %299 = sbr.rel (%p297) target = $region16
        $region15: #{simple_cnn_forward.1} parent=11 // pred_region
          _
        $region16: #{simple_cnn_forward.1} parent=11 // pred_fallthru
          _
        // Predicated region
        $region17: #{simple_cnn_forward.1} parent=11 // pred_check
          %p300 = pneg %p88
        $region18: #{simple_cnn_forward.1} parent=11 // pred_check_branch
          %302 = sbr.rel (%p300) target = $region20
        $region19: #{simple_cnn_forward.1} parent=11 // pred_region
          _
        $region20: #{simple_cnn_forward.1} parent=11 // pred_fallthru
          _
        // Predicated region
        $region21: #{simple_cnn_forward.1} parent=11 // pred_check
          %p303 = pneg %p109
        $region22: #{simple_cnn_forward.1} parent=11 // pred_check_branch
          %305 = sbr.rel (%p303) target = $region24
        $region23: #{simple_cnn_forward.1} parent=11 // pred_region
          _
        $region24: #{simple_cnn_forward.1} parent=11 // pred_fallthru
          _
        // Predicated region
        $region25: #{simple_cnn_forward.1} parent=11 // pred_check
          %p306 = pneg %p130
        $region26: #{simple_cnn_forward.1} parent=11 // pred_check_branch
          %308 = sbr.rel (%p306) target = $region28
        $region27: #{simple_cnn_forward.1} parent=11 // pred_region
          _
        $region28: #{simple_cnn_forward.1} parent=11 // pred_fallthru
          _
        // Predicated region
        $region29: #{simple_cnn_forward.1} parent=11 // pred_check
          %p309 = pneg %p151
        $region30: #{simple_cnn_forward.1} parent=11 // pred_check_branch
          %311 = sbr.rel (%p309) target = $region32
        $region31: #{simple_cnn_forward.1} parent=11 // pred_region
          _
        $region32: #{simple_cnn_forward.1} parent=11 // pred_fallthru
          _
        // Predicated region
        $region33: #{simple_cnn_forward.1} parent=11 // pred_check
          %p312 = pneg %p172
        $region34: #{simple_cnn_forward.1} parent=11 // pred_check_branch
          %314 = sbr.rel (%p312) target = $region36
        $region35: #{simple_cnn_forward.1} parent=11 // pred_region
          _
        $region36: #{simple_cnn_forward.1} parent=11 // pred_fallthru
          _
        // Predicated region
        $region37: #{simple_cnn_forward.1} parent=11 // pred_check
          %p315 = pneg %p193
        $region38: #{simple_cnn_forward.1} parent=11 // pred_check_branch
          %317 = sbr.rel (%p315) target = $region40
        $region39: #{simple_cnn_forward.1} parent=11 // pred_region
          _
        $region40: #{simple_cnn_forward.1} parent=11 // pred_fallthru
          _
        // Predicated region
        $region41: #{simple_cnn_forward.1} parent=11 // pred_check
          %p318 = pneg %p214
        $region42: #{simple_cnn_forward.1} parent=11 // pred_check_branch
          %320 = sbr.rel (%p318) target = $region44
        $region43: #{simple_cnn_forward.1} parent=11 // pred_region
          _
        $region44: #{simple_cnn_forward.1} parent=11 // pred_fallthru
          _
        // Predicated region
        $region45: #{simple_cnn_forward.1} parent=11 // pred_check
          %p321 = pneg %p235
        $region46: #{simple_cnn_forward.1} parent=11 // pred_check_branch
          %323 = sbr.rel (%p321) target = $region48
        $region47: #{simple_cnn_forward.1} parent=11 // pred_region
          _
        $region48: #{simple_cnn_forward.1} parent=11 // pred_fallthru
          _
        // Predicated region
        $region49: #{simple_cnn_forward.1} parent=11 // pred_check
          %p324 = pneg %p256
        $region50: #{simple_cnn_forward.1} parent=11 // pred_check_branch
          %326 = sbr.rel (%p324) target = $region52
        $region51: #{simple_cnn_forward.1} parent=11 // pred_region
          _
        $region52: #{simple_cnn_forward.1} parent=11 // pred_fallthru
          _
      $region12: #{simple_cnn_forward.1} parent=5 // pred_fallthru
        _
      %p327 = scmp.lt.s32.totalorder %s20, 2
      // Predicated region
      $region53: #{simple_cnn_forward.1} parent=5 // pred_check
        %p328 = pneg %p327
      $region54: #{simple_cnn_forward.1} parent=5 // pred_check_branch
        %330 = sbr.rel (%p328) target = $region56
      $region55: #{simple_cnn_forward.1} parent=5 // pred_region
        // Predicated region
        $region57: #{simple_cnn_forward.1} parent=55 // pred_check
          %p331 = pneg %p40
        $region58: #{simple_cnn_forward.1} parent=55 // pred_check_branch
          %333 = sbr.rel (%p331) target = $region60
        $region59: #{simple_cnn_forward.1} parent=55 // pred_region
          %p334 = scmp.lt.s32.totalorder %s20, 1
          %s335 = scalar_select %p334, %s20, 1
          %s336 = smul.addr %s335, 128
          %s337 = smul.addr %s336, 4
          %s338 = scalar_lea.vmem %s0, %s337
        $region60: #{simple_cnn_forward.1} parent=55 // pred_fallthru
          _
      $region56: #{simple_cnn_forward.1} parent=5 // pred_fallthru
        _
      %p339 = scmp.le.s32.totalorder 1, %s20
      %p340 = scmp.lt.s32.totalorder %s20, 3
      %p341 = pnand %p339, %p340
      %p342 = pneg %p341
      // Predicated region
      $region61: #{simple_cnn_forward.1} parent=5 // pred_check
        _
      $region62: #{simple_cnn_forward.1} parent=5 // pred_check_branch
        %344 = sbr.rel (%p341) target = $region64
      $region63: #{simple_cnn_forward.1} parent=5 // pred_region
        %s345 = ssub.s32 %s20, 1
        %p346 = scmp.lt.s32.totalorder %s25, 1
        %s347 = scalar_select %p346, %s25, 1
        %s348 = smul.addr %s347, 128
        %s349 = smul.addr %s348, 4
        %s350 = scalar_lea.vmem %s0, %s349
        %p351 = pneg %p46
        %p352 = pneg %p43
        %p353 = pneg %p67
        %p354 = pneg %p64
        %p355 = pneg %p88
        %p356 = pneg %p85
        %p357 = pneg %p109
        %p358 = pneg %p106
        %p359 = pneg %p130
        %p360 = pneg %p127
        %p361 = pneg %p151
        %p362 = pneg %p148
        %p363 = pneg %p172
        %p364 = pneg %p169
        %p365 = pneg %p193
        %p366 = pneg %p190
        %p367 = pneg %p214
        %p368 = pneg %p211
        %p369 = pneg %p235
        %p370 = pneg %p232
        %p371 = pneg %p256
        %p372 = pneg %p253
        %p373 = pneg %p282
        %p374 = pneg %p279
        %s375 = sand.u32 %s269, 1
        %s376 = scalar_lea.sflag [#allocation11], %s375
        %s377 = sand.u32 %s269, 1
        %s378 = scalar_lea.vmem [#allocation10], %s377
        %p379 = scmp.lt.s32.totalorder %s25, 1
        %s380 = scalar_select %p379, %s25, 1
        %s381 = smul.addr %s380, 128
        %s382 = smul.addr %s381, 4
        %s383 = scalar_lea.vmem %s0, %s382
        %v385 = vld [vmem:[%s383] sm:$0xf]
        %v386 = vld [vmem:[%s383 + $0x4] sm:$0xf]
        %v387 = vld [vmem:[%s383 + $0x8] sm:$0xf]
        %v388 = vld [vmem:[%s383 + $0xc] sm:$0xf]
        %v389 = vld [vmem:[%s383 + $0x10] sm:$0xf]
        %v390 = vld [vmem:[%s383 + $0x14] sm:$0xf]
        %v391 = vld [vmem:[%s383 + $0x18] sm:$0xf]
        %v392 = vld [vmem:[%s383 + $0x1c] sm:$0xf]
        %v393 = vld [vmem:[%s383 + $0x20] sm:$0xf]
        %v394 = vld [vmem:[%s383 + $0x24] sm:$0xf]
        %v395 = vld [vmem:[%s383 + $0x28] sm:$0xf]
        %v396 = vld [vmem:[%s383 + $0x2c] sm:$0xf]
        %v397 = vld [vmem:[%s383 + $0x30] sm:$0xf]
        %v398 = vld [vmem:[%s383 + $0x34] sm:$0xf]
        %v399 = vld [vmem:[%s383 + $0x38] sm:$0xf]
        %v400 = vld [vmem:[%s383 + $0x3c] sm:$0xf]
        %v401 = vld [vmem:[%s383 + $0x40] sm:$0xf]
        %v402 = vld [vmem:[%s383 + $0x44] sm:$0xf]
        %v403 = vld [vmem:[%s383 + $0x48] sm:$0xf]
        %v404 = vld [vmem:[%s383 + $0x4c] sm:$0xf]
        %v405 = vld [vmem:[%s383 + $0x50] sm:$0xf]
        %v406 = vld [vmem:[%s383 + $0x54] sm:$0xf]
        %v407 = vld [vmem:[%s383 + $0x58] sm:$0xf]
        %v408 = vld [vmem:[%s383 + $0x5c] sm:$0xf]
        %v409 = vld [vmem:[%s383 + $0x60] sm:$0xf]
        %v410 = vld [vmem:[%s383 + $0x64] sm:$0xf]
        %v411 = vld [vmem:[%s383 + $0x68] sm:$0xf]
        %v412 = vld [vmem:[%s383 + $0x6c] sm:$0xf]
        %v413 = vld [vmem:[%s383 + $0x70] sm:$0xf]
        %v414 = vld [vmem:[%s383 + $0x74] sm:$0xf]
        %v415 = vld [vmem:[%s383 + $0x78] sm:$0xf]
        %v416 = vld [vmem:[%s383 + $0x7c] sm:$0xf]
        %v417 = vld [vmem:[%s383 + $0x80] sm:$0xf]
        %v418 = vld [vmem:[%s383 + $0x84] sm:$0xf]
        %v419 = vld [vmem:[%s383 + $0x88] sm:$0xf]
        %v420 = vld [vmem:[%s383 + $0x8c] sm:$0xf]
        %v421 = vld [vmem:[%s383 + $0x90] sm:$0xf]
        %v422 = vld [vmem:[%s383 + $0x94] sm:$0xf]
        %v423 = vld [vmem:[%s383 + $0x98] sm:$0xf]
        %v424 = vld [vmem:[%s383 + $0x9c] sm:$0xf]
        %v425 = vld [vmem:[%s383 + $0xa0] sm:$0xf]
        %v426 = vld [vmem:[%s383 + $0xa4] sm:$0xf]
        %v427 = vld [vmem:[%s383 + $0xa8] sm:$0xf]
        %v428 = vld [vmem:[%s383 + $0xac] sm:$0xf]
        %v429 = vld [vmem:[%s383 + $0xb0] sm:$0xf]
        %v430 = vld [vmem:[%s383 + $0xb4] sm:$0xf]
        %v431 = vld [vmem:[%s383 + $0xb8] sm:$0xf]
        %v432 = vld [vmem:[%s383 + $0xbc] sm:$0xf]
        %v433 = vld [vmem:[%s383 + $0xc0] sm:$0xf]
        %v434 = vld [vmem:[%s383 + $0xc4] sm:$0xf]
        %v435 = vld [vmem:[%s383 + $0xc8] sm:$0xf]
        %v436 = vld [vmem:[%s383 + $0xcc] sm:$0xf]
        %v437 = vld [vmem:[%s383 + $0xd0] sm:$0xf]
        %v438 = vld [vmem:[%s383 + $0xd4] sm:$0xf]
        %v439 = vld [vmem:[%s383 + $0xd8] sm:$0xf]
        %v440 = vld [vmem:[%s383 + $0xdc] sm:$0xf]
        %v441 = vld [vmem:[%s383 + $0xe0] sm:$0xf]
        %v442 = vld [vmem:[%s383 + $0xe4] sm:$0xf]
        %v443 = vld [vmem:[%s383 + $0xe8] sm:$0xf]
        %v444 = vld [vmem:[%s383 + $0xec] sm:$0xf]
        %v445 = vld [vmem:[%s383 + $0xf0] sm:$0xf]
        %v446 = vld [vmem:[%s383 + $0xf4] sm:$0xf]
        %v447 = vld [vmem:[%s383 + $0xf8] sm:$0xf]
        %v448 = vld [vmem:[%s383 + $0xfc] sm:$0xf]
        %v449 = vld [vmem:[%s383 + $0x100] sm:$0xf]
        %v450 = vld [vmem:[%s383 + $0x104] sm:$0xf]
        %v451 = vld [vmem:[%s383 + $0x108] sm:$0xf]
        %v452 = vld [vmem:[%s383 + $0x10c] sm:$0xf]
        %v453 = vld [vmem:[%s383 + $0x110] sm:$0xf]
        %v454 = vld [vmem:[%s383 + $0x114] sm:$0xf]
        %v455 = vld [vmem:[%s383 + $0x118] sm:$0xf]
        %v456 = vld [vmem:[%s383 + $0x11c] sm:$0xf]
        %v457 = vld [vmem:[%s383 + $0x120] sm:$0xf]
        %v458 = vld [vmem:[%s383 + $0x124] sm:$0xf]
        %v459 = vld [vmem:[%s383 + $0x128] sm:$0xf]
        %v460 = vld [vmem:[%s383 + $0x12c] sm:$0xf]
        %v461 = vld [vmem:[%s383 + $0x130] sm:$0xf]
        %v462 = vld [vmem:[%s383 + $0x134] sm:$0xf]
        %v463 = vld [vmem:[%s383 + $0x138] sm:$0xf]
        %v464 = vld [vmem:[%s383 + $0x13c] sm:$0xf]
        %v465 = vld [vmem:[%s383 + $0x140] sm:$0xf]
        %v466 = vld [vmem:[%s383 + $0x144] sm:$0xf]
        %v467 = vld [vmem:[%s383 + $0x148] sm:$0xf]
        %v468 = vld [vmem:[%s383 + $0x14c] sm:$0xf]
        %v469 = vld [vmem:[%s383 + $0x150] sm:$0xf]
        %v470 = vld [vmem:[%s383 + $0x154] sm:$0xf]
        %v471 = vld [vmem:[%s383 + $0x158] sm:$0xf]
        %v472 = vld [vmem:[%s383 + $0x15c] sm:$0xf]
        %v473 = vld [vmem:[%s383 + $0x160] sm:$0xf]
        %v474 = vld [vmem:[%s383 + $0x164] sm:$0xf]
        %v475 = vld [vmem:[%s383 + $0x168] sm:$0xf]
        %v476 = vld [vmem:[%s383 + $0x16c] sm:$0xf]
        %v477 = vld [vmem:[%s383 + $0x170] sm:$0xf]
        %v478 = vld [vmem:[%s383 + $0x174] sm:$0xf]
        %v479 = vld [vmem:[%s383 + $0x178] sm:$0xf]
        %v480 = vld [vmem:[%s383 + $0x17c] sm:$0xf]
        %v481 = vld [vmem:[%s383 + $0x180] sm:$0xf]
        %v482 = vld [vmem:[%s383 + $0x184] sm:$0xf]
        %v483 = vld [vmem:[%s383 + $0x188] sm:$0xf]
        %v484 = vld [vmem:[%s383 + $0x18c] sm:$0xf]
        %v485 = vld [vmem:[%s383 + $0x190] sm:$0xf]
        %v486 = vld [vmem:[%s383 + $0x194] sm:$0xf]
        %v487 = vld [vmem:[%s383 + $0x198] sm:$0xf]
        %v488 = vld [vmem:[%s383 + $0x19c] sm:$0xf]
        %v489 = vld [vmem:[%s383 + $0x1a0] sm:$0xf]
        %v490 = vld [vmem:[%s383 + $0x1a4] sm:$0xf]
        %v491 = vld [vmem:[%s383 + $0x1a8] sm:$0xf]
        %v492 = vld [vmem:[%s383 + $0x1ac] sm:$0xf]
        %v493 = vld [vmem:[%s383 + $0x1b0] sm:$0xf]
        %v494 = vld [vmem:[%s383 + $0x1b4] sm:$0xf]
        %v495 = vld [vmem:[%s383 + $0x1b8] sm:$0xf]
        %v496 = vld [vmem:[%s383 + $0x1bc] sm:$0xf]
        %v497 = vld [vmem:[%s383 + $0x1c0] sm:$0xf]
        %v498 = vld [vmem:[%s383 + $0x1c4] sm:$0xf]
        %v499 = vld [vmem:[%s383 + $0x1c8] sm:$0xf]
        %v500 = vld [vmem:[%s383 + $0x1cc] sm:$0xf]
        %v501 = vld [vmem:[%s383 + $0x1d0] sm:$0xf]
        %v502 = vld [vmem:[%s383 + $0x1d4] sm:$0xf]
        %v503 = vld [vmem:[%s383 + $0x1d8] sm:$0xf]
        %v504 = vld [vmem:[%s383 + $0x1dc] sm:$0xf]
        %v505 = vld [vmem:[%s383 + $0x1e0] sm:$0xf]
        %v506 = vld [vmem:[%s383 + $0x1e4] sm:$0xf]
        %v507 = vld [vmem:[%s383 + $0x1e8] sm:$0xf]
        %v508 = vld [vmem:[%s383 + $0x1ec] sm:$0xf]
        %v509 = vld [vmem:[%s383 + $0x1f0] sm:$0xf]
        %v510 = vld [vmem:[%s383 + $0x1f4] sm:$0xf]
        %v511 = vld [vmem:[%s383 + $0x1f8] sm:$0xf]
        %v512 = vld [vmem:[%s383 + $0x1fc] sm:$0xf]
        %v513 = vld [vmem:[%s1] sm:$0xf]
        %v514 = vld [vmem:[%s1 + $0x4] sm:$0xf]
        %v515 = vld [vmem:[%s1 + $0x8] sm:$0xf]
        %v516 = vld [vmem:[%s1 + $0xc] sm:$0xf]
        %v517 = vld [vmem:[%s2] sm:$0x1]
        %v519 = vlaneseq
        %v520 = vshrl.u32 %v519, 7
        %v521 = vsub.s32 0, %v520
        %v522 = vrot.slane %v517, %v521
        %v652 = vunpack.c.l.b16 %v385
        %v653 = vunpack.c.l.b16 %v386
        %v654 = vunpack.c.l.b16 %v387
        %v655 = vunpack.c.l.b16 %v388
        %v656 = vunpack.c.l.b16 %v389
        %v657 = vunpack.c.l.b16 %v390
        %v658 = vunpack.c.l.b16 %v391
        %v659 = vunpack.c.l.b16 %v392
        %v660 = vunpack.c.l.b16 %v393
        %v661 = vunpack.c.l.b16 %v394
        %v662 = vunpack.c.l.b16 %v395
        %v663 = vunpack.c.l.b16 %v396
        %v664 = vunpack.c.l.b16 %v397
        %v665 = vunpack.c.l.b16 %v398
        %v666 = vunpack.c.l.b16 %v399
        %v667 = vunpack.c.l.b16 %v400
        %v668 = vunpack.c.l.b16 %v401
        %v669 = vunpack.c.l.b16 %v402
        %v670 = vunpack.c.l.b16 %v403
        %v671 = vunpack.c.l.b16 %v404
        %v672 = vunpack.c.l.b16 %v405
        %v673 = vunpack.c.l.b16 %v406
        %v674 = vunpack.c.l.b16 %v407
        %v675 = vunpack.c.l.b16 %v408
        %v676 = vunpack.c.l.b16 %v409
        %v677 = vunpack.c.l.b16 %v410
        %v678 = vunpack.c.l.b16 %v411
        %v679 = vunpack.c.l.b16 %v412
        %v680 = vunpack.c.l.b16 %v413
        %v681 = vunpack.c.l.b16 %v414
        %v682 = vunpack.c.l.b16 %v415
        %v683 = vunpack.c.l.b16 %v416
        %v684 = vunpack.c.l.b16 %v417
        %v685 = vunpack.c.l.b16 %v418
        %v686 = vunpack.c.l.b16 %v419
        %v687 = vunpack.c.l.b16 %v420
        %v688 = vunpack.c.l.b16 %v421
        %v689 = vunpack.c.l.b16 %v422
        %v690 = vunpack.c.l.b16 %v423
        %v691 = vunpack.c.l.b16 %v424
        %v692 = vunpack.c.l.b16 %v425
        %v693 = vunpack.c.l.b16 %v426
        %v694 = vunpack.c.l.b16 %v427
        %v695 = vunpack.c.l.b16 %v428
        %v696 = vunpack.c.l.b16 %v429
        %v697 = vunpack.c.l.b16 %v430
        %v698 = vunpack.c.l.b16 %v431
        %v699 = vunpack.c.l.b16 %v432
        %v700 = vunpack.c.l.b16 %v433
        %v701 = vunpack.c.l.b16 %v434
        %v702 = vunpack.c.l.b16 %v435
        %v703 = vunpack.c.l.b16 %v436
        %v704 = vunpack.c.l.b16 %v437
        %v705 = vunpack.c.l.b16 %v438
        %v706 = vunpack.c.l.b16 %v439
        %v707 = vunpack.c.l.b16 %v440
        %v708 = vunpack.c.l.b16 %v441
        %v709 = vunpack.c.l.b16 %v442
        %v710 = vunpack.c.l.b16 %v443
        %v711 = vunpack.c.l.b16 %v444
        %v712 = vunpack.c.l.b16 %v445
        %v713 = vunpack.c.l.b16 %v446
        %v714 = vunpack.c.l.b16 %v447
        %v715 = vunpack.c.l.b16 %v448
        %v716 = vunpack.c.l.b16 %v449
        %v717 = vunpack.c.l.b16 %v450
        %v718 = vunpack.c.l.b16 %v451
        %v719 = vunpack.c.l.b16 %v452
        %v720 = vunpack.c.l.b16 %v453
        %v721 = vunpack.c.l.b16 %v454
        %v722 = vunpack.c.l.b16 %v455
        %v723 = vunpack.c.l.b16 %v456
        %v724 = vunpack.c.l.b16 %v457
        %v725 = vunpack.c.l.b16 %v458
        %v726 = vunpack.c.l.b16 %v459
        %v727 = vunpack.c.l.b16 %v460
        %v728 = vunpack.c.l.b16 %v461
        %v729 = vunpack.c.l.b16 %v462
        %v730 = vunpack.c.l.b16 %v463
        %v731 = vunpack.c.l.b16 %v464
        %v732 = vunpack.c.l.b16 %v465
        %v733 = vunpack.c.l.b16 %v466
        %v734 = vunpack.c.l.b16 %v467
        %v735 = vunpack.c.l.b16 %v468
        %v736 = vunpack.c.l.b16 %v469
        %v737 = vunpack.c.l.b16 %v470
        %v738 = vunpack.c.l.b16 %v471
        %v739 = vunpack.c.l.b16 %v472
        %v740 = vunpack.c.l.b16 %v473
        %v741 = vunpack.c.l.b16 %v474
        %v742 = vunpack.c.l.b16 %v475
        %v743 = vunpack.c.l.b16 %v476
        %v744 = vunpack.c.l.b16 %v477
        %v745 = vunpack.c.l.b16 %v478
        %v746 = vunpack.c.l.b16 %v479
        %v747 = vunpack.c.l.b16 %v480
        %v748 = vunpack.c.l.b16 %v481
        %v749 = vunpack.c.l.b16 %v482
        %v750 = vunpack.c.l.b16 %v483
        %v751 = vunpack.c.l.b16 %v484
        %v752 = vunpack.c.l.b16 %v485
        %v753 = vunpack.c.l.b16 %v486
        %v754 = vunpack.c.l.b16 %v487
        %v755 = vunpack.c.l.b16 %v488
        %v756 = vunpack.c.l.b16 %v489
        %v757 = vunpack.c.l.b16 %v490
        %v758 = vunpack.c.l.b16 %v491
        %v759 = vunpack.c.l.b16 %v492
        %v760 = vunpack.c.l.b16 %v493
        %v761 = vunpack.c.l.b16 %v494
        %v762 = vunpack.c.l.b16 %v495
        %v763 = vunpack.c.l.b16 %v496
        %v764 = vunpack.c.l.b16 %v497
        %v765 = vunpack.c.l.b16 %v498
        %v766 = vunpack.c.l.b16 %v499
        %v767 = vunpack.c.l.b16 %v500
        %v768 = vunpack.c.l.b16 %v501
        %v769 = vunpack.c.l.b16 %v502
        %v770 = vunpack.c.l.b16 %v503
        %v771 = vunpack.c.l.b16 %v504
        %v772 = vunpack.c.l.b16 %v505
        %v773 = vunpack.c.l.b16 %v506
        %v774 = vunpack.c.l.b16 %v507
        %v775 = vunpack.c.l.b16 %v508
        %v776 = vunpack.c.l.b16 %v509
        %v777 = vunpack.c.l.b16 %v510
        %v778 = vunpack.c.l.b16 %v511
        %v779 = vunpack.c.l.b16 %v512
        %v780 = vpack.c.b16 %v653, %v652
        %v781 = vpack.c.b16 %v655, %v654
        %v782 = vpack.c.b16 %v657, %v656
        %v783 = vpack.c.b16 %v659, %v658
        %v784 = vpack.c.b16 %v661, %v660
        %v785 = vpack.c.b16 %v663, %v662
        %v786 = vpack.c.b16 %v665, %v664
        %v787 = vpack.c.b16 %v667, %v666
        %v788 = vpack.c.b16 %v669, %v668
        %v789 = vpack.c.b16 %v671, %v670
        %v790 = vpack.c.b16 %v673, %v672
        %v791 = vpack.c.b16 %v675, %v674
        %v792 = vpack.c.b16 %v677, %v676
        %v793 = vpack.c.b16 %v679, %v678
        %v794 = vpack.c.b16 %v681, %v680
        %v795 = vpack.c.b16 %v683, %v682
        %v796 = vpack.c.b16 %v685, %v684
        %v797 = vpack.c.b16 %v687, %v686
        %v798 = vpack.c.b16 %v689, %v688
        %v799 = vpack.c.b16 %v691, %v690
        %v800 = vpack.c.b16 %v693, %v692
        %v801 = vpack.c.b16 %v695, %v694
        %v802 = vpack.c.b16 %v697, %v696
        %v803 = vpack.c.b16 %v699, %v698
        %v804 = vpack.c.b16 %v701, %v700
        %v805 = vpack.c.b16 %v703, %v702
        %v806 = vpack.c.b16 %v705, %v704
        %v807 = vpack.c.b16 %v707, %v706
        %v808 = vpack.c.b16 %v709, %v708
        %v809 = vpack.c.b16 %v711, %v710
        %v810 = vpack.c.b16 %v713, %v712
        %v811 = vpack.c.b16 %v715, %v714
        %v812 = vpack.c.b16 %v717, %v716
        %v813 = vpack.c.b16 %v719, %v718
        %v814 = vpack.c.b16 %v721, %v720
        %v815 = vpack.c.b16 %v723, %v722
        %v816 = vpack.c.b16 %v725, %v724
        %v817 = vpack.c.b16 %v727, %v726
        %v818 = vpack.c.b16 %v729, %v728
        %v819 = vpack.c.b16 %v731, %v730
        %v820 = vpack.c.b16 %v733, %v732
        %v821 = vpack.c.b16 %v735, %v734
        %v822 = vpack.c.b16 %v737, %v736
        %v823 = vpack.c.b16 %v739, %v738
        %v824 = vpack.c.b16 %v741, %v740
        %v825 = vpack.c.b16 %v743, %v742
        %v826 = vpack.c.b16 %v745, %v744
        %v827 = vpack.c.b16 %v747, %v746
        %v828 = vpack.c.b16 %v749, %v748
        %v829 = vpack.c.b16 %v751, %v750
        %v830 = vpack.c.b16 %v753, %v752
        %v831 = vpack.c.b16 %v755, %v754
        %v832 = vpack.c.b16 %v757, %v756
        %v833 = vpack.c.b16 %v759, %v758
        %v834 = vpack.c.b16 %v761, %v760
        %v835 = vpack.c.b16 %v763, %v762
        %v836 = vpack.c.b16 %v765, %v764
        %v837 = vpack.c.b16 %v767, %v766
        %v838 = vpack.c.b16 %v769, %v768
        %v839 = vpack.c.b16 %v771, %v770
        %v840 = vpack.c.b16 %v773, %v772
        %v841 = vpack.c.b16 %v775, %v774
        %v842 = vpack.c.b16 %v777, %v776
        %v843 = vpack.c.b16 %v779, %v778
        %v848 = vunpack.c.l.b16 %v513
        %v849 = vunpack.c.l.b16 %v514
        %v850 = vunpack.c.l.b16 %v515
        %v851 = vunpack.c.l.b16 %v516
        %v852 = vpack.c.b16 %v849, %v848
        %v853 = vpack.c.b16 %v851, %v850
        %vm856 = vcmask 261120
        %v858 = vsel %vm856, %v780, 0
        %v861 = vsel %vm856, %v781, 0
        %v864 = vsel %vm856, %v782, 0
        %v867 = vsel %vm856, %v783, 0
        %v870 = vsel %vm856, %v784, 0
        %v873 = vsel %vm856, %v785, 0
        %v876 = vsel %vm856, %v786, 0
        %v879 = vsel %vm856, %v787, 0
        %v882 = vsel %vm856, %v788, 0
        %v885 = vsel %vm856, %v789, 0
        %v888 = vsel %vm856, %v790, 0
        %v891 = vsel %vm856, %v791, 0
        %v894 = vsel %vm856, %v792, 0
        %v897 = vsel %vm856, %v793, 0
        %v900 = vsel %vm856, %v794, 0
        %v903 = vsel %vm856, %v795, 0
        %v906 = vsel %vm856, %v796, 0
        %v909 = vsel %vm856, %v797, 0
        %v912 = vsel %vm856, %v798, 0
        %v915 = vsel %vm856, %v799, 0
        %v918 = vsel %vm856, %v800, 0
        %v921 = vsel %vm856, %v801, 0
        %v924 = vsel %vm856, %v802, 0
        %v927 = vsel %vm856, %v803, 0
        %v930 = vsel %vm856, %v804, 0
        %v933 = vsel %vm856, %v805, 0
        %v936 = vsel %vm856, %v806, 0
        %v939 = vsel %vm856, %v807, 0
        %v942 = vsel %vm856, %v808, 0
        %v945 = vsel %vm856, %v809, 0
        %v948 = vsel %vm856, %v810, 0
        %v951 = vsel %vm856, %v811, 0
        %v954 = vsel %vm856, %v812, 0
        %v957 = vsel %vm856, %v813, 0
        %v960 = vsel %vm856, %v814, 0
        %v963 = vsel %vm856, %v815, 0
        %v966 = vsel %vm856, %v816, 0
        %v969 = vsel %vm856, %v817, 0
        %v972 = vsel %vm856, %v818, 0
        %v975 = vsel %vm856, %v819, 0
        %v978 = vsel %vm856, %v820, 0
        %v981 = vsel %vm856, %v821, 0
        %v984 = vsel %vm856, %v822, 0
        %v987 = vsel %vm856, %v823, 0
        %v990 = vsel %vm856, %v824, 0
        %v993 = vsel %vm856, %v825, 0
        %v996 = vsel %vm856, %v826, 0
        %v999 = vsel %vm856, %v827, 0
        %v1002 = vsel %vm856, %v828, 0
        %v1005 = vsel %vm856, %v829, 0
        %v1008 = vsel %vm856, %v830, 0
        %v1011 = vsel %vm856, %v831, 0
        %v1014 = vsel %vm856, %v832, 0
        %v1017 = vsel %vm856, %v833, 0
        %v1020 = vsel %vm856, %v834, 0
        %v1023 = vsel %vm856, %v835, 0
        %v1026 = vsel %vm856, %v836, 0
        %v1029 = vsel %vm856, %v837, 0
        %v1032 = vsel %vm856, %v838, 0
        %v1035 = vsel %vm856, %v839, 0
        %v1038 = vsel %vm856, %v840, 0
        %v1041 = vsel %vm856, %v841, 0
        %v1044 = vsel %vm856, %v842, 0
        %v1047 = vsel %vm856, %v843, 0
        %1049 = vmatprep.subr.bf16.mxu0 0
        %1050 = vmatpush1.bf16.msra.mxu0 0
        %1051 = vmatprep.subr.bf16.mxu0 0
        %1052 = vmatpush1.bf16.msra.mxu0 0
        %1053 = vmatprep.subr.bf16.mxu0 0
        %1054 = vmatpush1.bf16.msra.mxu0 0
        %1055 = vmatprep.subr.bf16.mxu0 0
        %1056 = vmatpush1.bf16.msra.mxu0 0
        %1057 = vmatprep.subr.bf16.mxu0 0
        %1058 = vmatpush1.bf16.msra.mxu0 0
        %1059 = vmatprep.subr.bf16.mxu0 0
        %1060 = vmatpush1.bf16.msra.mxu0 0
        %1061 = vmatprep.subr.bf16.mxu0 0
        %1062 = vmatpush1.bf16.msra.mxu0 %v853
        %1063 = vmatprep.subr.bf16.mxu0 0
        %1064 = vmatpush1.bf16.msra.mxu0 %v852
        %1065 = vmatprep.subr.bf16.mxu0 0
        %1066 = vmatpush2.bf16.msra.mxu0 0
        %1067 = vmatprep.subr.bf16.mxu0 0
        %1068 = vmatpush2.bf16.msra.mxu0 0
        %1069 = vmatprep.subr.bf16.mxu0 0
        %1070 = vmatpush2.bf16.msra.mxu0 0
        %1071 = vmatprep.subr.bf16.mxu0 0
        %1072 = vmatpush2.bf16.msra.mxu0 0
        %1073 = vmatprep.subr.bf16.mxu0 0
        %1074 = vmatpush2.bf16.msra.mxu0 0
        %1075 = vmatprep.subr.bf16.mxu0 0
        %1076 = vmatpush2.bf16.msra.mxu0 0
        %1077 = vmatprep.subr.bf16.mxu0 0
        %1078 = vmatpush2.bf16.msra.mxu0 0
        %1079 = vmatprep.subr.bf16.mxu0 0
        %1080 = vmatpush2.bf16.msra.mxu0 0
        %1081 = vmatprep.mubr.bf16.mxu0 0
        %1082 = vmatmul.mubr.bf16.gmra.mxu0 %v858
        %v1083 = vpop.f32.mrf.mxu0
        %v1084 = vadd.f32 %v522, %v1083
        %v1085 = vpop.f32.mrf.mxu0
        %v1086 = vpop.f32.mrf.mxu0
        %v1087 = vadd.f32 %v522, %v1086
        %v1088 = vpop.f32.mrf.mxu0
        %1089 = vmatprep.mubr.bf16.mxu0 0
        %1090 = vmatmul.mubr.bf16.gmra.mxu0 %v861
        %v1091 = vpop.f32.mrf.mxu0
        %v1092 = vadd.f32 %v522, %v1091
        %v1093 = vpop.f32.mrf.mxu0
        %v1094 = vpop.f32.mrf.mxu0
        %v1095 = vadd.f32 %v522, %v1094
        %v1096 = vpop.f32.mrf.mxu0
        %1097 = vmatprep.mubr.bf16.mxu0 0
        %1098 = vmatmul.mubr.bf16.gmra.mxu0 %v864
        %v1099 = vpop.f32.mrf.mxu0
        %v1100 = vadd.f32 %v522, %v1099
        %v1101 = vpop.f32.mrf.mxu0
        %v1102 = vpop.f32.mrf.mxu0
        %v1103 = vadd.f32 %v522, %v1102
        %v1104 = vpop.f32.mrf.mxu0
        %1105 = vmatprep.mubr.bf16.mxu0 0
        %1106 = vmatmul.mubr.bf16.gmra.mxu0 %v867
        %v1107 = vpop.f32.mrf.mxu0
        %v1108 = vadd.f32 %v522, %v1107
        %v1109 = vpop.f32.mrf.mxu0
        %v1110 = vpop.f32.mrf.mxu0
        %v1111 = vadd.f32 %v522, %v1110
        %v1112 = vpop.f32.mrf.mxu0
        %1113 = vmatprep.mubr.bf16.mxu0 0
        %1114 = vmatmul.mubr.bf16.gmra.mxu0 %v870
        %v1115 = vpop.f32.mrf.mxu0
        %v1116 = vadd.f32 %v522, %v1115
        %v1117 = vpop.f32.mrf.mxu0
        %v1118 = vpop.f32.mrf.mxu0
        %v1119 = vadd.f32 %v522, %v1118
        %v1120 = vpop.f32.mrf.mxu0
        %1121 = vmatprep.mubr.bf16.mxu0 0
        %1122 = vmatmul.mubr.bf16.gmra.mxu0 %v873
        %v1123 = vpop.f32.mrf.mxu0
        %v1124 = vadd.f32 %v522, %v1123
        %v1125 = vpop.f32.mrf.mxu0
        %v1126 = vpop.f32.mrf.mxu0
        %v1127 = vadd.f32 %v522, %v1126
        %v1128 = vpop.f32.mrf.mxu0
        %1129 = vmatprep.mubr.bf16.mxu0 0
        %1130 = vmatmul.mubr.bf16.gmra.mxu0 %v876
        %v1131 = vpop.f32.mrf.mxu0
        %v1132 = vadd.f32 %v522, %v1131
        %v1133 = vpop.f32.mrf.mxu0
        %v1134 = vpop.f32.mrf.mxu0
        %v1135 = vadd.f32 %v522, %v1134
        %v1136 = vpop.f32.mrf.mxu0
        %1137 = vmatprep.mubr.bf16.mxu0 0
        %1138 = vmatmul.mubr.bf16.gmra.mxu0 %v879
        %v1139 = vpop.f32.mrf.mxu0
        %v1140 = vadd.f32 %v522, %v1139
        %v1141 = vpop.f32.mrf.mxu0
        %v1142 = vpop.f32.mrf.mxu0
        %v1143 = vadd.f32 %v522, %v1142
        %v1144 = vpop.f32.mrf.mxu0
        %1145 = vmatprep.mubr.bf16.mxu0 0
        %1146 = vmatmul.mubr.bf16.gmra.mxu0 %v882
        %v1147 = vpop.f32.mrf.mxu0
        %v1148 = vadd.f32 %v522, %v1147
        %v1149 = vpop.f32.mrf.mxu0
        %v1150 = vpop.f32.mrf.mxu0
        %v1151 = vadd.f32 %v522, %v1150
        %v1152 = vpop.f32.mrf.mxu0
        %1153 = vmatprep.mubr.bf16.mxu0 0
        %1154 = vmatmul.mubr.bf16.gmra.mxu0 %v885
        %v1155 = vpop.f32.mrf.mxu0
        %v1156 = vadd.f32 %v522, %v1155
        %v1157 = vpop.f32.mrf.mxu0
        %v1158 = vpop.f32.mrf.mxu0
        %v1159 = vadd.f32 %v522, %v1158
        %v1160 = vpop.f32.mrf.mxu0
        %1161 = vmatprep.mubr.bf16.mxu0 0
        %1162 = vmatmul.mubr.bf16.gmra.mxu0 %v888
        %v1163 = vpop.f32.mrf.mxu0
        %v1164 = vadd.f32 %v522, %v1163
        %v1165 = vpop.f32.mrf.mxu0
        %v1166 = vpop.f32.mrf.mxu0
        %v1167 = vadd.f32 %v522, %v1166
        %v1168 = vpop.f32.mrf.mxu0
        %1169 = vmatprep.mubr.bf16.mxu0 0
        %1170 = vmatmul.mubr.bf16.gmra.mxu0 %v891
        %v1171 = vpop.f32.mrf.mxu0
        %v1172 = vadd.f32 %v522, %v1171
        %v1173 = vpop.f32.mrf.mxu0
        %v1174 = vpop.f32.mrf.mxu0
        %v1175 = vadd.f32 %v522, %v1174
        %v1176 = vpop.f32.mrf.mxu0
        %1177 = vmatprep.mubr.bf16.mxu0 0
        %1178 = vmatmul.mubr.bf16.gmra.mxu0 %v894
        %v1179 = vpop.f32.mrf.mxu0
        %v1180 = vadd.f32 %v522, %v1179
        %v1181 = vpop.f32.mrf.mxu0
        %v1182 = vpop.f32.mrf.mxu0
        %v1183 = vadd.f32 %v522, %v1182
        %v1184 = vpop.f32.mrf.mxu0
        %1185 = vmatprep.mubr.bf16.mxu0 0
        %1186 = vmatmul.mubr.bf16.gmra.mxu0 %v897
        %v1187 = vpop.f32.mrf.mxu0
        %v1188 = vadd.f32 %v522, %v1187
        %v1189 = vpop.f32.mrf.mxu0
        %v1190 = vpop.f32.mrf.mxu0
        %v1191 = vadd.f32 %v522, %v1190
        %v1192 = vpop.f32.mrf.mxu0
        %1193 = vmatprep.mubr.bf16.mxu0 0
        %1194 = vmatmul.mubr.bf16.gmra.mxu0 %v900
        %v1195 = vpop.f32.mrf.mxu0
        %v1196 = vadd.f32 %v522, %v1195
        %v1197 = vpop.f32.mrf.mxu0
        %v1198 = vpop.f32.mrf.mxu0
        %v1199 = vadd.f32 %v522, %v1198
        %v1200 = vpop.f32.mrf.mxu0
        %1201 = vmatprep.mubr.bf16.mxu0 0
        %1202 = vmatmul.mubr.bf16.gmra.mxu0 %v903
        %v1203 = vpop.f32.mrf.mxu0
        %v1204 = vadd.f32 %v522, %v1203
        %v1205 = vpop.f32.mrf.mxu0
        %v1206 = vpop.f32.mrf.mxu0
        %v1207 = vadd.f32 %v522, %v1206
        %v1208 = vpop.f32.mrf.mxu0
        %1209 = vmatprep.mubr.bf16.mxu0 0
        %1210 = vmatmul.mubr.bf16.gmra.mxu0 %v906
        %v1211 = vpop.f32.mrf.mxu0
        %v1212 = vadd.f32 %v522, %v1211
        %v1213 = vpop.f32.mrf.mxu0
        %v1214 = vpop.f32.mrf.mxu0
        %v1215 = vadd.f32 %v522, %v1214
        %v1216 = vpop.f32.mrf.mxu0
        %1217 = vmatprep.mubr.bf16.mxu0 0
        %1218 = vmatmul.mubr.bf16.gmra.mxu0 %v909
        %v1219 = vpop.f32.mrf.mxu0
        %v1220 = vadd.f32 %v522, %v1219
        %v1221 = vpop.f32.mrf.mxu0
        %v1222 = vpop.f32.mrf.mxu0
        %v1223 = vadd.f32 %v522, %v1222
        %v1224 = vpop.f32.mrf.mxu0
        %1225 = vmatprep.mubr.bf16.mxu0 0
        %1226 = vmatmul.mubr.bf16.gmra.mxu0 %v912
        %v1227 = vpop.f32.mrf.mxu0
        %v1228 = vadd.f32 %v522, %v1227
        %v1229 = vpop.f32.mrf.mxu0
        %v1230 = vpop.f32.mrf.mxu0
        %v1231 = vadd.f32 %v522, %v1230
        %v1232 = vpop.f32.mrf.mxu0
        %1233 = vmatprep.mubr.bf16.mxu0 0
        %1234 = vmatmul.mubr.bf16.gmra.mxu0 %v915
        %v1235 = vpop.f32.mrf.mxu0
        %v1236 = vadd.f32 %v522, %v1235
        %v1237 = vpop.f32.mrf.mxu0
        %v1238 = vpop.f32.mrf.mxu0
        %v1239 = vadd.f32 %v522, %v1238
        %v1240 = vpop.f32.mrf.mxu0
        %1241 = vmatprep.mubr.bf16.mxu0 0
        %1242 = vmatmul.mubr.bf16.gmra.mxu0 %v918
        %v1243 = vpop.f32.mrf.mxu0
        %v1244 = vadd.f32 %v522, %v1243
        %v1245 = vpop.f32.mrf.mxu0
        %v1246 = vpop.f32.mrf.mxu0
        %v1247 = vadd.f32 %v522, %v1246
        %v1248 = vpop.f32.mrf.mxu0
        %1249 = vmatprep.mubr.bf16.mxu0 0
        %1250 = vmatmul.mubr.bf16.gmra.mxu0 %v921
        %v1251 = vpop.f32.mrf.mxu0
        %v1252 = vadd.f32 %v522, %v1251
        %v1253 = vpop.f32.mrf.mxu0
        %v1254 = vpop.f32.mrf.mxu0
        %v1255 = vadd.f32 %v522, %v1254
        %v1256 = vpop.f32.mrf.mxu0
        %1257 = vmatprep.mubr.bf16.mxu0 0
        %1258 = vmatmul.mubr.bf16.gmra.mxu0 %v924
        %v1259 = vpop.f32.mrf.mxu0
        %v1260 = vadd.f32 %v522, %v1259
        %v1261 = vpop.f32.mrf.mxu0
        %v1262 = vpop.f32.mrf.mxu0
        %v1263 = vadd.f32 %v522, %v1262
        %v1264 = vpop.f32.mrf.mxu0
        %1265 = vmatprep.mubr.bf16.mxu0 0
        %1266 = vmatmul.mubr.bf16.gmra.mxu0 %v927
        %v1267 = vpop.f32.mrf.mxu0
        %v1268 = vadd.f32 %v522, %v1267
        %v1269 = vpop.f32.mrf.mxu0
        %v1270 = vpop.f32.mrf.mxu0
        %v1271 = vadd.f32 %v522, %v1270
        %v1272 = vpop.f32.mrf.mxu0
        %1273 = vmatprep.mubr.bf16.mxu0 0
        %1274 = vmatmul.mubr.bf16.gmra.mxu0 %v930
        %v1275 = vpop.f32.mrf.mxu0
        %v1276 = vadd.f32 %v522, %v1275
        %v1277 = vpop.f32.mrf.mxu0
        %v1278 = vpop.f32.mrf.mxu0
        %v1279 = vadd.f32 %v522, %v1278
        %v1280 = vpop.f32.mrf.mxu0
        %1281 = vmatprep.mubr.bf16.mxu0 0
        %1282 = vmatmul.mubr.bf16.gmra.mxu0 %v933
        %v1283 = vpop.f32.mrf.mxu0
        %v1284 = vadd.f32 %v522, %v1283
        %v1285 = vpop.f32.mrf.mxu0
        %v1286 = vpop.f32.mrf.mxu0
        %v1287 = vadd.f32 %v522, %v1286
        %v1288 = vpop.f32.mrf.mxu0
        %1289 = vmatprep.mubr.bf16.mxu0 0
        %1290 = vmatmul.mubr.bf16.gmra.mxu0 %v936
        %v1291 = vpop.f32.mrf.mxu0
        %v1292 = vadd.f32 %v522, %v1291
        %v1293 = vpop.f32.mrf.mxu0
        %v1294 = vpop.f32.mrf.mxu0
        %v1295 = vadd.f32 %v522, %v1294
        %v1296 = vpop.f32.mrf.mxu0
        %1297 = vmatprep.mubr.bf16.mxu0 0
        %1298 = vmatmul.mubr.bf16.gmra.mxu0 %v939
        %v1299 = vpop.f32.mrf.mxu0
        %v1300 = vadd.f32 %v522, %v1299
        %v1301 = vpop.f32.mrf.mxu0
        %v1302 = vpop.f32.mrf.mxu0
        %v1303 = vadd.f32 %v522, %v1302
        %v1304 = vpop.f32.mrf.mxu0
        %1305 = vmatprep.mubr.bf16.mxu0 0
        %1306 = vmatmul.mubr.bf16.gmra.mxu0 %v942
        %v1307 = vpop.f32.mrf.mxu0
        %v1308 = vadd.f32 %v522, %v1307
        %v1309 = vpop.f32.mrf.mxu0
        %v1310 = vpop.f32.mrf.mxu0
        %v1311 = vadd.f32 %v522, %v1310
        %v1312 = vpop.f32.mrf.mxu0
        %1313 = vmatprep.mubr.bf16.mxu0 0
        %1314 = vmatmul.mubr.bf16.gmra.mxu0 %v945
        %v1315 = vpop.f32.mrf.mxu0
        %v1316 = vadd.f32 %v522, %v1315
        %v1317 = vpop.f32.mrf.mxu0
        %v1318 = vpop.f32.mrf.mxu0
        %v1319 = vadd.f32 %v522, %v1318
        %v1320 = vpop.f32.mrf.mxu0
        %1321 = vmatprep.mubr.bf16.mxu0 0
        %1322 = vmatmul.mubr.bf16.gmra.mxu0 %v948
        %v1323 = vpop.f32.mrf.mxu0
        %v1324 = vadd.f32 %v522, %v1323
        %v1325 = vpop.f32.mrf.mxu0
        %v1326 = vpop.f32.mrf.mxu0
        %v1327 = vadd.f32 %v522, %v1326
        %v1328 = vpop.f32.mrf.mxu0
        %1329 = vmatprep.mubr.bf16.mxu0 0
        %1330 = vmatmul.mubr.bf16.gmra.mxu0 %v951
        %v1331 = vpop.f32.mrf.mxu0
        %v1332 = vadd.f32 %v522, %v1331
        %v1333 = vpop.f32.mrf.mxu0
        %v1334 = vpop.f32.mrf.mxu0
        %v1335 = vadd.f32 %v522, %v1334
        %v1336 = vpop.f32.mrf.mxu0
        %1337 = vmatprep.mubr.bf16.mxu0 0
        %1338 = vmatmul.mubr.bf16.gmra.mxu0 %v954
        %v1339 = vpop.f32.mrf.mxu0
        %v1340 = vadd.f32 %v522, %v1339
        %v1341 = vpop.f32.mrf.mxu0
        %v1342 = vpop.f32.mrf.mxu0
        %v1343 = vadd.f32 %v522, %v1342
        %v1344 = vpop.f32.mrf.mxu0
        %1345 = vmatprep.mubr.bf16.mxu0 0
        %1346 = vmatmul.mubr.bf16.gmra.mxu0 %v957
        %v1347 = vpop.f32.mrf.mxu0
        %v1348 = vadd.f32 %v522, %v1347
        %v1349 = vpop.f32.mrf.mxu0
        %v1350 = vpop.f32.mrf.mxu0
        %v1351 = vadd.f32 %v522, %v1350
        %v1352 = vpop.f32.mrf.mxu0
        %1353 = vmatprep.mubr.bf16.mxu0 0
        %1354 = vmatmul.mubr.bf16.gmra.mxu0 %v960
        %v1355 = vpop.f32.mrf.mxu0
        %v1356 = vadd.f32 %v522, %v1355
        %v1357 = vpop.f32.mrf.mxu0
        %v1358 = vpop.f32.mrf.mxu0
        %v1359 = vadd.f32 %v522, %v1358
        %v1360 = vpop.f32.mrf.mxu0
        %1361 = vmatprep.mubr.bf16.mxu0 0
        %1362 = vmatmul.mubr.bf16.gmra.mxu0 %v963
        %v1363 = vpop.f32.mrf.mxu0
        %v1364 = vadd.f32 %v522, %v1363
        %v1365 = vpop.f32.mrf.mxu0
        %v1366 = vpop.f32.mrf.mxu0
        %v1367 = vadd.f32 %v522, %v1366
        %v1368 = vpop.f32.mrf.mxu0
        %1369 = vmatprep.mubr.bf16.mxu0 0
        %1370 = vmatmul.mubr.bf16.gmra.mxu0 %v966
        %v1371 = vpop.f32.mrf.mxu0
        %v1372 = vadd.f32 %v522, %v1371
        %v1373 = vpop.f32.mrf.mxu0
        %v1374 = vpop.f32.mrf.mxu0
        %v1375 = vadd.f32 %v522, %v1374
        %v1376 = vpop.f32.mrf.mxu0
        %1377 = vmatprep.mubr.bf16.mxu0 0
        %1378 = vmatmul.mubr.bf16.gmra.mxu0 %v969
        %v1379 = vpop.f32.mrf.mxu0
        %v1380 = vadd.f32 %v522, %v1379
        %v1381 = vpop.f32.mrf.mxu0
        %v1382 = vpop.f32.mrf.mxu0
        %v1383 = vadd.f32 %v522, %v1382
        %v1384 = vpop.f32.mrf.mxu0
        %1385 = vmatprep.mubr.bf16.mxu0 0
        %1386 = vmatmul.mubr.bf16.gmra.mxu0 %v972
        %v1387 = vpop.f32.mrf.mxu0
        %v1388 = vadd.f32 %v522, %v1387
        %v1389 = vpop.f32.mrf.mxu0
        %v1390 = vpop.f32.mrf.mxu0
        %v1391 = vadd.f32 %v522, %v1390
        %v1392 = vpop.f32.mrf.mxu0
        %1393 = vmatprep.mubr.bf16.mxu0 0
        %1394 = vmatmul.mubr.bf16.gmra.mxu0 %v975
        %v1395 = vpop.f32.mrf.mxu0
        %v1396 = vadd.f32 %v522, %v1395
        %v1397 = vpop.f32.mrf.mxu0
        %v1398 = vpop.f32.mrf.mxu0
        %v1399 = vadd.f32 %v522, %v1398
        %v1400 = vpop.f32.mrf.mxu0
        %1401 = vmatprep.mubr.bf16.mxu0 0
        %1402 = vmatmul.mubr.bf16.gmra.mxu0 %v978
        %v1403 = vpop.f32.mrf.mxu0
        %v1404 = vadd.f32 %v522, %v1403
        %v1405 = vpop.f32.mrf.mxu0
        %v1406 = vpop.f32.mrf.mxu0
        %v1407 = vadd.f32 %v522, %v1406
        %v1408 = vpop.f32.mrf.mxu0
        %1409 = vmatprep.mubr.bf16.mxu0 0
        %1410 = vmatmul.mubr.bf16.gmra.mxu0 %v981
        %v1411 = vpop.f32.mrf.mxu0
        %v1412 = vadd.f32 %v522, %v1411
        %v1413 = vpop.f32.mrf.mxu0
        %v1414 = vpop.f32.mrf.mxu0
        %v1415 = vadd.f32 %v522, %v1414
        %v1416 = vpop.f32.mrf.mxu0
        %1417 = vmatprep.mubr.bf16.mxu0 0
        %1418 = vmatmul.mubr.bf16.gmra.mxu0 %v984
        %v1419 = vpop.f32.mrf.mxu0
        %v1420 = vadd.f32 %v522, %v1419
        %v1421 = vpop.f32.mrf.mxu0
        %v1422 = vpop.f32.mrf.mxu0
        %v1423 = vadd.f32 %v522, %v1422
        %v1424 = vpop.f32.mrf.mxu0
        %1425 = vmatprep.mubr.bf16.mxu0 0
        %1426 = vmatmul.mubr.bf16.gmra.mxu0 %v987
        %v1427 = vpop.f32.mrf.mxu0
        %v1428 = vadd.f32 %v522, %v1427
        %v1429 = vpop.f32.mrf.mxu0
        %v1430 = vpop.f32.mrf.mxu0
        %v1431 = vadd.f32 %v522, %v1430
        %v1432 = vpop.f32.mrf.mxu0
        %1433 = vmatprep.mubr.bf16.mxu0 0
        %1434 = vmatmul.mubr.bf16.gmra.mxu0 %v990
        %v1435 = vpop.f32.mrf.mxu0
        %v1436 = vadd.f32 %v522, %v1435
        %v1437 = vpop.f32.mrf.mxu0
        %v1438 = vpop.f32.mrf.mxu0
        %v1439 = vadd.f32 %v522, %v1438
        %v1440 = vpop.f32.mrf.mxu0
        %1441 = vmatprep.mubr.bf16.mxu0 0
        %1442 = vmatmul.mubr.bf16.gmra.mxu0 %v993
        %v1443 = vpop.f32.mrf.mxu0
        %v1444 = vadd.f32 %v522, %v1443
        %v1445 = vpop.f32.mrf.mxu0
        %v1446 = vpop.f32.mrf.mxu0
        %v1447 = vadd.f32 %v522, %v1446
        %v1448 = vpop.f32.mrf.mxu0
        %1449 = vmatprep.mubr.bf16.mxu0 0
        %1450 = vmatmul.mubr.bf16.gmra.mxu0 %v996
        %v1451 = vpop.f32.mrf.mxu0
        %v1452 = vadd.f32 %v522, %v1451
        %v1453 = vpop.f32.mrf.mxu0
        %v1454 = vpop.f32.mrf.mxu0
        %v1455 = vadd.f32 %v522, %v1454
        %v1456 = vpop.f32.mrf.mxu0
        %1457 = vmatprep.mubr.bf16.mxu0 0
        %1458 = vmatmul.mubr.bf16.gmra.mxu0 %v999
        %v1459 = vpop.f32.mrf.mxu0
        %v1460 = vadd.f32 %v522, %v1459
        %v1461 = vpop.f32.mrf.mxu0
        %v1462 = vpop.f32.mrf.mxu0
        %v1463 = vadd.f32 %v522, %v1462
        %v1464 = vpop.f32.mrf.mxu0
        %1465 = vmatprep.mubr.bf16.mxu0 0
        %1466 = vmatmul.mubr.bf16.gmra.mxu0 %v1002
        %v1467 = vpop.f32.mrf.mxu0
        %v1468 = vadd.f32 %v522, %v1467
        %v1469 = vpop.f32.mrf.mxu0
        %v1470 = vpop.f32.mrf.mxu0
        %v1471 = vadd.f32 %v522, %v1470
        %v1472 = vpop.f32.mrf.mxu0
        %1473 = vmatprep.mubr.bf16.mxu0 0
        %1474 = vmatmul.mubr.bf16.gmra.mxu0 %v1005
        %v1475 = vpop.f32.mrf.mxu0
        %v1476 = vadd.f32 %v522, %v1475
        %v1477 = vpop.f32.mrf.mxu0
        %v1478 = vpop.f32.mrf.mxu0
        %v1479 = vadd.f32 %v522, %v1478
        %v1480 = vpop.f32.mrf.mxu0
        %1481 = vmatprep.mubr.bf16.mxu0 0
        %1482 = vmatmul.mubr.bf16.gmra.mxu0 %v1008
        %v1483 = vpop.f32.mrf.mxu0
        %v1484 = vadd.f32 %v522, %v1483
        %v1485 = vpop.f32.mrf.mxu0
        %v1486 = vpop.f32.mrf.mxu0
        %v1487 = vadd.f32 %v522, %v1486
        %v1488 = vpop.f32.mrf.mxu0
        %1489 = vmatprep.mubr.bf16.mxu0 0
        %1490 = vmatmul.mubr.bf16.gmra.mxu0 %v1011
        %v1491 = vpop.f32.mrf.mxu0
        %v1492 = vadd.f32 %v522, %v1491
        %v1493 = vpop.f32.mrf.mxu0
        %v1494 = vpop.f32.mrf.mxu0
        %v1495 = vadd.f32 %v522, %v1494
        %v1496 = vpop.f32.mrf.mxu0
        %1497 = vmatprep.mubr.bf16.mxu0 0
        %1498 = vmatmul.mubr.bf16.gmra.mxu0 %v1014
        %v1499 = vpop.f32.mrf.mxu0
        %v1500 = vadd.f32 %v522, %v1499
        %v1501 = vpop.f32.mrf.mxu0
        %v1502 = vpop.f32.mrf.mxu0
        %v1503 = vadd.f32 %v522, %v1502
        %v1504 = vpop.f32.mrf.mxu0
        %1505 = vmatprep.mubr.bf16.mxu0 0
        %1506 = vmatmul.mubr.bf16.gmra.mxu0 %v1017
        %v1507 = vpop.f32.mrf.mxu0
        %v1508 = vadd.f32 %v522, %v1507
        %v1509 = vpop.f32.mrf.mxu0
        %v1510 = vpop.f32.mrf.mxu0
        %v1511 = vadd.f32 %v522, %v1510
        %v1512 = vpop.f32.mrf.mxu0
        %1513 = vmatprep.mubr.bf16.mxu0 0
        %1514 = vmatmul.mubr.bf16.gmra.mxu0 %v1020
        %v1515 = vpop.f32.mrf.mxu0
        %v1516 = vadd.f32 %v522, %v1515
        %v1517 = vpop.f32.mrf.mxu0
        %v1518 = vpop.f32.mrf.mxu0
        %v1519 = vadd.f32 %v522, %v1518
        %v1520 = vpop.f32.mrf.mxu0
        %1521 = vmatprep.mubr.bf16.mxu0 0
        %1522 = vmatmul.mubr.bf16.gmra.mxu0 %v1023
        %v1523 = vpop.f32.mrf.mxu0
        %v1524 = vadd.f32 %v522, %v1523
        %v1525 = vpop.f32.mrf.mxu0
        %v1526 = vpop.f32.mrf.mxu0
        %v1527 = vadd.f32 %v522, %v1526
        %v1528 = vpop.f32.mrf.mxu0
        %1529 = vmatprep.mubr.bf16.mxu0 0
        %1530 = vmatmul.mubr.bf16.gmra.mxu0 %v1026
        %v1531 = vpop.f32.mrf.mxu0
        %v1532 = vadd.f32 %v522, %v1531
        %v1533 = vpop.f32.mrf.mxu0
        %v1534 = vpop.f32.mrf.mxu0
        %v1535 = vadd.f32 %v522, %v1534
        %v1536 = vpop.f32.mrf.mxu0
        %1537 = vmatprep.mubr.bf16.mxu0 0
        %1538 = vmatmul.mubr.bf16.gmra.mxu0 %v1029
        %v1539 = vpop.f32.mrf.mxu0
        %v1540 = vadd.f32 %v522, %v1539
        %v1541 = vpop.f32.mrf.mxu0
        %v1542 = vpop.f32.mrf.mxu0
        %v1543 = vadd.f32 %v522, %v1542
        %v1544 = vpop.f32.mrf.mxu0
        %1545 = vmatprep.mubr.bf16.mxu0 0
        %1546 = vmatmul.mubr.bf16.gmra.mxu0 %v1032
        %v1547 = vpop.f32.mrf.mxu0
        %v1548 = vadd.f32 %v522, %v1547
        %v1549 = vpop.f32.mrf.mxu0
        %v1550 = vpop.f32.mrf.mxu0
        %v1551 = vadd.f32 %v522, %v1550
        %v1552 = vpop.f32.mrf.mxu0
        %1553 = vmatprep.mubr.bf16.mxu0 0
        %1554 = vmatmul.mubr.bf16.gmra.mxu0 %v1035
        %v1555 = vpop.f32.mrf.mxu0
        %v1556 = vadd.f32 %v522, %v1555
        %v1557 = vpop.f32.mrf.mxu0
        %v1558 = vpop.f32.mrf.mxu0
        %v1559 = vadd.f32 %v522, %v1558
        %v1560 = vpop.f32.mrf.mxu0
        %1561 = vmatprep.mubr.bf16.mxu0 0
        %1562 = vmatmul.mubr.bf16.gmra.mxu0 %v1038
        %v1563 = vpop.f32.mrf.mxu0
        %v1564 = vadd.f32 %v522, %v1563
        %v1565 = vpop.f32.mrf.mxu0
        %v1566 = vpop.f32.mrf.mxu0
        %v1567 = vadd.f32 %v522, %v1566
        %v1568 = vpop.f32.mrf.mxu0
        %1569 = vmatprep.mubr.bf16.mxu0 0
        %1570 = vmatmul.mubr.bf16.gmra.mxu0 %v1041
        %v1571 = vpop.f32.mrf.mxu0
        %v1572 = vadd.f32 %v522, %v1571
        %v1573 = vpop.f32.mrf.mxu0
        %v1574 = vpop.f32.mrf.mxu0
        %v1575 = vadd.f32 %v522, %v1574
        %v1576 = vpop.f32.mrf.mxu0
        %1577 = vmatprep.mubr.bf16.mxu0 0
        %1578 = vmatmul.mubr.bf16.gmra.mxu0 %v1044
        %v1579 = vpop.f32.mrf.mxu0
        %v1580 = vadd.f32 %v522, %v1579
        %v1581 = vpop.f32.mrf.mxu0
        %v1582 = vpop.f32.mrf.mxu0
        %v1583 = vadd.f32 %v522, %v1582
        %v1584 = vpop.f32.mrf.mxu0
        %1585 = vmatprep.mubr.bf16.mxu0 0
        %1586 = vmatmul.mubr.bf16.gmra.mxu0 %v1047
        %v1587 = vpop.f32.mrf.mxu0
        %v1588 = vadd.f32 %v522, %v1587
        %v1589 = vpop.f32.mrf.mxu0
        %v1590 = vpop.f32.mrf.mxu0
        %v1591 = vadd.f32 %v522, %v1590
        %v1592 = vpop.f32.mrf.mxu0
        %1593 = vdwg.mxu0
        %v1594 = vmax.f32 %v1084, 0.0
        %v1595 = vmax.f32 %v1087, 0.0
        %v1596 = vmax.f32 %v1092, 0.0
        %v1597 = vmax.f32 %v1095, 0.0
        %v1598 = vmax.f32 %v1100, 0.0
        %v1599 = vmax.f32 %v1103, 0.0
        %v1600 = vmax.f32 %v1108, 0.0
        %v1601 = vmax.f32 %v1111, 0.0
        %v1602 = vmax.f32 %v1116, 0.0
        %v1603 = vmax.f32 %v1119, 0.0
        %v1604 = vmax.f32 %v1124, 0.0
        %v1605 = vmax.f32 %v1127, 0.0
        %v1606 = vmax.f32 %v1132, 0.0
        %v1607 = vmax.f32 %v1135, 0.0
        %v1608 = vmax.f32 %v1140, 0.0
        %v1609 = vmax.f32 %v1143, 0.0
        %v1610 = vmax.f32 %v1148, 0.0
        %v1611 = vmax.f32 %v1151, 0.0
        %v1612 = vmax.f32 %v1156, 0.0
        %v1613 = vmax.f32 %v1159, 0.0
        %v1614 = vmax.f32 %v1164, 0.0
        %v1615 = vmax.f32 %v1167, 0.0
        %v1616 = vmax.f32 %v1172, 0.0
        %v1617 = vmax.f32 %v1175, 0.0
        %v1618 = vmax.f32 %v1180, 0.0
        %v1619 = vmax.f32 %v1183, 0.0
        %v1620 = vmax.f32 %v1188, 0.0
        %v1621 = vmax.f32 %v1191, 0.0
        %v1622 = vmax.f32 %v1196, 0.0
        %v1623 = vmax.f32 %v1199, 0.0
        %v1624 = vmax.f32 %v1204, 0.0
        %v1625 = vmax.f32 %v1207, 0.0
        %v1626 = vmax.f32 %v1212, 0.0
        %v1627 = vmax.f32 %v1215, 0.0
        %v1628 = vmax.f32 %v1220, 0.0
        %v1629 = vmax.f32 %v1223, 0.0
        %v1630 = vmax.f32 %v1228, 0.0
        %v1631 = vmax.f32 %v1231, 0.0
        %v1632 = vmax.f32 %v1236, 0.0
        %v1633 = vmax.f32 %v1239, 0.0
        %v1634 = vmax.f32 %v1244, 0.0
        %v1635 = vmax.f32 %v1247, 0.0
        %v1636 = vmax.f32 %v1252, 0.0
        %v1637 = vmax.f32 %v1255, 0.0
        %v1638 = vmax.f32 %v1260, 0.0
        %v1639 = vmax.f32 %v1263, 0.0
        %v1640 = vmax.f32 %v1268, 0.0
        %v1641 = vmax.f32 %v1271, 0.0
        %v1642 = vmax.f32 %v1276, 0.0
        %v1643 = vmax.f32 %v1279, 0.0
        %v1644 = vmax.f32 %v1284, 0.0
        %v1645 = vmax.f32 %v1287, 0.0
        %v1646 = vmax.f32 %v1292, 0.0
        %v1647 = vmax.f32 %v1295, 0.0
        %v1648 = vmax.f32 %v1300, 0.0
        %v1649 = vmax.f32 %v1303, 0.0
        %v1650 = vmax.f32 %v1308, 0.0
        %v1651 = vmax.f32 %v1311, 0.0
        %v1652 = vmax.f32 %v1316, 0.0
        %v1653 = vmax.f32 %v1319, 0.0
        %v1654 = vmax.f32 %v1324, 0.0
        %v1655 = vmax.f32 %v1327, 0.0
        %v1656 = vmax.f32 %v1332, 0.0
        %v1657 = vmax.f32 %v1335, 0.0
        %v1658 = vmax.f32 %v1340, 0.0
        %v1659 = vmax.f32 %v1343, 0.0
        %v1660 = vmax.f32 %v1348, 0.0
        %v1661 = vmax.f32 %v1351, 0.0
        %v1662 = vmax.f32 %v1356, 0.0
        %v1663 = vmax.f32 %v1359, 0.0
        %v1664 = vmax.f32 %v1364, 0.0
        %v1665 = vmax.f32 %v1367, 0.0
        %v1666 = vmax.f32 %v1372, 0.0
        %v1667 = vmax.f32 %v1375, 0.0
        %v1668 = vmax.f32 %v1380, 0.0
        %v1669 = vmax.f32 %v1383, 0.0
        %v1670 = vmax.f32 %v1388, 0.0
        %v1671 = vmax.f32 %v1391, 0.0
        %v1672 = vmax.f32 %v1396, 0.0
        %v1673 = vmax.f32 %v1399, 0.0
        %v1674 = vmax.f32 %v1404, 0.0
        %v1675 = vmax.f32 %v1407, 0.0
        %v1676 = vmax.f32 %v1412, 0.0
        %v1677 = vmax.f32 %v1415, 0.0
        %v1678 = vmax.f32 %v1420, 0.0
        %v1679 = vmax.f32 %v1423, 0.0
        %v1680 = vmax.f32 %v1428, 0.0
        %v1681 = vmax.f32 %v1431, 0.0
        %v1682 = vmax.f32 %v1436, 0.0
        %v1683 = vmax.f32 %v1439, 0.0
        %v1684 = vmax.f32 %v1444, 0.0
        %v1685 = vmax.f32 %v1447, 0.0
        %v1686 = vmax.f32 %v1452, 0.0
        %v1687 = vmax.f32 %v1455, 0.0
        %v1688 = vmax.f32 %v1460, 0.0
        %v1689 = vmax.f32 %v1463, 0.0
        %v1690 = vmax.f32 %v1468, 0.0
        %v1691 = vmax.f32 %v1471, 0.0
        %v1692 = vmax.f32 %v1476, 0.0
        %v1693 = vmax.f32 %v1479, 0.0
        %v1694 = vmax.f32 %v1484, 0.0
        %v1695 = vmax.f32 %v1487, 0.0
        %v1696 = vmax.f32 %v1492, 0.0
        %v1697 = vmax.f32 %v1495, 0.0
        %v1698 = vmax.f32 %v1500, 0.0
        %v1699 = vmax.f32 %v1503, 0.0
        %v1700 = vmax.f32 %v1508, 0.0
        %v1701 = vmax.f32 %v1511, 0.0
        %v1702 = vmax.f32 %v1516, 0.0
        %v1703 = vmax.f32 %v1519, 0.0
        %v1704 = vmax.f32 %v1524, 0.0
        %v1705 = vmax.f32 %v1527, 0.0
        %v1706 = vmax.f32 %v1532, 0.0
        %v1707 = vmax.f32 %v1535, 0.0
        %v1708 = vmax.f32 %v1540, 0.0
        %v1709 = vmax.f32 %v1543, 0.0
        %v1710 = vmax.f32 %v1548, 0.0
        %v1711 = vmax.f32 %v1551, 0.0
        %v1712 = vmax.f32 %v1556, 0.0
        %v1713 = vmax.f32 %v1559, 0.0
        %v1714 = vmax.f32 %v1564, 0.0
        %v1715 = vmax.f32 %v1567, 0.0
        %v1716 = vmax.f32 %v1572, 0.0
        %v1717 = vmax.f32 %v1575, 0.0
        %v1718 = vmax.f32 %v1580, 0.0
        %v1719 = vmax.f32 %v1583, 0.0
        %v1720 = vmax.f32 %v1588, 0.0
        %v1721 = vmax.f32 %v1591, 0.0
        %1722 = vst.msk [vmem:[#allocation4] sm:$0xff] %vm856, %v1594
        %1723 = vst.msk [vmem:[#allocation4 + $0x8] sm:$0xff] %vm856, %v1595
        %1724 = vst.msk [vmem:[#allocation4 + $0x10] sm:$0xff] %vm856, %v1596
        %1725 = vst.msk [vmem:[#allocation4 + $0x18] sm:$0xff] %vm856, %v1597
        %1726 = vst.msk [vmem:[#allocation4 + $0x20] sm:$0xff] %vm856, %v1598
        %1727 = vst.msk [vmem:[#allocation4 + $0x28] sm:$0xff] %vm856, %v1599
        %1728 = vst.msk [vmem:[#allocation4 + $0x30] sm:$0xff] %vm856, %v1600
        %1729 = vst.msk [vmem:[#allocation4 + $0x38] sm:$0xff] %vm856, %v1601
        %1730 = vst.msk [vmem:[#allocation4 + $0x40] sm:$0xff] %vm856, %v1602
        %1731 = vst.msk [vmem:[#allocation4 + $0x48] sm:$0xff] %vm856, %v1603
        %1732 = vst.msk [vmem:[#allocation4 + $0x50] sm:$0xff] %vm856, %v1604
        %1733 = vst.msk [vmem:[#allocation4 + $0x58] sm:$0xff] %vm856, %v1605
        %1734 = vst.msk [vmem:[#allocation4 + $0x60] sm:$0xff] %vm856, %v1606
        %1735 = vst.msk [vmem:[#allocation4 + $0x68] sm:$0xff] %vm856, %v1607
        %1736 = vst.msk [vmem:[#allocation4 + $0x70] sm:$0xff] %vm856, %v1608
        %1737 = vst.msk [vmem:[#allocation4 + $0x78] sm:$0xff] %vm856, %v1609
        %1738 = vst.msk [vmem:[#allocation4 + $0x80] sm:$0xff] %vm856, %v1610
        %1739 = vst.msk [vmem:[#allocation4 + $0x88] sm:$0xff] %vm856, %v1611
        %1740 = vst.msk [vmem:[#allocation4 + $0x90] sm:$0xff] %vm856, %v1612
        %1741 = vst.msk [vmem:[#allocation4 + $0x98] sm:$0xff] %vm856, %v1613
        %1742 = vst.msk [vmem:[#allocation4 + $0xa0] sm:$0xff] %vm856, %v1614
        %1743 = vst.msk [vmem:[#allocation4 + $0xa8] sm:$0xff] %vm856, %v1615
        %1744 = vst.msk [vmem:[#allocation4 + $0xb0] sm:$0xff] %vm856, %v1616
        %1745 = vst.msk [vmem:[#allocation4 + $0xb8] sm:$0xff] %vm856, %v1617
        %1746 = vst.msk [vmem:[#allocation4 + $0xc0] sm:$0xff] %vm856, %v1618
        %1747 = vst.msk [vmem:[#allocation4 + $0xc8] sm:$0xff] %vm856, %v1619
        %1748 = vst.msk [vmem:[#allocation4 + $0xd0] sm:$0xff] %vm856, %v1620
        %1749 = vst.msk [vmem:[#allocation4 + $0xd8] sm:$0xff] %vm856, %v1621
        %1750 = vst.msk [vmem:[#allocation4 + $0xe0] sm:$0xff] %vm856, %v1622
        %1751 = vst.msk [vmem:[#allocation4 + $0xe8] sm:$0xff] %vm856, %v1623
        %1752 = vst.msk [vmem:[#allocation4 + $0xf0] sm:$0xff] %vm856, %v1624
        %1753 = vst.msk [vmem:[#allocation4 + $0xf8] sm:$0xff] %vm856, %v1625
        %1754 = vst.msk [vmem:[#allocation4 + $0x100] sm:$0xff] %vm856, %v1626
        %1755 = vst.msk [vmem:[#allocation4 + $0x108] sm:$0xff] %vm856, %v1627
        %1756 = vst.msk [vmem:[#allocation4 + $0x110] sm:$0xff] %vm856, %v1628
        %1757 = vst.msk [vmem:[#allocation4 + $0x118] sm:$0xff] %vm856, %v1629
        %1758 = vst.msk [vmem:[#allocation4 + $0x120] sm:$0xff] %vm856, %v1630
        %1759 = vst.msk [vmem:[#allocation4 + $0x128] sm:$0xff] %vm856, %v1631
        %1760 = vst.msk [vmem:[#allocation4 + $0x130] sm:$0xff] %vm856, %v1632
        %1761 = vst.msk [vmem:[#allocation4 + $0x138] sm:$0xff] %vm856, %v1633
        %1762 = vst.msk [vmem:[#allocation4 + $0x140] sm:$0xff] %vm856, %v1634
        %1763 = vst.msk [vmem:[#allocation4 + $0x148] sm:$0xff] %vm856, %v1635
        %1764 = vst.msk [vmem:[#allocation4 + $0x150] sm:$0xff] %vm856, %v1636
        %1765 = vst.msk [vmem:[#allocation4 + $0x158] sm:$0xff] %vm856, %v1637
        %1766 = vst.msk [vmem:[#allocation4 + $0x160] sm:$0xff] %vm856, %v1638
        %1767 = vst.msk [vmem:[#allocation4 + $0x168] sm:$0xff] %vm856, %v1639
        %1768 = vst.msk [vmem:[#allocation4 + $0x170] sm:$0xff] %vm856, %v1640
        %1769 = vst.msk [vmem:[#allocation4 + $0x178] sm:$0xff] %vm856, %v1641
        %1770 = vst.msk [vmem:[#allocation4 + $0x180] sm:$0xff] %vm856, %v1642
        %1771 = vst.msk [vmem:[#allocation4 + $0x188] sm:$0xff] %vm856, %v1643
        %1772 = vst.msk [vmem:[#allocation4 + $0x190] sm:$0xff] %vm856, %v1644
        %1773 = vst.msk [vmem:[#allocation4 + $0x198] sm:$0xff] %vm856, %v1645
        %1774 = vst.msk [vmem:[#allocation4 + $0x1a0] sm:$0xff] %vm856, %v1646
        %1775 = vst.msk [vmem:[#allocation4 + $0x1a8] sm:$0xff] %vm856, %v1647
        %1776 = vst.msk [vmem:[#allocation4 + $0x1b0] sm:$0xff] %vm856, %v1648
        %1777 = vst.msk [vmem:[#allocation4 + $0x1b8] sm:$0xff] %vm856, %v1649
        %1778 = vst.msk [vmem:[#allocation4 + $0x1c0] sm:$0xff] %vm856, %v1650
        %1779 = vst.msk [vmem:[#allocation4 + $0x1c8] sm:$0xff] %vm856, %v1651
        %1780 = vst.msk [vmem:[#allocation4 + $0x1d0] sm:$0xff] %vm856, %v1652
        %1781 = vst.msk [vmem:[#allocation4 + $0x1d8] sm:$0xff] %vm856, %v1653
        %1782 = vst.msk [vmem:[#allocation4 + $0x1e0] sm:$0xff] %vm856, %v1654
        %1783 = vst.msk [vmem:[#allocation4 + $0x1e8] sm:$0xff] %vm856, %v1655
        %1784 = vst.msk [vmem:[#allocation4 + $0x1f0] sm:$0xff] %vm856, %v1656
        %1785 = vst.msk [vmem:[#allocation4 + $0x1f8] sm:$0xff] %vm856, %v1657
        %1786 = vst.msk [vmem:[#allocation4 + $0x200] sm:$0xff] %vm856, %v1658
        %1787 = vst.msk [vmem:[#allocation4 + $0x208] sm:$0xff] %vm856, %v1659
        %1788 = vst.msk [vmem:[#allocation4 + $0x210] sm:$0xff] %vm856, %v1660
        %1789 = vst.msk [vmem:[#allocation4 + $0x218] sm:$0xff] %vm856, %v1661
        %1790 = vst.msk [vmem:[#allocation4 + $0x220] sm:$0xff] %vm856, %v1662
        %1791 = vst.msk [vmem:[#allocation4 + $0x228] sm:$0xff] %vm856, %v1663
        %1792 = vst.msk [vmem:[#allocation4 + $0x230] sm:$0xff] %vm856, %v1664
        %1793 = vst.msk [vmem:[#allocation4 + $0x238] sm:$0xff] %vm856, %v1665
        %1794 = vst.msk [vmem:[#allocation4 + $0x240] sm:$0xff] %vm856, %v1666
        %1795 = vst.msk [vmem:[#allocation4 + $0x248] sm:$0xff] %vm856, %v1667
        %1796 = vst.msk [vmem:[#allocation4 + $0x250] sm:$0xff] %vm856, %v1668
        %1797 = vst.msk [vmem:[#allocation4 + $0x258] sm:$0xff] %vm856, %v1669
        %1798 = vst.msk [vmem:[#allocation4 + $0x260] sm:$0xff] %vm856, %v1670
        %1799 = vst.msk [vmem:[#allocation4 + $0x268] sm:$0xff] %vm856, %v1671
        %1800 = vst.msk [vmem:[#allocation4 + $0x270] sm:$0xff] %vm856, %v1672
        %1801 = vst.msk [vmem:[#allocation4 + $0x278] sm:$0xff] %vm856, %v1673
        %1802 = vst.msk [vmem:[#allocation4 + $0x280] sm:$0xff] %vm856, %v1674
        %1803 = vst.msk [vmem:[#allocation4 + $0x288] sm:$0xff] %vm856, %v1675
        %1804 = vst.msk [vmem:[#allocation4 + $0x290] sm:$0xff] %vm856, %v1676
        %1805 = vst.msk [vmem:[#allocation4 + $0x298] sm:$0xff] %vm856, %v1677
        %1806 = vst.msk [vmem:[#allocation4 + $0x2a0] sm:$0xff] %vm856, %v1678
        %1807 = vst.msk [vmem:[#allocation4 + $0x2a8] sm:$0xff] %vm856, %v1679
        %1808 = vst.msk [vmem:[#allocation4 + $0x2b0] sm:$0xff] %vm856, %v1680
        %1809 = vst.msk [vmem:[#allocation4 + $0x2b8] sm:$0xff] %vm856, %v1681
        %1810 = vst.msk [vmem:[#allocation4 + $0x2c0] sm:$0xff] %vm856, %v1682
        %1811 = vst.msk [vmem:[#allocation4 + $0x2c8] sm:$0xff] %vm856, %v1683
        %1812 = vst.msk [vmem:[#allocation4 + $0x2d0] sm:$0xff] %vm856, %v1684
        %1813 = vst.msk [vmem:[#allocation4 + $0x2d8] sm:$0xff] %vm856, %v1685
        %1814 = vst.msk [vmem:[#allocation4 + $0x2e0] sm:$0xff] %vm856, %v1686
        %1815 = vst.msk [vmem:[#allocation4 + $0x2e8] sm:$0xff] %vm856, %v1687
        %1816 = vst.msk [vmem:[#allocation4 + $0x2f0] sm:$0xff] %vm856, %v1688
        %1817 = vst.msk [vmem:[#allocation4 + $0x2f8] sm:$0xff] %vm856, %v1689
        %1818 = vst.msk [vmem:[#allocation4 + $0x300] sm:$0xff] %vm856, %v1690
        %1819 = vst.msk [vmem:[#allocation4 + $0x308] sm:$0xff] %vm856, %v1691
        %1820 = vst.msk [vmem:[#allocation4 + $0x310] sm:$0xff] %vm856, %v1692
        %1821 = vst.msk [vmem:[#allocation4 + $0x318] sm:$0xff] %vm856, %v1693
        %1822 = vst.msk [vmem:[#allocation4 + $0x320] sm:$0xff] %vm856, %v1694
        %1823 = vst.msk [vmem:[#allocation4 + $0x328] sm:$0xff] %vm856, %v1695
        %1824 = vst.msk [vmem:[#allocation4 + $0x330] sm:$0xff] %vm856, %v1696
        %1825 = vst.msk [vmem:[#allocation4 + $0x338] sm:$0xff] %vm856, %v1697
        %1826 = vst.msk [vmem:[#allocation4 + $0x340] sm:$0xff] %vm856, %v1698
        %1827 = vst.msk [vmem:[#allocation4 + $0x348] sm:$0xff] %vm856, %v1699
        %1828 = vst.msk [vmem:[#allocation4 + $0x350] sm:$0xff] %vm856, %v1700
        %1829 = vst.msk [vmem:[#allocation4 + $0x358] sm:$0xff] %vm856, %v1701
        %1830 = vst.msk [vmem:[#allocation4 + $0x360] sm:$0xff] %vm856, %v1702
        %1831 = vst.msk [vmem:[#allocation4 + $0x368] sm:$0xff] %vm856, %v1703
        %1832 = vst.msk [vmem:[#allocation4 + $0x370] sm:$0xff] %vm856, %v1704
        %1833 = vst.msk [vmem:[#allocation4 + $0x378] sm:$0xff] %vm856, %v1705
        %1834 = vst.msk [vmem:[#allocation4 + $0x380] sm:$0xff] %vm856, %v1706
        %1835 = vst.msk [vmem:[#allocation4 + $0x388] sm:$0xff] %vm856, %v1707
        %1836 = vst.msk [vmem:[#allocation4 + $0x390] sm:$0xff] %vm856, %v1708
        %1837 = vst.msk [vmem:[#allocation4 + $0x398] sm:$0xff] %vm856, %v1709
        %1838 = vst.msk [vmem:[#allocation4 + $0x3a0] sm:$0xff] %vm856, %v1710
        %1839 = vst.msk [vmem:[#allocation4 + $0x3a8] sm:$0xff] %vm856, %v1711
        %1840 = vst.msk [vmem:[#allocation4 + $0x3b0] sm:$0xff] %vm856, %v1712
        %1841 = vst.msk [vmem:[#allocation4 + $0x3b8] sm:$0xff] %vm856, %v1713
        %1842 = vst.msk [vmem:[#allocation4 + $0x3c0] sm:$0xff] %vm856, %v1714
        %1843 = vst.msk [vmem:[#allocation4 + $0x3c8] sm:$0xff] %vm856, %v1715
        %1844 = vst.msk [vmem:[#allocation4 + $0x3d0] sm:$0xff] %vm856, %v1716
        %1845 = vst.msk [vmem:[#allocation4 + $0x3d8] sm:$0xff] %vm856, %v1717
        %1846 = vst.msk [vmem:[#allocation4 + $0x3e0] sm:$0xff] %vm856, %v1718
        %1847 = vst.msk [vmem:[#allocation4 + $0x3e8] sm:$0xff] %vm856, %v1719
        %1848 = vst.msk [vmem:[#allocation4 + $0x3f0] sm:$0xff] %vm856, %v1720
        %1849 = vst.msk [vmem:[#allocation4 + $0x3f8] sm:$0xff] %vm856, %v1721
        %v1850 = vld [vmem:[#allocation4] sm:$0xff]
        %v1851 = vld [vmem:[#allocation4 + $0x8] sm:$0xff]
        %v1852 = vld [vmem:[#allocation4 + $0x10] sm:$0xff]
        %v1853 = vld [vmem:[#allocation4 + $0x18] sm:$0xff]
        %v1854 = vld [vmem:[#allocation4 + $0x40] sm:$0xff]
        %v1855 = vld [vmem:[#allocation4 + $0x48] sm:$0xff]
        %v1856 = vld [vmem:[#allocation4 + $0x50] sm:$0xff]
        %v1857 = vld [vmem:[#allocation4 + $0x58] sm:$0xff]
        %v1858 = vld [vmem:[#allocation4 + $0x80] sm:$0xff]
        %v1859 = vld [vmem:[#allocation4 + $0x88] sm:$0xff]
        %v1860 = vld [vmem:[#allocation4 + $0x90] sm:$0xff]
        %v1861 = vld [vmem:[#allocation4 + $0x98] sm:$0xff]
        %v1862 = vld [vmem:[#allocation4 + $0xc0] sm:$0xff]
        %v1863 = vld [vmem:[#allocation4 + $0xc8] sm:$0xff]
        %v1864 = vld [vmem:[#allocation4 + $0xd0] sm:$0xff]
        %v1865 = vld [vmem:[#allocation4 + $0xd8] sm:$0xff]
        %v1866 = vld [vmem:[#allocation4 + $0x100] sm:$0xff]
        %v1867 = vld [vmem:[#allocation4 + $0x108] sm:$0xff]
        %v1868 = vld [vmem:[#allocation4 + $0x110] sm:$0xff]
        %v1869 = vld [vmem:[#allocation4 + $0x118] sm:$0xff]
        %v1870 = vld [vmem:[#allocation4 + $0x140] sm:$0xff]
        %v1871 = vld [vmem:[#allocation4 + $0x148] sm:$0xff]
        %v1872 = vld [vmem:[#allocation4 + $0x150] sm:$0xff]
        %v1873 = vld [vmem:[#allocation4 + $0x158] sm:$0xff]
        %v1874 = vld [vmem:[#allocation4 + $0x180] sm:$0xff]
        %v1875 = vld [vmem:[#allocation4 + $0x188] sm:$0xff]
        %v1876 = vld [vmem:[#allocation4 + $0x190] sm:$0xff]
        %v1877 = vld [vmem:[#allocation4 + $0x198] sm:$0xff]
        %v1878 = vld [vmem:[#allocation4 + $0x1c0] sm:$0xff]
        %v1879 = vld [vmem:[#allocation4 + $0x1c8] sm:$0xff]
        %v1880 = vld [vmem:[#allocation4 + $0x1d0] sm:$0xff]
        %v1881 = vld [vmem:[#allocation4 + $0x1d8] sm:$0xff]
        %v1882 = vld [vmem:[#allocation4 + $0x200] sm:$0xff]
        %v1883 = vld [vmem:[#allocation4 + $0x208] sm:$0xff]
        %v1884 = vld [vmem:[#allocation4 + $0x210] sm:$0xff]
        %v1885 = vld [vmem:[#allocation4 + $0x218] sm:$0xff]
        %v1886 = vld [vmem:[#allocation4 + $0x240] sm:$0xff]
        %v1887 = vld [vmem:[#allocation4 + $0x248] sm:$0xff]
        %v1888 = vld [vmem:[#allocation4 + $0x250] sm:$0xff]
        %v1889 = vld [vmem:[#allocation4 + $0x258] sm:$0xff]
        %v1890 = vld [vmem:[#allocation4 + $0x280] sm:$0xff]
        %v1891 = vld [vmem:[#allocation4 + $0x288] sm:$0xff]
        %v1892 = vld [vmem:[#allocation4 + $0x290] sm:$0xff]
        %v1893 = vld [vmem:[#allocation4 + $0x298] sm:$0xff]
        %v1894 = vld [vmem:[#allocation4 + $0x2c0] sm:$0xff]
        %v1895 = vld [vmem:[#allocation4 + $0x2c8] sm:$0xff]
        %v1896 = vld [vmem:[#allocation4 + $0x2d0] sm:$0xff]
        %v1897 = vld [vmem:[#allocation4 + $0x2d8] sm:$0xff]
        %v1898 = vld [vmem:[#allocation4 + $0x300] sm:$0xff]
        %v1899 = vld [vmem:[#allocation4 + $0x308] sm:$0xff]
        %v1900 = vld [vmem:[#allocation4 + $0x310] sm:$0xff]
        %v1901 = vld [vmem:[#allocation4 + $0x318] sm:$0xff]
        %v1902 = vld [vmem:[#allocation4 + $0x340] sm:$0xff]
        %v1903 = vld [vmem:[#allocation4 + $0x348] sm:$0xff]
        %v1904 = vld [vmem:[#allocation4 + $0x350] sm:$0xff]
        %v1905 = vld [vmem:[#allocation4 + $0x358] sm:$0xff]
        %v1906 = vld [vmem:[#allocation4 + $0x380] sm:$0xff]
        %v1907 = vld [vmem:[#allocation4 + $0x388] sm:$0xff]
        %v1908 = vld [vmem:[#allocation4 + $0x390] sm:$0xff]
        %v1909 = vld [vmem:[#allocation4 + $0x398] sm:$0xff]
        %v1910 = vld [vmem:[#allocation4 + $0x3c0] sm:$0xff]
        %v1911 = vld [vmem:[#allocation4 + $0x3c8] sm:$0xff]
        %v1912 = vld [vmem:[#allocation4 + $0x3d0] sm:$0xff]
        %v1913 = vld [vmem:[#allocation4 + $0x3d8] sm:$0xff]
        %s1914 = scalar_lea.vmem [#allocation4], 32
        %v1915 = vld [vmem:[%s1914] sm:$0xff]
        %v1916 = vld [vmem:[%s1914 + $0x8] sm:$0xff]
        %v1917 = vld [vmem:[%s1914 + $0x10] sm:$0xff]
        %v1918 = vld [vmem:[%s1914 + $0x18] sm:$0xff]
        %v1919 = vld [vmem:[%s1914 + $0x40] sm:$0xff]
        %v1920 = vld [vmem:[%s1914 + $0x48] sm:$0xff]
        %v1921 = vld [vmem:[%s1914 + $0x50] sm:$0xff]
        %v1922 = vld [vmem:[%s1914 + $0x58] sm:$0xff]
        %v1923 = vld [vmem:[%s1914 + $0x80] sm:$0xff]
        %v1924 = vld [vmem:[%s1914 + $0x88] sm:$0xff]
        %v1925 = vld [vmem:[%s1914 + $0x90] sm:$0xff]
        %v1926 = vld [vmem:[%s1914 + $0x98] sm:$0xff]
        %v1927 = vld [vmem:[%s1914 + $0xc0] sm:$0xff]
        %v1928 = vld [vmem:[%s1914 + $0xc8] sm:$0xff]
        %v1929 = vld [vmem:[%s1914 + $0xd0] sm:$0xff]
        %v1930 = vld [vmem:[%s1914 + $0xd8] sm:$0xff]
        %v1931 = vld [vmem:[%s1914 + $0x100] sm:$0xff]
        %v1932 = vld [vmem:[%s1914 + $0x108] sm:$0xff]
        %v1933 = vld [vmem:[%s1914 + $0x110] sm:$0xff]
        %v1934 = vld [vmem:[%s1914 + $0x118] sm:$0xff]
        %v1935 = vld [vmem:[%s1914 + $0x140] sm:$0xff]
        %v1936 = vld [vmem:[%s1914 + $0x148] sm:$0xff]
        %v1937 = vld [vmem:[%s1914 + $0x150] sm:$0xff]
        %v1938 = vld [vmem:[%s1914 + $0x158] sm:$0xff]
        %v1939 = vld [vmem:[%s1914 + $0x180] sm:$0xff]
        %v1940 = vld [vmem:[%s1914 + $0x188] sm:$0xff]
        %v1941 = vld [vmem:[%s1914 + $0x190] sm:$0xff]
        %v1942 = vld [vmem:[%s1914 + $0x198] sm:$0xff]
        %v1943 = vld [vmem:[%s1914 + $0x1c0] sm:$0xff]
        %v1944 = vld [vmem:[%s1914 + $0x1c8] sm:$0xff]
        %v1945 = vld [vmem:[%s1914 + $0x1d0] sm:$0xff]
        %v1946 = vld [vmem:[%s1914 + $0x1d8] sm:$0xff]
        %v1947 = vld [vmem:[%s1914 + $0x200] sm:$0xff]
        %v1948 = vld [vmem:[%s1914 + $0x208] sm:$0xff]
        %v1949 = vld [vmem:[%s1914 + $0x210] sm:$0xff]
        %v1950 = vld [vmem:[%s1914 + $0x218] sm:$0xff]
        %v1951 = vld [vmem:[%s1914 + $0x240] sm:$0xff]
        %v1952 = vld [vmem:[%s1914 + $0x248] sm:$0xff]
        %v1953 = vld [vmem:[%s1914 + $0x250] sm:$0xff]
        %v1954 = vld [vmem:[%s1914 + $0x258] sm:$0xff]
        %v1955 = vld [vmem:[%s1914 + $0x280] sm:$0xff]
        %v1956 = vld [vmem:[%s1914 + $0x288] sm:$0xff]
        %v1957 = vld [vmem:[%s1914 + $0x290] sm:$0xff]
        %v1958 = vld [vmem:[%s1914 + $0x298] sm:$0xff]
        %v1959 = vld [vmem:[%s1914 + $0x2c0] sm:$0xff]
        %v1960 = vld [vmem:[%s1914 + $0x2c8] sm:$0xff]
        %v1961 = vld [vmem:[%s1914 + $0x2d0] sm:$0xff]
        %v1962 = vld [vmem:[%s1914 + $0x2d8] sm:$0xff]
        %v1963 = vld [vmem:[%s1914 + $0x300] sm:$0xff]
        %v1964 = vld [vmem:[%s1914 + $0x308] sm:$0xff]
        %v1965 = vld [vmem:[%s1914 + $0x310] sm:$0xff]
        %v1966 = vld [vmem:[%s1914 + $0x318] sm:$0xff]
        %v1967 = vld [vmem:[%s1914 + $0x340] sm:$0xff]
        %v1968 = vld [vmem:[%s1914 + $0x348] sm:$0xff]
        %v1969 = vld [vmem:[%s1914 + $0x350] sm:$0xff]
        %v1970 = vld [vmem:[%s1914 + $0x358] sm:$0xff]
        %v1971 = vld [vmem:[%s1914 + $0x380] sm:$0xff]
        %v1972 = vld [vmem:[%s1914 + $0x388] sm:$0xff]
        %v1973 = vld [vmem:[%s1914 + $0x390] sm:$0xff]
        %v1974 = vld [vmem:[%s1914 + $0x398] sm:$0xff]
        %v1975 = vld [vmem:[%s1914 + $0x3c0] sm:$0xff]
        %v1976 = vld [vmem:[%s1914 + $0x3c8] sm:$0xff]
        %v1977 = vld [vmem:[%s1914 + $0x3d0] sm:$0xff]
        %v1978 = vld [vmem:[%s1914 + $0x3d8] sm:$0xff]
        %v1979 = vmax.f32 %v1850, %v1915
        %v1980 = vmax.f32 %v1851, %v1916
        %v1981 = vmax.f32 %v1852, %v1917
        %v1982 = vmax.f32 %v1853, %v1918
        %v1983 = vmax.f32 %v1854, %v1919
        %v1984 = vmax.f32 %v1855, %v1920
        %v1985 = vmax.f32 %v1856, %v1921
        %v1986 = vmax.f32 %v1857, %v1922
        %v1987 = vmax.f32 %v1858, %v1923
        %v1988 = vmax.f32 %v1859, %v1924
        %v1989 = vmax.f32 %v1860, %v1925
        %v1990 = vmax.f32 %v1861, %v1926
        %v1991 = vmax.f32 %v1862, %v1927
        %v1992 = vmax.f32 %v1863, %v1928
        %v1993 = vmax.f32 %v1864, %v1929
        %v1994 = vmax.f32 %v1865, %v1930
        %v1995 = vmax.f32 %v1866, %v1931
        %v1996 = vmax.f32 %v1867, %v1932
        %v1997 = vmax.f32 %v1868, %v1933
        %v1998 = vmax.f32 %v1869, %v1934
        %v1999 = vmax.f32 %v1870, %v1935
        %v2000 = vmax.f32 %v1871, %v1936
        %v2001 = vmax.f32 %v1872, %v1937
        %v2002 = vmax.f32 %v1873, %v1938
        %v2003 = vmax.f32 %v1874, %v1939
        %v2004 = vmax.f32 %v1875, %v1940
        %v2005 = vmax.f32 %v1876, %v1941
        %v2006 = vmax.f32 %v1877, %v1942
        %v2007 = vmax.f32 %v1878, %v1943
        %v2008 = vmax.f32 %v1879, %v1944
        %v2009 = vmax.f32 %v1880, %v1945
        %v2010 = vmax.f32 %v1881, %v1946
        %v2011 = vmax.f32 %v1882, %v1947
        %v2012 = vmax.f32 %v1883, %v1948
        %v2013 = vmax.f32 %v1884, %v1949
        %v2014 = vmax.f32 %v1885, %v1950
        %v2015 = vmax.f32 %v1886, %v1951
        %v2016 = vmax.f32 %v1887, %v1952
        %v2017 = vmax.f32 %v1888, %v1953
        %v2018 = vmax.f32 %v1889, %v1954
        %v2019 = vmax.f32 %v1890, %v1955
        %v2020 = vmax.f32 %v1891, %v1956
        %v2021 = vmax.f32 %v1892, %v1957
        %v2022 = vmax.f32 %v1893, %v1958
        %v2023 = vmax.f32 %v1894, %v1959
        %v2024 = vmax.f32 %v1895, %v1960
        %v2025 = vmax.f32 %v1896, %v1961
        %v2026 = vmax.f32 %v1897, %v1962
        %v2027 = vmax.f32 %v1898, %v1963
        %v2028 = vmax.f32 %v1899, %v1964
        %v2029 = vmax.f32 %v1900, %v1965
        %v2030 = vmax.f32 %v1901, %v1966
        %v2031 = vmax.f32 %v1902, %v1967
        %v2032 = vmax.f32 %v1903, %v1968
        %v2033 = vmax.f32 %v1904, %v1969
        %v2034 = vmax.f32 %v1905, %v1970
        %v2035 = vmax.f32 %v1906, %v1971
        %v2036 = vmax.f32 %v1907, %v1972
        %v2037 = vmax.f32 %v1908, %v1973
        %v2038 = vmax.f32 %v1909, %v1974
        %v2039 = vmax.f32 %v1910, %v1975
        %v2040 = vmax.f32 %v1911, %v1976
        %v2041 = vmax.f32 %v1912, %v1977
        %v2042 = vmax.f32 %v1913, %v1978
        %2043 = vst.msk [vmem:[#allocation7] sm:$0xff] %vm856, %v1979
        %2044 = vst.msk [vmem:[#allocation7 + $0x8] sm:$0xff] %vm856, %v1980
        %2045 = vst.msk [vmem:[#allocation7 + $0x10] sm:$0xff] %vm856, %v1981
        %2046 = vst.msk [vmem:[#allocation7 + $0x18] sm:$0xff] %vm856, %v1982
        %2047 = vst.msk [vmem:[#allocation7 + $0x20] sm:$0xff] %vm856, %v1983
        %2048 = vst.msk [vmem:[#allocation7 + $0x28] sm:$0xff] %vm856, %v1984
        %2049 = vst.msk [vmem:[#allocation7 + $0x30] sm:$0xff] %vm856, %v1985
        %2050 = vst.msk [vmem:[#allocation7 + $0x38] sm:$0xff] %vm856, %v1986
        %2051 = vst.msk [vmem:[#allocation7 + $0x40] sm:$0xff] %vm856, %v1987
        %2052 = vst.msk [vmem:[#allocation7 + $0x48] sm:$0xff] %vm856, %v1988
        %2053 = vst.msk [vmem:[#allocation7 + $0x50] sm:$0xff] %vm856, %v1989
        %2054 = vst.msk [vmem:[#allocation7 + $0x58] sm:$0xff] %vm856, %v1990
        %2055 = vst.msk [vmem:[#allocation7 + $0x60] sm:$0xff] %vm856, %v1991
        %2056 = vst.msk [vmem:[#allocation7 + $0x68] sm:$0xff] %vm856, %v1992
        %2057 = vst.msk [vmem:[#allocation7 + $0x70] sm:$0xff] %vm856, %v1993
        %2058 = vst.msk [vmem:[#allocation7 + $0x78] sm:$0xff] %vm856, %v1994
        %2059 = vst.msk [vmem:[#allocation7 + $0x80] sm:$0xff] %vm856, %v1995
        %2060 = vst.msk [vmem:[#allocation7 + $0x88] sm:$0xff] %vm856, %v1996
        %2061 = vst.msk [vmem:[#allocation7 + $0x90] sm:$0xff] %vm856, %v1997
        %2062 = vst.msk [vmem:[#allocation7 + $0x98] sm:$0xff] %vm856, %v1998
        %2063 = vst.msk [vmem:[#allocation7 + $0xa0] sm:$0xff] %vm856, %v1999
        %2064 = vst.msk [vmem:[#allocation7 + $0xa8] sm:$0xff] %vm856, %v2000
        %2065 = vst.msk [vmem:[#allocation7 + $0xb0] sm:$0xff] %vm856, %v2001
        %2066 = vst.msk [vmem:[#allocation7 + $0xb8] sm:$0xff] %vm856, %v2002
        %2067 = vst.msk [vmem:[#allocation7 + $0xc0] sm:$0xff] %vm856, %v2003
        %2068 = vst.msk [vmem:[#allocation7 + $0xc8] sm:$0xff] %vm856, %v2004
        %2069 = vst.msk [vmem:[#allocation7 + $0xd0] sm:$0xff] %vm856, %v2005
        %2070 = vst.msk [vmem:[#allocation7 + $0xd8] sm:$0xff] %vm856, %v2006
        %2071 = vst.msk [vmem:[#allocation7 + $0xe0] sm:$0xff] %vm856, %v2007
        %2072 = vst.msk [vmem:[#allocation7 + $0xe8] sm:$0xff] %vm856, %v2008
        %2073 = vst.msk [vmem:[#allocation7 + $0xf0] sm:$0xff] %vm856, %v2009
        %2074 = vst.msk [vmem:[#allocation7 + $0xf8] sm:$0xff] %vm856, %v2010
        %2075 = vst.msk [vmem:[#allocation7 + $0x100] sm:$0xff] %vm856, %v2011
        %2076 = vst.msk [vmem:[#allocation7 + $0x108] sm:$0xff] %vm856, %v2012
        %2077 = vst.msk [vmem:[#allocation7 + $0x110] sm:$0xff] %vm856, %v2013
        %2078 = vst.msk [vmem:[#allocation7 + $0x118] sm:$0xff] %vm856, %v2014
        %2079 = vst.msk [vmem:[#allocation7 + $0x120] sm:$0xff] %vm856, %v2015
        %2080 = vst.msk [vmem:[#allocation7 + $0x128] sm:$0xff] %vm856, %v2016
        %2081 = vst.msk [vmem:[#allocation7 + $0x130] sm:$0xff] %vm856, %v2017
        %2082 = vst.msk [vmem:[#allocation7 + $0x138] sm:$0xff] %vm856, %v2018
        %2083 = vst.msk [vmem:[#allocation7 + $0x140] sm:$0xff] %vm856, %v2019
        %2084 = vst.msk [vmem:[#allocation7 + $0x148] sm:$0xff] %vm856, %v2020
        %2085 = vst.msk [vmem:[#allocation7 + $0x150] sm:$0xff] %vm856, %v2021
        %2086 = vst.msk [vmem:[#allocation7 + $0x158] sm:$0xff] %vm856, %v2022
        %2087 = vst.msk [vmem:[#allocation7 + $0x160] sm:$0xff] %vm856, %v2023
        %2088 = vst.msk [vmem:[#allocation7 + $0x168] sm:$0xff] %vm856, %v2024
        %2089 = vst.msk [vmem:[#allocation7 + $0x170] sm:$0xff] %vm856, %v2025
        %2090 = vst.msk [vmem:[#allocation7 + $0x178] sm:$0xff] %vm856, %v2026
        %2091 = vst.msk [vmem:[#allocation7 + $0x180] sm:$0xff] %vm856, %v2027
        %2092 = vst.msk [vmem:[#allocation7 + $0x188] sm:$0xff] %vm856, %v2028
        %2093 = vst.msk [vmem:[#allocation7 + $0x190] sm:$0xff] %vm856, %v2029
        %2094 = vst.msk [vmem:[#allocation7 + $0x198] sm:$0xff] %vm856, %v2030
        %2095 = vst.msk [vmem:[#allocation7 + $0x1a0] sm:$0xff] %vm856, %v2031
        %2096 = vst.msk [vmem:[#allocation7 + $0x1a8] sm:$0xff] %vm856, %v2032
        %2097 = vst.msk [vmem:[#allocation7 + $0x1b0] sm:$0xff] %vm856, %v2033
        %2098 = vst.msk [vmem:[#allocation7 + $0x1b8] sm:$0xff] %vm856, %v2034
        %2099 = vst.msk [vmem:[#allocation7 + $0x1c0] sm:$0xff] %vm856, %v2035
        %2100 = vst.msk [vmem:[#allocation7 + $0x1c8] sm:$0xff] %vm856, %v2036
        %2101 = vst.msk [vmem:[#allocation7 + $0x1d0] sm:$0xff] %vm856, %v2037
        %2102 = vst.msk [vmem:[#allocation7 + $0x1d8] sm:$0xff] %vm856, %v2038
        %2103 = vst.msk [vmem:[#allocation7 + $0x1e0] sm:$0xff] %vm856, %v2039
        %2104 = vst.msk [vmem:[#allocation7 + $0x1e8] sm:$0xff] %vm856, %v2040
        %2105 = vst.msk [vmem:[#allocation7 + $0x1f0] sm:$0xff] %vm856, %v2041
        %2106 = vst.msk [vmem:[#allocation7 + $0x1f8] sm:$0xff] %vm856, %v2042
        %v2107 = vld [vmem:[#allocation7] ss:$2 sm:$0xff]
        %s2108 = scalar_lea.vmem [#allocation7], 16
        %v2109 = vld [vmem:[%s2108] ss:$2 sm:$0xff]
        %s2110 = scalar_lea.vmem [#allocation7], 32
        %v2111 = vld [vmem:[%s2110] ss:$2 sm:$0xff]
        %s2112 = scalar_lea.vmem [#allocation7], 48
        %v2113 = vld [vmem:[%s2112] ss:$2 sm:$0xff]
        %s2114 = scalar_lea.vmem [#allocation7], 64
        %v2115 = vld [vmem:[%s2114] ss:$2 sm:$0xff]
        %s2116 = scalar_lea.vmem [#allocation7], 80
        %v2117 = vld [vmem:[%s2116] ss:$2 sm:$0xff]
        %s2118 = scalar_lea.vmem [#allocation7], 96
        %v2119 = vld [vmem:[%s2118] ss:$2 sm:$0xff]
        %s2120 = scalar_lea.vmem [#allocation7], 112
        %v2121 = vld [vmem:[%s2120] ss:$2 sm:$0xff]
        %s2122 = scalar_lea.vmem [#allocation7], 128
        %v2123 = vld [vmem:[%s2122] ss:$2 sm:$0xff]
        %s2124 = scalar_lea.vmem [#allocation7], 144
        %v2125 = vld [vmem:[%s2124] ss:$2 sm:$0xff]
        %s2126 = scalar_lea.vmem [#allocation7], 160
        %v2127 = vld [vmem:[%s2126] ss:$2 sm:$0xff]
        %s2128 = scalar_lea.vmem [#allocation7], 176
        %v2129 = vld [vmem:[%s2128] ss:$2 sm:$0xff]
        %s2130 = scalar_lea.vmem [#allocation7], 192
        %v2131 = vld [vmem:[%s2130] ss:$2 sm:$0xff]
        %s2132 = scalar_lea.vmem [#allocation7], 208
        %v2133 = vld [vmem:[%s2132] ss:$2 sm:$0xff]
        %s2134 = scalar_lea.vmem [#allocation7], 224
        %v2135 = vld [vmem:[%s2134] ss:$2 sm:$0xff]
        %s2136 = scalar_lea.vmem [#allocation7], 240
        %v2137 = vld [vmem:[%s2136] ss:$2 sm:$0xff]
        %s2138 = scalar_lea.vmem [#allocation7], 256
        %v2139 = vld [vmem:[%s2138] ss:$2 sm:$0xff]
        %s2140 = scalar_lea.vmem [#allocation7], 272
        %v2141 = vld [vmem:[%s2140] ss:$2 sm:$0xff]
        %s2142 = scalar_lea.vmem [#allocation7], 288
        %v2143 = vld [vmem:[%s2142] ss:$2 sm:$0xff]
        %s2144 = scalar_lea.vmem [#allocation7], 304
        %v2145 = vld [vmem:[%s2144] ss:$2 sm:$0xff]
        %s2146 = scalar_lea.vmem [#allocation7], 320
        %v2147 = vld [vmem:[%s2146] ss:$2 sm:$0xff]
        %s2148 = scalar_lea.vmem [#allocation7], 336
        %v2149 = vld [vmem:[%s2148] ss:$2 sm:$0xff]
        %s2150 = scalar_lea.vmem [#allocation7], 352
        %v2151 = vld [vmem:[%s2150] ss:$2 sm:$0xff]
        %s2152 = scalar_lea.vmem [#allocation7], 368
        %v2153 = vld [vmem:[%s2152] ss:$2 sm:$0xff]
        %s2154 = scalar_lea.vmem [#allocation7], 384
        %v2155 = vld [vmem:[%s2154] ss:$2 sm:$0xff]
        %s2156 = scalar_lea.vmem [#allocation7], 400
        %v2157 = vld [vmem:[%s2156] ss:$2 sm:$0xff]
        %s2158 = scalar_lea.vmem [#allocation7], 416
        %v2159 = vld [vmem:[%s2158] ss:$2 sm:$0xff]
        %s2160 = scalar_lea.vmem [#allocation7], 432
        %v2161 = vld [vmem:[%s2160] ss:$2 sm:$0xff]
        %s2162 = scalar_lea.vmem [#allocation7], 448
        %v2163 = vld [vmem:[%s2162] ss:$2 sm:$0xff]
        %s2164 = scalar_lea.vmem [#allocation7], 464
        %v2165 = vld [vmem:[%s2164] ss:$2 sm:$0xff]
        %s2166 = scalar_lea.vmem [#allocation7], 480
        %v2167 = vld [vmem:[%s2166] ss:$2 sm:$0xff]
        %s2168 = scalar_lea.vmem [#allocation7], 496
        %v2169 = vld [vmem:[%s2168] ss:$2 sm:$0xff]
        %s2170 = scalar_lea.vmem [#allocation7], 1
        %v2171 = vld [vmem:[%s2170] ss:$2 sm:$0xff]
        %s2172 = scalar_lea.vmem [#allocation7], 17
        %v2173 = vld [vmem:[%s2172] ss:$2 sm:$0xff]
        %s2174 = scalar_lea.vmem [#allocation7], 33
        %v2175 = vld [vmem:[%s2174] ss:$2 sm:$0xff]
        %s2176 = scalar_lea.vmem [#allocation7], 49
        %v2177 = vld [vmem:[%s2176] ss:$2 sm:$0xff]
        %s2178 = scalar_lea.vmem [#allocation7], 65
        %v2179 = vld [vmem:[%s2178] ss:$2 sm:$0xff]
        %s2180 = scalar_lea.vmem [#allocation7], 81
        %v2181 = vld [vmem:[%s2180] ss:$2 sm:$0xff]
        %s2182 = scalar_lea.vmem [#allocation7], 97
        %v2183 = vld [vmem:[%s2182] ss:$2 sm:$0xff]
        %s2184 = scalar_lea.vmem [#allocation7], 113
        %v2185 = vld [vmem:[%s2184] ss:$2 sm:$0xff]
        %s2186 = scalar_lea.vmem [#allocation7], 129
        %v2187 = vld [vmem:[%s2186] ss:$2 sm:$0xff]
        %s2188 = scalar_lea.vmem [#allocation7], 145
        %v2189 = vld [vmem:[%s2188] ss:$2 sm:$0xff]
        %s2190 = scalar_lea.vmem [#allocation7], 161
        %v2191 = vld [vmem:[%s2190] ss:$2 sm:$0xff]
        %s2192 = scalar_lea.vmem [#allocation7], 177
        %v2193 = vld [vmem:[%s2192] ss:$2 sm:$0xff]
        %s2194 = scalar_lea.vmem [#allocation7], 193
        %v2195 = vld [vmem:[%s2194] ss:$2 sm:$0xff]
        %s2196 = scalar_lea.vmem [#allocation7], 209
        %v2197 = vld [vmem:[%s2196] ss:$2 sm:$0xff]
        %s2198 = scalar_lea.vmem [#allocation7], 225
        %v2199 = vld [vmem:[%s2198] ss:$2 sm:$0xff]
        %s2200 = scalar_lea.vmem [#allocation7], 241
        %v2201 = vld [vmem:[%s2200] ss:$2 sm:$0xff]
        %s2202 = scalar_lea.vmem [#allocation7], 257
        %v2203 = vld [vmem:[%s2202] ss:$2 sm:$0xff]
        %s2204 = scalar_lea.vmem [#allocation7], 273
        %v2205 = vld [vmem:[%s2204] ss:$2 sm:$0xff]
        %s2206 = scalar_lea.vmem [#allocation7], 289
        %v2207 = vld [vmem:[%s2206] ss:$2 sm:$0xff]
        %s2208 = scalar_lea.vmem [#allocation7], 305
        %v2209 = vld [vmem:[%s2208] ss:$2 sm:$0xff]
        %s2210 = scalar_lea.vmem [#allocation7], 321
        %v2211 = vld [vmem:[%s2210] ss:$2 sm:$0xff]
        %s2212 = scalar_lea.vmem [#allocation7], 337
        %v2213 = vld [vmem:[%s2212] ss:$2 sm:$0xff]
        %s2214 = scalar_lea.vmem [#allocation7], 353
        %v2215 = vld [vmem:[%s2214] ss:$2 sm:$0xff]
        %s2216 = scalar_lea.vmem [#allocation7], 369
        %v2217 = vld [vmem:[%s2216] ss:$2 sm:$0xff]
        %s2218 = scalar_lea.vmem [#allocation7], 385
        %v2219 = vld [vmem:[%s2218] ss:$2 sm:$0xff]
        %s2220 = scalar_lea.vmem [#allocation7], 401
        %v2221 = vld [vmem:[%s2220] ss:$2 sm:$0xff]
        %s2222 = scalar_lea.vmem [#allocation7], 417
        %v2223 = vld [vmem:[%s2222] ss:$2 sm:$0xff]
        %s2224 = scalar_lea.vmem [#allocation7], 433
        %v2225 = vld [vmem:[%s2224] ss:$2 sm:$0xff]
        %s2226 = scalar_lea.vmem [#allocation7], 449
        %v2227 = vld [vmem:[%s2226] ss:$2 sm:$0xff]
        %s2228 = scalar_lea.vmem [#allocation7], 465
        %v2229 = vld [vmem:[%s2228] ss:$2 sm:$0xff]
        %s2230 = scalar_lea.vmem [#allocation7], 481
        %v2231 = vld [vmem:[%s2230] ss:$2 sm:$0xff]
        %s2232 = scalar_lea.vmem [#allocation7], 497
        %v2233 = vld [vmem:[%s2232] ss:$2 sm:$0xff]
        %v2234 = vmax.f32 %v2107, %v2171
        %v2235 = vmax.f32 %v2109, %v2173
        %v2236 = vmax.f32 %v2111, %v2175
        %v2237 = vmax.f32 %v2113, %v2177
        %v2238 = vmax.f32 %v2115, %v2179
        %v2239 = vmax.f32 %v2117, %v2181
        %v2240 = vmax.f32 %v2119, %v2183
        %v2241 = vmax.f32 %v2121, %v2185
        %v2242 = vmax.f32 %v2123, %v2187
        %v2243 = vmax.f32 %v2125, %v2189
        %v2244 = vmax.f32 %v2127, %v2191
        %v2245 = vmax.f32 %v2129, %v2193
        %v2246 = vmax.f32 %v2131, %v2195
        %v2247 = vmax.f32 %v2133, %v2197
        %v2248 = vmax.f32 %v2135, %v2199
        %v2249 = vmax.f32 %v2137, %v2201
        %v2250 = vmax.f32 %v2139, %v2203
        %v2251 = vmax.f32 %v2141, %v2205
        %v2252 = vmax.f32 %v2143, %v2207
        %v2253 = vmax.f32 %v2145, %v2209
        %v2254 = vmax.f32 %v2147, %v2211
        %v2255 = vmax.f32 %v2149, %v2213
        %v2256 = vmax.f32 %v2151, %v2215
        %v2257 = vmax.f32 %v2153, %v2217
        %v2258 = vmax.f32 %v2155, %v2219
        %v2259 = vmax.f32 %v2157, %v2221
        %v2260 = vmax.f32 %v2159, %v2223
        %v2261 = vmax.f32 %v2161, %v2225
        %v2262 = vmax.f32 %v2163, %v2227
        %v2263 = vmax.f32 %v2165, %v2229
        %v2264 = vmax.f32 %v2167, %v2231
        %v2265 = vmax.f32 %v2169, %v2233
        %2266 = vst.msk [vmem:[#allocation2] sm:$0xff] %vm856, 0.0
        %2267 = vst.msk [vmem:[#allocation2 + $0x8] sm:$0xff] %vm856, 0.0
        %vm2268 = vcmask 254976
        %2269 = vst.msk [vmem:[#allocation2 + $0x10] sm:$0x3] %vm2268, 0.0
        %s2270 = scalar_lea.vmem [#allocation2], 408
        %2271 = vst.msk [vmem:[%s2270] sm:$0xff] %vm856, 0.0
        %2272 = vst.msk [vmem:[%s2270 + $0x8] sm:$0xff] %vm856, 0.0
        %2273 = vst.msk [vmem:[%s2270 + $0x10] sm:$0x3] %vm2268, 0.0
        %vm2274 = vcmask 253952
        %2275 = vst.msk [vmem:[#allocation2] sm:$0x1] %vm2274, 0.0
        %2276 = vst.msk [vmem:[#allocation2 + $0x18] sm:$0x1] %vm2274, 0.0
        %2277 = vst.msk [vmem:[#allocation2 + $0x30] sm:$0x1] %vm2274, 0.0
        %2278 = vst.msk [vmem:[#allocation2 + $0x48] sm:$0x1] %vm2274, 0.0
        %2279 = vst.msk [vmem:[#allocation2 + $0x60] sm:$0x1] %vm2274, 0.0
        %2280 = vst.msk [vmem:[#allocation2 + $0x78] sm:$0x1] %vm2274, 0.0
        %2281 = vst.msk [vmem:[#allocation2 + $0x90] sm:$0x1] %vm2274, 0.0
        %2282 = vst.msk [vmem:[#allocation2 + $0xa8] sm:$0x1] %vm2274, 0.0
        %2283 = vst.msk [vmem:[#allocation2 + $0xc0] sm:$0x1] %vm2274, 0.0
        %2284 = vst.msk [vmem:[#allocation2 + $0xd8] sm:$0x1] %vm2274, 0.0
        %2285 = vst.msk [vmem:[#allocation2 + $0xf0] sm:$0x1] %vm2274, 0.0
        %2286 = vst.msk [vmem:[#allocation2 + $0x108] sm:$0x1] %vm2274, 0.0
        %2287 = vst.msk [vmem:[#allocation2 + $0x120] sm:$0x1] %vm2274, 0.0
        %2288 = vst.msk [vmem:[#allocation2 + $0x138] sm:$0x1] %vm2274, 0.0
        %2289 = vst.msk [vmem:[#allocation2 + $0x150] sm:$0x1] %vm2274, 0.0
        %2290 = vst.msk [vmem:[#allocation2 + $0x168] sm:$0x1] %vm2274, 0.0
        %2291 = vst.msk [vmem:[#allocation2 + $0x180] sm:$0x1] %vm2274, 0.0
        %2292 = vst.msk [vmem:[#allocation2 + $0x198] sm:$0x1] %vm2274, 0.0
        %2293 = vst.msk [vmem:[#allocation2 + $0x11] sm:$0x1] %vm2274, 0.0
        %2294 = vst.msk [vmem:[#allocation2 + $0x29] sm:$0x1] %vm2274, 0.0
        %2295 = vst.msk [vmem:[#allocation2 + $0x41] sm:$0x1] %vm2274, 0.0
        %2296 = vst.msk [vmem:[#allocation2 + $0x59] sm:$0x1] %vm2274, 0.0
        %2297 = vst.msk [vmem:[#allocation2 + $0x71] sm:$0x1] %vm2274, 0.0
        %2298 = vst.msk [vmem:[#allocation2 + $0x89] sm:$0x1] %vm2274, 0.0
        %2299 = vst.msk [vmem:[#allocation2 + $0xa1] sm:$0x1] %vm2274, 0.0
        %2300 = vst.msk [vmem:[#allocation2 + $0xb9] sm:$0x1] %vm2274, 0.0
        %2301 = vst.msk [vmem:[#allocation2 + $0xd1] sm:$0x1] %vm2274, 0.0
        %2302 = vst.msk [vmem:[#allocation2 + $0xe9] sm:$0x1] %vm2274, 0.0
        %2303 = vst.msk [vmem:[#allocation2 + $0x101] sm:$0x1] %vm2274, 0.0
        %2304 = vst.msk [vmem:[#allocation2 + $0x119] sm:$0x1] %vm2274, 0.0
        %2305 = vst.msk [vmem:[#allocation2 + $0x131] sm:$0x1] %vm2274, 0.0
        %2306 = vst.msk [vmem:[#allocation2 + $0x149] sm:$0x1] %vm2274, 0.0
        %2307 = vst.msk [vmem:[#allocation2 + $0x161] sm:$0x1] %vm2274, 0.0
        %2308 = vst.msk [vmem:[#allocation2 + $0x179] sm:$0x1] %vm2274, 0.0
        %2309 = vst.msk [vmem:[#allocation2 + $0x191] sm:$0x1] %vm2274, 0.0
        %2310 = vst.msk [vmem:[#allocation2 + $0x1a9] sm:$0x1] %vm2274, 0.0
        %s2311 = scalar_lea.vmem [#allocation2], 24
        %2312 = vst.msk [vmem:[%s2311 + $0x1] sm:$0xff] %vm856, %v2234
        %2313 = vst.msk [vmem:[%s2311 + $0x9] sm:$0xff] %vm856, %v2235
        %2314 = vst.msk [vmem:[%s2311 + $0x19] sm:$0xff] %vm856, %v2236
        %2315 = vst.msk [vmem:[%s2311 + $0x21] sm:$0xff] %vm856, %v2237
        %2316 = vst.msk [vmem:[%s2311 + $0x31] sm:$0xff] %vm856, %v2238
        %2317 = vst.msk [vmem:[%s2311 + $0x39] sm:$0xff] %vm856, %v2239
        %2318 = vst.msk [vmem:[%s2311 + $0x49] sm:$0xff] %vm856, %v2240
        %2319 = vst.msk [vmem:[%s2311 + $0x51] sm:$0xff] %vm856, %v2241
        %2320 = vst.msk [vmem:[%s2311 + $0x61] sm:$0xff] %vm856, %v2242
        %2321 = vst.msk [vmem:[%s2311 + $0x69] sm:$0xff] %vm856, %v2243
        %2322 = vst.msk [vmem:[%s2311 + $0x79] sm:$0xff] %vm856, %v2244
        %2323 = vst.msk [vmem:[%s2311 + $0x81] sm:$0xff] %vm856, %v2245
        %2324 = vst.msk [vmem:[%s2311 + $0x91] sm:$0xff] %vm856, %v2246
        %2325 = vst.msk [vmem:[%s2311 + $0x99] sm:$0xff] %vm856, %v2247
        %2326 = vst.msk [vmem:[%s2311 + $0xa9] sm:$0xff] %vm856, %v2248
        %2327 = vst.msk [vmem:[%s2311 + $0xb1] sm:$0xff] %vm856, %v2249
        %2328 = vst.msk [vmem:[%s2311 + $0xc1] sm:$0xff] %vm856, %v2250
        %2329 = vst.msk [vmem:[%s2311 + $0xc9] sm:$0xff] %vm856, %v2251
        %2330 = vst.msk [vmem:[%s2311 + $0xd9] sm:$0xff] %vm856, %v2252
        %2331 = vst.msk [vmem:[%s2311 + $0xe1] sm:$0xff] %vm856, %v2253
        %2332 = vst.msk [vmem:[%s2311 + $0xf1] sm:$0xff] %vm856, %v2254
        %2333 = vst.msk [vmem:[%s2311 + $0xf9] sm:$0xff] %vm856, %v2255
        %2334 = vst.msk [vmem:[%s2311 + $0x109] sm:$0xff] %vm856, %v2256
        %2335 = vst.msk [vmem:[%s2311 + $0x111] sm:$0xff] %vm856, %v2257
        %2336 = vst.msk [vmem:[%s2311 + $0x121] sm:$0xff] %vm856, %v2258
        %2337 = vst.msk [vmem:[%s2311 + $0x129] sm:$0xff] %vm856, %v2259
        %2338 = vst.msk [vmem:[%s2311 + $0x139] sm:$0xff] %vm856, %v2260
        %2339 = vst.msk [vmem:[%s2311 + $0x141] sm:$0xff] %vm856, %v2261
        %2340 = vst.msk [vmem:[%s2311 + $0x151] sm:$0xff] %vm856, %v2262
        %2341 = vst.msk [vmem:[%s2311 + $0x159] sm:$0xff] %vm856, %v2263
        %2342 = vst.msk [vmem:[%s2311 + $0x169] sm:$0xff] %vm856, %v2264
        %2343 = vst.msk [vmem:[%s2311 + $0x171] sm:$0xff] %vm856, %v2265
        %v2344 = vld [vmem:[#allocation2] sm:$0xff]
        %v2345 = vld [vmem:[#allocation2 + $0x8] sm:$0xff]
        %v2346 = vld [vmem:[#allocation2 + $0x18] sm:$0xff]
        %v2347 = vld [vmem:[#allocation2 + $0x20] sm:$0xff]
        %v2348 = vld [vmem:[#allocation2 + $0x30] sm:$0xff]
        %v2349 = vld [vmem:[#allocation2 + $0x38] sm:$0xff]
        %v2350 = vld [vmem:[#allocation2 + $0x48] sm:$0xff]
        %v2351 = vld [vmem:[#allocation2 + $0x50] sm:$0xff]
        %v2352 = vld [vmem:[#allocation2 + $0x60] sm:$0xff]
        %v2353 = vld [vmem:[#allocation2 + $0x68] sm:$0xff]
        %v2354 = vld [vmem:[#allocation2 + $0x78] sm:$0xff]
        %v2355 = vld [vmem:[#allocation2 + $0x80] sm:$0xff]
        %v2356 = vld [vmem:[#allocation2 + $0x90] sm:$0xff]
        %v2357 = vld [vmem:[#allocation2 + $0x98] sm:$0xff]
        %v2358 = vld [vmem:[#allocation2 + $0xa8] sm:$0xff]
        %v2359 = vld [vmem:[#allocation2 + $0xb0] sm:$0xff]
        %v2360 = vld [vmem:[#allocation2 + $0xc0] sm:$0xff]
        %v2361 = vld [vmem:[#allocation2 + $0xc8] sm:$0xff]
        %v2362 = vld [vmem:[#allocation2 + $0xd8] sm:$0xff]
        %v2363 = vld [vmem:[#allocation2 + $0xe0] sm:$0xff]
        %v2364 = vld [vmem:[#allocation2 + $0xf0] sm:$0xff]
        %v2365 = vld [vmem:[#allocation2 + $0xf8] sm:$0xff]
        %v2366 = vld [vmem:[#allocation2 + $0x108] sm:$0xff]
        %v2367 = vld [vmem:[#allocation2 + $0x110] sm:$0xff]
        %v2368 = vld [vmem:[#allocation2 + $0x120] sm:$0xff]
        %v2369 = vld [vmem:[#allocation2 + $0x128] sm:$0xff]
        %v2370 = vld [vmem:[#allocation2 + $0x138] sm:$0xff]
        %v2371 = vld [vmem:[#allocation2 + $0x140] sm:$0xff]
        %v2372 = vld [vmem:[#allocation2 + $0x150] sm:$0xff]
        %v2373 = vld [vmem:[#allocation2 + $0x158] sm:$0xff]
        %v2374 = vld [vmem:[#allocation2 + $0x168] sm:$0xff]
        %v2375 = vld [vmem:[#allocation2 + $0x170] sm:$0xff]
        %v2376 = vpack.c.bf16 %v2345, %v2344
        %v2377 = vpack.c.bf16 %v2347, %v2346
        %v2378 = vpack.c.bf16 %v2349, %v2348
        %v2379 = vpack.c.bf16 %v2351, %v2350
        %v2380 = vpack.c.bf16 %v2353, %v2352
        %v2381 = vpack.c.bf16 %v2355, %v2354
        %v2382 = vpack.c.bf16 %v2357, %v2356
        %v2383 = vpack.c.bf16 %v2359, %v2358
        %v2384 = vpack.c.bf16 %v2361, %v2360
        %v2385 = vpack.c.bf16 %v2363, %v2362
        %v2386 = vpack.c.bf16 %v2365, %v2364
        %v2387 = vpack.c.bf16 %v2367, %v2366
        %v2388 = vpack.c.bf16 %v2369, %v2368
        %v2389 = vpack.c.bf16 %v2371, %v2370
        %v2390 = vpack.c.bf16 %v2373, %v2372
        %v2391 = vpack.c.bf16 %v2375, %v2374
        %v2392 = vld [vmem:[%s3] sm:$0xf]
        %v2393 = vld [vmem:[%s3 + $0x4] sm:$0xf]
        %v2394 = vld [vmem:[%s3 + $0x8] sm:$0xf]
        %v2395 = vld [vmem:[%s3 + $0xc] sm:$0xf]
        %v2396 = vld [vmem:[#allocation2 + $0x1] sm:$0xff]
        %v2397 = vld [vmem:[#allocation2 + $0x9] sm:$0xff]
        %v2398 = vld [vmem:[#allocation2 + $0x19] sm:$0xff]
        %v2399 = vld [vmem:[#allocation2 + $0x21] sm:$0xff]
        %v2400 = vld [vmem:[#allocation2 + $0x31] sm:$0xff]
        %v2401 = vld [vmem:[#allocation2 + $0x39] sm:$0xff]
        %v2402 = vld [vmem:[#allocation2 + $0x49] sm:$0xff]
        %v2403 = vld [vmem:[#allocation2 + $0x51] sm:$0xff]
        %v2404 = vld [vmem:[#allocation2 + $0x61] sm:$0xff]
        %v2405 = vld [vmem:[#allocation2 + $0x69] sm:$0xff]
        %v2406 = vld [vmem:[#allocation2 + $0x79] sm:$0xff]
        %v2407 = vld [vmem:[#allocation2 + $0x81] sm:$0xff]
        %v2408 = vld [vmem:[#allocation2 + $0x91] sm:$0xff]
        %v2409 = vld [vmem:[#allocation2 + $0x99] sm:$0xff]
        %v2410 = vld [vmem:[#allocation2 + $0xa9] sm:$0xff]
        %v2411 = vld [vmem:[#allocation2 + $0xb1] sm:$0xff]
        %v2412 = vld [vmem:[#allocation2 + $0xc1] sm:$0xff]
        %v2413 = vld [vmem:[#allocation2 + $0xc9] sm:$0xff]
        %v2414 = vld [vmem:[#allocation2 + $0xd9] sm:$0xff]
        %v2415 = vld [vmem:[#allocation2 + $0xe1] sm:$0xff]
        %v2416 = vld [vmem:[#allocation2 + $0xf1] sm:$0xff]
        %v2417 = vld [vmem:[#allocation2 + $0xf9] sm:$0xff]
        %v2418 = vld [vmem:[#allocation2 + $0x109] sm:$0xff]
        %v2419 = vld [vmem:[#allocation2 + $0x111] sm:$0xff]
        %v2420 = vld [vmem:[#allocation2 + $0x121] sm:$0xff]
        %v2421 = vld [vmem:[#allocation2 + $0x129] sm:$0xff]
        %v2422 = vld [vmem:[#allocation2 + $0x139] sm:$0xff]
        %v2423 = vld [vmem:[#allocation2 + $0x141] sm:$0xff]
        %v2424 = vld [vmem:[#allocation2 + $0x151] sm:$0xff]
        %v2425 = vld [vmem:[#allocation2 + $0x159] sm:$0xff]
        %v2426 = vld [vmem:[#allocation2 + $0x169] sm:$0xff]
        %v2427 = vld [vmem:[#allocation2 + $0x171] sm:$0xff]
        %v2428 = vpack.c.bf16 %v2397, %v2396
        %v2429 = vpack.c.bf16 %v2399, %v2398
        %v2430 = vpack.c.bf16 %v2401, %v2400
        %v2431 = vpack.c.bf16 %v2403, %v2402
        %v2432 = vpack.c.bf16 %v2405, %v2404
        %v2433 = vpack.c.bf16 %v2407, %v2406
        %v2434 = vpack.c.bf16 %v2409, %v2408
        %v2435 = vpack.c.bf16 %v2411, %v2410
        %v2436 = vpack.c.bf16 %v2413, %v2412
        %v2437 = vpack.c.bf16 %v2415, %v2414
        %v2438 = vpack.c.bf16 %v2417, %v2416
        %v2439 = vpack.c.bf16 %v2419, %v2418
        %v2440 = vpack.c.bf16 %v2421, %v2420
        %v2441 = vpack.c.bf16 %v2423, %v2422
        %v2442 = vpack.c.bf16 %v2425, %v2424
        %v2443 = vpack.c.bf16 %v2427, %v2426
        %v2444 = vld [vmem:[%s3 + $0x10] sm:$0xf]
        %v2445 = vld [vmem:[%s3 + $0x14] sm:$0xf]
        %v2446 = vld [vmem:[%s3 + $0x18] sm:$0xf]
        %v2447 = vld [vmem:[%s3 + $0x1c] sm:$0xf]
        %v2452 = vunpack.c.l.b16 %v2444
        %v2453 = vunpack.c.l.b16 %v2445
        %v2454 = vunpack.c.l.b16 %v2446
        %v2455 = vunpack.c.l.b16 %v2447
        %v2456 = vpack.c.b16 %v2453, %v2452
        %v2457 = vpack.c.b16 %v2455, %v2454
        %v2461 = vsel %vm856, %v2428, 0
        %v2464 = vsel %vm856, %v2429, 0
        %v2467 = vsel %vm856, %v2430, 0
        %v2470 = vsel %vm856, %v2431, 0
        %v2473 = vsel %vm856, %v2432, 0
        %v2476 = vsel %vm856, %v2433, 0
        %v2479 = vsel %vm856, %v2434, 0
        %v2482 = vsel %vm856, %v2435, 0
        %v2485 = vsel %vm856, %v2436, 0
        %v2488 = vsel %vm856, %v2437, 0
        %v2491 = vsel %vm856, %v2438, 0
        %v2494 = vsel %vm856, %v2439, 0
        %v2497 = vsel %vm856, %v2440, 0
        %v2500 = vsel %vm856, %v2441, 0
        %v2503 = vsel %vm856, %v2442, 0
        %v2506 = vsel %vm856, %v2443, 0
        %2508 = vmatprep.subr.bf16.mxu0 0
        %2509 = vmatpush1.bf16.msra.mxu0 0
        %2510 = vmatprep.subr.bf16.mxu0 0
        %2511 = vmatpush1.bf16.msra.mxu0 0
        %2512 = vmatprep.subr.bf16.mxu0 0
        %2513 = vmatpush1.bf16.msra.mxu0 0
        %2514 = vmatprep.subr.bf16.mxu0 0
        %2515 = vmatpush1.bf16.msra.mxu0 0
        %2516 = vmatprep.subr.bf16.mxu0 0
        %2517 = vmatpush1.bf16.msra.mxu0 0
        %2518 = vmatprep.subr.bf16.mxu0 0
        %2519 = vmatpush1.bf16.msra.mxu0 0
        %2520 = vmatprep.subr.bf16.mxu0 0
        %2521 = vmatpush1.bf16.msra.mxu0 %v2457
        %2522 = vmatprep.subr.bf16.mxu0 0
        %2523 = vmatpush1.bf16.msra.mxu0 %v2456
        %2524 = vmatprep.subr.bf16.mxu0 0
        %2525 = vmatpush2.bf16.msra.mxu0 0
        %2526 = vmatprep.subr.bf16.mxu0 0
        %2527 = vmatpush2.bf16.msra.mxu0 0
        %2528 = vmatprep.subr.bf16.mxu0 0
        %2529 = vmatpush2.bf16.msra.mxu0 0
        %2530 = vmatprep.subr.bf16.mxu0 0
        %2531 = vmatpush2.bf16.msra.mxu0 0
        %2532 = vmatprep.subr.bf16.mxu0 0
        %2533 = vmatpush2.bf16.msra.mxu0 0
        %2534 = vmatprep.subr.bf16.mxu0 0
        %2535 = vmatpush2.bf16.msra.mxu0 0
        %2536 = vmatprep.subr.bf16.mxu0 0
        %2537 = vmatpush2.bf16.msra.mxu0 0
        %2538 = vmatprep.subr.bf16.mxu0 0
        %2539 = vmatpush2.bf16.msra.mxu0 0
        %2540 = vmatprep.mubr.bf16.mxu0 0
        %2541 = vmatmul.mubr.bf16.gmra.mxu0 %v2461
        %v2542 = vpop.f32.mrf.mxu0
        %v2543 = vadd.f32 0.0, %v2542
        %v2544 = vpop.f32.mrf.mxu0
        %v2545 = vpop.f32.mrf.mxu0
        %v2546 = vadd.f32 0.0, %v2545
        %v2547 = vpop.f32.mrf.mxu0
        %2548 = vmatprep.mubr.bf16.mxu0 0
        %2549 = vmatmul.mubr.bf16.gmra.mxu0 %v2464
        %v2550 = vpop.f32.mrf.mxu0
        %v2551 = vadd.f32 0.0, %v2550
        %v2552 = vpop.f32.mrf.mxu0
        %v2553 = vpop.f32.mrf.mxu0
        %v2554 = vadd.f32 0.0, %v2553
        %v2555 = vpop.f32.mrf.mxu0
        %2556 = vmatprep.mubr.bf16.mxu0 0
        %2557 = vmatmul.mubr.bf16.gmra.mxu0 %v2467
        %v2558 = vpop.f32.mrf.mxu0
        %v2559 = vadd.f32 0.0, %v2558
        %v2560 = vpop.f32.mrf.mxu0
        %v2561 = vpop.f32.mrf.mxu0
        %v2562 = vadd.f32 0.0, %v2561
        %v2563 = vpop.f32.mrf.mxu0
        %2564 = vmatprep.mubr.bf16.mxu0 0
        %2565 = vmatmul.mubr.bf16.gmra.mxu0 %v2470
        %v2566 = vpop.f32.mrf.mxu0
        %v2567 = vadd.f32 0.0, %v2566
        %v2568 = vpop.f32.mrf.mxu0
        %v2569 = vpop.f32.mrf.mxu0
        %v2570 = vadd.f32 0.0, %v2569
        %v2571 = vpop.f32.mrf.mxu0
        %2572 = vmatprep.mubr.bf16.mxu0 0
        %2573 = vmatmul.mubr.bf16.gmra.mxu0 %v2473
        %v2574 = vpop.f32.mrf.mxu0
        %v2575 = vadd.f32 0.0, %v2574
        %v2576 = vpop.f32.mrf.mxu0
        %v2577 = vpop.f32.mrf.mxu0
        %v2578 = vadd.f32 0.0, %v2577
        %v2579 = vpop.f32.mrf.mxu0
        %2580 = vmatprep.mubr.bf16.mxu0 0
        %2581 = vmatmul.mubr.bf16.gmra.mxu0 %v2476
        %v2582 = vpop.f32.mrf.mxu0
        %v2583 = vadd.f32 0.0, %v2582
        %v2584 = vpop.f32.mrf.mxu0
        %v2585 = vpop.f32.mrf.mxu0
        %v2586 = vadd.f32 0.0, %v2585
        %v2587 = vpop.f32.mrf.mxu0
        %2588 = vmatprep.mubr.bf16.mxu0 0
        %2589 = vmatmul.mubr.bf16.gmra.mxu0 %v2479
        %v2590 = vpop.f32.mrf.mxu0
        %v2591 = vadd.f32 0.0, %v2590
        %v2592 = vpop.f32.mrf.mxu0
        %v2593 = vpop.f32.mrf.mxu0
        %v2594 = vadd.f32 0.0, %v2593
        %v2595 = vpop.f32.mrf.mxu0
        %2596 = vmatprep.mubr.bf16.mxu0 0
        %2597 = vmatmul.mubr.bf16.gmra.mxu0 %v2482
        %v2598 = vpop.f32.mrf.mxu0
        %v2599 = vadd.f32 0.0, %v2598
        %v2600 = vpop.f32.mrf.mxu0
        %v2601 = vpop.f32.mrf.mxu0
        %v2602 = vadd.f32 0.0, %v2601
        %v2603 = vpop.f32.mrf.mxu0
        %2604 = vmatprep.mubr.bf16.mxu0 0
        %2605 = vmatmul.mubr.bf16.gmra.mxu0 %v2485
        %v2606 = vpop.f32.mrf.mxu0
        %v2607 = vadd.f32 0.0, %v2606
        %v2608 = vpop.f32.mrf.mxu0
        %v2609 = vpop.f32.mrf.mxu0
        %v2610 = vadd.f32 0.0, %v2609
        %v2611 = vpop.f32.mrf.mxu0
        %2612 = vmatprep.mubr.bf16.mxu0 0
        %2613 = vmatmul.mubr.bf16.gmra.mxu0 %v2488
        %v2614 = vpop.f32.mrf.mxu0
        %v2615 = vadd.f32 0.0, %v2614
        %v2616 = vpop.f32.mrf.mxu0
        %v2617 = vpop.f32.mrf.mxu0
        %v2618 = vadd.f32 0.0, %v2617
        %v2619 = vpop.f32.mrf.mxu0
        %2620 = vmatprep.mubr.bf16.mxu0 0
        %2621 = vmatmul.mubr.bf16.gmra.mxu0 %v2491
        %v2622 = vpop.f32.mrf.mxu0
        %v2623 = vadd.f32 0.0, %v2622
        %v2624 = vpop.f32.mrf.mxu0
        %v2625 = vpop.f32.mrf.mxu0
        %v2626 = vadd.f32 0.0, %v2625
        %v2627 = vpop.f32.mrf.mxu0
        %2628 = vmatprep.mubr.bf16.mxu0 0
        %2629 = vmatmul.mubr.bf16.gmra.mxu0 %v2494
        %v2630 = vpop.f32.mrf.mxu0
        %v2631 = vadd.f32 0.0, %v2630
        %v2632 = vpop.f32.mrf.mxu0
        %v2633 = vpop.f32.mrf.mxu0
        %v2634 = vadd.f32 0.0, %v2633
        %v2635 = vpop.f32.mrf.mxu0
        %2636 = vmatprep.mubr.bf16.mxu0 0
        %2637 = vmatmul.mubr.bf16.gmra.mxu0 %v2497
        %v2638 = vpop.f32.mrf.mxu0
        %v2639 = vadd.f32 0.0, %v2638
        %v2640 = vpop.f32.mrf.mxu0
        %v2641 = vpop.f32.mrf.mxu0
        %v2642 = vadd.f32 0.0, %v2641
        %v2643 = vpop.f32.mrf.mxu0
        %2644 = vmatprep.mubr.bf16.mxu0 0
        %2645 = vmatmul.mubr.bf16.gmra.mxu0 %v2500
        %v2646 = vpop.f32.mrf.mxu0
        %v2647 = vadd.f32 0.0, %v2646
        %v2648 = vpop.f32.mrf.mxu0
        %v2649 = vpop.f32.mrf.mxu0
        %v2650 = vadd.f32 0.0, %v2649
        %v2651 = vpop.f32.mrf.mxu0
        %2652 = vmatprep.mubr.bf16.mxu0 0
        %2653 = vmatmul.mubr.bf16.gmra.mxu0 %v2503
        %v2654 = vpop.f32.mrf.mxu0
        %v2655 = vadd.f32 0.0, %v2654
        %v2656 = vpop.f32.mrf.mxu0
        %v2657 = vpop.f32.mrf.mxu0
        %v2658 = vadd.f32 0.0, %v2657
        %v2659 = vpop.f32.mrf.mxu0
        %2660 = vmatprep.mubr.bf16.mxu0 0
        %2661 = vmatmul.mubr.bf16.gmra.mxu0 %v2506
        %v2662 = vpop.f32.mrf.mxu0
        %v2663 = vadd.f32 0.0, %v2662
        %v2664 = vpop.f32.mrf.mxu0
        %v2665 = vpop.f32.mrf.mxu0
        %v2666 = vadd.f32 0.0, %v2665
        %v2667 = vpop.f32.mrf.mxu0
        %2668 = vdwg.mxu0
        %v2673 = vunpack.c.l.b16 %v2392
        %v2674 = vunpack.c.l.b16 %v2393
        %v2675 = vunpack.c.l.b16 %v2394
        %v2676 = vunpack.c.l.b16 %v2395
        %v2677 = vpack.c.b16 %v2674, %v2673
        %v2678 = vpack.c.b16 %v2676, %v2675
        %v2682 = vsel %vm856, %v2376, 0
        %v2685 = vsel %vm856, %v2377, 0
        %v2688 = vsel %vm856, %v2378, 0
        %v2691 = vsel %vm856, %v2379, 0
        %v2694 = vsel %vm856, %v2380, 0
        %v2697 = vsel %vm856, %v2381, 0
        %v2700 = vsel %vm856, %v2382, 0
        %v2703 = vsel %vm856, %v2383, 0
        %v2706 = vsel %vm856, %v2384, 0
        %v2709 = vsel %vm856, %v2385, 0
        %v2712 = vsel %vm856, %v2386, 0
        %v2715 = vsel %vm856, %v2387, 0
        %v2718 = vsel %vm856, %v2388, 0
        %v2721 = vsel %vm856, %v2389, 0
        %v2724 = vsel %vm856, %v2390, 0
        %v2727 = vsel %vm856, %v2391, 0
        %2729 = vmatprep.subr.bf16.mxu0 0
        %2730 = vmatpush1.bf16.msra.mxu0 0
        %2731 = vmatprep.subr.bf16.mxu0 0
        %2732 = vmatpush1.bf16.msra.mxu0 0
        %2733 = vmatprep.subr.bf16.mxu0 0
        %2734 = vmatpush1.bf16.msra.mxu0 0
        %2735 = vmatprep.subr.bf16.mxu0 0
        %2736 = vmatpush1.bf16.msra.mxu0 0
        %2737 = vmatprep.subr.bf16.mxu0 0
        %2738 = vmatpush1.bf16.msra.mxu0 0
        %2739 = vmatprep.subr.bf16.mxu0 0
        %2740 = vmatpush1.bf16.msra.mxu0 0
        %2741 = vmatprep.subr.bf16.mxu0 0
        %2742 = vmatpush1.bf16.msra.mxu0 %v2678
        %2743 = vmatprep.subr.bf16.mxu0 0
        %2744 = vmatpush1.bf16.msra.mxu0 %v2677
        %2745 = vmatprep.subr.bf16.mxu0 0
        %2746 = vmatpush2.bf16.msra.mxu0 0
        %2747 = vmatprep.subr.bf16.mxu0 0
        %2748 = vmatpush2.bf16.msra.mxu0 0
        %2749 = vmatprep.subr.bf16.mxu0 0
        %2750 = vmatpush2.bf16.msra.mxu0 0
        %2751 = vmatprep.subr.bf16.mxu0 0
        %2752 = vmatpush2.bf16.msra.mxu0 0
        %2753 = vmatprep.subr.bf16.mxu0 0
        %2754 = vmatpush2.bf16.msra.mxu0 0
        %2755 = vmatprep.subr.bf16.mxu0 0
        %2756 = vmatpush2.bf16.msra.mxu0 0
        %2757 = vmatprep.subr.bf16.mxu0 0
        %2758 = vmatpush2.bf16.msra.mxu0 0
        %2759 = vmatprep.subr.bf16.mxu0 0
        %2760 = vmatpush2.bf16.msra.mxu0 0
        %2761 = vmatprep.mubr.bf16.mxu0 0
        %2762 = vmatmul.mubr.bf16.gmra.mxu0 %v2682
        %v2763 = vpop.f32.mrf.mxu0
        %v2764 = vadd.f32 %v2543, %v2763
        %v2765 = vpop.f32.mrf.mxu0
        %v2766 = vpop.f32.mrf.mxu0
        %v2767 = vadd.f32 %v2546, %v2766
        %v2768 = vpop.f32.mrf.mxu0
        %2769 = vmatprep.mubr.bf16.mxu0 0
        %2770 = vmatmul.mubr.bf16.gmra.mxu0 %v2685
        %v2771 = vpop.f32.mrf.mxu0
        %v2772 = vadd.f32 %v2551, %v2771
        %v2773 = vpop.f32.mrf.mxu0
        %v2774 = vpop.f32.mrf.mxu0
        %v2775 = vadd.f32 %v2554, %v2774
        %v2776 = vpop.f32.mrf.mxu0
        %2777 = vmatprep.mubr.bf16.mxu0 0
        %2778 = vmatmul.mubr.bf16.gmra.mxu0 %v2688
        %v2779 = vpop.f32.mrf.mxu0
        %v2780 = vadd.f32 %v2559, %v2779
        %v2781 = vpop.f32.mrf.mxu0
        %v2782 = vpop.f32.mrf.mxu0
        %v2783 = vadd.f32 %v2562, %v2782
        %v2784 = vpop.f32.mrf.mxu0
        %2785 = vmatprep.mubr.bf16.mxu0 0
        %2786 = vmatmul.mubr.bf16.gmra.mxu0 %v2691
        %v2787 = vpop.f32.mrf.mxu0
        %v2788 = vadd.f32 %v2567, %v2787
        %v2789 = vpop.f32.mrf.mxu0
        %v2790 = vpop.f32.mrf.mxu0
        %v2791 = vadd.f32 %v2570, %v2790
        %v2792 = vpop.f32.mrf.mxu0
        %2793 = vmatprep.mubr.bf16.mxu0 0
        %2794 = vmatmul.mubr.bf16.gmra.mxu0 %v2694
        %v2795 = vpop.f32.mrf.mxu0
        %v2796 = vadd.f32 %v2575, %v2795
        %v2797 = vpop.f32.mrf.mxu0
        %v2798 = vpop.f32.mrf.mxu0
        %v2799 = vadd.f32 %v2578, %v2798
        %v2800 = vpop.f32.mrf.mxu0
        %2801 = vmatprep.mubr.bf16.mxu0 0
        %2802 = vmatmul.mubr.bf16.gmra.mxu0 %v2697
        %v2803 = vpop.f32.mrf.mxu0
        %v2804 = vadd.f32 %v2583, %v2803
        %v2805 = vpop.f32.mrf.mxu0
        %v2806 = vpop.f32.mrf.mxu0
        %v2807 = vadd.f32 %v2586, %v2806
        %v2808 = vpop.f32.mrf.mxu0
        %2809 = vmatprep.mubr.bf16.mxu0 0
        %2810 = vmatmul.mubr.bf16.gmra.mxu0 %v2700
        %v2811 = vpop.f32.mrf.mxu0
        %v2812 = vadd.f32 %v2591, %v2811
        %v2813 = vpop.f32.mrf.mxu0
        %v2814 = vpop.f32.mrf.mxu0
        %v2815 = vadd.f32 %v2594, %v2814
        %v2816 = vpop.f32.mrf.mxu0
        %2817 = vmatprep.mubr.bf16.mxu0 0
        %2818 = vmatmul.mubr.bf16.gmra.mxu0 %v2703
        %v2819 = vpop.f32.mrf.mxu0
        %v2820 = vadd.f32 %v2599, %v2819
        %v2821 = vpop.f32.mrf.mxu0
        %v2822 = vpop.f32.mrf.mxu0
        %v2823 = vadd.f32 %v2602, %v2822
        %v2824 = vpop.f32.mrf.mxu0
        %2825 = vmatprep.mubr.bf16.mxu0 0
        %2826 = vmatmul.mubr.bf16.gmra.mxu0 %v2706
        %v2827 = vpop.f32.mrf.mxu0
        %v2828 = vadd.f32 %v2607, %v2827
        %v2829 = vpop.f32.mrf.mxu0
        %v2830 = vpop.f32.mrf.mxu0
        %v2831 = vadd.f32 %v2610, %v2830
        %v2832 = vpop.f32.mrf.mxu0
        %2833 = vmatprep.mubr.bf16.mxu0 0
        %2834 = vmatmul.mubr.bf16.gmra.mxu0 %v2709
        %v2835 = vpop.f32.mrf.mxu0
        %v2836 = vadd.f32 %v2615, %v2835
        %v2837 = vpop.f32.mrf.mxu0
        %v2838 = vpop.f32.mrf.mxu0
        %v2839 = vadd.f32 %v2618, %v2838
        %v2840 = vpop.f32.mrf.mxu0
        %2841 = vmatprep.mubr.bf16.mxu0 0
        %2842 = vmatmul.mubr.bf16.gmra.mxu0 %v2712
        %v2843 = vpop.f32.mrf.mxu0
        %v2844 = vadd.f32 %v2623, %v2843
        %v2845 = vpop.f32.mrf.mxu0
        %v2846 = vpop.f32.mrf.mxu0
        %v2847 = vadd.f32 %v2626, %v2846
        %v2848 = vpop.f32.mrf.mxu0
        %2849 = vmatprep.mubr.bf16.mxu0 0
        %2850 = vmatmul.mubr.bf16.gmra.mxu0 %v2715
        %v2851 = vpop.f32.mrf.mxu0
        %v2852 = vadd.f32 %v2631, %v2851
        %v2853 = vpop.f32.mrf.mxu0
        %v2854 = vpop.f32.mrf.mxu0
        %v2855 = vadd.f32 %v2634, %v2854
        %v2856 = vpop.f32.mrf.mxu0
        %2857 = vmatprep.mubr.bf16.mxu0 0
        %2858 = vmatmul.mubr.bf16.gmra.mxu0 %v2718
        %v2859 = vpop.f32.mrf.mxu0
        %v2860 = vadd.f32 %v2639, %v2859
        %v2861 = vpop.f32.mrf.mxu0
        %v2862 = vpop.f32.mrf.mxu0
        %v2863 = vadd.f32 %v2642, %v2862
        %v2864 = vpop.f32.mrf.mxu0
        %2865 = vmatprep.mubr.bf16.mxu0 0
        %2866 = vmatmul.mubr.bf16.gmra.mxu0 %v2721
        %v2867 = vpop.f32.mrf.mxu0
        %v2868 = vadd.f32 %v2647, %v2867
        %v2869 = vpop.f32.mrf.mxu0
        %v2870 = vpop.f32.mrf.mxu0
        %v2871 = vadd.f32 %v2650, %v2870
        %v2872 = vpop.f32.mrf.mxu0
        %2873 = vmatprep.mubr.bf16.mxu0 0
        %2874 = vmatmul.mubr.bf16.gmra.mxu0 %v2724
        %v2875 = vpop.f32.mrf.mxu0
        %v2876 = vadd.f32 %v2655, %v2875
        %v2877 = vpop.f32.mrf.mxu0
        %v2878 = vpop.f32.mrf.mxu0
        %v2879 = vadd.f32 %v2658, %v2878
        %v2880 = vpop.f32.mrf.mxu0
        %2881 = vmatprep.mubr.bf16.mxu0 0
        %2882 = vmatmul.mubr.bf16.gmra.mxu0 %v2727
        %v2883 = vpop.f32.mrf.mxu0
        %v2884 = vadd.f32 %v2663, %v2883
        %v2885 = vpop.f32.mrf.mxu0
        %v2886 = vpop.f32.mrf.mxu0
        %v2887 = vadd.f32 %v2666, %v2886
        %v2888 = vpop.f32.mrf.mxu0
        %2889 = vdwg.mxu0
        %v2890 = vld [vmem:[#allocation2 + $0x2] sm:$0xff]
        %v2891 = vld [vmem:[#allocation2 + $0xa] sm:$0xff]
        %v2892 = vld [vmem:[#allocation2 + $0x1a] sm:$0xff]
        %v2893 = vld [vmem:[#allocation2 + $0x22] sm:$0xff]
        %v2894 = vld [vmem:[#allocation2 + $0x32] sm:$0xff]
        %v2895 = vld [vmem:[#allocation2 + $0x3a] sm:$0xff]
        %v2896 = vld [vmem:[#allocation2 + $0x4a] sm:$0xff]
        %v2897 = vld [vmem:[#allocation2 + $0x52] sm:$0xff]
        %v2898 = vld [vmem:[#allocation2 + $0x62] sm:$0xff]
        %v2899 = vld [vmem:[#allocation2 + $0x6a] sm:$0xff]
        %v2900 = vld [vmem:[#allocation2 + $0x7a] sm:$0xff]
        %v2901 = vld [vmem:[#allocation2 + $0x82] sm:$0xff]
        %v2902 = vld [vmem:[#allocation2 + $0x92] sm:$0xff]
        %v2903 = vld [vmem:[#allocation2 + $0x9a] sm:$0xff]
        %v2904 = vld [vmem:[#allocation2 + $0xaa] sm:$0xff]
        %v2905 = vld [vmem:[#allocation2 + $0xb2] sm:$0xff]
        %v2906 = vld [vmem:[#allocation2 + $0xc2] sm:$0xff]
        %v2907 = vld [vmem:[#allocation2 + $0xca] sm:$0xff]
        %v2908 = vld [vmem:[#allocation2 + $0xda] sm:$0xff]
        %v2909 = vld [vmem:[#allocation2 + $0xe2] sm:$0xff]
        %v2910 = vld [vmem:[#allocation2 + $0xf2] sm:$0xff]
        %v2911 = vld [vmem:[#allocation2 + $0xfa] sm:$0xff]
        %v2912 = vld [vmem:[#allocation2 + $0x10a] sm:$0xff]
        %v2913 = vld [vmem:[#allocation2 + $0x112] sm:$0xff]
        %v2914 = vld [vmem:[#allocation2 + $0x122] sm:$0xff]
        %v2915 = vld [vmem:[#allocation2 + $0x12a] sm:$0xff]
        %v2916 = vld [vmem:[#allocation2 + $0x13a] sm:$0xff]
        %v2917 = vld [vmem:[#allocation2 + $0x142] sm:$0xff]
        %v2918 = vld [vmem:[#allocation2 + $0x152] sm:$0xff]
        %v2919 = vld [vmem:[#allocation2 + $0x15a] sm:$0xff]
        %v2920 = vld [vmem:[#allocation2 + $0x16a] sm:$0xff]
        %v2921 = vld [vmem:[#allocation2 + $0x172] sm:$0xff]
        %v2922 = vpack.c.bf16 %v2891, %v2890
        %v2923 = vpack.c.bf16 %v2893, %v2892
        %v2924 = vpack.c.bf16 %v2895, %v2894
        %v2925 = vpack.c.bf16 %v2897, %v2896
        %v2926 = vpack.c.bf16 %v2899, %v2898
        %v2927 = vpack.c.bf16 %v2901, %v2900
        %v2928 = vpack.c.bf16 %v2903, %v2902
        %v2929 = vpack.c.bf16 %v2905, %v2904
        %v2930 = vpack.c.bf16 %v2907, %v2906
        %v2931 = vpack.c.bf16 %v2909, %v2908
        %v2932 = vpack.c.bf16 %v2911, %v2910
        %v2933 = vpack.c.bf16 %v2913, %v2912
        %v2934 = vpack.c.bf16 %v2915, %v2914
        %v2935 = vpack.c.bf16 %v2917, %v2916
        %v2936 = vpack.c.bf16 %v2919, %v2918
        %v2937 = vpack.c.bf16 %v2921, %v2920
        %v2938 = vld [vmem:[%s3 + $0x20] sm:$0xf]
        %v2939 = vld [vmem:[%s3 + $0x24] sm:$0xf]
        %v2940 = vld [vmem:[%s3 + $0x28] sm:$0xf]
        %v2941 = vld [vmem:[%s3 + $0x2c] sm:$0xf]
        %v2946 = vunpack.c.l.b16 %v2938
        %v2947 = vunpack.c.l.b16 %v2939
        %v2948 = vunpack.c.l.b16 %v2940
        %v2949 = vunpack.c.l.b16 %v2941
        %v2950 = vpack.c.b16 %v2947, %v2946
        %v2951 = vpack.c.b16 %v2949, %v2948
        %v2955 = vsel %vm856, %v2922, 0
        %v2958 = vsel %vm856, %v2923, 0
        %v2961 = vsel %vm856, %v2924, 0
        %v2964 = vsel %vm856, %v2925, 0
        %v2967 = vsel %vm856, %v2926, 0
        %v2970 = vsel %vm856, %v2927, 0
        %v2973 = vsel %vm856, %v2928, 0
        %v2976 = vsel %vm856, %v2929, 0
        %v2979 = vsel %vm856, %v2930, 0
        %v2982 = vsel %vm856, %v2931, 0
        %v2985 = vsel %vm856, %v2932, 0
        %v2988 = vsel %vm856, %v2933, 0
        %v2991 = vsel %vm856, %v2934, 0
        %v2994 = vsel %vm856, %v2935, 0
        %v2997 = vsel %vm856, %v2936, 0
        %v3000 = vsel %vm856, %v2937, 0
        %3002 = vmatprep.subr.bf16.mxu0 0
        %3003 = vmatpush1.bf16.msra.mxu0 0
        %3004 = vmatprep.subr.bf16.mxu0 0
        %3005 = vmatpush1.bf16.msra.mxu0 0
        %3006 = vmatprep.subr.bf16.mxu0 0
        %3007 = vmatpush1.bf16.msra.mxu0 0
        %3008 = vmatprep.subr.bf16.mxu0 0
        %3009 = vmatpush1.bf16.msra.mxu0 0
        %3010 = vmatprep.subr.bf16.mxu0 0
        %3011 = vmatpush1.bf16.msra.mxu0 0
        %3012 = vmatprep.subr.bf16.mxu0 0
        %3013 = vmatpush1.bf16.msra.mxu0 0
        %3014 = vmatprep.subr.bf16.mxu0 0
        %3015 = vmatpush1.bf16.msra.mxu0 %v2951
        %3016 = vmatprep.subr.bf16.mxu0 0
        %3017 = vmatpush1.bf16.msra.mxu0 %v2950
        %3018 = vmatprep.subr.bf16.mxu0 0
        %3019 = vmatpush2.bf16.msra.mxu0 0
        %3020 = vmatprep.subr.bf16.mxu0 0
        %3021 = vmatpush2.bf16.msra.mxu0 0
        %3022 = vmatprep.subr.bf16.mxu0 0
        %3023 = vmatpush2.bf16.msra.mxu0 0
        %3024 = vmatprep.subr.bf16.mxu0 0
        %3025 = vmatpush2.bf16.msra.mxu0 0
        %3026 = vmatprep.subr.bf16.mxu0 0
        %3027 = vmatpush2.bf16.msra.mxu0 0
        %3028 = vmatprep.subr.bf16.mxu0 0
        %3029 = vmatpush2.bf16.msra.mxu0 0
        %3030 = vmatprep.subr.bf16.mxu0 0
        %3031 = vmatpush2.bf16.msra.mxu0 0
        %3032 = vmatprep.subr.bf16.mxu0 0
        %3033 = vmatpush2.bf16.msra.mxu0 0
        %3034 = vmatprep.mubr.bf16.mxu0 0
        %3035 = vmatmul.mubr.bf16.gmra.mxu0 %v2955
        %v3036 = vpop.f32.mrf.mxu0
        %v3037 = vadd.f32 0.0, %v3036
        %v3038 = vpop.f32.mrf.mxu0
        %v3039 = vpop.f32.mrf.mxu0
        %v3040 = vadd.f32 0.0, %v3039
        %v3041 = vpop.f32.mrf.mxu0
        %3042 = vmatprep.mubr.bf16.mxu0 0
        %3043 = vmatmul.mubr.bf16.gmra.mxu0 %v2958
        %v3044 = vpop.f32.mrf.mxu0
        %v3045 = vadd.f32 0.0, %v3044
        %v3046 = vpop.f32.mrf.mxu0
        %v3047 = vpop.f32.mrf.mxu0
        %v3048 = vadd.f32 0.0, %v3047
        %v3049 = vpop.f32.mrf.mxu0
        %3050 = vmatprep.mubr.bf16.mxu0 0
        %3051 = vmatmul.mubr.bf16.gmra.mxu0 %v2961
        %v3052 = vpop.f32.mrf.mxu0
        %v3053 = vadd.f32 0.0, %v3052
        %v3054 = vpop.f32.mrf.mxu0
        %v3055 = vpop.f32.mrf.mxu0
        %v3056 = vadd.f32 0.0, %v3055
        %v3057 = vpop.f32.mrf.mxu0
        %3058 = vmatprep.mubr.bf16.mxu0 0
        %3059 = vmatmul.mubr.bf16.gmra.mxu0 %v2964
        %v3060 = vpop.f32.mrf.mxu0
        %v3061 = vadd.f32 0.0, %v3060
        %v3062 = vpop.f32.mrf.mxu0
        %v3063 = vpop.f32.mrf.mxu0
        %v3064 = vadd.f32 0.0, %v3063
        %v3065 = vpop.f32.mrf.mxu0
        %3066 = vmatprep.mubr.bf16.mxu0 0
        %3067 = vmatmul.mubr.bf16.gmra.mxu0 %v2967
        %v3068 = vpop.f32.mrf.mxu0
        %v3069 = vadd.f32 0.0, %v3068
        %v3070 = vpop.f32.mrf.mxu0
        %v3071 = vpop.f32.mrf.mxu0
        %v3072 = vadd.f32 0.0, %v3071
        %v3073 = vpop.f32.mrf.mxu0
        %3074 = vmatprep.mubr.bf16.mxu0 0
        %3075 = vmatmul.mubr.bf16.gmra.mxu0 %v2970
        %v3076 = vpop.f32.mrf.mxu0
        %v3077 = vadd.f32 0.0, %v3076
        %v3078 = vpop.f32.mrf.mxu0
        %v3079 = vpop.f32.mrf.mxu0
        %v3080 = vadd.f32 0.0, %v3079
        %v3081 = vpop.f32.mrf.mxu0
        %3082 = vmatprep.mubr.bf16.mxu0 0
        %3083 = vmatmul.mubr.bf16.gmra.mxu0 %v2973
        %v3084 = vpop.f32.mrf.mxu0
        %v3085 = vadd.f32 0.0, %v3084
        %v3086 = vpop.f32.mrf.mxu0
        %v3087 = vpop.f32.mrf.mxu0
        %v3088 = vadd.f32 0.0, %v3087
        %v3089 = vpop.f32.mrf.mxu0
        %3090 = vmatprep.mubr.bf16.mxu0 0
        %3091 = vmatmul.mubr.bf16.gmra.mxu0 %v2976
        %v3092 = vpop.f32.mrf.mxu0
        %v3093 = vadd.f32 0.0, %v3092
        %v3094 = vpop.f32.mrf.mxu0
        %v3095 = vpop.f32.mrf.mxu0
        %v3096 = vadd.f32 0.0, %v3095
        %v3097 = vpop.f32.mrf.mxu0
        %3098 = vmatprep.mubr.bf16.mxu0 0
        %3099 = vmatmul.mubr.bf16.gmra.mxu0 %v2979
        %v3100 = vpop.f32.mrf.mxu0
        %v3101 = vadd.f32 0.0, %v3100
        %v3102 = vpop.f32.mrf.mxu0
        %v3103 = vpop.f32.mrf.mxu0
        %v3104 = vadd.f32 0.0, %v3103
        %v3105 = vpop.f32.mrf.mxu0
        %3106 = vmatprep.mubr.bf16.mxu0 0
        %3107 = vmatmul.mubr.bf16.gmra.mxu0 %v2982
        %v3108 = vpop.f32.mrf.mxu0
        %v3109 = vadd.f32 0.0, %v3108
        %v3110 = vpop.f32.mrf.mxu0
        %v3111 = vpop.f32.mrf.mxu0
        %v3112 = vadd.f32 0.0, %v3111
        %v3113 = vpop.f32.mrf.mxu0
        %3114 = vmatprep.mubr.bf16.mxu0 0
        %3115 = vmatmul.mubr.bf16.gmra.mxu0 %v2985
        %v3116 = vpop.f32.mrf.mxu0
        %v3117 = vadd.f32 0.0, %v3116
        %v3118 = vpop.f32.mrf.mxu0
        %v3119 = vpop.f32.mrf.mxu0
        %v3120 = vadd.f32 0.0, %v3119
        %v3121 = vpop.f32.mrf.mxu0
        %3122 = vmatprep.mubr.bf16.mxu0 0
        %3123 = vmatmul.mubr.bf16.gmra.mxu0 %v2988
        %v3124 = vpop.f32.mrf.mxu0
        %v3125 = vadd.f32 0.0, %v3124
        %v3126 = vpop.f32.mrf.mxu0
        %v3127 = vpop.f32.mrf.mxu0
        %v3128 = vadd.f32 0.0, %v3127
        %v3129 = vpop.f32.mrf.mxu0
        %3130 = vmatprep.mubr.bf16.mxu0 0
        %3131 = vmatmul.mubr.bf16.gmra.mxu0 %v2991
        %v3132 = vpop.f32.mrf.mxu0
        %v3133 = vadd.f32 0.0, %v3132
        %v3134 = vpop.f32.mrf.mxu0
        %v3135 = vpop.f32.mrf.mxu0
        %v3136 = vadd.f32 0.0, %v3135
        %v3137 = vpop.f32.mrf.mxu0
        %3138 = vmatprep.mubr.bf16.mxu0 0
        %3139 = vmatmul.mubr.bf16.gmra.mxu0 %v2994
        %v3140 = vpop.f32.mrf.mxu0
        %v3141 = vadd.f32 0.0, %v3140
        %v3142 = vpop.f32.mrf.mxu0
        %v3143 = vpop.f32.mrf.mxu0
        %v3144 = vadd.f32 0.0, %v3143
        %v3145 = vpop.f32.mrf.mxu0
        %3146 = vmatprep.mubr.bf16.mxu0 0
        %3147 = vmatmul.mubr.bf16.gmra.mxu0 %v2997
        %v3148 = vpop.f32.mrf.mxu0
        %v3149 = vadd.f32 0.0, %v3148
        %v3150 = vpop.f32.mrf.mxu0
        %v3151 = vpop.f32.mrf.mxu0
        %v3152 = vadd.f32 0.0, %v3151
        %v3153 = vpop.f32.mrf.mxu0
        %3154 = vmatprep.mubr.bf16.mxu0 0
        %3155 = vmatmul.mubr.bf16.gmra.mxu0 %v3000
        %v3156 = vpop.f32.mrf.mxu0
        %v3157 = vadd.f32 0.0, %v3156
        %v3158 = vpop.f32.mrf.mxu0
        %v3159 = vpop.f32.mrf.mxu0
        %v3160 = vadd.f32 0.0, %v3159
        %v3161 = vpop.f32.mrf.mxu0
        %3162 = vdwg.mxu0
        %v3163 = vadd.f32 %v2764, %v3037
        %v3164 = vadd.f32 %v2767, %v3040
        %v3165 = vadd.f32 %v2772, %v3045
        %v3166 = vadd.f32 %v2775, %v3048
        %v3167 = vadd.f32 %v2780, %v3053
        %v3168 = vadd.f32 %v2783, %v3056
        %v3169 = vadd.f32 %v2788, %v3061
        %v3170 = vadd.f32 %v2791, %v3064
        %v3171 = vadd.f32 %v2796, %v3069
        %v3172 = vadd.f32 %v2799, %v3072
        %v3173 = vadd.f32 %v2804, %v3077
        %v3174 = vadd.f32 %v2807, %v3080
        %v3175 = vadd.f32 %v2812, %v3085
        %v3176 = vadd.f32 %v2815, %v3088
        %v3177 = vadd.f32 %v2820, %v3093
        %v3178 = vadd.f32 %v2823, %v3096
        %v3179 = vadd.f32 %v2828, %v3101
        %v3180 = vadd.f32 %v2831, %v3104
        %v3181 = vadd.f32 %v2836, %v3109
        %v3182 = vadd.f32 %v2839, %v3112
        %v3183 = vadd.f32 %v2844, %v3117
        %v3184 = vadd.f32 %v2847, %v3120
        %v3185 = vadd.f32 %v2852, %v3125
        %v3186 = vadd.f32 %v2855, %v3128
        %v3187 = vadd.f32 %v2860, %v3133
        %v3188 = vadd.f32 %v2863, %v3136
        %v3189 = vadd.f32 %v2868, %v3141
        %v3190 = vadd.f32 %v2871, %v3144
        %v3191 = vadd.f32 %v2876, %v3149
        %v3192 = vadd.f32 %v2879, %v3152
        %v3193 = vadd.f32 %v2884, %v3157
        %v3194 = vadd.f32 %v2887, %v3160
        %v3195 = vld [vmem:[%s2311] sm:$0xff]
        %v3196 = vld [vmem:[%s2311 + $0x8] sm:$0xff]
        %v3197 = vld [vmem:[%s2311 + $0x18] sm:$0xff]
        %v3198 = vld [vmem:[%s2311 + $0x20] sm:$0xff]
        %v3199 = vld [vmem:[%s2311 + $0x30] sm:$0xff]
        %v3200 = vld [vmem:[%s2311 + $0x38] sm:$0xff]
        %v3201 = vld [vmem:[%s2311 + $0x48] sm:$0xff]
        %v3202 = vld [vmem:[%s2311 + $0x50] sm:$0xff]
        %v3203 = vld [vmem:[%s2311 + $0x60] sm:$0xff]
        %v3204 = vld [vmem:[%s2311 + $0x68] sm:$0xff]
        %v3205 = vld [vmem:[%s2311 + $0x78] sm:$0xff]
        %v3206 = vld [vmem:[%s2311 + $0x80] sm:$0xff]
        %v3207 = vld [vmem:[%s2311 + $0x90] sm:$0xff]
        %v3208 = vld [vmem:[%s2311 + $0x98] sm:$0xff]
        %v3209 = vld [vmem:[%s2311 + $0xa8] sm:$0xff]
        %v3210 = vld [vmem:[%s2311 + $0xb0] sm:$0xff]
        %v3211 = vld [vmem:[%s2311 + $0xc0] sm:$0xff]
        %v3212 = vld [vmem:[%s2311 + $0xc8] sm:$0xff]
        %v3213 = vld [vmem:[%s2311 + $0xd8] sm:$0xff]
        %v3214 = vld [vmem:[%s2311 + $0xe0] sm:$0xff]
        %v3215 = vld [vmem:[%s2311 + $0xf0] sm:$0xff]
        %v3216 = vld [vmem:[%s2311 + $0xf8] sm:$0xff]
        %v3217 = vld [vmem:[%s2311 + $0x108] sm:$0xff]
        %v3218 = vld [vmem:[%s2311 + $0x110] sm:$0xff]
        %v3219 = vld [vmem:[%s2311 + $0x120] sm:$0xff]
        %v3220 = vld [vmem:[%s2311 + $0x128] sm:$0xff]
        %v3221 = vld [vmem:[%s2311 + $0x138] sm:$0xff]
        %v3222 = vld [vmem:[%s2311 + $0x140] sm:$0xff]
        %v3223 = vld [vmem:[%s2311 + $0x150] sm:$0xff]
        %v3224 = vld [vmem:[%s2311 + $0x158] sm:$0xff]
        %v3225 = vld [vmem:[%s2311 + $0x168] sm:$0xff]
        %v3226 = vld [vmem:[%s2311 + $0x170] sm:$0xff]
        %v3227 = vpack.c.bf16 %v3196, %v3195
        %v3228 = vpack.c.bf16 %v3198, %v3197
        %v3229 = vpack.c.bf16 %v3200, %v3199
        %v3230 = vpack.c.bf16 %v3202, %v3201
        %v3231 = vpack.c.bf16 %v3204, %v3203
        %v3232 = vpack.c.bf16 %v3206, %v3205
        %v3233 = vpack.c.bf16 %v3208, %v3207
        %v3234 = vpack.c.bf16 %v3210, %v3209
        %v3235 = vpack.c.bf16 %v3212, %v3211
        %v3236 = vpack.c.bf16 %v3214, %v3213
        %v3237 = vpack.c.bf16 %v3216, %v3215
        %v3238 = vpack.c.bf16 %v3218, %v3217
        %v3239 = vpack.c.bf16 %v3220, %v3219
        %v3240 = vpack.c.bf16 %v3222, %v3221
        %v3241 = vpack.c.bf16 %v3224, %v3223
        %v3242 = vpack.c.bf16 %v3226, %v3225
        %v3243 = vld [vmem:[%s3 + $0x30] sm:$0xf]
        %v3244 = vld [vmem:[%s3 + $0x34] sm:$0xf]
        %v3245 = vld [vmem:[%s3 + $0x38] sm:$0xf]
        %v3246 = vld [vmem:[%s3 + $0x3c] sm:$0xf]
        %v3251 = vunpack.c.l.b16 %v3243
        %v3252 = vunpack.c.l.b16 %v3244
        %v3253 = vunpack.c.l.b16 %v3245
        %v3254 = vunpack.c.l.b16 %v3246
        %v3255 = vpack.c.b16 %v3252, %v3251
        %v3256 = vpack.c.b16 %v3254, %v3253
        %v3260 = vsel %vm856, %v3227, 0
        %v3263 = vsel %vm856, %v3228, 0
        %v3266 = vsel %vm856, %v3229, 0
        %v3269 = vsel %vm856, %v3230, 0
        %v3272 = vsel %vm856, %v3231, 0
        %v3275 = vsel %vm856, %v3232, 0
        %v3278 = vsel %vm856, %v3233, 0
        %v3281 = vsel %vm856, %v3234, 0
        %v3284 = vsel %vm856, %v3235, 0
        %v3287 = vsel %vm856, %v3236, 0
        %v3290 = vsel %vm856, %v3237, 0
        %v3293 = vsel %vm856, %v3238, 0
        %v3296 = vsel %vm856, %v3239, 0
        %v3299 = vsel %vm856, %v3240, 0
        %v3302 = vsel %vm856, %v3241, 0
        %v3305 = vsel %vm856, %v3242, 0
        %3307 = vmatprep.subr.bf16.mxu0 0
        %3308 = vmatpush1.bf16.msra.mxu0 0
        %3309 = vmatprep.subr.bf16.mxu0 0
        %3310 = vmatpush1.bf16.msra.mxu0 0
        %3311 = vmatprep.subr.bf16.mxu0 0
        %3312 = vmatpush1.bf16.msra.mxu0 0
        %3313 = vmatprep.subr.bf16.mxu0 0
        %3314 = vmatpush1.bf16.msra.mxu0 0
        %3315 = vmatprep.subr.bf16.mxu0 0
        %3316 = vmatpush1.bf16.msra.mxu0 0
        %3317 = vmatprep.subr.bf16.mxu0 0
        %3318 = vmatpush1.bf16.msra.mxu0 0
        %3319 = vmatprep.subr.bf16.mxu0 0
        %3320 = vmatpush1.bf16.msra.mxu0 %v3256
        %3321 = vmatprep.subr.bf16.mxu0 0
        %3322 = vmatpush1.bf16.msra.mxu0 %v3255
        %3323 = vmatprep.subr.bf16.mxu0 0
        %3324 = vmatpush2.bf16.msra.mxu0 0
        %3325 = vmatprep.subr.bf16.mxu0 0
        %3326 = vmatpush2.bf16.msra.mxu0 0
        %3327 = vmatprep.subr.bf16.mxu0 0
        %3328 = vmatpush2.bf16.msra.mxu0 0
        %3329 = vmatprep.subr.bf16.mxu0 0
        %3330 = vmatpush2.bf16.msra.mxu0 0
        %3331 = vmatprep.subr.bf16.mxu0 0
        %3332 = vmatpush2.bf16.msra.mxu0 0
        %3333 = vmatprep.subr.bf16.mxu0 0
        %3334 = vmatpush2.bf16.msra.mxu0 0
        %3335 = vmatprep.subr.bf16.mxu0 0
        %3336 = vmatpush2.bf16.msra.mxu0 0
        %3337 = vmatprep.subr.bf16.mxu0 0
        %3338 = vmatpush2.bf16.msra.mxu0 0
        %3339 = vmatprep.mubr.bf16.mxu0 0
        %3340 = vmatmul.mubr.bf16.gmra.mxu0 %v3260
        %v3341 = vpop.f32.mrf.mxu0
        %v3342 = vadd.f32 0.0, %v3341
        %v3343 = vpop.f32.mrf.mxu0
        %v3344 = vpop.f32.mrf.mxu0
        %v3345 = vadd.f32 0.0, %v3344
        %v3346 = vpop.f32.mrf.mxu0
        %3347 = vmatprep.mubr.bf16.mxu0 0
        %3348 = vmatmul.mubr.bf16.gmra.mxu0 %v3263
        %v3349 = vpop.f32.mrf.mxu0
        %v3350 = vadd.f32 0.0, %v3349
        %v3351 = vpop.f32.mrf.mxu0
        %v3352 = vpop.f32.mrf.mxu0
        %v3353 = vadd.f32 0.0, %v3352
        %v3354 = vpop.f32.mrf.mxu0
        %3355 = vmatprep.mubr.bf16.mxu0 0
        %3356 = vmatmul.mubr.bf16.gmra.mxu0 %v3266
        %v3357 = vpop.f32.mrf.mxu0
        %v3358 = vadd.f32 0.0, %v3357
        %v3359 = vpop.f32.mrf.mxu0
        %v3360 = vpop.f32.mrf.mxu0
        %v3361 = vadd.f32 0.0, %v3360
        %v3362 = vpop.f32.mrf.mxu0
        %3363 = vmatprep.mubr.bf16.mxu0 0
        %3364 = vmatmul.mubr.bf16.gmra.mxu0 %v3269
        %v3365 = vpop.f32.mrf.mxu0
        %v3366 = vadd.f32 0.0, %v3365
        %v3367 = vpop.f32.mrf.mxu0
        %v3368 = vpop.f32.mrf.mxu0
        %v3369 = vadd.f32 0.0, %v3368
        %v3370 = vpop.f32.mrf.mxu0
        %3371 = vmatprep.mubr.bf16.mxu0 0
        %3372 = vmatmul.mubr.bf16.gmra.mxu0 %v3272
        %v3373 = vpop.f32.mrf.mxu0
        %v3374 = vadd.f32 0.0, %v3373
        %v3375 = vpop.f32.mrf.mxu0
        %v3376 = vpop.f32.mrf.mxu0
        %v3377 = vadd.f32 0.0, %v3376
        %v3378 = vpop.f32.mrf.mxu0
        %3379 = vmatprep.mubr.bf16.mxu0 0
        %3380 = vmatmul.mubr.bf16.gmra.mxu0 %v3275
        %v3381 = vpop.f32.mrf.mxu0
        %v3382 = vadd.f32 0.0, %v3381
        %v3383 = vpop.f32.mrf.mxu0
        %v3384 = vpop.f32.mrf.mxu0
        %v3385 = vadd.f32 0.0, %v3384
        %v3386 = vpop.f32.mrf.mxu0
        %3387 = vmatprep.mubr.bf16.mxu0 0
        %3388 = vmatmul.mubr.bf16.gmra.mxu0 %v3278
        %v3389 = vpop.f32.mrf.mxu0
        %v3390 = vadd.f32 0.0, %v3389
        %v3391 = vpop.f32.mrf.mxu0
        %v3392 = vpop.f32.mrf.mxu0
        %v3393 = vadd.f32 0.0, %v3392
        %v3394 = vpop.f32.mrf.mxu0
        %3395 = vmatprep.mubr.bf16.mxu0 0
        %3396 = vmatmul.mubr.bf16.gmra.mxu0 %v3281
        %v3397 = vpop.f32.mrf.mxu0
        %v3398 = vadd.f32 0.0, %v3397
        %v3399 = vpop.f32.mrf.mxu0
        %v3400 = vpop.f32.mrf.mxu0
        %v3401 = vadd.f32 0.0, %v3400
        %v3402 = vpop.f32.mrf.mxu0
        %3403 = vmatprep.mubr.bf16.mxu0 0
        %3404 = vmatmul.mubr.bf16.gmra.mxu0 %v3284
        %v3405 = vpop.f32.mrf.mxu0
        %v3406 = vadd.f32 0.0, %v3405
        %v3407 = vpop.f32.mrf.mxu0
        %v3408 = vpop.f32.mrf.mxu0
        %v3409 = vadd.f32 0.0, %v3408
        %v3410 = vpop.f32.mrf.mxu0
        %3411 = vmatprep.mubr.bf16.mxu0 0
        %3412 = vmatmul.mubr.bf16.gmra.mxu0 %v3287
        %v3413 = vpop.f32.mrf.mxu0
        %v3414 = vadd.f32 0.0, %v3413
        %v3415 = vpop.f32.mrf.mxu0
        %v3416 = vpop.f32.mrf.mxu0
        %v3417 = vadd.f32 0.0, %v3416
        %v3418 = vpop.f32.mrf.mxu0
        %3419 = vmatprep.mubr.bf16.mxu0 0
        %3420 = vmatmul.mubr.bf16.gmra.mxu0 %v3290
        %v3421 = vpop.f32.mrf.mxu0
        %v3422 = vadd.f32 0.0, %v3421
        %v3423 = vpop.f32.mrf.mxu0
        %v3424 = vpop.f32.mrf.mxu0
        %v3425 = vadd.f32 0.0, %v3424
        %v3426 = vpop.f32.mrf.mxu0
        %3427 = vmatprep.mubr.bf16.mxu0 0
        %3428 = vmatmul.mubr.bf16.gmra.mxu0 %v3293
        %v3429 = vpop.f32.mrf.mxu0
        %v3430 = vadd.f32 0.0, %v3429
        %v3431 = vpop.f32.mrf.mxu0
        %v3432 = vpop.f32.mrf.mxu0
        %v3433 = vadd.f32 0.0, %v3432
        %v3434 = vpop.f32.mrf.mxu0
        %3435 = vmatprep.mubr.bf16.mxu0 0
        %3436 = vmatmul.mubr.bf16.gmra.mxu0 %v3296
        %v3437 = vpop.f32.mrf.mxu0
        %v3438 = vadd.f32 0.0, %v3437
        %v3439 = vpop.f32.mrf.mxu0
        %v3440 = vpop.f32.mrf.mxu0
        %v3441 = vadd.f32 0.0, %v3440
        %v3442 = vpop.f32.mrf.mxu0
        %3443 = vmatprep.mubr.bf16.mxu0 0
        %3444 = vmatmul.mubr.bf16.gmra.mxu0 %v3299
        %v3445 = vpop.f32.mrf.mxu0
        %v3446 = vadd.f32 0.0, %v3445
        %v3447 = vpop.f32.mrf.mxu0
        %v3448 = vpop.f32.mrf.mxu0
        %v3449 = vadd.f32 0.0, %v3448
        %v3450 = vpop.f32.mrf.mxu0
        %3451 = vmatprep.mubr.bf16.mxu0 0
        %3452 = vmatmul.mubr.bf16.gmra.mxu0 %v3302
        %v3453 = vpop.f32.mrf.mxu0
        %v3454 = vadd.f32 0.0, %v3453
        %v3455 = vpop.f32.mrf.mxu0
        %v3456 = vpop.f32.mrf.mxu0
        %v3457 = vadd.f32 0.0, %v3456
        %v3458 = vpop.f32.mrf.mxu0
        %3459 = vmatprep.mubr.bf16.mxu0 0
        %3460 = vmatmul.mubr.bf16.gmra.mxu0 %v3305
        %v3461 = vpop.f32.mrf.mxu0
        %v3462 = vadd.f32 0.0, %v3461
        %v3463 = vpop.f32.mrf.mxu0
        %v3464 = vpop.f32.mrf.mxu0
        %v3465 = vadd.f32 0.0, %v3464
        %v3466 = vpop.f32.mrf.mxu0
        %3467 = vdwg.mxu0
        %v3468 = vadd.f32 %v3163, %v3342
        %v3469 = vadd.f32 %v3164, %v3345
        %v3470 = vadd.f32 %v3165, %v3350
        %v3471 = vadd.f32 %v3166, %v3353
        %v3472 = vadd.f32 %v3167, %v3358
        %v3473 = vadd.f32 %v3168, %v3361
        %v3474 = vadd.f32 %v3169, %v3366
        %v3475 = vadd.f32 %v3170, %v3369
        %v3476 = vadd.f32 %v3171, %v3374
        %v3477 = vadd.f32 %v3172, %v3377
        %v3478 = vadd.f32 %v3173, %v3382
        %v3479 = vadd.f32 %v3174, %v3385
        %v3480 = vadd.f32 %v3175, %v3390
        %v3481 = vadd.f32 %v3176, %v3393
        %v3482 = vadd.f32 %v3177, %v3398
        %v3483 = vadd.f32 %v3178, %v3401
        %v3484 = vadd.f32 %v3179, %v3406
        %v3485 = vadd.f32 %v3180, %v3409
        %v3486 = vadd.f32 %v3181, %v3414
        %v3487 = vadd.f32 %v3182, %v3417
        %v3488 = vadd.f32 %v3183, %v3422
        %v3489 = vadd.f32 %v3184, %v3425
        %v3490 = vadd.f32 %v3185, %v3430
        %v3491 = vadd.f32 %v3186, %v3433
        %v3492 = vadd.f32 %v3187, %v3438
        %v3493 = vadd.f32 %v3188, %v3441
        %v3494 = vadd.f32 %v3189, %v3446
        %v3495 = vadd.f32 %v3190, %v3449
        %v3496 = vadd.f32 %v3191, %v3454
        %v3497 = vadd.f32 %v3192, %v3457
        %v3498 = vadd.f32 %v3193, %v3462
        %v3499 = vadd.f32 %v3194, %v3465
        %v3500 = vld [vmem:[%s2311 + $0x1] sm:$0xff]
        %v3501 = vld [vmem:[%s2311 + $0x9] sm:$0xff]
        %v3502 = vld [vmem:[%s2311 + $0x19] sm:$0xff]
        %v3503 = vld [vmem:[%s2311 + $0x21] sm:$0xff]
        %v3504 = vld [vmem:[%s2311 + $0x31] sm:$0xff]
        %v3505 = vld [vmem:[%s2311 + $0x39] sm:$0xff]
        %v3506 = vld [vmem:[%s2311 + $0x49] sm:$0xff]
        %v3507 = vld [vmem:[%s2311 + $0x51] sm:$0xff]
        %v3508 = vld [vmem:[%s2311 + $0x61] sm:$0xff]
        %v3509 = vld [vmem:[%s2311 + $0x69] sm:$0xff]
        %v3510 = vld [vmem:[%s2311 + $0x79] sm:$0xff]
        %v3511 = vld [vmem:[%s2311 + $0x81] sm:$0xff]
        %v3512 = vld [vmem:[%s2311 + $0x91] sm:$0xff]
        %v3513 = vld [vmem:[%s2311 + $0x99] sm:$0xff]
        %v3514 = vld [vmem:[%s2311 + $0xa9] sm:$0xff]
        %v3515 = vld [vmem:[%s2311 + $0xb1] sm:$0xff]
        %v3516 = vld [vmem:[%s2311 + $0xc1] sm:$0xff]
        %v3517 = vld [vmem:[%s2311 + $0xc9] sm:$0xff]
        %v3518 = vld [vmem:[%s2311 + $0xd9] sm:$0xff]
        %v3519 = vld [vmem:[%s2311 + $0xe1] sm:$0xff]
        %v3520 = vld [vmem:[%s2311 + $0xf1] sm:$0xff]
        %v3521 = vld [vmem:[%s2311 + $0xf9] sm:$0xff]
        %v3522 = vld [vmem:[%s2311 + $0x109] sm:$0xff]
        %v3523 = vld [vmem:[%s2311 + $0x111] sm:$0xff]
        %v3524 = vld [vmem:[%s2311 + $0x121] sm:$0xff]
        %v3525 = vld [vmem:[%s2311 + $0x129] sm:$0xff]
        %v3526 = vld [vmem:[%s2311 + $0x139] sm:$0xff]
        %v3527 = vld [vmem:[%s2311 + $0x141] sm:$0xff]
        %v3528 = vld [vmem:[%s2311 + $0x151] sm:$0xff]
        %v3529 = vld [vmem:[%s2311 + $0x159] sm:$0xff]
        %v3530 = vld [vmem:[%s2311 + $0x169] sm:$0xff]
        %v3531 = vld [vmem:[%s2311 + $0x171] sm:$0xff]
        %v3532 = vpack.c.bf16 %v3501, %v3500
        %v3533 = vpack.c.bf16 %v3503, %v3502
        %v3534 = vpack.c.bf16 %v3505, %v3504
        %v3535 = vpack.c.bf16 %v3507, %v3506
        %v3536 = vpack.c.bf16 %v3509, %v3508
        %v3537 = vpack.c.bf16 %v3511, %v3510
        %v3538 = vpack.c.bf16 %v3513, %v3512
        %v3539 = vpack.c.bf16 %v3515, %v3514
        %v3540 = vpack.c.bf16 %v3517, %v3516
        %v3541 = vpack.c.bf16 %v3519, %v3518
        %v3542 = vpack.c.bf16 %v3521, %v3520
        %v3543 = vpack.c.bf16 %v3523, %v3522
        %v3544 = vpack.c.bf16 %v3525, %v3524
        %v3545 = vpack.c.bf16 %v3527, %v3526
        %v3546 = vpack.c.bf16 %v3529, %v3528
        %v3547 = vpack.c.bf16 %v3531, %v3530
        %v3548 = vld [vmem:[%s3 + $0x40] sm:$0xf]
        %v3549 = vld [vmem:[%s3 + $0x44] sm:$0xf]
        %v3550 = vld [vmem:[%s3 + $0x48] sm:$0xf]
        %v3551 = vld [vmem:[%s3 + $0x4c] sm:$0xf]
        %v3556 = vunpack.c.l.b16 %v3548
        %v3557 = vunpack.c.l.b16 %v3549
        %v3558 = vunpack.c.l.b16 %v3550
        %v3559 = vunpack.c.l.b16 %v3551
        %v3560 = vpack.c.b16 %v3557, %v3556
        %v3561 = vpack.c.b16 %v3559, %v3558
        %v3565 = vsel %vm856, %v3532, 0
        %v3568 = vsel %vm856, %v3533, 0
        %v3571 = vsel %vm856, %v3534, 0
        %v3574 = vsel %vm856, %v3535, 0
        %v3577 = vsel %vm856, %v3536, 0
        %v3580 = vsel %vm856, %v3537, 0
        %v3583 = vsel %vm856, %v3538, 0
        %v3586 = vsel %vm856, %v3539, 0
        %v3589 = vsel %vm856, %v3540, 0
        %v3592 = vsel %vm856, %v3541, 0
        %v3595 = vsel %vm856, %v3542, 0
        %v3598 = vsel %vm856, %v3543, 0
        %v3601 = vsel %vm856, %v3544, 0
        %v3604 = vsel %vm856, %v3545, 0
        %v3607 = vsel %vm856, %v3546, 0
        %v3610 = vsel %vm856, %v3547, 0
        %3612 = vmatprep.subr.bf16.mxu0 0
        %3613 = vmatpush1.bf16.msra.mxu0 0
        %3614 = vmatprep.subr.bf16.mxu0 0
        %3615 = vmatpush1.bf16.msra.mxu0 0
        %3616 = vmatprep.subr.bf16.mxu0 0
        %3617 = vmatpush1.bf16.msra.mxu0 0
        %3618 = vmatprep.subr.bf16.mxu0 0
        %3619 = vmatpush1.bf16.msra.mxu0 0
        %3620 = vmatprep.subr.bf16.mxu0 0
        %3621 = vmatpush1.bf16.msra.mxu0 0
        %3622 = vmatprep.subr.bf16.mxu0 0
        %3623 = vmatpush1.bf16.msra.mxu0 0
        %3624 = vmatprep.subr.bf16.mxu0 0
        %3625 = vmatpush1.bf16.msra.mxu0 %v3561
        %3626 = vmatprep.subr.bf16.mxu0 0
        %3627 = vmatpush1.bf16.msra.mxu0 %v3560
        %3628 = vmatprep.subr.bf16.mxu0 0
        %3629 = vmatpush2.bf16.msra.mxu0 0
        %3630 = vmatprep.subr.bf16.mxu0 0
        %3631 = vmatpush2.bf16.msra.mxu0 0
        %3632 = vmatprep.subr.bf16.mxu0 0
        %3633 = vmatpush2.bf16.msra.mxu0 0
        %3634 = vmatprep.subr.bf16.mxu0 0
        %3635 = vmatpush2.bf16.msra.mxu0 0
        %3636 = vmatprep.subr.bf16.mxu0 0
        %3637 = vmatpush2.bf16.msra.mxu0 0
        %3638 = vmatprep.subr.bf16.mxu0 0
        %3639 = vmatpush2.bf16.msra.mxu0 0
        %3640 = vmatprep.subr.bf16.mxu0 0
        %3641 = vmatpush2.bf16.msra.mxu0 0
        %3642 = vmatprep.subr.bf16.mxu0 0
        %3643 = vmatpush2.bf16.msra.mxu0 0
        %3644 = vmatprep.mubr.bf16.mxu0 0
        %3645 = vmatmul.mubr.bf16.gmra.mxu0 %v3565
        %v3646 = vpop.f32.mrf.mxu0
        %v3647 = vadd.f32 0.0, %v3646
        %v3648 = vpop.f32.mrf.mxu0
        %v3649 = vpop.f32.mrf.mxu0
        %v3650 = vadd.f32 0.0, %v3649
        %v3651 = vpop.f32.mrf.mxu0
        %3652 = vmatprep.mubr.bf16.mxu0 0
        %3653 = vmatmul.mubr.bf16.gmra.mxu0 %v3568
        %v3654 = vpop.f32.mrf.mxu0
        %v3655 = vadd.f32 0.0, %v3654
        %v3656 = vpop.f32.mrf.mxu0
        %v3657 = vpop.f32.mrf.mxu0
        %v3658 = vadd.f32 0.0, %v3657
        %v3659 = vpop.f32.mrf.mxu0
        %3660 = vmatprep.mubr.bf16.mxu0 0
        %3661 = vmatmul.mubr.bf16.gmra.mxu0 %v3571
        %v3662 = vpop.f32.mrf.mxu0
        %v3663 = vadd.f32 0.0, %v3662
        %v3664 = vpop.f32.mrf.mxu0
        %v3665 = vpop.f32.mrf.mxu0
        %v3666 = vadd.f32 0.0, %v3665
        %v3667 = vpop.f32.mrf.mxu0
        %3668 = vmatprep.mubr.bf16.mxu0 0
        %3669 = vmatmul.mubr.bf16.gmra.mxu0 %v3574
        %v3670 = vpop.f32.mrf.mxu0
        %v3671 = vadd.f32 0.0, %v3670
        %v3672 = vpop.f32.mrf.mxu0
        %v3673 = vpop.f32.mrf.mxu0
        %v3674 = vadd.f32 0.0, %v3673
        %v3675 = vpop.f32.mrf.mxu0
        %3676 = vmatprep.mubr.bf16.mxu0 0
        %3677 = vmatmul.mubr.bf16.gmra.mxu0 %v3577
        %v3678 = vpop.f32.mrf.mxu0
        %v3679 = vadd.f32 0.0, %v3678
        %v3680 = vpop.f32.mrf.mxu0
        %v3681 = vpop.f32.mrf.mxu0
        %v3682 = vadd.f32 0.0, %v3681
        %v3683 = vpop.f32.mrf.mxu0
        %3684 = vmatprep.mubr.bf16.mxu0 0
        %3685 = vmatmul.mubr.bf16.gmra.mxu0 %v3580
        %v3686 = vpop.f32.mrf.mxu0
        %v3687 = vadd.f32 0.0, %v3686
        %v3688 = vpop.f32.mrf.mxu0
        %v3689 = vpop.f32.mrf.mxu0
        %v3690 = vadd.f32 0.0, %v3689
        %v3691 = vpop.f32.mrf.mxu0
        %3692 = vmatprep.mubr.bf16.mxu0 0
        %3693 = vmatmul.mubr.bf16.gmra.mxu0 %v3583
        %v3694 = vpop.f32.mrf.mxu0
        %v3695 = vadd.f32 0.0, %v3694
        %v3696 = vpop.f32.mrf.mxu0
        %v3697 = vpop.f32.mrf.mxu0
        %v3698 = vadd.f32 0.0, %v3697
        %v3699 = vpop.f32.mrf.mxu0
        %3700 = vmatprep.mubr.bf16.mxu0 0
        %3701 = vmatmul.mubr.bf16.gmra.mxu0 %v3586
        %v3702 = vpop.f32.mrf.mxu0
        %v3703 = vadd.f32 0.0, %v3702
        %v3704 = vpop.f32.mrf.mxu0
        %v3705 = vpop.f32.mrf.mxu0
        %v3706 = vadd.f32 0.0, %v3705
        %v3707 = vpop.f32.mrf.mxu0
        %3708 = vmatprep.mubr.bf16.mxu0 0
        %3709 = vmatmul.mubr.bf16.gmra.mxu0 %v3589
        %v3710 = vpop.f32.mrf.mxu0
        %v3711 = vadd.f32 0.0, %v3710
        %v3712 = vpop.f32.mrf.mxu0
        %v3713 = vpop.f32.mrf.mxu0
        %v3714 = vadd.f32 0.0, %v3713
        %v3715 = vpop.f32.mrf.mxu0
        %3716 = vmatprep.mubr.bf16.mxu0 0
        %3717 = vmatmul.mubr.bf16.gmra.mxu0 %v3592
        %v3718 = vpop.f32.mrf.mxu0
        %v3719 = vadd.f32 0.0, %v3718
        %v3720 = vpop.f32.mrf.mxu0
        %v3721 = vpop.f32.mrf.mxu0
        %v3722 = vadd.f32 0.0, %v3721
        %v3723 = vpop.f32.mrf.mxu0
        %3724 = vmatprep.mubr.bf16.mxu0 0
        %3725 = vmatmul.mubr.bf16.gmra.mxu0 %v3595
        %v3726 = vpop.f32.mrf.mxu0
        %v3727 = vadd.f32 0.0, %v3726
        %v3728 = vpop.f32.mrf.mxu0
        %v3729 = vpop.f32.mrf.mxu0
        %v3730 = vadd.f32 0.0, %v3729
        %v3731 = vpop.f32.mrf.mxu0
        %3732 = vmatprep.mubr.bf16.mxu0 0
        %3733 = vmatmul.mubr.bf16.gmra.mxu0 %v3598
        %v3734 = vpop.f32.mrf.mxu0
        %v3735 = vadd.f32 0.0, %v3734
        %v3736 = vpop.f32.mrf.mxu0
        %v3737 = vpop.f32.mrf.mxu0
        %v3738 = vadd.f32 0.0, %v3737
        %v3739 = vpop.f32.mrf.mxu0
        %3740 = vmatprep.mubr.bf16.mxu0 0
        %3741 = vmatmul.mubr.bf16.gmra.mxu0 %v3601
        %v3742 = vpop.f32.mrf.mxu0
        %v3743 = vadd.f32 0.0, %v3742
        %v3744 = vpop.f32.mrf.mxu0
        %v3745 = vpop.f32.mrf.mxu0
        %v3746 = vadd.f32 0.0, %v3745
        %v3747 = vpop.f32.mrf.mxu0
        %3748 = vmatprep.mubr.bf16.mxu0 0
        %3749 = vmatmul.mubr.bf16.gmra.mxu0 %v3604
        %v3750 = vpop.f32.mrf.mxu0
        %v3751 = vadd.f32 0.0, %v3750
        %v3752 = vpop.f32.mrf.mxu0
        %v3753 = vpop.f32.mrf.mxu0
        %v3754 = vadd.f32 0.0, %v3753
        %v3755 = vpop.f32.mrf.mxu0
        %3756 = vmatprep.mubr.bf16.mxu0 0
        %3757 = vmatmul.mubr.bf16.gmra.mxu0 %v3607
        %v3758 = vpop.f32.mrf.mxu0
        %v3759 = vadd.f32 0.0, %v3758
        %v3760 = vpop.f32.mrf.mxu0
        %v3761 = vpop.f32.mrf.mxu0
        %v3762 = vadd.f32 0.0, %v3761
        %v3763 = vpop.f32.mrf.mxu0
        %3764 = vmatprep.mubr.bf16.mxu0 0
        %3765 = vmatmul.mubr.bf16.gmra.mxu0 %v3610
        %v3766 = vpop.f32.mrf.mxu0
        %v3767 = vadd.f32 0.0, %v3766
        %v3768 = vpop.f32.mrf.mxu0
        %v3769 = vpop.f32.mrf.mxu0
        %v3770 = vadd.f32 0.0, %v3769
        %v3771 = vpop.f32.mrf.mxu0
        %3772 = vdwg.mxu0
        %v3773 = vadd.f32 %v3468, %v3647
        %v3774 = vadd.f32 %v3469, %v3650
        %v3775 = vadd.f32 %v3470, %v3655
        %v3776 = vadd.f32 %v3471, %v3658
        %v3777 = vadd.f32 %v3472, %v3663
        %v3778 = vadd.f32 %v3473, %v3666
        %v3779 = vadd.f32 %v3474, %v3671
        %v3780 = vadd.f32 %v3475, %v3674
        %v3781 = vadd.f32 %v3476, %v3679
        %v3782 = vadd.f32 %v3477, %v3682
        %v3783 = vadd.f32 %v3478, %v3687
        %v3784 = vadd.f32 %v3479, %v3690
        %v3785 = vadd.f32 %v3480, %v3695
        %v3786 = vadd.f32 %v3481, %v3698
        %v3787 = vadd.f32 %v3482, %v3703
        %v3788 = vadd.f32 %v3483, %v3706
        %v3789 = vadd.f32 %v3484, %v3711
        %v3790 = vadd.f32 %v3485, %v3714
        %v3791 = vadd.f32 %v3486, %v3719
        %v3792 = vadd.f32 %v3487, %v3722
        %v3793 = vadd.f32 %v3488, %v3727
        %v3794 = vadd.f32 %v3489, %v3730
        %v3795 = vadd.f32 %v3490, %v3735
        %v3796 = vadd.f32 %v3491, %v3738
        %v3797 = vadd.f32 %v3492, %v3743
        %v3798 = vadd.f32 %v3493, %v3746
        %v3799 = vadd.f32 %v3494, %v3751
        %v3800 = vadd.f32 %v3495, %v3754
        %v3801 = vadd.f32 %v3496, %v3759
        %v3802 = vadd.f32 %v3497, %v3762
        %v3803 = vadd.f32 %v3498, %v3767
        %v3804 = vadd.f32 %v3499, %v3770
        %v3805 = vld [vmem:[%s2311 + $0x2] sm:$0xff]
        %v3806 = vld [vmem:[%s2311 + $0xa] sm:$0xff]
        %v3807 = vld [vmem:[%s2311 + $0x1a] sm:$0xff]
        %v3808 = vld [vmem:[%s2311 + $0x22] sm:$0xff]
        %v3809 = vld [vmem:[%s2311 + $0x32] sm:$0xff]
        %v3810 = vld [vmem:[%s2311 + $0x3a] sm:$0xff]
        %v3811 = vld [vmem:[%s2311 + $0x4a] sm:$0xff]
        %v3812 = vld [vmem:[%s2311 + $0x52] sm:$0xff]
        %v3813 = vld [vmem:[%s2311 + $0x62] sm:$0xff]
        %v3814 = vld [vmem:[%s2311 + $0x6a] sm:$0xff]
        %v3815 = vld [vmem:[%s2311 + $0x7a] sm:$0xff]
        %v3816 = vld [vmem:[%s2311 + $0x82] sm:$0xff]
        %v3817 = vld [vmem:[%s2311 + $0x92] sm:$0xff]
        %v3818 = vld [vmem:[%s2311 + $0x9a] sm:$0xff]
        %v3819 = vld [vmem:[%s2311 + $0xaa] sm:$0xff]
        %v3820 = vld [vmem:[%s2311 + $0xb2] sm:$0xff]
        %v3821 = vld [vmem:[%s2311 + $0xc2] sm:$0xff]
        %v3822 = vld [vmem:[%s2311 + $0xca] sm:$0xff]
        %v3823 = vld [vmem:[%s2311 + $0xda] sm:$0xff]
        %v3824 = vld [vmem:[%s2311 + $0xe2] sm:$0xff]
        %v3825 = vld [vmem:[%s2311 + $0xf2] sm:$0xff]
        %v3826 = vld [vmem:[%s2311 + $0xfa] sm:$0xff]
        %v3827 = vld [vmem:[%s2311 + $0x10a] sm:$0xff]
        %v3828 = vld [vmem:[%s2311 + $0x112] sm:$0xff]
        %v3829 = vld [vmem:[%s2311 + $0x122] sm:$0xff]
        %v3830 = vld [vmem:[%s2311 + $0x12a] sm:$0xff]
        %v3831 = vld [vmem:[%s2311 + $0x13a] sm:$0xff]
        %v3832 = vld [vmem:[%s2311 + $0x142] sm:$0xff]
        %v3833 = vld [vmem:[%s2311 + $0x152] sm:$0xff]
        %v3834 = vld [vmem:[%s2311 + $0x15a] sm:$0xff]
        %v3835 = vld [vmem:[%s2311 + $0x16a] sm:$0xff]
        %v3836 = vld [vmem:[%s2311 + $0x172] sm:$0xff]
        %v3837 = vpack.c.bf16 %v3806, %v3805
        %v3838 = vpack.c.bf16 %v3808, %v3807
        %v3839 = vpack.c.bf16 %v3810, %v3809
        %v3840 = vpack.c.bf16 %v3812, %v3811
        %v3841 = vpack.c.bf16 %v3814, %v3813
        %v3842 = vpack.c.bf16 %v3816, %v3815
        %v3843 = vpack.c.bf16 %v3818, %v3817
        %v3844 = vpack.c.bf16 %v3820, %v3819
        %v3845 = vpack.c.bf16 %v3822, %v3821
        %v3846 = vpack.c.bf16 %v3824, %v3823
        %v3847 = vpack.c.bf16 %v3826, %v3825
        %v3848 = vpack.c.bf16 %v3828, %v3827
        %v3849 = vpack.c.bf16 %v3830, %v3829
        %v3850 = vpack.c.bf16 %v3832, %v3831
        %v3851 = vpack.c.bf16 %v3834, %v3833
        %v3852 = vpack.c.bf16 %v3836, %v3835
        %v3853 = vld [vmem:[%s3 + $0x50] sm:$0xf]
        %v3854 = vld [vmem:[%s3 + $0x54] sm:$0xf]
        %v3855 = vld [vmem:[%s3 + $0x58] sm:$0xf]
        %v3856 = vld [vmem:[%s3 + $0x5c] sm:$0xf]
        %v3861 = vunpack.c.l.b16 %v3853
        %v3862 = vunpack.c.l.b16 %v3854
        %v3863 = vunpack.c.l.b16 %v3855
        %v3864 = vunpack.c.l.b16 %v3856
        %v3865 = vpack.c.b16 %v3862, %v3861
        %v3866 = vpack.c.b16 %v3864, %v3863
        %v3870 = vsel %vm856, %v3837, 0
        %v3873 = vsel %vm856, %v3838, 0
        %v3876 = vsel %vm856, %v3839, 0
        %v3879 = vsel %vm856, %v3840, 0
        %v3882 = vsel %vm856, %v3841, 0
        %v3885 = vsel %vm856, %v3842, 0
        %v3888 = vsel %vm856, %v3843, 0
        %v3891 = vsel %vm856, %v3844, 0
        %v3894 = vsel %vm856, %v3845, 0
        %v3897 = vsel %vm856, %v3846, 0
        %v3900 = vsel %vm856, %v3847, 0
        %v3903 = vsel %vm856, %v3848, 0
        %v3906 = vsel %vm856, %v3849, 0
        %v3909 = vsel %vm856, %v3850, 0
        %v3912 = vsel %vm856, %v3851, 0
        %v3915 = vsel %vm856, %v3852, 0
        %3917 = vmatprep.subr.bf16.mxu0 0
        %3918 = vmatpush1.bf16.msra.mxu0 0
        %3919 = vmatprep.subr.bf16.mxu0 0
        %3920 = vmatpush1.bf16.msra.mxu0 0
        %3921 = vmatprep.subr.bf16.mxu0 0
        %3922 = vmatpush1.bf16.msra.mxu0 0
        %3923 = vmatprep.subr.bf16.mxu0 0
        %3924 = vmatpush1.bf16.msra.mxu0 0
        %3925 = vmatprep.subr.bf16.mxu0 0
        %3926 = vmatpush1.bf16.msra.mxu0 0
        %3927 = vmatprep.subr.bf16.mxu0 0
        %3928 = vmatpush1.bf16.msra.mxu0 0
        %3929 = vmatprep.subr.bf16.mxu0 0
        %3930 = vmatpush1.bf16.msra.mxu0 %v3866
        %3931 = vmatprep.subr.bf16.mxu0 0
        %3932 = vmatpush1.bf16.msra.mxu0 %v3865
        %3933 = vmatprep.subr.bf16.mxu0 0
        %3934 = vmatpush2.bf16.msra.mxu0 0
        %3935 = vmatprep.subr.bf16.mxu0 0
        %3936 = vmatpush2.bf16.msra.mxu0 0
        %3937 = vmatprep.subr.bf16.mxu0 0
        %3938 = vmatpush2.bf16.msra.mxu0 0
        %3939 = vmatprep.subr.bf16.mxu0 0
        %3940 = vmatpush2.bf16.msra.mxu0 0
        %3941 = vmatprep.subr.bf16.mxu0 0
        %3942 = vmatpush2.bf16.msra.mxu0 0
        %3943 = vmatprep.subr.bf16.mxu0 0
        %3944 = vmatpush2.bf16.msra.mxu0 0
        %3945 = vmatprep.subr.bf16.mxu0 0
        %3946 = vmatpush2.bf16.msra.mxu0 0
        %3947 = vmatprep.subr.bf16.mxu0 0
        %3948 = vmatpush2.bf16.msra.mxu0 0
        %3949 = vmatprep.mubr.bf16.mxu0 0
        %3950 = vmatmul.mubr.bf16.gmra.mxu0 %v3870
        %v3951 = vpop.f32.mrf.mxu0
        %v3952 = vadd.f32 0.0, %v3951
        %v3953 = vpop.f32.mrf.mxu0
        %v3954 = vpop.f32.mrf.mxu0
        %v3955 = vadd.f32 0.0, %v3954
        %v3956 = vpop.f32.mrf.mxu0
        %3957 = vmatprep.mubr.bf16.mxu0 0
        %3958 = vmatmul.mubr.bf16.gmra.mxu0 %v3873
        %v3959 = vpop.f32.mrf.mxu0
        %v3960 = vadd.f32 0.0, %v3959
        %v3961 = vpop.f32.mrf.mxu0
        %v3962 = vpop.f32.mrf.mxu0
        %v3963 = vadd.f32 0.0, %v3962
        %v3964 = vpop.f32.mrf.mxu0
        %3965 = vmatprep.mubr.bf16.mxu0 0
        %3966 = vmatmul.mubr.bf16.gmra.mxu0 %v3876
        %v3967 = vpop.f32.mrf.mxu0
        %v3968 = vadd.f32 0.0, %v3967
        %v3969 = vpop.f32.mrf.mxu0
        %v3970 = vpop.f32.mrf.mxu0
        %v3971 = vadd.f32 0.0, %v3970
        %v3972 = vpop.f32.mrf.mxu0
        %3973 = vmatprep.mubr.bf16.mxu0 0
        %3974 = vmatmul.mubr.bf16.gmra.mxu0 %v3879
        %v3975 = vpop.f32.mrf.mxu0
        %v3976 = vadd.f32 0.0, %v3975
        %v3977 = vpop.f32.mrf.mxu0
        %v3978 = vpop.f32.mrf.mxu0
        %v3979 = vadd.f32 0.0, %v3978
        %v3980 = vpop.f32.mrf.mxu0
        %3981 = vmatprep.mubr.bf16.mxu0 0
        %3982 = vmatmul.mubr.bf16.gmra.mxu0 %v3882
        %v3983 = vpop.f32.mrf.mxu0
        %v3984 = vadd.f32 0.0, %v3983
        %v3985 = vpop.f32.mrf.mxu0
        %v3986 = vpop.f32.mrf.mxu0
        %v3987 = vadd.f32 0.0, %v3986
        %v3988 = vpop.f32.mrf.mxu0
        %3989 = vmatprep.mubr.bf16.mxu0 0
        %3990 = vmatmul.mubr.bf16.gmra.mxu0 %v3885
        %v3991 = vpop.f32.mrf.mxu0
        %v3992 = vadd.f32 0.0, %v3991
        %v3993 = vpop.f32.mrf.mxu0
        %v3994 = vpop.f32.mrf.mxu0
        %v3995 = vadd.f32 0.0, %v3994
        %v3996 = vpop.f32.mrf.mxu0
        %3997 = vmatprep.mubr.bf16.mxu0 0
        %3998 = vmatmul.mubr.bf16.gmra.mxu0 %v3888
        %v3999 = vpop.f32.mrf.mxu0
        %v4000 = vadd.f32 0.0, %v3999
        %v4001 = vpop.f32.mrf.mxu0
        %v4002 = vpop.f32.mrf.mxu0
        %v4003 = vadd.f32 0.0, %v4002
        %v4004 = vpop.f32.mrf.mxu0
        %4005 = vmatprep.mubr.bf16.mxu0 0
        %4006 = vmatmul.mubr.bf16.gmra.mxu0 %v3891
        %v4007 = vpop.f32.mrf.mxu0
        %v4008 = vadd.f32 0.0, %v4007
        %v4009 = vpop.f32.mrf.mxu0
        %v4010 = vpop.f32.mrf.mxu0
        %v4011 = vadd.f32 0.0, %v4010
        %v4012 = vpop.f32.mrf.mxu0
        %4013 = vmatprep.mubr.bf16.mxu0 0
        %4014 = vmatmul.mubr.bf16.gmra.mxu0 %v3894
        %v4015 = vpop.f32.mrf.mxu0
        %v4016 = vadd.f32 0.0, %v4015
        %v4017 = vpop.f32.mrf.mxu0
        %v4018 = vpop.f32.mrf.mxu0
        %v4019 = vadd.f32 0.0, %v4018
        %v4020 = vpop.f32.mrf.mxu0
        %4021 = vmatprep.mubr.bf16.mxu0 0
        %4022 = vmatmul.mubr.bf16.gmra.mxu0 %v3897
        %v4023 = vpop.f32.mrf.mxu0
        %v4024 = vadd.f32 0.0, %v4023
        %v4025 = vpop.f32.mrf.mxu0
        %v4026 = vpop.f32.mrf.mxu0
        %v4027 = vadd.f32 0.0, %v4026
        %v4028 = vpop.f32.mrf.mxu0
        %4029 = vmatprep.mubr.bf16.mxu0 0
        %4030 = vmatmul.mubr.bf16.gmra.mxu0 %v3900
        %v4031 = vpop.f32.mrf.mxu0
        %v4032 = vadd.f32 0.0, %v4031
        %v4033 = vpop.f32.mrf.mxu0
        %v4034 = vpop.f32.mrf.mxu0
        %v4035 = vadd.f32 0.0, %v4034
        %v4036 = vpop.f32.mrf.mxu0
        %4037 = vmatprep.mubr.bf16.mxu0 0
        %4038 = vmatmul.mubr.bf16.gmra.mxu0 %v3903
        %v4039 = vpop.f32.mrf.mxu0
        %v4040 = vadd.f32 0.0, %v4039
        %v4041 = vpop.f32.mrf.mxu0
        %v4042 = vpop.f32.mrf.mxu0
        %v4043 = vadd.f32 0.0, %v4042
        %v4044 = vpop.f32.mrf.mxu0
        %4045 = vmatprep.mubr.bf16.mxu0 0
        %4046 = vmatmul.mubr.bf16.gmra.mxu0 %v3906
        %v4047 = vpop.f32.mrf.mxu0
        %v4048 = vadd.f32 0.0, %v4047
        %v4049 = vpop.f32.mrf.mxu0
        %v4050 = vpop.f32.mrf.mxu0
        %v4051 = vadd.f32 0.0, %v4050
        %v4052 = vpop.f32.mrf.mxu0
        %4053 = vmatprep.mubr.bf16.mxu0 0
        %4054 = vmatmul.mubr.bf16.gmra.mxu0 %v3909
        %v4055 = vpop.f32.mrf.mxu0
        %v4056 = vadd.f32 0.0, %v4055
        %v4057 = vpop.f32.mrf.mxu0
        %v4058 = vpop.f32.mrf.mxu0
        %v4059 = vadd.f32 0.0, %v4058
        %v4060 = vpop.f32.mrf.mxu0
        %4061 = vmatprep.mubr.bf16.mxu0 0
        %4062 = vmatmul.mubr.bf16.gmra.mxu0 %v3912
        %v4063 = vpop.f32.mrf.mxu0
        %v4064 = vadd.f32 0.0, %v4063
        %v4065 = vpop.f32.mrf.mxu0
        %v4066 = vpop.f32.mrf.mxu0
        %v4067 = vadd.f32 0.0, %v4066
        %v4068 = vpop.f32.mrf.mxu0
        %4069 = vmatprep.mubr.bf16.mxu0 0
        %4070 = vmatmul.mubr.bf16.gmra.mxu0 %v3915
        %v4071 = vpop.f32.mrf.mxu0
        %v4072 = vadd.f32 0.0, %v4071
        %v4073 = vpop.f32.mrf.mxu0
        %v4074 = vpop.f32.mrf.mxu0
        %v4075 = vadd.f32 0.0, %v4074
        %v4076 = vpop.f32.mrf.mxu0
        %4077 = vdwg.mxu0
        %v4078 = vadd.f32 %v3773, %v3952
        %v4079 = vadd.f32 %v3774, %v3955
        %v4080 = vadd.f32 %v3775, %v3960
        %v4081 = vadd.f32 %v3776, %v3963
        %v4082 = vadd.f32 %v3777, %v3968
        %v4083 = vadd.f32 %v3778, %v3971
        %v4084 = vadd.f32 %v3779, %v3976
        %v4085 = vadd.f32 %v3780, %v3979
        %v4086 = vadd.f32 %v3781, %v3984
        %v4087 = vadd.f32 %v3782, %v3987
        %v4088 = vadd.f32 %v3783, %v3992
        %v4089 = vadd.f32 %v3784, %v3995
        %v4090 = vadd.f32 %v3785, %v4000
        %v4091 = vadd.f32 %v3786, %v4003
        %v4092 = vadd.f32 %v3787, %v4008
        %v4093 = vadd.f32 %v3788, %v4011
        %v4094 = vadd.f32 %v3789, %v4016
        %v4095 = vadd.f32 %v3790, %v4019
        %v4096 = vadd.f32 %v3791, %v4024
        %v4097 = vadd.f32 %v3792, %v4027
        %v4098 = vadd.f32 %v3793, %v4032
        %v4099 = vadd.f32 %v3794, %v4035
        %v4100 = vadd.f32 %v3795, %v4040
        %v4101 = vadd.f32 %v3796, %v4043
        %v4102 = vadd.f32 %v3797, %v4048
        %v4103 = vadd.f32 %v3798, %v4051
        %v4104 = vadd.f32 %v3799, %v4056
        %v4105 = vadd.f32 %v3800, %v4059
        %v4106 = vadd.f32 %v3801, %v4064
        %v4107 = vadd.f32 %v3802, %v4067
        %v4108 = vadd.f32 %v3803, %v4072
        %v4109 = vadd.f32 %v3804, %v4075
        %s4110 = scalar_lea.vmem [#allocation2], 48
        %v4111 = vld [vmem:[%s4110] sm:$0xff]
        %v4112 = vld [vmem:[%s4110 + $0x8] sm:$0xff]
        %v4113 = vld [vmem:[%s4110 + $0x18] sm:$0xff]
        %v4114 = vld [vmem:[%s4110 + $0x20] sm:$0xff]
        %v4115 = vld [vmem:[%s4110 + $0x30] sm:$0xff]
        %v4116 = vld [vmem:[%s4110 + $0x38] sm:$0xff]
        %v4117 = vld [vmem:[%s4110 + $0x48] sm:$0xff]
        %v4118 = vld [vmem:[%s4110 + $0x50] sm:$0xff]
        %v4119 = vld [vmem:[%s4110 + $0x60] sm:$0xff]
        %v4120 = vld [vmem:[%s4110 + $0x68] sm:$0xff]
        %v4121 = vld [vmem:[%s4110 + $0x78] sm:$0xff]
        %v4122 = vld [vmem:[%s4110 + $0x80] sm:$0xff]
        %v4123 = vld [vmem:[%s4110 + $0x90] sm:$0xff]
        %v4124 = vld [vmem:[%s4110 + $0x98] sm:$0xff]
        %v4125 = vld [vmem:[%s4110 + $0xa8] sm:$0xff]
        %v4126 = vld [vmem:[%s4110 + $0xb0] sm:$0xff]
        %v4127 = vld [vmem:[%s4110 + $0xc0] sm:$0xff]
        %v4128 = vld [vmem:[%s4110 + $0xc8] sm:$0xff]
        %v4129 = vld [vmem:[%s4110 + $0xd8] sm:$0xff]
        %v4130 = vld [vmem:[%s4110 + $0xe0] sm:$0xff]
        %v4131 = vld [vmem:[%s4110 + $0xf0] sm:$0xff]
        %v4132 = vld [vmem:[%s4110 + $0xf8] sm:$0xff]
        %v4133 = vld [vmem:[%s4110 + $0x108] sm:$0xff]
        %v4134 = vld [vmem:[%s4110 + $0x110] sm:$0xff]
        %v4135 = vld [vmem:[%s4110 + $0x120] sm:$0xff]
        %v4136 = vld [vmem:[%s4110 + $0x128] sm:$0xff]
        %v4137 = vld [vmem:[%s4110 + $0x138] sm:$0xff]
        %v4138 = vld [vmem:[%s4110 + $0x140] sm:$0xff]
        %v4139 = vld [vmem:[%s4110 + $0x150] sm:$0xff]
        %v4140 = vld [vmem:[%s4110 + $0x158] sm:$0xff]
        %v4141 = vld [vmem:[%s4110 + $0x168] sm:$0xff]
        %v4142 = vld [vmem:[%s4110 + $0x170] sm:$0xff]
        %v4143 = vpack.c.bf16 %v4112, %v4111
        %v4144 = vpack.c.bf16 %v4114, %v4113
        %v4145 = vpack.c.bf16 %v4116, %v4115
        %v4146 = vpack.c.bf16 %v4118, %v4117
        %v4147 = vpack.c.bf16 %v4120, %v4119
        %v4148 = vpack.c.bf16 %v4122, %v4121
        %v4149 = vpack.c.bf16 %v4124, %v4123
        %v4150 = vpack.c.bf16 %v4126, %v4125
        %v4151 = vpack.c.bf16 %v4128, %v4127
        %v4152 = vpack.c.bf16 %v4130, %v4129
        %v4153 = vpack.c.bf16 %v4132, %v4131
        %v4154 = vpack.c.bf16 %v4134, %v4133
        %v4155 = vpack.c.bf16 %v4136, %v4135
        %v4156 = vpack.c.bf16 %v4138, %v4137
        %v4157 = vpack.c.bf16 %v4140, %v4139
        %v4158 = vpack.c.bf16 %v4142, %v4141
        %v4159 = vld [vmem:[%s3 + $0x60] sm:$0xf]
        %v4160 = vld [vmem:[%s3 + $0x64] sm:$0xf]
        %v4161 = vld [vmem:[%s3 + $0x68] sm:$0xf]
        %v4162 = vld [vmem:[%s3 + $0x6c] sm:$0xf]
        %v4167 = vunpack.c.l.b16 %v4159
        %v4168 = vunpack.c.l.b16 %v4160
        %v4169 = vunpack.c.l.b16 %v4161
        %v4170 = vunpack.c.l.b16 %v4162
        %v4171 = vpack.c.b16 %v4168, %v4167
        %v4172 = vpack.c.b16 %v4170, %v4169
        %v4176 = vsel %vm856, %v4143, 0
        %v4179 = vsel %vm856, %v4144, 0
        %v4182 = vsel %vm856, %v4145, 0
        %v4185 = vsel %vm856, %v4146, 0
        %v4188 = vsel %vm856, %v4147, 0
        %v4191 = vsel %vm856, %v4148, 0
        %v4194 = vsel %vm856, %v4149, 0
        %v4197 = vsel %vm856, %v4150, 0
        %v4200 = vsel %vm856, %v4151, 0
        %v4203 = vsel %vm856, %v4152, 0
        %v4206 = vsel %vm856, %v4153, 0
        %v4209 = vsel %vm856, %v4154, 0
        %v4212 = vsel %vm856, %v4155, 0
        %v4215 = vsel %vm856, %v4156, 0
        %v4218 = vsel %vm856, %v4157, 0
        %v4221 = vsel %vm856, %v4158, 0
        %4223 = vmatprep.subr.bf16.mxu0 0
        %4224 = vmatpush1.bf16.msra.mxu0 0
        %4225 = vmatprep.subr.bf16.mxu0 0
        %4226 = vmatpush1.bf16.msra.mxu0 0
        %4227 = vmatprep.subr.bf16.mxu0 0
        %4228 = vmatpush1.bf16.msra.mxu0 0
        %4229 = vmatprep.subr.bf16.mxu0 0
        %4230 = vmatpush1.bf16.msra.mxu0 0
        %4231 = vmatprep.subr.bf16.mxu0 0
        %4232 = vmatpush1.bf16.msra.mxu0 0
        %4233 = vmatprep.subr.bf16.mxu0 0
        %4234 = vmatpush1.bf16.msra.mxu0 0
        %4235 = vmatprep.subr.bf16.mxu0 0
        %4236 = vmatpush1.bf16.msra.mxu0 %v4172
        %4237 = vmatprep.subr.bf16.mxu0 0
        %4238 = vmatpush1.bf16.msra.mxu0 %v4171
        %4239 = vmatprep.subr.bf16.mxu0 0
        %4240 = vmatpush2.bf16.msra.mxu0 0
        %4241 = vmatprep.subr.bf16.mxu0 0
        %4242 = vmatpush2.bf16.msra.mxu0 0
        %4243 = vmatprep.subr.bf16.mxu0 0
        %4244 = vmatpush2.bf16.msra.mxu0 0
        %4245 = vmatprep.subr.bf16.mxu0 0
        %4246 = vmatpush2.bf16.msra.mxu0 0
        %4247 = vmatprep.subr.bf16.mxu0 0
        %4248 = vmatpush2.bf16.msra.mxu0 0
        %4249 = vmatprep.subr.bf16.mxu0 0
        %4250 = vmatpush2.bf16.msra.mxu0 0
        %4251 = vmatprep.subr.bf16.mxu0 0
        %4252 = vmatpush2.bf16.msra.mxu0 0
        %4253 = vmatprep.subr.bf16.mxu0 0
        %4254 = vmatpush2.bf16.msra.mxu0 0
        %4255 = vmatprep.mubr.bf16.mxu0 0
        %4256 = vmatmul.mubr.bf16.gmra.mxu0 %v4176
        %v4257 = vpop.f32.mrf.mxu0
        %v4258 = vadd.f32 0.0, %v4257
        %v4259 = vpop.f32.mrf.mxu0
        %v4260 = vpop.f32.mrf.mxu0
        %v4261 = vadd.f32 0.0, %v4260
        %v4262 = vpop.f32.mrf.mxu0
        %4263 = vmatprep.mubr.bf16.mxu0 0
        %4264 = vmatmul.mubr.bf16.gmra.mxu0 %v4179
        %v4265 = vpop.f32.mrf.mxu0
        %v4266 = vadd.f32 0.0, %v4265
        %v4267 = vpop.f32.mrf.mxu0
        %v4268 = vpop.f32.mrf.mxu0
        %v4269 = vadd.f32 0.0, %v4268
        %v4270 = vpop.f32.mrf.mxu0
        %4271 = vmatprep.mubr.bf16.mxu0 0
        %4272 = vmatmul.mubr.bf16.gmra.mxu0 %v4182
        %v4273 = vpop.f32.mrf.mxu0
        %v4274 = vadd.f32 0.0, %v4273
        %v4275 = vpop.f32.mrf.mxu0
        %v4276 = vpop.f32.mrf.mxu0
        %v4277 = vadd.f32 0.0, %v4276
        %v4278 = vpop.f32.mrf.mxu0
        %4279 = vmatprep.mubr.bf16.mxu0 0
        %4280 = vmatmul.mubr.bf16.gmra.mxu0 %v4185
        %v4281 = vpop.f32.mrf.mxu0
        %v4282 = vadd.f32 0.0, %v4281
        %v4283 = vpop.f32.mrf.mxu0
        %v4284 = vpop.f32.mrf.mxu0
        %v4285 = vadd.f32 0.0, %v4284
        %v4286 = vpop.f32.mrf.mxu0
        %4287 = vmatprep.mubr.bf16.mxu0 0
        %4288 = vmatmul.mubr.bf16.gmra.mxu0 %v4188
        %v4289 = vpop.f32.mrf.mxu0
        %v4290 = vadd.f32 0.0, %v4289
        %v4291 = vpop.f32.mrf.mxu0
        %v4292 = vpop.f32.mrf.mxu0
        %v4293 = vadd.f32 0.0, %v4292
        %v4294 = vpop.f32.mrf.mxu0
        %4295 = vmatprep.mubr.bf16.mxu0 0
        %4296 = vmatmul.mubr.bf16.gmra.mxu0 %v4191
        %v4297 = vpop.f32.mrf.mxu0
        %v4298 = vadd.f32 0.0, %v4297
        %v4299 = vpop.f32.mrf.mxu0
        %v4300 = vpop.f32.mrf.mxu0
        %v4301 = vadd.f32 0.0, %v4300
        %v4302 = vpop.f32.mrf.mxu0
        %4303 = vmatprep.mubr.bf16.mxu0 0
        %4304 = vmatmul.mubr.bf16.gmra.mxu0 %v4194
        %v4305 = vpop.f32.mrf.mxu0
        %v4306 = vadd.f32 0.0, %v4305
        %v4307 = vpop.f32.mrf.mxu0
        %v4308 = vpop.f32.mrf.mxu0
        %v4309 = vadd.f32 0.0, %v4308
        %v4310 = vpop.f32.mrf.mxu0
        %4311 = vmatprep.mubr.bf16.mxu0 0
        %4312 = vmatmul.mubr.bf16.gmra.mxu0 %v4197
        %v4313 = vpop.f32.mrf.mxu0
        %v4314 = vadd.f32 0.0, %v4313
        %v4315 = vpop.f32.mrf.mxu0
        %v4316 = vpop.f32.mrf.mxu0
        %v4317 = vadd.f32 0.0, %v4316
        %v4318 = vpop.f32.mrf.mxu0
        %4319 = vmatprep.mubr.bf16.mxu0 0
        %4320 = vmatmul.mubr.bf16.gmra.mxu0 %v4200
        %v4321 = vpop.f32.mrf.mxu0
        %v4322 = vadd.f32 0.0, %v4321
        %v4323 = vpop.f32.mrf.mxu0
        %v4324 = vpop.f32.mrf.mxu0
        %v4325 = vadd.f32 0.0, %v4324
        %v4326 = vpop.f32.mrf.mxu0
        %4327 = vmatprep.mubr.bf16.mxu0 0
        %4328 = vmatmul.mubr.bf16.gmra.mxu0 %v4203
        %v4329 = vpop.f32.mrf.mxu0
        %v4330 = vadd.f32 0.0, %v4329
        %v4331 = vpop.f32.mrf.mxu0
        %v4332 = vpop.f32.mrf.mxu0
        %v4333 = vadd.f32 0.0, %v4332
        %v4334 = vpop.f32.mrf.mxu0
        %4335 = vmatprep.mubr.bf16.mxu0 0
        %4336 = vmatmul.mubr.bf16.gmra.mxu0 %v4206
        %v4337 = vpop.f32.mrf.mxu0
        %v4338 = vadd.f32 0.0, %v4337
        %v4339 = vpop.f32.mrf.mxu0
        %v4340 = vpop.f32.mrf.mxu0
        %v4341 = vadd.f32 0.0, %v4340
        %v4342 = vpop.f32.mrf.mxu0
        %4343 = vmatprep.mubr.bf16.mxu0 0
        %4344 = vmatmul.mubr.bf16.gmra.mxu0 %v4209
        %v4345 = vpop.f32.mrf.mxu0
        %v4346 = vadd.f32 0.0, %v4345
        %v4347 = vpop.f32.mrf.mxu0
        %v4348 = vpop.f32.mrf.mxu0
        %v4349 = vadd.f32 0.0, %v4348
        %v4350 = vpop.f32.mrf.mxu0
        %4351 = vmatprep.mubr.bf16.mxu0 0
        %4352 = vmatmul.mubr.bf16.gmra.mxu0 %v4212
        %v4353 = vpop.f32.mrf.mxu0
        %v4354 = vadd.f32 0.0, %v4353
        %v4355 = vpop.f32.mrf.mxu0
        %v4356 = vpop.f32.mrf.mxu0
        %v4357 = vadd.f32 0.0, %v4356
        %v4358 = vpop.f32.mrf.mxu0
        %4359 = vmatprep.mubr.bf16.mxu0 0
        %4360 = vmatmul.mubr.bf16.gmra.mxu0 %v4215
        %v4361 = vpop.f32.mrf.mxu0
        %v4362 = vadd.f32 0.0, %v4361
        %v4363 = vpop.f32.mrf.mxu0
        %v4364 = vpop.f32.mrf.mxu0
        %v4365 = vadd.f32 0.0, %v4364
        %v4366 = vpop.f32.mrf.mxu0
        %4367 = vmatprep.mubr.bf16.mxu0 0
        %4368 = vmatmul.mubr.bf16.gmra.mxu0 %v4218
        %v4369 = vpop.f32.mrf.mxu0
        %v4370 = vadd.f32 0.0, %v4369
        %v4371 = vpop.f32.mrf.mxu0
        %v4372 = vpop.f32.mrf.mxu0
        %v4373 = vadd.f32 0.0, %v4372
        %v4374 = vpop.f32.mrf.mxu0
        %4375 = vmatprep.mubr.bf16.mxu0 0
        %4376 = vmatmul.mubr.bf16.gmra.mxu0 %v4221
        %v4377 = vpop.f32.mrf.mxu0
        %v4378 = vadd.f32 0.0, %v4377
        %v4379 = vpop.f32.mrf.mxu0
        %v4380 = vpop.f32.mrf.mxu0
        %v4381 = vadd.f32 0.0, %v4380
        %v4382 = vpop.f32.mrf.mxu0
        %4383 = vdwg.mxu0
        %v4384 = vadd.f32 %v4078, %v4258
        %v4385 = vadd.f32 %v4079, %v4261
        %v4386 = vadd.f32 %v4080, %v4266
        %v4387 = vadd.f32 %v4081, %v4269
        %v4388 = vadd.f32 %v4082, %v4274
        %v4389 = vadd.f32 %v4083, %v4277
        %v4390 = vadd.f32 %v4084, %v4282
        %v4391 = vadd.f32 %v4085, %v4285
        %v4392 = vadd.f32 %v4086, %v4290
        %v4393 = vadd.f32 %v4087, %v4293
        %v4394 = vadd.f32 %v4088, %v4298
        %v4395 = vadd.f32 %v4089, %v4301
        %v4396 = vadd.f32 %v4090, %v4306
        %v4397 = vadd.f32 %v4091, %v4309
        %v4398 = vadd.f32 %v4092, %v4314
        %v4399 = vadd.f32 %v4093, %v4317
        %v4400 = vadd.f32 %v4094, %v4322
        %v4401 = vadd.f32 %v4095, %v4325
        %v4402 = vadd.f32 %v4096, %v4330
        %v4403 = vadd.f32 %v4097, %v4333
        %v4404 = vadd.f32 %v4098, %v4338
        %v4405 = vadd.f32 %v4099, %v4341
        %v4406 = vadd.f32 %v4100, %v4346
        %v4407 = vadd.f32 %v4101, %v4349
        %v4408 = vadd.f32 %v4102, %v4354
        %v4409 = vadd.f32 %v4103, %v4357
        %v4410 = vadd.f32 %v4104, %v4362
        %v4411 = vadd.f32 %v4105, %v4365
        %v4412 = vadd.f32 %v4106, %v4370
        %v4413 = vadd.f32 %v4107, %v4373
        %v4414 = vadd.f32 %v4108, %v4378
        %v4415 = vadd.f32 %v4109, %v4381
        %v4416 = vld [vmem:[%s4110 + $0x1] sm:$0xff]
        %v4417 = vld [vmem:[%s4110 + $0x9] sm:$0xff]
        %v4418 = vld [vmem:[%s4110 + $0x19] sm:$0xff]
        %v4419 = vld [vmem:[%s4110 + $0x21] sm:$0xff]
        %v4420 = vld [vmem:[%s4110 + $0x31] sm:$0xff]
        %v4421 = vld [vmem:[%s4110 + $0x39] sm:$0xff]
        %v4422 = vld [vmem:[%s4110 + $0x49] sm:$0xff]
        %v4423 = vld [vmem:[%s4110 + $0x51] sm:$0xff]
        %v4424 = vld [vmem:[%s4110 + $0x61] sm:$0xff]
        %v4425 = vld [vmem:[%s4110 + $0x69] sm:$0xff]
        %v4426 = vld [vmem:[%s4110 + $0x79] sm:$0xff]
        %v4427 = vld [vmem:[%s4110 + $0x81] sm:$0xff]
        %v4428 = vld [vmem:[%s4110 + $0x91] sm:$0xff]
        %v4429 = vld [vmem:[%s4110 + $0x99] sm:$0xff]
        %v4430 = vld [vmem:[%s4110 + $0xa9] sm:$0xff]
        %v4431 = vld [vmem:[%s4110 + $0xb1] sm:$0xff]
        %v4432 = vld [vmem:[%s4110 + $0xc1] sm:$0xff]
        %v4433 = vld [vmem:[%s4110 + $0xc9] sm:$0xff]
        %v4434 = vld [vmem:[%s4110 + $0xd9] sm:$0xff]
        %v4435 = vld [vmem:[%s4110 + $0xe1] sm:$0xff]
        %v4436 = vld [vmem:[%s4110 + $0xf1] sm:$0xff]
        %v4437 = vld [vmem:[%s4110 + $0xf9] sm:$0xff]
        %v4438 = vld [vmem:[%s4110 + $0x109] sm:$0xff]
        %v4439 = vld [vmem:[%s4110 + $0x111] sm:$0xff]
        %v4440 = vld [vmem:[%s4110 + $0x121] sm:$0xff]
        %v4441 = vld [vmem:[%s4110 + $0x129] sm:$0xff]
        %v4442 = vld [vmem:[%s4110 + $0x139] sm:$0xff]
        %v4443 = vld [vmem:[%s4110 + $0x141] sm:$0xff]
        %v4444 = vld [vmem:[%s4110 + $0x151] sm:$0xff]
        %v4445 = vld [vmem:[%s4110 + $0x159] sm:$0xff]
        %v4446 = vld [vmem:[%s4110 + $0x169] sm:$0xff]
        %v4447 = vld [vmem:[%s4110 + $0x171] sm:$0xff]
        %v4448 = vpack.c.bf16 %v4417, %v4416
        %v4449 = vpack.c.bf16 %v4419, %v4418
        %v4450 = vpack.c.bf16 %v4421, %v4420
        %v4451 = vpack.c.bf16 %v4423, %v4422
        %v4452 = vpack.c.bf16 %v4425, %v4424
        %v4453 = vpack.c.bf16 %v4427, %v4426
        %v4454 = vpack.c.bf16 %v4429, %v4428
        %v4455 = vpack.c.bf16 %v4431, %v4430
        %v4456 = vpack.c.bf16 %v4433, %v4432
        %v4457 = vpack.c.bf16 %v4435, %v4434
        %v4458 = vpack.c.bf16 %v4437, %v4436
        %v4459 = vpack.c.bf16 %v4439, %v4438
        %v4460 = vpack.c.bf16 %v4441, %v4440
        %v4461 = vpack.c.bf16 %v4443, %v4442
        %v4462 = vpack.c.bf16 %v4445, %v4444
        %v4463 = vpack.c.bf16 %v4447, %v4446
        %v4464 = vld [vmem:[%s3 + $0x70] sm:$0xf]
        %v4465 = vld [vmem:[%s3 + $0x74] sm:$0xf]
        %v4466 = vld [vmem:[%s3 + $0x78] sm:$0xf]
        %v4467 = vld [vmem:[%s3 + $0x7c] sm:$0xf]
        %v4472 = vunpack.c.l.b16 %v4464
        %v4473 = vunpack.c.l.b16 %v4465
        %v4474 = vunpack.c.l.b16 %v4466
        %v4475 = vunpack.c.l.b16 %v4467
        %v4476 = vpack.c.b16 %v4473, %v4472
        %v4477 = vpack.c.b16 %v4475, %v4474
        %v4481 = vsel %vm856, %v4448, 0
        %v4484 = vsel %vm856, %v4449, 0
        %v4487 = vsel %vm856, %v4450, 0
        %v4490 = vsel %vm856, %v4451, 0
        %v4493 = vsel %vm856, %v4452, 0
        %v4496 = vsel %vm856, %v4453, 0
        %v4499 = vsel %vm856, %v4454, 0
        %v4502 = vsel %vm856, %v4455, 0
        %v4505 = vsel %vm856, %v4456, 0
        %v4508 = vsel %vm856, %v4457, 0
        %v4511 = vsel %vm856, %v4458, 0
        %v4514 = vsel %vm856, %v4459, 0
        %v4517 = vsel %vm856, %v4460, 0
        %v4520 = vsel %vm856, %v4461, 0
        %v4523 = vsel %vm856, %v4462, 0
        %v4526 = vsel %vm856, %v4463, 0
        %4528 = vmatprep.subr.bf16.mxu0 0
        %4529 = vmatpush1.bf16.msra.mxu0 0
        %4530 = vmatprep.subr.bf16.mxu0 0
        %4531 = vmatpush1.bf16.msra.mxu0 0
        %4532 = vmatprep.subr.bf16.mxu0 0
        %4533 = vmatpush1.bf16.msra.mxu0 0
        %4534 = vmatprep.subr.bf16.mxu0 0
        %4535 = vmatpush1.bf16.msra.mxu0 0
        %4536 = vmatprep.subr.bf16.mxu0 0
        %4537 = vmatpush1.bf16.msra.mxu0 0
        %4538 = vmatprep.subr.bf16.mxu0 0
        %4539 = vmatpush1.bf16.msra.mxu0 0
        %4540 = vmatprep.subr.bf16.mxu0 0
        %4541 = vmatpush1.bf16.msra.mxu0 %v4477
        %4542 = vmatprep.subr.bf16.mxu0 0
        %4543 = vmatpush1.bf16.msra.mxu0 %v4476
        %4544 = vmatprep.subr.bf16.mxu0 0
        %4545 = vmatpush2.bf16.msra.mxu0 0
        %4546 = vmatprep.subr.bf16.mxu0 0
        %4547 = vmatpush2.bf16.msra.mxu0 0
        %4548 = vmatprep.subr.bf16.mxu0 0
        %4549 = vmatpush2.bf16.msra.mxu0 0
        %4550 = vmatprep.subr.bf16.mxu0 0
        %4551 = vmatpush2.bf16.msra.mxu0 0
        %4552 = vmatprep.subr.bf16.mxu0 0
        %4553 = vmatpush2.bf16.msra.mxu0 0
        %4554 = vmatprep.subr.bf16.mxu0 0
        %4555 = vmatpush2.bf16.msra.mxu0 0
        %4556 = vmatprep.subr.bf16.mxu0 0
        %4557 = vmatpush2.bf16.msra.mxu0 0
        %4558 = vmatprep.subr.bf16.mxu0 0
        %4559 = vmatpush2.bf16.msra.mxu0 0
        %4560 = vmatprep.mubr.bf16.mxu0 0
        %4561 = vmatmul.mubr.bf16.gmra.mxu0 %v4481
        %v4562 = vpop.f32.mrf.mxu0
        %v4563 = vadd.f32 0.0, %v4562
        %v4564 = vpop.f32.mrf.mxu0
        %v4565 = vpop.f32.mrf.mxu0
        %v4566 = vadd.f32 0.0, %v4565
        %v4567 = vpop.f32.mrf.mxu0
        %4568 = vmatprep.mubr.bf16.mxu0 0
        %4569 = vmatmul.mubr.bf16.gmra.mxu0 %v4484
        %v4570 = vpop.f32.mrf.mxu0
        %v4571 = vadd.f32 0.0, %v4570
        %v4572 = vpop.f32.mrf.mxu0
        %v4573 = vpop.f32.mrf.mxu0
        %v4574 = vadd.f32 0.0, %v4573
        %v4575 = vpop.f32.mrf.mxu0
        %4576 = vmatprep.mubr.bf16.mxu0 0
        %4577 = vmatmul.mubr.bf16.gmra.mxu0 %v4487
        %v4578 = vpop.f32.mrf.mxu0
        %v4579 = vadd.f32 0.0, %v4578
        %v4580 = vpop.f32.mrf.mxu0
        %v4581 = vpop.f32.mrf.mxu0
        %v4582 = vadd.f32 0.0, %v4581
        %v4583 = vpop.f32.mrf.mxu0
        %4584 = vmatprep.mubr.bf16.mxu0 0
        %4585 = vmatmul.mubr.bf16.gmra.mxu0 %v4490
        %v4586 = vpop.f32.mrf.mxu0
        %v4587 = vadd.f32 0.0, %v4586
        %v4588 = vpop.f32.mrf.mxu0
        %v4589 = vpop.f32.mrf.mxu0
        %v4590 = vadd.f32 0.0, %v4589
        %v4591 = vpop.f32.mrf.mxu0
        %4592 = vmatprep.mubr.bf16.mxu0 0
        %4593 = vmatmul.mubr.bf16.gmra.mxu0 %v4493
        %v4594 = vpop.f32.mrf.mxu0
        %v4595 = vadd.f32 0.0, %v4594
        %v4596 = vpop.f32.mrf.mxu0
        %v4597 = vpop.f32.mrf.mxu0
        %v4598 = vadd.f32 0.0, %v4597
        %v4599 = vpop.f32.mrf.mxu0
        %4600 = vmatprep.mubr.bf16.mxu0 0
        %4601 = vmatmul.mubr.bf16.gmra.mxu0 %v4496
        %v4602 = vpop.f32.mrf.mxu0
        %v4603 = vadd.f32 0.0, %v4602
        %v4604 = vpop.f32.mrf.mxu0
        %v4605 = vpop.f32.mrf.mxu0
        %v4606 = vadd.f32 0.0, %v4605
        %v4607 = vpop.f32.mrf.mxu0
        %4608 = vmatprep.mubr.bf16.mxu0 0
        %4609 = vmatmul.mubr.bf16.gmra.mxu0 %v4499
        %v4610 = vpop.f32.mrf.mxu0
        %v4611 = vadd.f32 0.0, %v4610
        %v4612 = vpop.f32.mrf.mxu0
        %v4613 = vpop.f32.mrf.mxu0
        %v4614 = vadd.f32 0.0, %v4613
        %v4615 = vpop.f32.mrf.mxu0
        %4616 = vmatprep.mubr.bf16.mxu0 0
        %4617 = vmatmul.mubr.bf16.gmra.mxu0 %v4502
        %v4618 = vpop.f32.mrf.mxu0
        %v4619 = vadd.f32 0.0, %v4618
        %v4620 = vpop.f32.mrf.mxu0
        %v4621 = vpop.f32.mrf.mxu0
        %v4622 = vadd.f32 0.0, %v4621
        %v4623 = vpop.f32.mrf.mxu0
        %4624 = vmatprep.mubr.bf16.mxu0 0
        %4625 = vmatmul.mubr.bf16.gmra.mxu0 %v4505
        %v4626 = vpop.f32.mrf.mxu0
        %v4627 = vadd.f32 0.0, %v4626
        %v4628 = vpop.f32.mrf.mxu0
        %v4629 = vpop.f32.mrf.mxu0
        %v4630 = vadd.f32 0.0, %v4629
        %v4631 = vpop.f32.mrf.mxu0
        %4632 = vmatprep.mubr.bf16.mxu0 0
        %4633 = vmatmul.mubr.bf16.gmra.mxu0 %v4508
        %v4634 = vpop.f32.mrf.mxu0
        %v4635 = vadd.f32 0.0, %v4634
        %v4636 = vpop.f32.mrf.mxu0
        %v4637 = vpop.f32.mrf.mxu0
        %v4638 = vadd.f32 0.0, %v4637
        %v4639 = vpop.f32.mrf.mxu0
        %4640 = vmatprep.mubr.bf16.mxu0 0
        %4641 = vmatmul.mubr.bf16.gmra.mxu0 %v4511
        %v4642 = vpop.f32.mrf.mxu0
        %v4643 = vadd.f32 0.0, %v4642
        %v4644 = vpop.f32.mrf.mxu0
        %v4645 = vpop.f32.mrf.mxu0
        %v4646 = vadd.f32 0.0, %v4645
        %v4647 = vpop.f32.mrf.mxu0
        %4648 = vmatprep.mubr.bf16.mxu0 0
        %4649 = vmatmul.mubr.bf16.gmra.mxu0 %v4514
        %v4650 = vpop.f32.mrf.mxu0
        %v4651 = vadd.f32 0.0, %v4650
        %v4652 = vpop.f32.mrf.mxu0
        %v4653 = vpop.f32.mrf.mxu0
        %v4654 = vadd.f32 0.0, %v4653
        %v4655 = vpop.f32.mrf.mxu0
        %4656 = vmatprep.mubr.bf16.mxu0 0
        %4657 = vmatmul.mubr.bf16.gmra.mxu0 %v4517
        %v4658 = vpop.f32.mrf.mxu0
        %v4659 = vadd.f32 0.0, %v4658
        %v4660 = vpop.f32.mrf.mxu0
        %v4661 = vpop.f32.mrf.mxu0
        %v4662 = vadd.f32 0.0, %v4661
        %v4663 = vpop.f32.mrf.mxu0
        %4664 = vmatprep.mubr.bf16.mxu0 0
        %4665 = vmatmul.mubr.bf16.gmra.mxu0 %v4520
        %v4666 = vpop.f32.mrf.mxu0
        %v4667 = vadd.f32 0.0, %v4666
        %v4668 = vpop.f32.mrf.mxu0
        %v4669 = vpop.f32.mrf.mxu0
        %v4670 = vadd.f32 0.0, %v4669
        %v4671 = vpop.f32.mrf.mxu0
        %4672 = vmatprep.mubr.bf16.mxu0 0
        %4673 = vmatmul.mubr.bf16.gmra.mxu0 %v4523
        %v4674 = vpop.f32.mrf.mxu0
        %v4675 = vadd.f32 0.0, %v4674
        %v4676 = vpop.f32.mrf.mxu0
        %v4677 = vpop.f32.mrf.mxu0
        %v4678 = vadd.f32 0.0, %v4677
        %v4679 = vpop.f32.mrf.mxu0
        %4680 = vmatprep.mubr.bf16.mxu0 0
        %4681 = vmatmul.mubr.bf16.gmra.mxu0 %v4526
        %v4682 = vpop.f32.mrf.mxu0
        %v4683 = vadd.f32 0.0, %v4682
        %v4684 = vpop.f32.mrf.mxu0
        %v4685 = vpop.f32.mrf.mxu0
        %v4686 = vadd.f32 0.0, %v4685
        %v4687 = vpop.f32.mrf.mxu0
        %4688 = vdwg.mxu0
        %v4689 = vadd.f32 %v4384, %v4563
        %v4690 = vadd.f32 %v4385, %v4566
        %v4691 = vadd.f32 %v4386, %v4571
        %v4692 = vadd.f32 %v4387, %v4574
        %v4693 = vadd.f32 %v4388, %v4579
        %v4694 = vadd.f32 %v4389, %v4582
        %v4695 = vadd.f32 %v4390, %v4587
        %v4696 = vadd.f32 %v4391, %v4590
        %v4697 = vadd.f32 %v4392, %v4595
        %v4698 = vadd.f32 %v4393, %v4598
        %v4699 = vadd.f32 %v4394, %v4603
        %v4700 = vadd.f32 %v4395, %v4606
        %v4701 = vadd.f32 %v4396, %v4611
        %v4702 = vadd.f32 %v4397, %v4614
        %v4703 = vadd.f32 %v4398, %v4619
        %v4704 = vadd.f32 %v4399, %v4622
        %v4705 = vadd.f32 %v4400, %v4627
        %v4706 = vadd.f32 %v4401, %v4630
        %v4707 = vadd.f32 %v4402, %v4635
        %v4708 = vadd.f32 %v4403, %v4638
        %v4709 = vadd.f32 %v4404, %v4643
        %v4710 = vadd.f32 %v4405, %v4646
        %v4711 = vadd.f32 %v4406, %v4651
        %v4712 = vadd.f32 %v4407, %v4654
        %v4713 = vadd.f32 %v4408, %v4659
        %v4714 = vadd.f32 %v4409, %v4662
        %v4715 = vadd.f32 %v4410, %v4667
        %v4716 = vadd.f32 %v4411, %v4670
        %v4717 = vadd.f32 %v4412, %v4675
        %v4718 = vadd.f32 %v4413, %v4678
        %v4719 = vadd.f32 %v4414, %v4683
        %v4720 = vadd.f32 %v4415, %v4686
        %v4721 = vld [vmem:[%s4110 + $0x2] sm:$0xff]
        %v4722 = vld [vmem:[%s4110 + $0xa] sm:$0xff]
        %v4723 = vld [vmem:[%s4110 + $0x1a] sm:$0xff]
        %v4724 = vld [vmem:[%s4110 + $0x22] sm:$0xff]
        %v4725 = vld [vmem:[%s4110 + $0x32] sm:$0xff]
        %v4726 = vld [vmem:[%s4110 + $0x3a] sm:$0xff]
        %v4727 = vld [vmem:[%s4110 + $0x4a] sm:$0xff]
        %v4728 = vld [vmem:[%s4110 + $0x52] sm:$0xff]
        %v4729 = vld [vmem:[%s4110 + $0x62] sm:$0xff]
        %v4730 = vld [vmem:[%s4110 + $0x6a] sm:$0xff]
        %v4731 = vld [vmem:[%s4110 + $0x7a] sm:$0xff]
        %v4732 = vld [vmem:[%s4110 + $0x82] sm:$0xff]
        %v4733 = vld [vmem:[%s4110 + $0x92] sm:$0xff]
        %v4734 = vld [vmem:[%s4110 + $0x9a] sm:$0xff]
        %v4735 = vld [vmem:[%s4110 + $0xaa] sm:$0xff]
        %v4736 = vld [vmem:[%s4110 + $0xb2] sm:$0xff]
        %v4737 = vld [vmem:[%s4110 + $0xc2] sm:$0xff]
        %v4738 = vld [vmem:[%s4110 + $0xca] sm:$0xff]
        %v4739 = vld [vmem:[%s4110 + $0xda] sm:$0xff]
        %v4740 = vld [vmem:[%s4110 + $0xe2] sm:$0xff]
        %v4741 = vld [vmem:[%s4110 + $0xf2] sm:$0xff]
        %v4742 = vld [vmem:[%s4110 + $0xfa] sm:$0xff]
        %v4743 = vld [vmem:[%s4110 + $0x10a] sm:$0xff]
        %v4744 = vld [vmem:[%s4110 + $0x112] sm:$0xff]
        %v4745 = vld [vmem:[%s4110 + $0x122] sm:$0xff]
        %v4746 = vld [vmem:[%s4110 + $0x12a] sm:$0xff]
        %v4747 = vld [vmem:[%s4110 + $0x13a] sm:$0xff]
        %v4748 = vld [vmem:[%s4110 + $0x142] sm:$0xff]
        %v4749 = vld [vmem:[%s4110 + $0x152] sm:$0xff]
        %v4750 = vld [vmem:[%s4110 + $0x15a] sm:$0xff]
        %v4751 = vld [vmem:[%s4110 + $0x16a] sm:$0xff]
        %v4752 = vld [vmem:[%s4110 + $0x172] sm:$0xff]
        %v4753 = vpack.c.bf16 %v4722, %v4721
        %v4754 = vpack.c.bf16 %v4724, %v4723
        %v4755 = vpack.c.bf16 %v4726, %v4725
        %v4756 = vpack.c.bf16 %v4728, %v4727
        %v4757 = vpack.c.bf16 %v4730, %v4729
        %v4758 = vpack.c.bf16 %v4732, %v4731
        %v4759 = vpack.c.bf16 %v4734, %v4733
        %v4760 = vpack.c.bf16 %v4736, %v4735
        %v4761 = vpack.c.bf16 %v4738, %v4737
        %v4762 = vpack.c.bf16 %v4740, %v4739
        %v4763 = vpack.c.bf16 %v4742, %v4741
        %v4764 = vpack.c.bf16 %v4744, %v4743
        %v4765 = vpack.c.bf16 %v4746, %v4745
        %v4766 = vpack.c.bf16 %v4748, %v4747
        %v4767 = vpack.c.bf16 %v4750, %v4749
        %v4768 = vpack.c.bf16 %v4752, %v4751
        %v4769 = vld [vmem:[%s3 + $0x80] sm:$0xf]
        %v4770 = vld [vmem:[%s3 + $0x84] sm:$0xf]
        %v4771 = vld [vmem:[%s3 + $0x88] sm:$0xf]
        %v4772 = vld [vmem:[%s3 + $0x8c] sm:$0xf]
        %v4777 = vunpack.c.l.b16 %v4769
        %v4778 = vunpack.c.l.b16 %v4770
        %v4779 = vunpack.c.l.b16 %v4771
        %v4780 = vunpack.c.l.b16 %v4772
        %v4781 = vpack.c.b16 %v4778, %v4777
        %v4782 = vpack.c.b16 %v4780, %v4779
        %v4786 = vsel %vm856, %v4753, 0
        %v4789 = vsel %vm856, %v4754, 0
        %v4792 = vsel %vm856, %v4755, 0
        %v4795 = vsel %vm856, %v4756, 0
        %v4798 = vsel %vm856, %v4757, 0
        %v4801 = vsel %vm856, %v4758, 0
        %v4804 = vsel %vm856, %v4759, 0
        %v4807 = vsel %vm856, %v4760, 0
        %v4810 = vsel %vm856, %v4761, 0
        %v4813 = vsel %vm856, %v4762, 0
        %v4816 = vsel %vm856, %v4763, 0
        %v4819 = vsel %vm856, %v4764, 0
        %v4822 = vsel %vm856, %v4765, 0
        %v4825 = vsel %vm856, %v4766, 0
        %v4828 = vsel %vm856, %v4767, 0
        %v4831 = vsel %vm856, %v4768, 0
        %4833 = vmatprep.subr.bf16.mxu0 0
        %4834 = vmatpush1.bf16.msra.mxu0 0
        %4835 = vmatprep.subr.bf16.mxu0 0
        %4836 = vmatpush1.bf16.msra.mxu0 0
        %4837 = vmatprep.subr.bf16.mxu0 0
        %4838 = vmatpush1.bf16.msra.mxu0 0
        %4839 = vmatprep.subr.bf16.mxu0 0
        %4840 = vmatpush1.bf16.msra.mxu0 0
        %4841 = vmatprep.subr.bf16.mxu0 0
        %4842 = vmatpush1.bf16.msra.mxu0 0
        %4843 = vmatprep.subr.bf16.mxu0 0
        %4844 = vmatpush1.bf16.msra.mxu0 0
        %4845 = vmatprep.subr.bf16.mxu0 0
        %4846 = vmatpush1.bf16.msra.mxu0 %v4782
        %4847 = vmatprep.subr.bf16.mxu0 0
        %4848 = vmatpush1.bf16.msra.mxu0 %v4781
        %4849 = vmatprep.subr.bf16.mxu0 0
        %4850 = vmatpush2.bf16.msra.mxu0 0
        %4851 = vmatprep.subr.bf16.mxu0 0
        %4852 = vmatpush2.bf16.msra.mxu0 0
        %4853 = vmatprep.subr.bf16.mxu0 0
        %4854 = vmatpush2.bf16.msra.mxu0 0
        %4855 = vmatprep.subr.bf16.mxu0 0
        %4856 = vmatpush2.bf16.msra.mxu0 0
        %4857 = vmatprep.subr.bf16.mxu0 0
        %4858 = vmatpush2.bf16.msra.mxu0 0
        %4859 = vmatprep.subr.bf16.mxu0 0
        %4860 = vmatpush2.bf16.msra.mxu0 0
        %4861 = vmatprep.subr.bf16.mxu0 0
        %4862 = vmatpush2.bf16.msra.mxu0 0
        %4863 = vmatprep.subr.bf16.mxu0 0
        %4864 = vmatpush2.bf16.msra.mxu0 0
        %4865 = vmatprep.mubr.bf16.mxu0 0
        %4866 = vmatmul.mubr.bf16.gmra.mxu0 %v4786
        %v4867 = vpop.f32.mrf.mxu0
        %v4868 = vadd.f32 0.0, %v4867
        %v4869 = vpop.f32.mrf.mxu0
        %v4870 = vpop.f32.mrf.mxu0
        %v4871 = vadd.f32 0.0, %v4870
        %v4872 = vpop.f32.mrf.mxu0
        %4873 = vmatprep.mubr.bf16.mxu0 0
        %4874 = vmatmul.mubr.bf16.gmra.mxu0 %v4789
        %v4875 = vpop.f32.mrf.mxu0
        %v4876 = vadd.f32 0.0, %v4875
        %v4877 = vpop.f32.mrf.mxu0
        %v4878 = vpop.f32.mrf.mxu0
        %v4879 = vadd.f32 0.0, %v4878
        %v4880 = vpop.f32.mrf.mxu0
        %4881 = vmatprep.mubr.bf16.mxu0 0
        %4882 = vmatmul.mubr.bf16.gmra.mxu0 %v4792
        %v4883 = vpop.f32.mrf.mxu0
        %v4884 = vadd.f32 0.0, %v4883
        %v4885 = vpop.f32.mrf.mxu0
        %v4886 = vpop.f32.mrf.mxu0
        %v4887 = vadd.f32 0.0, %v4886
        %v4888 = vpop.f32.mrf.mxu0
        %4889 = vmatprep.mubr.bf16.mxu0 0
        %4890 = vmatmul.mubr.bf16.gmra.mxu0 %v4795
        %v4891 = vpop.f32.mrf.mxu0
        %v4892 = vadd.f32 0.0, %v4891
        %v4893 = vpop.f32.mrf.mxu0
        %v4894 = vpop.f32.mrf.mxu0
        %v4895 = vadd.f32 0.0, %v4894
        %v4896 = vpop.f32.mrf.mxu0
        %4897 = vmatprep.mubr.bf16.mxu0 0
        %4898 = vmatmul.mubr.bf16.gmra.mxu0 %v4798
        %v4899 = vpop.f32.mrf.mxu0
        %v4900 = vadd.f32 0.0, %v4899
        %v4901 = vpop.f32.mrf.mxu0
        %v4902 = vpop.f32.mrf.mxu0
        %v4903 = vadd.f32 0.0, %v4902
        %v4904 = vpop.f32.mrf.mxu0
        %4905 = vmatprep.mubr.bf16.mxu0 0
        %4906 = vmatmul.mubr.bf16.gmra.mxu0 %v4801
        %v4907 = vpop.f32.mrf.mxu0
        %v4908 = vadd.f32 0.0, %v4907
        %v4909 = vpop.f32.mrf.mxu0
        %v4910 = vpop.f32.mrf.mxu0
        %v4911 = vadd.f32 0.0, %v4910
        %v4912 = vpop.f32.mrf.mxu0
        %4913 = vmatprep.mubr.bf16.mxu0 0
        %4914 = vmatmul.mubr.bf16.gmra.mxu0 %v4804
        %v4915 = vpop.f32.mrf.mxu0
        %v4916 = vadd.f32 0.0, %v4915
        %v4917 = vpop.f32.mrf.mxu0
        %v4918 = vpop.f32.mrf.mxu0
        %v4919 = vadd.f32 0.0, %v4918
        %v4920 = vpop.f32.mrf.mxu0
        %4921 = vmatprep.mubr.bf16.mxu0 0
        %4922 = vmatmul.mubr.bf16.gmra.mxu0 %v4807
        %v4923 = vpop.f32.mrf.mxu0
        %v4924 = vadd.f32 0.0, %v4923
        %v4925 = vpop.f32.mrf.mxu0
        %v4926 = vpop.f32.mrf.mxu0
        %v4927 = vadd.f32 0.0, %v4926
        %v4928 = vpop.f32.mrf.mxu0
        %4929 = vmatprep.mubr.bf16.mxu0 0
        %4930 = vmatmul.mubr.bf16.gmra.mxu0 %v4810
        %v4931 = vpop.f32.mrf.mxu0
        %v4932 = vadd.f32 0.0, %v4931
        %v4933 = vpop.f32.mrf.mxu0
        %v4934 = vpop.f32.mrf.mxu0
        %v4935 = vadd.f32 0.0, %v4934
        %v4936 = vpop.f32.mrf.mxu0
        %4937 = vmatprep.mubr.bf16.mxu0 0
        %4938 = vmatmul.mubr.bf16.gmra.mxu0 %v4813
        %v4939 = vpop.f32.mrf.mxu0
        %v4940 = vadd.f32 0.0, %v4939
        %v4941 = vpop.f32.mrf.mxu0
        %v4942 = vpop.f32.mrf.mxu0
        %v4943 = vadd.f32 0.0, %v4942
        %v4944 = vpop.f32.mrf.mxu0
        %4945 = vmatprep.mubr.bf16.mxu0 0
        %4946 = vmatmul.mubr.bf16.gmra.mxu0 %v4816
        %v4947 = vpop.f32.mrf.mxu0
        %v4948 = vadd.f32 0.0, %v4947
        %v4949 = vpop.f32.mrf.mxu0
        %v4950 = vpop.f32.mrf.mxu0
        %v4951 = vadd.f32 0.0, %v4950
        %v4952 = vpop.f32.mrf.mxu0
        %4953 = vmatprep.mubr.bf16.mxu0 0
        %4954 = vmatmul.mubr.bf16.gmra.mxu0 %v4819
        %v4955 = vpop.f32.mrf.mxu0
        %v4956 = vadd.f32 0.0, %v4955
        %v4957 = vpop.f32.mrf.mxu0
        %v4958 = vpop.f32.mrf.mxu0
        %v4959 = vadd.f32 0.0, %v4958
        %v4960 = vpop.f32.mrf.mxu0
        %4961 = vmatprep.mubr.bf16.mxu0 0
        %4962 = vmatmul.mubr.bf16.gmra.mxu0 %v4822
        %v4963 = vpop.f32.mrf.mxu0
        %v4964 = vadd.f32 0.0, %v4963
        %v4965 = vpop.f32.mrf.mxu0
        %v4966 = vpop.f32.mrf.mxu0
        %v4967 = vadd.f32 0.0, %v4966
        %v4968 = vpop.f32.mrf.mxu0
        %4969 = vmatprep.mubr.bf16.mxu0 0
        %4970 = vmatmul.mubr.bf16.gmra.mxu0 %v4825
        %v4971 = vpop.f32.mrf.mxu0
        %v4972 = vadd.f32 0.0, %v4971
        %v4973 = vpop.f32.mrf.mxu0
        %v4974 = vpop.f32.mrf.mxu0
        %v4975 = vadd.f32 0.0, %v4974
        %v4976 = vpop.f32.mrf.mxu0
        %4977 = vmatprep.mubr.bf16.mxu0 0
        %4978 = vmatmul.mubr.bf16.gmra.mxu0 %v4828
        %v4979 = vpop.f32.mrf.mxu0
        %v4980 = vadd.f32 0.0, %v4979
        %v4981 = vpop.f32.mrf.mxu0
        %v4982 = vpop.f32.mrf.mxu0
        %v4983 = vadd.f32 0.0, %v4982
        %v4984 = vpop.f32.mrf.mxu0
        %4985 = vmatprep.mubr.bf16.mxu0 0
        %4986 = vmatmul.mubr.bf16.gmra.mxu0 %v4831
        %v4987 = vpop.f32.mrf.mxu0
        %v4988 = vadd.f32 0.0, %v4987
        %v4989 = vpop.f32.mrf.mxu0
        %v4990 = vpop.f32.mrf.mxu0
        %v4991 = vadd.f32 0.0, %v4990
        %v4992 = vpop.f32.mrf.mxu0
        %4993 = vdwg.mxu0
        %v4994 = vadd.f32 %v4689, %v4868
        %v4995 = vadd.f32 %v4690, %v4871
        %v4996 = vadd.f32 %v4691, %v4876
        %v4997 = vadd.f32 %v4692, %v4879
        %v4998 = vadd.f32 %v4693, %v4884
        %v4999 = vadd.f32 %v4694, %v4887
        %v5000 = vadd.f32 %v4695, %v4892
        %v5001 = vadd.f32 %v4696, %v4895
        %v5002 = vadd.f32 %v4697, %v4900
        %v5003 = vadd.f32 %v4698, %v4903
        %v5004 = vadd.f32 %v4699, %v4908
        %v5005 = vadd.f32 %v4700, %v4911
        %v5006 = vadd.f32 %v4701, %v4916
        %v5007 = vadd.f32 %v4702, %v4919
        %v5008 = vadd.f32 %v4703, %v4924
        %v5009 = vadd.f32 %v4704, %v4927
        %v5010 = vadd.f32 %v4705, %v4932
        %v5011 = vadd.f32 %v4706, %v4935
        %v5012 = vadd.f32 %v4707, %v4940
        %v5013 = vadd.f32 %v4708, %v4943
        %v5014 = vadd.f32 %v4709, %v4948
        %v5015 = vadd.f32 %v4710, %v4951
        %v5016 = vadd.f32 %v4711, %v4956
        %v5017 = vadd.f32 %v4712, %v4959
        %v5018 = vadd.f32 %v4713, %v4964
        %v5019 = vadd.f32 %v4714, %v4967
        %v5020 = vadd.f32 %v4715, %v4972
        %v5021 = vadd.f32 %v4716, %v4975
        %v5022 = vadd.f32 %v4717, %v4980
        %v5023 = vadd.f32 %v4718, %v4983
        %v5024 = vadd.f32 %v4719, %v4988
        %v5025 = vadd.f32 %v4720, %v4991
        %v5026 = vld [vmem:[%s4] sm:$0x1]
        %v5028 = vlaneseq
        %v5029 = vshrl.u32 %v5028, 7
        %v5030 = vsub.s32 0, %v5029
        %v5031 = vrot.slane %v5026, %v5030
        %v5033 = vadd.f32 %v4994, %v5031
        %v5034 = vadd.f32 %v4995, %v5031
        %v5035 = vadd.f32 %v4996, %v5031
        %v5036 = vadd.f32 %v4997, %v5031
        %v5037 = vadd.f32 %v4998, %v5031
        %v5038 = vadd.f32 %v4999, %v5031
        %v5039 = vadd.f32 %v5000, %v5031
        %v5040 = vadd.f32 %v5001, %v5031
        %v5041 = vadd.f32 %v5002, %v5031
        %v5042 = vadd.f32 %v5003, %v5031
        %v5043 = vadd.f32 %v5004, %v5031
        %v5044 = vadd.f32 %v5005, %v5031
        %v5045 = vadd.f32 %v5006, %v5031
        %v5046 = vadd.f32 %v5007, %v5031
        %v5047 = vadd.f32 %v5008, %v5031
        %v5048 = vadd.f32 %v5009, %v5031
        %v5049 = vadd.f32 %v5010, %v5031
        %v5050 = vadd.f32 %v5011, %v5031
        %v5051 = vadd.f32 %v5012, %v5031
        %v5052 = vadd.f32 %v5013, %v5031
        %v5053 = vadd.f32 %v5014, %v5031
        %v5054 = vadd.f32 %v5015, %v5031
        %v5055 = vadd.f32 %v5016, %v5031
        %v5056 = vadd.f32 %v5017, %v5031
        %v5057 = vadd.f32 %v5018, %v5031
        %v5058 = vadd.f32 %v5019, %v5031
        %v5059 = vadd.f32 %v5020, %v5031
        %v5060 = vadd.f32 %v5021, %v5031
        %v5061 = vadd.f32 %v5022, %v5031
        %v5062 = vadd.f32 %v5023, %v5031
        %v5063 = vadd.f32 %v5024, %v5031
        %v5064 = vadd.f32 %v5025, %v5031
        %v5065 = vmax.f32 %v5033, 0.0
        %v5066 = vmax.f32 %v5034, 0.0
        %v5067 = vmax.f32 %v5035, 0.0
        %v5068 = vmax.f32 %v5036, 0.0
        %v5069 = vmax.f32 %v5037, 0.0
        %v5070 = vmax.f32 %v5038, 0.0
        %v5071 = vmax.f32 %v5039, 0.0
        %v5072 = vmax.f32 %v5040, 0.0
        %v5073 = vmax.f32 %v5041, 0.0
        %v5074 = vmax.f32 %v5042, 0.0
        %v5075 = vmax.f32 %v5043, 0.0
        %v5076 = vmax.f32 %v5044, 0.0
        %v5077 = vmax.f32 %v5045, 0.0
        %v5078 = vmax.f32 %v5046, 0.0
        %v5079 = vmax.f32 %v5047, 0.0
        %v5080 = vmax.f32 %v5048, 0.0
        %v5081 = vmax.f32 %v5049, 0.0
        %v5082 = vmax.f32 %v5050, 0.0
        %v5083 = vmax.f32 %v5051, 0.0
        %v5084 = vmax.f32 %v5052, 0.0
        %v5085 = vmax.f32 %v5053, 0.0
        %v5086 = vmax.f32 %v5054, 0.0
        %v5087 = vmax.f32 %v5055, 0.0
        %v5088 = vmax.f32 %v5056, 0.0
        %v5089 = vmax.f32 %v5057, 0.0
        %v5090 = vmax.f32 %v5058, 0.0
        %v5091 = vmax.f32 %v5059, 0.0
        %v5092 = vmax.f32 %v5060, 0.0
        %v5093 = vmax.f32 %v5061, 0.0
        %v5094 = vmax.f32 %v5062, 0.0
        %v5095 = vmax.f32 %v5063, 0.0
        %v5096 = vmax.f32 %v5064, 0.0
        %vm5097 = vcmask 523264
        %5098 = vst.msk [vmem:[#allocation5] sm:$0xff] %vm5097, %v5065
        %5099 = vst.msk [vmem:[#allocation5 + $0x8] sm:$0xff] %vm5097, %v5066
        %5100 = vst.msk [vmem:[#allocation5 + $0x10] sm:$0xff] %vm5097, %v5067
        %5101 = vst.msk [vmem:[#allocation5 + $0x18] sm:$0xff] %vm5097, %v5068
        %5102 = vst.msk [vmem:[#allocation5 + $0x20] sm:$0xff] %vm5097, %v5069
        %5103 = vst.msk [vmem:[#allocation5 + $0x28] sm:$0xff] %vm5097, %v5070
        %5104 = vst.msk [vmem:[#allocation5 + $0x30] sm:$0xff] %vm5097, %v5071
        %5105 = vst.msk [vmem:[#allocation5 + $0x38] sm:$0xff] %vm5097, %v5072
        %5106 = vst.msk [vmem:[#allocation5 + $0x40] sm:$0xff] %vm5097, %v5073
        %5107 = vst.msk [vmem:[#allocation5 + $0x48] sm:$0xff] %vm5097, %v5074
        %5108 = vst.msk [vmem:[#allocation5 + $0x50] sm:$0xff] %vm5097, %v5075
        %5109 = vst.msk [vmem:[#allocation5 + $0x58] sm:$0xff] %vm5097, %v5076
        %5110 = vst.msk [vmem:[#allocation5 + $0x60] sm:$0xff] %vm5097, %v5077
        %5111 = vst.msk [vmem:[#allocation5 + $0x68] sm:$0xff] %vm5097, %v5078
        %5112 = vst.msk [vmem:[#allocation5 + $0x70] sm:$0xff] %vm5097, %v5079
        %5113 = vst.msk [vmem:[#allocation5 + $0x78] sm:$0xff] %vm5097, %v5080
        %5114 = vst.msk [vmem:[#allocation5 + $0x80] sm:$0xff] %vm5097, %v5081
        %5115 = vst.msk [vmem:[#allocation5 + $0x88] sm:$0xff] %vm5097, %v5082
        %5116 = vst.msk [vmem:[#allocation5 + $0x90] sm:$0xff] %vm5097, %v5083
        %5117 = vst.msk [vmem:[#allocation5 + $0x98] sm:$0xff] %vm5097, %v5084
        %5118 = vst.msk [vmem:[#allocation5 + $0xa0] sm:$0xff] %vm5097, %v5085
        %5119 = vst.msk [vmem:[#allocation5 + $0xa8] sm:$0xff] %vm5097, %v5086
        %5120 = vst.msk [vmem:[#allocation5 + $0xb0] sm:$0xff] %vm5097, %v5087
        %5121 = vst.msk [vmem:[#allocation5 + $0xb8] sm:$0xff] %vm5097, %v5088
        %5122 = vst.msk [vmem:[#allocation5 + $0xc0] sm:$0xff] %vm5097, %v5089
        %5123 = vst.msk [vmem:[#allocation5 + $0xc8] sm:$0xff] %vm5097, %v5090
        %5124 = vst.msk [vmem:[#allocation5 + $0xd0] sm:$0xff] %vm5097, %v5091
        %5125 = vst.msk [vmem:[#allocation5 + $0xd8] sm:$0xff] %vm5097, %v5092
        %5126 = vst.msk [vmem:[#allocation5 + $0xe0] sm:$0xff] %vm5097, %v5093
        %5127 = vst.msk [vmem:[#allocation5 + $0xe8] sm:$0xff] %vm5097, %v5094
        %5128 = vst.msk [vmem:[#allocation5 + $0xf0] sm:$0xff] %vm5097, %v5095
        %5129 = vst.msk [vmem:[#allocation5 + $0xf8] sm:$0xff] %vm5097, %v5096
        %v5130 = vld [vmem:[#allocation5] sm:$0xff]
        %v5131 = vld [vmem:[#allocation5 + $0x8] sm:$0xff]
        %v5132 = vld [vmem:[#allocation5 + $0x20] sm:$0xff]
        %v5133 = vld [vmem:[#allocation5 + $0x28] sm:$0xff]
        %v5134 = vld [vmem:[#allocation5 + $0x40] sm:$0xff]
        %v5135 = vld [vmem:[#allocation5 + $0x48] sm:$0xff]
        %v5136 = vld [vmem:[#allocation5 + $0x60] sm:$0xff]
        %v5137 = vld [vmem:[#allocation5 + $0x68] sm:$0xff]
        %v5138 = vld [vmem:[#allocation5 + $0x80] sm:$0xff]
        %v5139 = vld [vmem:[#allocation5 + $0x88] sm:$0xff]
        %v5140 = vld [vmem:[#allocation5 + $0xa0] sm:$0xff]
        %v5141 = vld [vmem:[#allocation5 + $0xa8] sm:$0xff]
        %v5142 = vld [vmem:[#allocation5 + $0xc0] sm:$0xff]
        %v5143 = vld [vmem:[#allocation5 + $0xc8] sm:$0xff]
        %v5144 = vld [vmem:[#allocation5 + $0xe0] sm:$0xff]
        %v5145 = vld [vmem:[#allocation5 + $0xe8] sm:$0xff]
        %s5146 = scalar_lea.vmem [#allocation5], 16
        %v5147 = vld [vmem:[%s5146] sm:$0xff]
        %v5148 = vld [vmem:[%s5146 + $0x8] sm:$0xff]
        %v5149 = vld [vmem:[%s5146 + $0x20] sm:$0xff]
        %v5150 = vld [vmem:[%s5146 + $0x28] sm:$0xff]
        %v5151 = vld [vmem:[%s5146 + $0x40] sm:$0xff]
        %v5152 = vld [vmem:[%s5146 + $0x48] sm:$0xff]
        %v5153 = vld [vmem:[%s5146 + $0x60] sm:$0xff]
        %v5154 = vld [vmem:[%s5146 + $0x68] sm:$0xff]
        %v5155 = vld [vmem:[%s5146 + $0x80] sm:$0xff]
        %v5156 = vld [vmem:[%s5146 + $0x88] sm:$0xff]
        %v5157 = vld [vmem:[%s5146 + $0xa0] sm:$0xff]
        %v5158 = vld [vmem:[%s5146 + $0xa8] sm:$0xff]
        %v5159 = vld [vmem:[%s5146 + $0xc0] sm:$0xff]
        %v5160 = vld [vmem:[%s5146 + $0xc8] sm:$0xff]
        %v5161 = vld [vmem:[%s5146 + $0xe0] sm:$0xff]
        %v5162 = vld [vmem:[%s5146 + $0xe8] sm:$0xff]
        %v5163 = vmax.f32 %v5130, %v5147
        %v5164 = vmax.f32 %v5131, %v5148
        %v5165 = vmax.f32 %v5132, %v5149
        %v5166 = vmax.f32 %v5133, %v5150
        %v5167 = vmax.f32 %v5134, %v5151
        %v5168 = vmax.f32 %v5135, %v5152
        %v5169 = vmax.f32 %v5136, %v5153
        %v5170 = vmax.f32 %v5137, %v5154
        %v5171 = vmax.f32 %v5138, %v5155
        %v5172 = vmax.f32 %v5139, %v5156
        %v5173 = vmax.f32 %v5140, %v5157
        %v5174 = vmax.f32 %v5141, %v5158
        %v5175 = vmax.f32 %v5142, %v5159
        %v5176 = vmax.f32 %v5143, %v5160
        %v5177 = vmax.f32 %v5144, %v5161
        %v5178 = vmax.f32 %v5145, %v5162
        %5179 = vst.msk [vmem:[#allocation8] sm:$0xff] %vm5097, %v5163
        %5180 = vst.msk [vmem:[#allocation8 + $0x8] sm:$0xff] %vm5097, %v5164
        %5181 = vst.msk [vmem:[#allocation8 + $0x10] sm:$0xff] %vm5097, %v5165
        %5182 = vst.msk [vmem:[#allocation8 + $0x18] sm:$0xff] %vm5097, %v5166
        %5183 = vst.msk [vmem:[#allocation8 + $0x20] sm:$0xff] %vm5097, %v5167
        %5184 = vst.msk [vmem:[#allocation8 + $0x28] sm:$0xff] %vm5097, %v5168
        %5185 = vst.msk [vmem:[#allocation8 + $0x30] sm:$0xff] %vm5097, %v5169
        %5186 = vst.msk [vmem:[#allocation8 + $0x38] sm:$0xff] %vm5097, %v5170
        %5187 = vst.msk [vmem:[#allocation8 + $0x40] sm:$0xff] %vm5097, %v5171
        %5188 = vst.msk [vmem:[#allocation8 + $0x48] sm:$0xff] %vm5097, %v5172
        %5189 = vst.msk [vmem:[#allocation8 + $0x50] sm:$0xff] %vm5097, %v5173
        %5190 = vst.msk [vmem:[#allocation8 + $0x58] sm:$0xff] %vm5097, %v5174
        %5191 = vst.msk [vmem:[#allocation8 + $0x60] sm:$0xff] %vm5097, %v5175
        %5192 = vst.msk [vmem:[#allocation8 + $0x68] sm:$0xff] %vm5097, %v5176
        %5193 = vst.msk [vmem:[#allocation8 + $0x70] sm:$0xff] %vm5097, %v5177
        %5194 = vst.msk [vmem:[#allocation8 + $0x78] sm:$0xff] %vm5097, %v5178
        %v5195 = vld [vmem:[#allocation8] ss:$2 sm:$0xff]
        %s5196 = scalar_lea.vmem [#allocation8], 16
        %v5197 = vld [vmem:[%s5196] ss:$2 sm:$0xff]
        %s5198 = scalar_lea.vmem [#allocation8], 32
        %v5199 = vld [vmem:[%s5198] ss:$2 sm:$0xff]
        %s5200 = scalar_lea.vmem [#allocation8], 48
        %v5201 = vld [vmem:[%s5200] ss:$2 sm:$0xff]
        %s5202 = scalar_lea.vmem [#allocation8], 64
        %v5203 = vld [vmem:[%s5202] ss:$2 sm:$0xff]
        %s5204 = scalar_lea.vmem [#allocation8], 80
        %v5205 = vld [vmem:[%s5204] ss:$2 sm:$0xff]
        %s5206 = scalar_lea.vmem [#allocation8], 96
        %v5207 = vld [vmem:[%s5206] ss:$2 sm:$0xff]
        %s5208 = scalar_lea.vmem [#allocation8], 112
        %v5209 = vld [vmem:[%s5208] ss:$2 sm:$0xff]
        %s5210 = scalar_lea.vmem [#allocation8], 1
        %v5211 = vld [vmem:[%s5210] ss:$2 sm:$0xff]
        %s5212 = scalar_lea.vmem [#allocation8], 17
        %v5213 = vld [vmem:[%s5212] ss:$2 sm:$0xff]
        %s5214 = scalar_lea.vmem [#allocation8], 33
        %v5215 = vld [vmem:[%s5214] ss:$2 sm:$0xff]
        %s5216 = scalar_lea.vmem [#allocation8], 49
        %v5217 = vld [vmem:[%s5216] ss:$2 sm:$0xff]
        %s5218 = scalar_lea.vmem [#allocation8], 65
        %v5219 = vld [vmem:[%s5218] ss:$2 sm:$0xff]
        %s5220 = scalar_lea.vmem [#allocation8], 81
        %v5221 = vld [vmem:[%s5220] ss:$2 sm:$0xff]
        %s5222 = scalar_lea.vmem [#allocation8], 97
        %v5223 = vld [vmem:[%s5222] ss:$2 sm:$0xff]
        %s5224 = scalar_lea.vmem [#allocation8], 113
        %v5225 = vld [vmem:[%s5224] ss:$2 sm:$0xff]
        %v5226 = vmax.f32 %v5195, %v5211
        %v5227 = vmax.f32 %v5197, %v5213
        %v5228 = vmax.f32 %v5199, %v5215
        %v5229 = vmax.f32 %v5201, %v5217
        %v5230 = vmax.f32 %v5203, %v5219
        %v5231 = vmax.f32 %v5205, %v5221
        %v5232 = vmax.f32 %v5207, %v5223
        %v5233 = vmax.f32 %v5209, %v5225
        %5234 = vst.msk [vmem:[#allocation3] sm:$0xff] %vm5097, 0.0
        %vm5235 = vcmask 517120
        %5236 = vst.msk [vmem:[#allocation3 + $0x8] sm:$0x3] %vm5235, 0.0
        %s5237 = scalar_lea.vmem [#allocation3], 144
        %5238 = vst.msk [vmem:[%s5237] sm:$0xff] %vm5097, 0.0
        %5239 = vst.msk [vmem:[%s5237 + $0x8] sm:$0x3] %vm5235, 0.0
        %vm5240 = vcmask 516096
        %5241 = vst.msk [vmem:[#allocation3] sm:$0x1] %vm5240, 0.0
        %5242 = vst.msk [vmem:[#allocation3 + $0x10] sm:$0x1] %vm5240, 0.0
        %5243 = vst.msk [vmem:[#allocation3 + $0x20] sm:$0x1] %vm5240, 0.0
        %5244 = vst.msk [vmem:[#allocation3 + $0x30] sm:$0x1] %vm5240, 0.0
        %5245 = vst.msk [vmem:[#allocation3 + $0x40] sm:$0x1] %vm5240, 0.0
        %5246 = vst.msk [vmem:[#allocation3 + $0x50] sm:$0x1] %vm5240, 0.0
        %5247 = vst.msk [vmem:[#allocation3 + $0x60] sm:$0x1] %vm5240, 0.0
        %5248 = vst.msk [vmem:[#allocation3 + $0x70] sm:$0x1] %vm5240, 0.0
        %5249 = vst.msk [vmem:[#allocation3 + $0x80] sm:$0x1] %vm5240, 0.0
        %5250 = vst.msk [vmem:[#allocation3 + $0x90] sm:$0x1] %vm5240, 0.0
        %5251 = vst.msk [vmem:[#allocation3 + $0x9] sm:$0x1] %vm5240, 0.0
        %5252 = vst.msk [vmem:[#allocation3 + $0x19] sm:$0x1] %vm5240, 0.0
        %5253 = vst.msk [vmem:[#allocation3 + $0x29] sm:$0x1] %vm5240, 0.0
        %5254 = vst.msk [vmem:[#allocation3 + $0x39] sm:$0x1] %vm5240, 0.0
        %5255 = vst.msk [vmem:[#allocation3 + $0x49] sm:$0x1] %vm5240, 0.0
        %5256 = vst.msk [vmem:[#allocation3 + $0x59] sm:$0x1] %vm5240, 0.0
        %5257 = vst.msk [vmem:[#allocation3 + $0x69] sm:$0x1] %vm5240, 0.0
        %5258 = vst.msk [vmem:[#allocation3 + $0x79] sm:$0x1] %vm5240, 0.0
        %5259 = vst.msk [vmem:[#allocation3 + $0x89] sm:$0x1] %vm5240, 0.0
        %5260 = vst.msk [vmem:[#allocation3 + $0x99] sm:$0x1] %vm5240, 0.0
        %s5261 = scalar_lea.vmem [#allocation3], 16
        %5262 = vst.msk [vmem:[%s5261 + $0x1] sm:$0xff] %vm5097, %v5226
        %5263 = vst.msk [vmem:[%s5261 + $0x11] sm:$0xff] %vm5097, %v5227
        %5264 = vst.msk [vmem:[%s5261 + $0x21] sm:$0xff] %vm5097, %v5228
        %5265 = vst.msk [vmem:[%s5261 + $0x31] sm:$0xff] %vm5097, %v5229
        %5266 = vst.msk [vmem:[%s5261 + $0x41] sm:$0xff] %vm5097, %v5230
        %5267 = vst.msk [vmem:[%s5261 + $0x51] sm:$0xff] %vm5097, %v5231
        %5268 = vst.msk [vmem:[%s5261 + $0x61] sm:$0xff] %vm5097, %v5232
        %5269 = vst.msk [vmem:[%s5261 + $0x71] sm:$0xff] %vm5097, %v5233
        %v5270 = vld [vmem:[#allocation3] sm:$0xff]
        %v5271 = vld [vmem:[#allocation3 + $0x10] sm:$0xff]
        %v5272 = vld [vmem:[#allocation3 + $0x20] sm:$0xff]
        %v5273 = vld [vmem:[#allocation3 + $0x30] sm:$0xff]
        %v5274 = vld [vmem:[#allocation3 + $0x40] sm:$0xff]
        %v5275 = vld [vmem:[#allocation3 + $0x50] sm:$0xff]
        %v5276 = vld [vmem:[#allocation3 + $0x60] sm:$0xff]
        %v5277 = vld [vmem:[#allocation3 + $0x70] sm:$0xff]
        %v5278 = vpack.c.bf16 %v5271, %v5270
        %v5279 = vpack.c.bf16 %v5273, %v5272
        %v5280 = vpack.c.bf16 %v5275, %v5274
        %v5281 = vpack.c.bf16 %v5277, %v5276
        %v5282 = vld [vmem:[%s5] sm:$0xf]
        %v5283 = vld [vmem:[%s5 + $0x4] sm:$0xf]
        %v5284 = vld [vmem:[%s5 + $0x8] sm:$0xf]
        %v5285 = vld [vmem:[%s5 + $0xc] sm:$0xf]
        %v5286 = vld [vmem:[%s5 + $0x10] sm:$0xf]
        %v5287 = vld [vmem:[%s5 + $0x14] sm:$0xf]
        %v5288 = vld [vmem:[%s5 + $0x18] sm:$0xf]
        %v5289 = vld [vmem:[%s5 + $0x1c] sm:$0xf]
        %v5290 = vld [vmem:[#allocation3 + $0x1] sm:$0xff]
        %v5291 = vld [vmem:[#allocation3 + $0x11] sm:$0xff]
        %v5292 = vld [vmem:[#allocation3 + $0x21] sm:$0xff]
        %v5293 = vld [vmem:[#allocation3 + $0x31] sm:$0xff]
        %v5294 = vld [vmem:[#allocation3 + $0x41] sm:$0xff]
        %v5295 = vld [vmem:[#allocation3 + $0x51] sm:$0xff]
        %v5296 = vld [vmem:[#allocation3 + $0x61] sm:$0xff]
        %v5297 = vld [vmem:[#allocation3 + $0x71] sm:$0xff]
        %v5298 = vpack.c.bf16 %v5291, %v5290
        %v5299 = vpack.c.bf16 %v5293, %v5292
        %v5300 = vpack.c.bf16 %v5295, %v5294
        %v5301 = vpack.c.bf16 %v5297, %v5296
        %v5302 = vld [vmem:[%s5 + $0x20] sm:$0xf]
        %v5303 = vld [vmem:[%s5 + $0x24] sm:$0xf]
        %v5304 = vld [vmem:[%s5 + $0x28] sm:$0xf]
        %v5305 = vld [vmem:[%s5 + $0x2c] sm:$0xf]
        %v5306 = vld [vmem:[%s5 + $0x30] sm:$0xf]
        %v5307 = vld [vmem:[%s5 + $0x34] sm:$0xf]
        %v5308 = vld [vmem:[%s5 + $0x38] sm:$0xf]
        %v5309 = vld [vmem:[%s5 + $0x3c] sm:$0xf]
        %v5318 = vunpack.c.l.b16 %v5302
        %v5319 = vunpack.c.l.b16 %v5303
        %v5320 = vunpack.c.l.b16 %v5304
        %v5321 = vunpack.c.l.b16 %v5305
        %v5322 = vunpack.c.l.b16 %v5306
        %v5323 = vunpack.c.l.b16 %v5307
        %v5324 = vunpack.c.l.b16 %v5308
        %v5325 = vunpack.c.l.b16 %v5309
        %v5326 = vpack.c.b16 %v5319, %v5318
        %v5327 = vpack.c.b16 %v5321, %v5320
        %v5328 = vpack.c.b16 %v5323, %v5322
        %v5329 = vpack.c.b16 %v5325, %v5324
        %v5335 = vsel %vm5097, %v5298, 0
        %v5338 = vsel %vm5097, %v5299, 0
        %v5341 = vsel %vm5097, %v5300, 0
        %v5344 = vsel %vm5097, %v5301, 0
        %5346 = vmatprep.subr.bf16.mxu0 0
        %5347 = vmatpush1.bf16.msra.mxu0 0
        %5348 = vmatprep.subr.bf16.mxu0 0
        %5349 = vmatpush1.bf16.msra.mxu0 0
        %5350 = vmatprep.subr.bf16.mxu0 0
        %5351 = vmatpush1.bf16.msra.mxu0 0
        %5352 = vmatprep.subr.bf16.mxu0 0
        %5353 = vmatpush1.bf16.msra.mxu0 0
        %5354 = vmatprep.subr.bf16.mxu0 0
        %5355 = vmatpush1.bf16.msra.mxu0 %v5329
        %5356 = vmatprep.subr.bf16.mxu0 0
        %5357 = vmatpush1.bf16.msra.mxu0 %v5328
        %5358 = vmatprep.subr.bf16.mxu0 0
        %5359 = vmatpush1.bf16.msra.mxu0 %v5327
        %5360 = vmatprep.subr.bf16.mxu0 0
        %5361 = vmatpush1.bf16.msra.mxu0 %v5326
        %5362 = vmatprep.subr.bf16.mxu0 0
        %5363 = vmatpush2.bf16.msra.mxu0 0
        %5364 = vmatprep.subr.bf16.mxu0 0
        %5365 = vmatpush2.bf16.msra.mxu0 0
        %5366 = vmatprep.subr.bf16.mxu0 0
        %5367 = vmatpush2.bf16.msra.mxu0 0
        %5368 = vmatprep.subr.bf16.mxu0 0
        %5369 = vmatpush2.bf16.msra.mxu0 0
        %5370 = vmatprep.subr.bf16.mxu0 0
        %5371 = vmatpush2.bf16.msra.mxu0 0
        %5372 = vmatprep.subr.bf16.mxu0 0
        %5373 = vmatpush2.bf16.msra.mxu0 0
        %5374 = vmatprep.subr.bf16.mxu0 0
        %5375 = vmatpush2.bf16.msra.mxu0 0
        %5376 = vmatprep.subr.bf16.mxu0 0
        %5377 = vmatpush2.bf16.msra.mxu0 0
        %5378 = vmatprep.mubr.bf16.mxu0 0
        %5379 = vmatmul.mubr.bf16.gmra.mxu0 %v5335
        %v5380 = vpop.f32.mrf.mxu0
        %v5381 = vadd.f32 0.0, %v5380
        %v5382 = vpop.f32.mrf.mxu0
        %v5383 = vpop.f32.mrf.mxu0
        %v5384 = vadd.f32 0.0, %v5383
        %v5385 = vpop.f32.mrf.mxu0
        %5386 = vmatprep.mubr.bf16.mxu0 0
        %5387 = vmatmul.mubr.bf16.gmra.mxu0 %v5338
        %v5388 = vpop.f32.mrf.mxu0
        %v5389 = vadd.f32 0.0, %v5388
        %v5390 = vpop.f32.mrf.mxu0
        %v5391 = vpop.f32.mrf.mxu0
        %v5392 = vadd.f32 0.0, %v5391
        %v5393 = vpop.f32.mrf.mxu0
        %5394 = vmatprep.mubr.bf16.mxu0 0
        %5395 = vmatmul.mubr.bf16.gmra.mxu0 %v5341
        %v5396 = vpop.f32.mrf.mxu0
        %v5397 = vadd.f32 0.0, %v5396
        %v5398 = vpop.f32.mrf.mxu0
        %v5399 = vpop.f32.mrf.mxu0
        %v5400 = vadd.f32 0.0, %v5399
        %v5401 = vpop.f32.mrf.mxu0
        %5402 = vmatprep.mubr.bf16.mxu0 0
        %5403 = vmatmul.mubr.bf16.gmra.mxu0 %v5344
        %v5404 = vpop.f32.mrf.mxu0
        %v5405 = vadd.f32 0.0, %v5404
        %v5406 = vpop.f32.mrf.mxu0
        %v5407 = vpop.f32.mrf.mxu0
        %v5408 = vadd.f32 0.0, %v5407
        %v5409 = vpop.f32.mrf.mxu0
        %5410 = vdwg.mxu0
        %v5419 = vunpack.c.l.b16 %v5282
        %v5420 = vunpack.c.l.b16 %v5283
        %v5421 = vunpack.c.l.b16 %v5284
        %v5422 = vunpack.c.l.b16 %v5285
        %v5423 = vunpack.c.l.b16 %v5286
        %v5424 = vunpack.c.l.b16 %v5287
        %v5425 = vunpack.c.l.b16 %v5288
        %v5426 = vunpack.c.l.b16 %v5289
        %v5427 = vpack.c.b16 %v5420, %v5419
        %v5428 = vpack.c.b16 %v5422, %v5421
        %v5429 = vpack.c.b16 %v5424, %v5423
        %v5430 = vpack.c.b16 %v5426, %v5425
        %v5436 = vsel %vm5097, %v5278, 0
        %v5439 = vsel %vm5097, %v5279, 0
        %v5442 = vsel %vm5097, %v5280, 0
        %v5445 = vsel %vm5097, %v5281, 0
        %5447 = vmatprep.subr.bf16.mxu0 0
        %5448 = vmatpush1.bf16.msra.mxu0 0
        %5449 = vmatprep.subr.bf16.mxu0 0
        %5450 = vmatpush1.bf16.msra.mxu0 0
        %5451 = vmatprep.subr.bf16.mxu0 0
        %5452 = vmatpush1.bf16.msra.mxu0 0
        %5453 = vmatprep.subr.bf16.mxu0 0
        %5454 = vmatpush1.bf16.msra.mxu0 0
        %5455 = vmatprep.subr.bf16.mxu0 0
        %5456 = vmatpush1.bf16.msra.mxu0 %v5430
        %5457 = vmatprep.subr.bf16.mxu0 0
        %5458 = vmatpush1.bf16.msra.mxu0 %v5429
        %5459 = vmatprep.subr.bf16.mxu0 0
        %5460 = vmatpush1.bf16.msra.mxu0 %v5428
        %5461 = vmatprep.subr.bf16.mxu0 0
        %5462 = vmatpush1.bf16.msra.mxu0 %v5427
        %5463 = vmatprep.subr.bf16.mxu0 0
        %5464 = vmatpush2.bf16.msra.mxu0 0
        %5465 = vmatprep.subr.bf16.mxu0 0
        %5466 = vmatpush2.bf16.msra.mxu0 0
        %5467 = vmatprep.subr.bf16.mxu0 0
        %5468 = vmatpush2.bf16.msra.mxu0 0
        %5469 = vmatprep.subr.bf16.mxu0 0
        %5470 = vmatpush2.bf16.msra.mxu0 0
        %5471 = vmatprep.subr.bf16.mxu0 0
        %5472 = vmatpush2.bf16.msra.mxu0 0
        %5473 = vmatprep.subr.bf16.mxu0 0
        %5474 = vmatpush2.bf16.msra.mxu0 0
        %5475 = vmatprep.subr.bf16.mxu0 0
        %5476 = vmatpush2.bf16.msra.mxu0 0
        %5477 = vmatprep.subr.bf16.mxu0 0
        %5478 = vmatpush2.bf16.msra.mxu0 0
        %5479 = vmatprep.mubr.bf16.mxu0 0
        %5480 = vmatmul.mubr.bf16.gmra.mxu0 %v5436
        %v5481 = vpop.f32.mrf.mxu0
        %v5482 = vadd.f32 %v5381, %v5481
        %v5483 = vpop.f32.mrf.mxu0
        %v5484 = vpop.f32.mrf.mxu0
        %v5485 = vadd.f32 %v5384, %v5484
        %v5486 = vpop.f32.mrf.mxu0
        %5487 = vmatprep.mubr.bf16.mxu0 0
        %5488 = vmatmul.mubr.bf16.gmra.mxu0 %v5439
        %v5489 = vpop.f32.mrf.mxu0
        %v5490 = vadd.f32 %v5389, %v5489
        %v5491 = vpop.f32.mrf.mxu0
        %v5492 = vpop.f32.mrf.mxu0
        %v5493 = vadd.f32 %v5392, %v5492
        %v5494 = vpop.f32.mrf.mxu0
        %5495 = vmatprep.mubr.bf16.mxu0 0
        %5496 = vmatmul.mubr.bf16.gmra.mxu0 %v5442
        %v5497 = vpop.f32.mrf.mxu0
        %v5498 = vadd.f32 %v5397, %v5497
        %v5499 = vpop.f32.mrf.mxu0
        %v5500 = vpop.f32.mrf.mxu0
        %v5501 = vadd.f32 %v5400, %v5500
        %v5502 = vpop.f32.mrf.mxu0
        %5503 = vmatprep.mubr.bf16.mxu0 0
        %5504 = vmatmul.mubr.bf16.gmra.mxu0 %v5445
        %v5505 = vpop.f32.mrf.mxu0
        %v5506 = vadd.f32 %v5405, %v5505
        %v5507 = vpop.f32.mrf.mxu0
        %v5508 = vpop.f32.mrf.mxu0
        %v5509 = vadd.f32 %v5408, %v5508
        %v5510 = vpop.f32.mrf.mxu0
        %5511 = vdwg.mxu0
        %v5512 = vld [vmem:[#allocation3 + $0x2] sm:$0xff]
        %v5513 = vld [vmem:[#allocation3 + $0x12] sm:$0xff]
        %v5514 = vld [vmem:[#allocation3 + $0x22] sm:$0xff]
        %v5515 = vld [vmem:[#allocation3 + $0x32] sm:$0xff]
        %v5516 = vld [vmem:[#allocation3 + $0x42] sm:$0xff]
        %v5517 = vld [vmem:[#allocation3 + $0x52] sm:$0xff]
        %v5518 = vld [vmem:[#allocation3 + $0x62] sm:$0xff]
        %v5519 = vld [vmem:[#allocation3 + $0x72] sm:$0xff]
        %v5520 = vpack.c.bf16 %v5513, %v5512
        %v5521 = vpack.c.bf16 %v5515, %v5514
        %v5522 = vpack.c.bf16 %v5517, %v5516
        %v5523 = vpack.c.bf16 %v5519, %v5518
        %v5524 = vld [vmem:[%s5 + $0x40] sm:$0xf]
        %v5525 = vld [vmem:[%s5 + $0x44] sm:$0xf]
        %v5526 = vld [vmem:[%s5 + $0x48] sm:$0xf]
        %v5527 = vld [vmem:[%s5 + $0x4c] sm:$0xf]
        %v5528 = vld [vmem:[%s5 + $0x50] sm:$0xf]
        %v5529 = vld [vmem:[%s5 + $0x54] sm:$0xf]
        %v5530 = vld [vmem:[%s5 + $0x58] sm:$0xf]
        %v5531 = vld [vmem:[%s5 + $0x5c] sm:$0xf]
        %v5540 = vunpack.c.l.b16 %v5524
        %v5541 = vunpack.c.l.b16 %v5525
        %v5542 = vunpack.c.l.b16 %v5526
        %v5543 = vunpack.c.l.b16 %v5527
        %v5544 = vunpack.c.l.b16 %v5528
        %v5545 = vunpack.c.l.b16 %v5529
        %v5546 = vunpack.c.l.b16 %v5530
        %v5547 = vunpack.c.l.b16 %v5531
        %v5548 = vpack.c.b16 %v5541, %v5540
        %v5549 = vpack.c.b16 %v5543, %v5542
        %v5550 = vpack.c.b16 %v5545, %v5544
        %v5551 = vpack.c.b16 %v5547, %v5546
        %v5557 = vsel %vm5097, %v5520, 0
        %v5560 = vsel %vm5097, %v5521, 0
        %v5563 = vsel %vm5097, %v5522, 0
        %v5566 = vsel %vm5097, %v5523, 0
        %5568 = vmatprep.subr.bf16.mxu0 0
        %5569 = vmatpush1.bf16.msra.mxu0 0
        %5570 = vmatprep.subr.bf16.mxu0 0
        %5571 = vmatpush1.bf16.msra.mxu0 0
        %5572 = vmatprep.subr.bf16.mxu0 0
        %5573 = vmatpush1.bf16.msra.mxu0 0
        %5574 = vmatprep.subr.bf16.mxu0 0
        %5575 = vmatpush1.bf16.msra.mxu0 0
        %5576 = vmatprep.subr.bf16.mxu0 0
        %5577 = vmatpush1.bf16.msra.mxu0 %v5551
        %5578 = vmatprep.subr.bf16.mxu0 0
        %5579 = vmatpush1.bf16.msra.mxu0 %v5550
        %5580 = vmatprep.subr.bf16.mxu0 0
        %5581 = vmatpush1.bf16.msra.mxu0 %v5549
        %5582 = vmatprep.subr.bf16.mxu0 0
        %5583 = vmatpush1.bf16.msra.mxu0 %v5548
        %5584 = vmatprep.subr.bf16.mxu0 0
        %5585 = vmatpush2.bf16.msra.mxu0 0
        %5586 = vmatprep.subr.bf16.mxu0 0
        %5587 = vmatpush2.bf16.msra.mxu0 0
        %5588 = vmatprep.subr.bf16.mxu0 0
        %5589 = vmatpush2.bf16.msra.mxu0 0
        %5590 = vmatprep.subr.bf16.mxu0 0
        %5591 = vmatpush2.bf16.msra.mxu0 0
        %5592 = vmatprep.subr.bf16.mxu0 0
        %5593 = vmatpush2.bf16.msra.mxu0 0
        %5594 = vmatprep.subr.bf16.mxu0 0
        %5595 = vmatpush2.bf16.msra.mxu0 0
        %5596 = vmatprep.subr.bf16.mxu0 0
        %5597 = vmatpush2.bf16.msra.mxu0 0
        %5598 = vmatprep.subr.bf16.mxu0 0
        %5599 = vmatpush2.bf16.msra.mxu0 0
        %5600 = vmatprep.mubr.bf16.mxu0 0
        %5601 = vmatmul.mubr.bf16.gmra.mxu0 %v5557
        %v5602 = vpop.f32.mrf.mxu0
        %v5603 = vadd.f32 0.0, %v5602
        %v5604 = vpop.f32.mrf.mxu0
        %v5605 = vpop.f32.mrf.mxu0
        %v5606 = vadd.f32 0.0, %v5605
        %v5607 = vpop.f32.mrf.mxu0
        %5608 = vmatprep.mubr.bf16.mxu0 0
        %5609 = vmatmul.mubr.bf16.gmra.mxu0 %v5560
        %v5610 = vpop.f32.mrf.mxu0
        %v5611 = vadd.f32 0.0, %v5610
        %v5612 = vpop.f32.mrf.mxu0
        %v5613 = vpop.f32.mrf.mxu0
        %v5614 = vadd.f32 0.0, %v5613
        %v5615 = vpop.f32.mrf.mxu0
        %5616 = vmatprep.mubr.bf16.mxu0 0
        %5617 = vmatmul.mubr.bf16.gmra.mxu0 %v5563
        %v5618 = vpop.f32.mrf.mxu0
        %v5619 = vadd.f32 0.0, %v5618
        %v5620 = vpop.f32.mrf.mxu0
        %v5621 = vpop.f32.mrf.mxu0
        %v5622 = vadd.f32 0.0, %v5621
        %v5623 = vpop.f32.mrf.mxu0
        %5624 = vmatprep.mubr.bf16.mxu0 0
        %5625 = vmatmul.mubr.bf16.gmra.mxu0 %v5566
        %v5626 = vpop.f32.mrf.mxu0
        %v5627 = vadd.f32 0.0, %v5626
        %v5628 = vpop.f32.mrf.mxu0
        %v5629 = vpop.f32.mrf.mxu0
        %v5630 = vadd.f32 0.0, %v5629
        %v5631 = vpop.f32.mrf.mxu0
        %5632 = vdwg.mxu0
        %v5633 = vadd.f32 %v5482, %v5603
        %v5634 = vadd.f32 %v5485, %v5606
        %v5635 = vadd.f32 %v5490, %v5611
        %v5636 = vadd.f32 %v5493, %v5614
        %v5637 = vadd.f32 %v5498, %v5619
        %v5638 = vadd.f32 %v5501, %v5622
        %v5639 = vadd.f32 %v5506, %v5627
        %v5640 = vadd.f32 %v5509, %v5630
        %v5641 = vld [vmem:[%s5261] sm:$0xff]
        %v5642 = vld [vmem:[%s5261 + $0x10] sm:$0xff]
        %v5643 = vld [vmem:[%s5261 + $0x20] sm:$0xff]
        %v5644 = vld [vmem:[%s5261 + $0x30] sm:$0xff]
        %v5645 = vld [vmem:[%s5261 + $0x40] sm:$0xff]
        %v5646 = vld [vmem:[%s5261 + $0x50] sm:$0xff]
        %v5647 = vld [vmem:[%s5261 + $0x60] sm:$0xff]
        %v5648 = vld [vmem:[%s5261 + $0x70] sm:$0xff]
        %v5649 = vpack.c.bf16 %v5642, %v5641
        %v5650 = vpack.c.bf16 %v5644, %v5643
        %v5651 = vpack.c.bf16 %v5646, %v5645
        %v5652 = vpack.c.bf16 %v5648, %v5647
        %v5653 = vld [vmem:[%s5 + $0x60] sm:$0xf]
        %v5654 = vld [vmem:[%s5 + $0x64] sm:$0xf]
        %v5655 = vld [vmem:[%s5 + $0x68] sm:$0xf]
        %v5656 = vld [vmem:[%s5 + $0x6c] sm:$0xf]
        %v5657 = vld [vmem:[%s5 + $0x70] sm:$0xf]
        %v5658 = vld [vmem:[%s5 + $0x74] sm:$0xf]
        %v5659 = vld [vmem:[%s5 + $0x78] sm:$0xf]
        %v5660 = vld [vmem:[%s5 + $0x7c] sm:$0xf]
        %v5669 = vunpack.c.l.b16 %v5653
        %v5670 = vunpack.c.l.b16 %v5654
        %v5671 = vunpack.c.l.b16 %v5655
        %v5672 = vunpack.c.l.b16 %v5656
        %v5673 = vunpack.c.l.b16 %v5657
        %v5674 = vunpack.c.l.b16 %v5658
        %v5675 = vunpack.c.l.b16 %v5659
        %v5676 = vunpack.c.l.b16 %v5660
        %v5677 = vpack.c.b16 %v5670, %v5669
        %v5678 = vpack.c.b16 %v5672, %v5671
        %v5679 = vpack.c.b16 %v5674, %v5673
        %v5680 = vpack.c.b16 %v5676, %v5675
        %v5686 = vsel %vm5097, %v5649, 0
        %v5689 = vsel %vm5097, %v5650, 0
        %v5692 = vsel %vm5097, %v5651, 0
        %v5695 = vsel %vm5097, %v5652, 0
        %5697 = vmatprep.subr.bf16.mxu0 0
        %5698 = vmatpush1.bf16.msra.mxu0 0
        %5699 = vmatprep.subr.bf16.mxu0 0
        %5700 = vmatpush1.bf16.msra.mxu0 0
        %5701 = vmatprep.subr.bf16.mxu0 0
        %5702 = vmatpush1.bf16.msra.mxu0 0
        %5703 = vmatprep.subr.bf16.mxu0 0
        %5704 = vmatpush1.bf16.msra.mxu0 0
        %5705 = vmatprep.subr.bf16.mxu0 0
        %5706 = vmatpush1.bf16.msra.mxu0 %v5680
        %5707 = vmatprep.subr.bf16.mxu0 0
        %5708 = vmatpush1.bf16.msra.mxu0 %v5679
        %5709 = vmatprep.subr.bf16.mxu0 0
        %5710 = vmatpush1.bf16.msra.mxu0 %v5678
        %5711 = vmatprep.subr.bf16.mxu0 0
        %5712 = vmatpush1.bf16.msra.mxu0 %v5677
        %5713 = vmatprep.subr.bf16.mxu0 0
        %5714 = vmatpush2.bf16.msra.mxu0 0
        %5715 = vmatprep.subr.bf16.mxu0 0
        %5716 = vmatpush2.bf16.msra.mxu0 0
        %5717 = vmatprep.subr.bf16.mxu0 0
        %5718 = vmatpush2.bf16.msra.mxu0 0
        %5719 = vmatprep.subr.bf16.mxu0 0
        %5720 = vmatpush2.bf16.msra.mxu0 0
        %5721 = vmatprep.subr.bf16.mxu0 0
        %5722 = vmatpush2.bf16.msra.mxu0 0
        %5723 = vmatprep.subr.bf16.mxu0 0
        %5724 = vmatpush2.bf16.msra.mxu0 0
        %5725 = vmatprep.subr.bf16.mxu0 0
        %5726 = vmatpush2.bf16.msra.mxu0 0
        %5727 = vmatprep.subr.bf16.mxu0 0
        %5728 = vmatpush2.bf16.msra.mxu0 0
        %5729 = vmatprep.mubr.bf16.mxu0 0
        %5730 = vmatmul.mubr.bf16.gmra.mxu0 %v5686
        %v5731 = vpop.f32.mrf.mxu0
        %v5732 = vadd.f32 0.0, %v5731
        %v5733 = vpop.f32.mrf.mxu0
        %v5734 = vpop.f32.mrf.mxu0
        %v5735 = vadd.f32 0.0, %v5734
        %v5736 = vpop.f32.mrf.mxu0
        %5737 = vmatprep.mubr.bf16.mxu0 0
        %5738 = vmatmul.mubr.bf16.gmra.mxu0 %v5689
        %v5739 = vpop.f32.mrf.mxu0
        %v5740 = vadd.f32 0.0, %v5739
        %v5741 = vpop.f32.mrf.mxu0
        %v5742 = vpop.f32.mrf.mxu0
        %v5743 = vadd.f32 0.0, %v5742
        %v5744 = vpop.f32.mrf.mxu0
        %5745 = vmatprep.mubr.bf16.mxu0 0
        %5746 = vmatmul.mubr.bf16.gmra.mxu0 %v5692
        %v5747 = vpop.f32.mrf.mxu0
        %v5748 = vadd.f32 0.0, %v5747
        %v5749 = vpop.f32.mrf.mxu0
        %v5750 = vpop.f32.mrf.mxu0
        %v5751 = vadd.f32 0.0, %v5750
        %v5752 = vpop.f32.mrf.mxu0
        %5753 = vmatprep.mubr.bf16.mxu0 0
        %5754 = vmatmul.mubr.bf16.gmra.mxu0 %v5695
        %v5755 = vpop.f32.mrf.mxu0
        %v5756 = vadd.f32 0.0, %v5755
        %v5757 = vpop.f32.mrf.mxu0
        %v5758 = vpop.f32.mrf.mxu0
        %v5759 = vadd.f32 0.0, %v5758
        %v5760 = vpop.f32.mrf.mxu0
        %5761 = vdwg.mxu0
        %v5762 = vadd.f32 %v5633, %v5732
        %v5763 = vadd.f32 %v5634, %v5735
        %v5764 = vadd.f32 %v5635, %v5740
        %v5765 = vadd.f32 %v5636, %v5743
        %v5766 = vadd.f32 %v5637, %v5748
        %v5767 = vadd.f32 %v5638, %v5751
        %v5768 = vadd.f32 %v5639, %v5756
        %v5769 = vadd.f32 %v5640, %v5759
        %v5770 = vld [vmem:[%s5261 + $0x1] sm:$0xff]
        %v5771 = vld [vmem:[%s5261 + $0x11] sm:$0xff]
        %v5772 = vld [vmem:[%s5261 + $0x21] sm:$0xff]
        %v5773 = vld [vmem:[%s5261 + $0x31] sm:$0xff]
        %v5774 = vld [vmem:[%s5261 + $0x41] sm:$0xff]
        %v5775 = vld [vmem:[%s5261 + $0x51] sm:$0xff]
        %v5776 = vld [vmem:[%s5261 + $0x61] sm:$0xff]
        %v5777 = vld [vmem:[%s5261 + $0x71] sm:$0xff]
        %v5778 = vpack.c.bf16 %v5771, %v5770
        %v5779 = vpack.c.bf16 %v5773, %v5772
        %v5780 = vpack.c.bf16 %v5775, %v5774
        %v5781 = vpack.c.bf16 %v5777, %v5776
        %v5782 = vld [vmem:[%s5 + $0x80] sm:$0xf]
        %v5783 = vld [vmem:[%s5 + $0x84] sm:$0xf]
        %v5784 = vld [vmem:[%s5 + $0x88] sm:$0xf]
        %v5785 = vld [vmem:[%s5 + $0x8c] sm:$0xf]
        %v5786 = vld [vmem:[%s5 + $0x90] sm:$0xf]
        %v5787 = vld [vmem:[%s5 + $0x94] sm:$0xf]
        %v5788 = vld [vmem:[%s5 + $0x98] sm:$0xf]
        %v5789 = vld [vmem:[%s5 + $0x9c] sm:$0xf]
        %v5798 = vunpack.c.l.b16 %v5782
        %v5799 = vunpack.c.l.b16 %v5783
        %v5800 = vunpack.c.l.b16 %v5784
        %v5801 = vunpack.c.l.b16 %v5785
        %v5802 = vunpack.c.l.b16 %v5786
        %v5803 = vunpack.c.l.b16 %v5787
        %v5804 = vunpack.c.l.b16 %v5788
        %v5805 = vunpack.c.l.b16 %v5789
        %v5806 = vpack.c.b16 %v5799, %v5798
        %v5807 = vpack.c.b16 %v5801, %v5800
        %v5808 = vpack.c.b16 %v5803, %v5802
        %v5809 = vpack.c.b16 %v5805, %v5804
        %v5815 = vsel %vm5097, %v5778, 0
        %v5818 = vsel %vm5097, %v5779, 0
        %v5821 = vsel %vm5097, %v5780, 0
        %v5824 = vsel %vm5097, %v5781, 0
        %5826 = vmatprep.subr.bf16.mxu0 0
        %5827 = vmatpush1.bf16.msra.mxu0 0
        %5828 = vmatprep.subr.bf16.mxu0 0
        %5829 = vmatpush1.bf16.msra.mxu0 0
        %5830 = vmatprep.subr.bf16.mxu0 0
        %5831 = vmatpush1.bf16.msra.mxu0 0
        %5832 = vmatprep.subr.bf16.mxu0 0
        %5833 = vmatpush1.bf16.msra.mxu0 0
        %5834 = vmatprep.subr.bf16.mxu0 0
        %5835 = vmatpush1.bf16.msra.mxu0 %v5809
        %5836 = vmatprep.subr.bf16.mxu0 0
        %5837 = vmatpush1.bf16.msra.mxu0 %v5808
        %5838 = vmatprep.subr.bf16.mxu0 0
        %5839 = vmatpush1.bf16.msra.mxu0 %v5807
        %5840 = vmatprep.subr.bf16.mxu0 0
        %5841 = vmatpush1.bf16.msra.mxu0 %v5806
        %5842 = vmatprep.subr.bf16.mxu0 0
        %5843 = vmatpush2.bf16.msra.mxu0 0
        %5844 = vmatprep.subr.bf16.mxu0 0
        %5845 = vmatpush2.bf16.msra.mxu0 0
        %5846 = vmatprep.subr.bf16.mxu0 0
        %5847 = vmatpush2.bf16.msra.mxu0 0
        %5848 = vmatprep.subr.bf16.mxu0 0
        %5849 = vmatpush2.bf16.msra.mxu0 0
        %5850 = vmatprep.subr.bf16.mxu0 0
        %5851 = vmatpush2.bf16.msra.mxu0 0
        %5852 = vmatprep.subr.bf16.mxu0 0
        %5853 = vmatpush2.bf16.msra.mxu0 0
        %5854 = vmatprep.subr.bf16.mxu0 0
        %5855 = vmatpush2.bf16.msra.mxu0 0
        %5856 = vmatprep.subr.bf16.mxu0 0
        %5857 = vmatpush2.bf16.msra.mxu0 0
        %5858 = vmatprep.mubr.bf16.mxu0 0
        %5859 = vmatmul.mubr.bf16.gmra.mxu0 %v5815
        %v5860 = vpop.f32.mrf.mxu0
        %v5861 = vadd.f32 0.0, %v5860
        %v5862 = vpop.f32.mrf.mxu0
        %v5863 = vpop.f32.mrf.mxu0
        %v5864 = vadd.f32 0.0, %v5863
        %v5865 = vpop.f32.mrf.mxu0
        %5866 = vmatprep.mubr.bf16.mxu0 0
        %5867 = vmatmul.mubr.bf16.gmra.mxu0 %v5818
        %v5868 = vpop.f32.mrf.mxu0
        %v5869 = vadd.f32 0.0, %v5868
        %v5870 = vpop.f32.mrf.mxu0
        %v5871 = vpop.f32.mrf.mxu0
        %v5872 = vadd.f32 0.0, %v5871
        %v5873 = vpop.f32.mrf.mxu0
        %5874 = vmatprep.mubr.bf16.mxu0 0
        %5875 = vmatmul.mubr.bf16.gmra.mxu0 %v5821
        %v5876 = vpop.f32.mrf.mxu0
        %v5877 = vadd.f32 0.0, %v5876
        %v5878 = vpop.f32.mrf.mxu0
        %v5879 = vpop.f32.mrf.mxu0
        %v5880 = vadd.f32 0.0, %v5879
        %v5881 = vpop.f32.mrf.mxu0
        %5882 = vmatprep.mubr.bf16.mxu0 0
        %5883 = vmatmul.mubr.bf16.gmra.mxu0 %v5824
        %v5884 = vpop.f32.mrf.mxu0
        %v5885 = vadd.f32 0.0, %v5884
        %v5886 = vpop.f32.mrf.mxu0
        %v5887 = vpop.f32.mrf.mxu0
        %v5888 = vadd.f32 0.0, %v5887
        %v5889 = vpop.f32.mrf.mxu0
        %5890 = vdwg.mxu0
        %v5891 = vadd.f32 %v5762, %v5861
        %v5892 = vadd.f32 %v5763, %v5864
        %v5893 = vadd.f32 %v5764, %v5869
        %v5894 = vadd.f32 %v5765, %v5872
        %v5895 = vadd.f32 %v5766, %v5877
        %v5896 = vadd.f32 %v5767, %v5880
        %v5897 = vadd.f32 %v5768, %v5885
        %v5898 = vadd.f32 %v5769, %v5888
        %v5899 = vld [vmem:[%s5261 + $0x2] sm:$0xff]
        %v5900 = vld [vmem:[%s5261 + $0x12] sm:$0xff]
        %v5901 = vld [vmem:[%s5261 + $0x22] sm:$0xff]
        %v5902 = vld [vmem:[%s5261 + $0x32] sm:$0xff]
        %v5903 = vld [vmem:[%s5261 + $0x42] sm:$0xff]
        %v5904 = vld [vmem:[%s5261 + $0x52] sm:$0xff]
        %v5905 = vld [vmem:[%s5261 + $0x62] sm:$0xff]
        %v5906 = vld [vmem:[%s5261 + $0x72] sm:$0xff]
        %v5907 = vpack.c.bf16 %v5900, %v5899
        %v5908 = vpack.c.bf16 %v5902, %v5901
        %v5909 = vpack.c.bf16 %v5904, %v5903
        %v5910 = vpack.c.bf16 %v5906, %v5905
        %v5911 = vld [vmem:[%s5 + $0xa0] sm:$0xf]
        %v5912 = vld [vmem:[%s5 + $0xa4] sm:$0xf]
        %v5913 = vld [vmem:[%s5 + $0xa8] sm:$0xf]
        %v5914 = vld [vmem:[%s5 + $0xac] sm:$0xf]
        %v5915 = vld [vmem:[%s5 + $0xb0] sm:$0xf]
        %v5916 = vld [vmem:[%s5 + $0xb4] sm:$0xf]
        %v5917 = vld [vmem:[%s5 + $0xb8] sm:$0xf]
        %v5918 = vld [vmem:[%s5 + $0xbc] sm:$0xf]
        %v5927 = vunpack.c.l.b16 %v5911
        %v5928 = vunpack.c.l.b16 %v5912
        %v5929 = vunpack.c.l.b16 %v5913
        %v5930 = vunpack.c.l.b16 %v5914
        %v5931 = vunpack.c.l.b16 %v5915
        %v5932 = vunpack.c.l.b16 %v5916
        %v5933 = vunpack.c.l.b16 %v5917
        %v5934 = vunpack.c.l.b16 %v5918
        %v5935 = vpack.c.b16 %v5928, %v5927
        %v5936 = vpack.c.b16 %v5930, %v5929
        %v5937 = vpack.c.b16 %v5932, %v5931
        %v5938 = vpack.c.b16 %v5934, %v5933
        %v5944 = vsel %vm5097, %v5907, 0
        %v5947 = vsel %vm5097, %v5908, 0
        %v5950 = vsel %vm5097, %v5909, 0
        %v5953 = vsel %vm5097, %v5910, 0
        %5955 = vmatprep.subr.bf16.mxu0 0
        %5956 = vmatpush1.bf16.msra.mxu0 0
        %5957 = vmatprep.subr.bf16.mxu0 0
        %5958 = vmatpush1.bf16.msra.mxu0 0
        %5959 = vmatprep.subr.bf16.mxu0 0
        %5960 = vmatpush1.bf16.msra.mxu0 0
        %5961 = vmatprep.subr.bf16.mxu0 0
        %5962 = vmatpush1.bf16.msra.mxu0 0
        %5963 = vmatprep.subr.bf16.mxu0 0
        %5964 = vmatpush1.bf16.msra.mxu0 %v5938
        %5965 = vmatprep.subr.bf16.mxu0 0
        %5966 = vmatpush1.bf16.msra.mxu0 %v5937
        %5967 = vmatprep.subr.bf16.mxu0 0
        %5968 = vmatpush1.bf16.msra.mxu0 %v5936
        %5969 = vmatprep.subr.bf16.mxu0 0
        %5970 = vmatpush1.bf16.msra.mxu0 %v5935
        %5971 = vmatprep.subr.bf16.mxu0 0
        %5972 = vmatpush2.bf16.msra.mxu0 0
        %5973 = vmatprep.subr.bf16.mxu0 0
        %5974 = vmatpush2.bf16.msra.mxu0 0
        %5975 = vmatprep.subr.bf16.mxu0 0
        %5976 = vmatpush2.bf16.msra.mxu0 0
        %5977 = vmatprep.subr.bf16.mxu0 0
        %5978 = vmatpush2.bf16.msra.mxu0 0
        %5979 = vmatprep.subr.bf16.mxu0 0
        %5980 = vmatpush2.bf16.msra.mxu0 0
        %5981 = vmatprep.subr.bf16.mxu0 0
        %5982 = vmatpush2.bf16.msra.mxu0 0
        %5983 = vmatprep.subr.bf16.mxu0 0
        %5984 = vmatpush2.bf16.msra.mxu0 0
        %5985 = vmatprep.subr.bf16.mxu0 0
        %5986 = vmatpush2.bf16.msra.mxu0 0
        %5987 = vmatprep.mubr.bf16.mxu0 0
        %5988 = vmatmul.mubr.bf16.gmra.mxu0 %v5944
        %v5989 = vpop.f32.mrf.mxu0
        %v5990 = vadd.f32 0.0, %v5989
        %v5991 = vpop.f32.mrf.mxu0
        %v5992 = vpop.f32.mrf.mxu0
        %v5993 = vadd.f32 0.0, %v5992
        %v5994 = vpop.f32.mrf.mxu0
        %5995 = vmatprep.mubr.bf16.mxu0 0
        %5996 = vmatmul.mubr.bf16.gmra.mxu0 %v5947
        %v5997 = vpop.f32.mrf.mxu0
        %v5998 = vadd.f32 0.0, %v5997
        %v5999 = vpop.f32.mrf.mxu0
        %v6000 = vpop.f32.mrf.mxu0
        %v6001 = vadd.f32 0.0, %v6000
        %v6002 = vpop.f32.mrf.mxu0
        %6003 = vmatprep.mubr.bf16.mxu0 0
        %6004 = vmatmul.mubr.bf16.gmra.mxu0 %v5950
        %v6005 = vpop.f32.mrf.mxu0
        %v6006 = vadd.f32 0.0, %v6005
        %v6007 = vpop.f32.mrf.mxu0
        %v6008 = vpop.f32.mrf.mxu0
        %v6009 = vadd.f32 0.0, %v6008
        %v6010 = vpop.f32.mrf.mxu0
        %6011 = vmatprep.mubr.bf16.mxu0 0
        %6012 = vmatmul.mubr.bf16.gmra.mxu0 %v5953
        %v6013 = vpop.f32.mrf.mxu0
        %v6014 = vadd.f32 0.0, %v6013
        %v6015 = vpop.f32.mrf.mxu0
        %v6016 = vpop.f32.mrf.mxu0
        %v6017 = vadd.f32 0.0, %v6016
        %v6018 = vpop.f32.mrf.mxu0
        %6019 = vdwg.mxu0
        %v6020 = vadd.f32 %v5891, %v5990
        %v6021 = vadd.f32 %v5892, %v5993
        %v6022 = vadd.f32 %v5893, %v5998
        %v6023 = vadd.f32 %v5894, %v6001
        %v6024 = vadd.f32 %v5895, %v6006
        %v6025 = vadd.f32 %v5896, %v6009
        %v6026 = vadd.f32 %v5897, %v6014
        %v6027 = vadd.f32 %v5898, %v6017
        %s6028 = scalar_lea.vmem [#allocation3], 32
        %v6029 = vld [vmem:[%s6028] sm:$0xff]
        %v6030 = vld [vmem:[%s6028 + $0x10] sm:$0xff]
        %v6031 = vld [vmem:[%s6028 + $0x20] sm:$0xff]
        %v6032 = vld [vmem:[%s6028 + $0x30] sm:$0xff]
        %v6033 = vld [vmem:[%s6028 + $0x40] sm:$0xff]
        %v6034 = vld [vmem:[%s6028 + $0x50] sm:$0xff]
        %v6035 = vld [vmem:[%s6028 + $0x60] sm:$0xff]
        %v6036 = vld [vmem:[%s6028 + $0x70] sm:$0xff]
        %v6037 = vpack.c.bf16 %v6030, %v6029
        %v6038 = vpack.c.bf16 %v6032, %v6031
        %v6039 = vpack.c.bf16 %v6034, %v6033
        %v6040 = vpack.c.bf16 %v6036, %v6035
        %v6041 = vld [vmem:[%s5 + $0xc0] sm:$0xf]
        %v6042 = vld [vmem:[%s5 + $0xc4] sm:$0xf]
        %v6043 = vld [vmem:[%s5 + $0xc8] sm:$0xf]
        %v6044 = vld [vmem:[%s5 + $0xcc] sm:$0xf]
        %v6045 = vld [vmem:[%s5 + $0xd0] sm:$0xf]
        %v6046 = vld [vmem:[%s5 + $0xd4] sm:$0xf]
        %v6047 = vld [vmem:[%s5 + $0xd8] sm:$0xf]
        %v6048 = vld [vmem:[%s5 + $0xdc] sm:$0xf]
        %v6057 = vunpack.c.l.b16 %v6041
        %v6058 = vunpack.c.l.b16 %v6042
        %v6059 = vunpack.c.l.b16 %v6043
        %v6060 = vunpack.c.l.b16 %v6044
        %v6061 = vunpack.c.l.b16 %v6045
        %v6062 = vunpack.c.l.b16 %v6046
        %v6063 = vunpack.c.l.b16 %v6047
        %v6064 = vunpack.c.l.b16 %v6048
        %v6065 = vpack.c.b16 %v6058, %v6057
        %v6066 = vpack.c.b16 %v6060, %v6059
        %v6067 = vpack.c.b16 %v6062, %v6061
        %v6068 = vpack.c.b16 %v6064, %v6063
        %v6074 = vsel %vm5097, %v6037, 0
        %v6077 = vsel %vm5097, %v6038, 0
        %v6080 = vsel %vm5097, %v6039, 0
        %v6083 = vsel %vm5097, %v6040, 0
        %6085 = vmatprep.subr.bf16.mxu0 0
        %6086 = vmatpush1.bf16.msra.mxu0 0
        %6087 = vmatprep.subr.bf16.mxu0 0
        %6088 = vmatpush1.bf16.msra.mxu0 0
        %6089 = vmatprep.subr.bf16.mxu0 0
        %6090 = vmatpush1.bf16.msra.mxu0 0
        %6091 = vmatprep.subr.bf16.mxu0 0
        %6092 = vmatpush1.bf16.msra.mxu0 0
        %6093 = vmatprep.subr.bf16.mxu0 0
        %6094 = vmatpush1.bf16.msra.mxu0 %v6068
        %6095 = vmatprep.subr.bf16.mxu0 0
        %6096 = vmatpush1.bf16.msra.mxu0 %v6067
        %6097 = vmatprep.subr.bf16.mxu0 0
        %6098 = vmatpush1.bf16.msra.mxu0 %v6066
        %6099 = vmatprep.subr.bf16.mxu0 0
        %6100 = vmatpush1.bf16.msra.mxu0 %v6065
        %6101 = vmatprep.subr.bf16.mxu0 0
        %6102 = vmatpush2.bf16.msra.mxu0 0
        %6103 = vmatprep.subr.bf16.mxu0 0
        %6104 = vmatpush2.bf16.msra.mxu0 0
        %6105 = vmatprep.subr.bf16.mxu0 0
        %6106 = vmatpush2.bf16.msra.mxu0 0
        %6107 = vmatprep.subr.bf16.mxu0 0
        %6108 = vmatpush2.bf16.msra.mxu0 0
        %6109 = vmatprep.subr.bf16.mxu0 0
        %6110 = vmatpush2.bf16.msra.mxu0 0
        %6111 = vmatprep.subr.bf16.mxu0 0
        %6112 = vmatpush2.bf16.msra.mxu0 0
        %6113 = vmatprep.subr.bf16.mxu0 0
        %6114 = vmatpush2.bf16.msra.mxu0 0
        %6115 = vmatprep.subr.bf16.mxu0 0
        %6116 = vmatpush2.bf16.msra.mxu0 0
        %6117 = vmatprep.mubr.bf16.mxu0 0
        %6118 = vmatmul.mubr.bf16.gmra.mxu0 %v6074
        %v6119 = vpop.f32.mrf.mxu0
        %v6120 = vadd.f32 0.0, %v6119
        %v6121 = vpop.f32.mrf.mxu0
        %v6122 = vpop.f32.mrf.mxu0
        %v6123 = vadd.f32 0.0, %v6122
        %v6124 = vpop.f32.mrf.mxu0
        %6125 = vmatprep.mubr.bf16.mxu0 0
        %6126 = vmatmul.mubr.bf16.gmra.mxu0 %v6077
        %v6127 = vpop.f32.mrf.mxu0
        %v6128 = vadd.f32 0.0, %v6127
        %v6129 = vpop.f32.mrf.mxu0
        %v6130 = vpop.f32.mrf.mxu0
        %v6131 = vadd.f32 0.0, %v6130
        %v6132 = vpop.f32.mrf.mxu0
        %6133 = vmatprep.mubr.bf16.mxu0 0
        %6134 = vmatmul.mubr.bf16.gmra.mxu0 %v6080
        %v6135 = vpop.f32.mrf.mxu0
        %v6136 = vadd.f32 0.0, %v6135
        %v6137 = vpop.f32.mrf.mxu0
        %v6138 = vpop.f32.mrf.mxu0
        %v6139 = vadd.f32 0.0, %v6138
        %v6140 = vpop.f32.mrf.mxu0
        %6141 = vmatprep.mubr.bf16.mxu0 0
        %6142 = vmatmul.mubr.bf16.gmra.mxu0 %v6083
        %v6143 = vpop.f32.mrf.mxu0
        %v6144 = vadd.f32 0.0, %v6143
        %v6145 = vpop.f32.mrf.mxu0
        %v6146 = vpop.f32.mrf.mxu0
        %v6147 = vadd.f32 0.0, %v6146
        %v6148 = vpop.f32.mrf.mxu0
        %6149 = vdwg.mxu0
        %v6150 = vadd.f32 %v6020, %v6120
        %v6151 = vadd.f32 %v6021, %v6123
        %v6152 = vadd.f32 %v6022, %v6128
        %v6153 = vadd.f32 %v6023, %v6131
        %v6154 = vadd.f32 %v6024, %v6136
        %v6155 = vadd.f32 %v6025, %v6139
        %v6156 = vadd.f32 %v6026, %v6144
        %v6157 = vadd.f32 %v6027, %v6147
        %v6158 = vld [vmem:[%s6028 + $0x1] sm:$0xff]
        %v6159 = vld [vmem:[%s6028 + $0x11] sm:$0xff]
        %v6160 = vld [vmem:[%s6028 + $0x21] sm:$0xff]
        %v6161 = vld [vmem:[%s6028 + $0x31] sm:$0xff]
        %v6162 = vld [vmem:[%s6028 + $0x41] sm:$0xff]
        %v6163 = vld [vmem:[%s6028 + $0x51] sm:$0xff]
        %v6164 = vld [vmem:[%s6028 + $0x61] sm:$0xff]
        %v6165 = vld [vmem:[%s6028 + $0x71] sm:$0xff]
        %v6166 = vpack.c.bf16 %v6159, %v6158
        %v6167 = vpack.c.bf16 %v6161, %v6160
        %v6168 = vpack.c.bf16 %v6163, %v6162
        %v6169 = vpack.c.bf16 %v6165, %v6164
        %v6170 = vld [vmem:[%s5 + $0xe0] sm:$0xf]
        %v6171 = vld [vmem:[%s5 + $0xe4] sm:$0xf]
        %v6172 = vld [vmem:[%s5 + $0xe8] sm:$0xf]
        %v6173 = vld [vmem:[%s5 + $0xec] sm:$0xf]
        %v6174 = vld [vmem:[%s5 + $0xf0] sm:$0xf]
        %v6175 = vld [vmem:[%s5 + $0xf4] sm:$0xf]
        %v6176 = vld [vmem:[%s5 + $0xf8] sm:$0xf]
        %v6177 = vld [vmem:[%s5 + $0xfc] sm:$0xf]
        %v6186 = vunpack.c.l.b16 %v6170
        %v6187 = vunpack.c.l.b16 %v6171
        %v6188 = vunpack.c.l.b16 %v6172
        %v6189 = vunpack.c.l.b16 %v6173
        %v6190 = vunpack.c.l.b16 %v6174
        %v6191 = vunpack.c.l.b16 %v6175
        %v6192 = vunpack.c.l.b16 %v6176
        %v6193 = vunpack.c.l.b16 %v6177
        %v6194 = vpack.c.b16 %v6187, %v6186
        %v6195 = vpack.c.b16 %v6189, %v6188
        %v6196 = vpack.c.b16 %v6191, %v6190
        %v6197 = vpack.c.b16 %v6193, %v6192
        %v6203 = vsel %vm5097, %v6166, 0
        %v6206 = vsel %vm5097, %v6167, 0
        %v6209 = vsel %vm5097, %v6168, 0
        %v6212 = vsel %vm5097, %v6169, 0
        %6214 = vmatprep.subr.bf16.mxu0 0
        %6215 = vmatpush1.bf16.msra.mxu0 0
        %6216 = vmatprep.subr.bf16.mxu0 0
        %6217 = vmatpush1.bf16.msra.mxu0 0
        %6218 = vmatprep.subr.bf16.mxu0 0
        %6219 = vmatpush1.bf16.msra.mxu0 0
        %6220 = vmatprep.subr.bf16.mxu0 0
        %6221 = vmatpush1.bf16.msra.mxu0 0
        %6222 = vmatprep.subr.bf16.mxu0 0
        %6223 = vmatpush1.bf16.msra.mxu0 %v6197
        %6224 = vmatprep.subr.bf16.mxu0 0
        %6225 = vmatpush1.bf16.msra.mxu0 %v6196
        %6226 = vmatprep.subr.bf16.mxu0 0
        %6227 = vmatpush1.bf16.msra.mxu0 %v6195
        %6228 = vmatprep.subr.bf16.mxu0 0
        %6229 = vmatpush1.bf16.msra.mxu0 %v6194
        %6230 = vmatprep.subr.bf16.mxu0 0
        %6231 = vmatpush2.bf16.msra.mxu0 0
        %6232 = vmatprep.subr.bf16.mxu0 0
        %6233 = vmatpush2.bf16.msra.mxu0 0
        %6234 = vmatprep.subr.bf16.mxu0 0
        %6235 = vmatpush2.bf16.msra.mxu0 0
        %6236 = vmatprep.subr.bf16.mxu0 0
        %6237 = vmatpush2.bf16.msra.mxu0 0
        %6238 = vmatprep.subr.bf16.mxu0 0
        %6239 = vmatpush2.bf16.msra.mxu0 0
        %6240 = vmatprep.subr.bf16.mxu0 0
        %6241 = vmatpush2.bf16.msra.mxu0 0
        %6242 = vmatprep.subr.bf16.mxu0 0
        %6243 = vmatpush2.bf16.msra.mxu0 0
        %6244 = vmatprep.subr.bf16.mxu0 0
        %6245 = vmatpush2.bf16.msra.mxu0 0
        %6246 = vmatprep.mubr.bf16.mxu0 0
        %6247 = vmatmul.mubr.bf16.gmra.mxu0 %v6203
        %v6248 = vpop.f32.mrf.mxu0
        %v6249 = vadd.f32 0.0, %v6248
        %v6250 = vpop.f32.mrf.mxu0
        %v6251 = vpop.f32.mrf.mxu0
        %v6252 = vadd.f32 0.0, %v6251
        %v6253 = vpop.f32.mrf.mxu0
        %6254 = vmatprep.mubr.bf16.mxu0 0
        %6255 = vmatmul.mubr.bf16.gmra.mxu0 %v6206
        %v6256 = vpop.f32.mrf.mxu0
        %v6257 = vadd.f32 0.0, %v6256
        %v6258 = vpop.f32.mrf.mxu0
        %v6259 = vpop.f32.mrf.mxu0
        %v6260 = vadd.f32 0.0, %v6259
        %v6261 = vpop.f32.mrf.mxu0
        %6262 = vmatprep.mubr.bf16.mxu0 0
        %6263 = vmatmul.mubr.bf16.gmra.mxu0 %v6209
        %v6264 = vpop.f32.mrf.mxu0
        %v6265 = vadd.f32 0.0, %v6264
        %v6266 = vpop.f32.mrf.mxu0
        %v6267 = vpop.f32.mrf.mxu0
        %v6268 = vadd.f32 0.0, %v6267
        %v6269 = vpop.f32.mrf.mxu0
        %6270 = vmatprep.mubr.bf16.mxu0 0
        %6271 = vmatmul.mubr.bf16.gmra.mxu0 %v6212
        %v6272 = vpop.f32.mrf.mxu0
        %v6273 = vadd.f32 0.0, %v6272
        %v6274 = vpop.f32.mrf.mxu0
        %v6275 = vpop.f32.mrf.mxu0
        %v6276 = vadd.f32 0.0, %v6275
        %v6277 = vpop.f32.mrf.mxu0
        %6278 = vdwg.mxu0
        %v6279 = vadd.f32 %v6150, %v6249
        %v6280 = vadd.f32 %v6151, %v6252
        %v6281 = vadd.f32 %v6152, %v6257
        %v6282 = vadd.f32 %v6153, %v6260
        %v6283 = vadd.f32 %v6154, %v6265
        %v6284 = vadd.f32 %v6155, %v6268
        %v6285 = vadd.f32 %v6156, %v6273
        %v6286 = vadd.f32 %v6157, %v6276
        %v6287 = vld [vmem:[%s6028 + $0x2] sm:$0xff]
        %v6288 = vld [vmem:[%s6028 + $0x12] sm:$0xff]
        %v6289 = vld [vmem:[%s6028 + $0x22] sm:$0xff]
        %v6290 = vld [vmem:[%s6028 + $0x32] sm:$0xff]
        %v6291 = vld [vmem:[%s6028 + $0x42] sm:$0xff]
        %v6292 = vld [vmem:[%s6028 + $0x52] sm:$0xff]
        %v6293 = vld [vmem:[%s6028 + $0x62] sm:$0xff]
        %v6294 = vld [vmem:[%s6028 + $0x72] sm:$0xff]
        %v6295 = vpack.c.bf16 %v6288, %v6287
        %v6296 = vpack.c.bf16 %v6290, %v6289
        %v6297 = vpack.c.bf16 %v6292, %v6291
        %v6298 = vpack.c.bf16 %v6294, %v6293
        %v6299 = vld [vmem:[%s5 + $0x100] sm:$0xf]
        %v6300 = vld [vmem:[%s5 + $0x104] sm:$0xf]
        %v6301 = vld [vmem:[%s5 + $0x108] sm:$0xf]
        %v6302 = vld [vmem:[%s5 + $0x10c] sm:$0xf]
        %v6303 = vld [vmem:[%s5 + $0x110] sm:$0xf]
        %v6304 = vld [vmem:[%s5 + $0x114] sm:$0xf]
        %v6305 = vld [vmem:[%s5 + $0x118] sm:$0xf]
        %v6306 = vld [vmem:[%s5 + $0x11c] sm:$0xf]
        %v6315 = vunpack.c.l.b16 %v6299
        %v6316 = vunpack.c.l.b16 %v6300
        %v6317 = vunpack.c.l.b16 %v6301
        %v6318 = vunpack.c.l.b16 %v6302
        %v6319 = vunpack.c.l.b16 %v6303
        %v6320 = vunpack.c.l.b16 %v6304
        %v6321 = vunpack.c.l.b16 %v6305
        %v6322 = vunpack.c.l.b16 %v6306
        %v6323 = vpack.c.b16 %v6316, %v6315
        %v6324 = vpack.c.b16 %v6318, %v6317
        %v6325 = vpack.c.b16 %v6320, %v6319
        %v6326 = vpack.c.b16 %v6322, %v6321
        %v6332 = vsel %vm5097, %v6295, 0
        %v6335 = vsel %vm5097, %v6296, 0
        %v6338 = vsel %vm5097, %v6297, 0
        %v6341 = vsel %vm5097, %v6298, 0
        %6343 = vmatprep.subr.bf16.mxu0 0
        %6344 = vmatpush1.bf16.msra.mxu0 0
        %6345 = vmatprep.subr.bf16.mxu0 0
        %6346 = vmatpush1.bf16.msra.mxu0 0
        %6347 = vmatprep.subr.bf16.mxu0 0
        %6348 = vmatpush1.bf16.msra.mxu0 0
        %6349 = vmatprep.subr.bf16.mxu0 0
        %6350 = vmatpush1.bf16.msra.mxu0 0
        %6351 = vmatprep.subr.bf16.mxu0 0
        %6352 = vmatpush1.bf16.msra.mxu0 %v6326
        %6353 = vmatprep.subr.bf16.mxu0 0
        %6354 = vmatpush1.bf16.msra.mxu0 %v6325
        %6355 = vmatprep.subr.bf16.mxu0 0
        %6356 = vmatpush1.bf16.msra.mxu0 %v6324
        %6357 = vmatprep.subr.bf16.mxu0 0
        %6358 = vmatpush1.bf16.msra.mxu0 %v6323
        %6359 = vmatprep.subr.bf16.mxu0 0
        %6360 = vmatpush2.bf16.msra.mxu0 0
        %6361 = vmatprep.subr.bf16.mxu0 0
        %6362 = vmatpush2.bf16.msra.mxu0 0
        %6363 = vmatprep.subr.bf16.mxu0 0
        %6364 = vmatpush2.bf16.msra.mxu0 0
        %6365 = vmatprep.subr.bf16.mxu0 0
        %6366 = vmatpush2.bf16.msra.mxu0 0
        %6367 = vmatprep.subr.bf16.mxu0 0
        %6368 = vmatpush2.bf16.msra.mxu0 0
        %6369 = vmatprep.subr.bf16.mxu0 0
        %6370 = vmatpush2.bf16.msra.mxu0 0
        %6371 = vmatprep.subr.bf16.mxu0 0
        %6372 = vmatpush2.bf16.msra.mxu0 0
        %6373 = vmatprep.subr.bf16.mxu0 0
        %6374 = vmatpush2.bf16.msra.mxu0 0
        %6375 = vmatprep.mubr.bf16.mxu0 0
        %6376 = vmatmul.mubr.bf16.gmra.mxu0 %v6332
        %v6377 = vpop.f32.mrf.mxu0
        %v6378 = vadd.f32 0.0, %v6377
        %v6379 = vpop.f32.mrf.mxu0
        %v6380 = vpop.f32.mrf.mxu0
        %v6381 = vadd.f32 0.0, %v6380
        %v6382 = vpop.f32.mrf.mxu0
        %6383 = vmatprep.mubr.bf16.mxu0 0
        %6384 = vmatmul.mubr.bf16.gmra.mxu0 %v6335
        %v6385 = vpop.f32.mrf.mxu0
        %v6386 = vadd.f32 0.0, %v6385
        %v6387 = vpop.f32.mrf.mxu0
        %v6388 = vpop.f32.mrf.mxu0
        %v6389 = vadd.f32 0.0, %v6388
        %v6390 = vpop.f32.mrf.mxu0
        %6391 = vmatprep.mubr.bf16.mxu0 0
        %6392 = vmatmul.mubr.bf16.gmra.mxu0 %v6338
        %v6393 = vpop.f32.mrf.mxu0
        %v6394 = vadd.f32 0.0, %v6393
        %v6395 = vpop.f32.mrf.mxu0
        %v6396 = vpop.f32.mrf.mxu0
        %v6397 = vadd.f32 0.0, %v6396
        %v6398 = vpop.f32.mrf.mxu0
        %6399 = vmatprep.mubr.bf16.mxu0 0
        %6400 = vmatmul.mubr.bf16.gmra.mxu0 %v6341
        %v6401 = vpop.f32.mrf.mxu0
        %v6402 = vadd.f32 0.0, %v6401
        %v6403 = vpop.f32.mrf.mxu0
        %v6404 = vpop.f32.mrf.mxu0
        %v6405 = vadd.f32 0.0, %v6404
        %v6406 = vpop.f32.mrf.mxu0
        %6407 = vdwg.mxu0
        %v6408 = vadd.f32 %v6279, %v6378
        %v6409 = vadd.f32 %v6280, %v6381
        %v6410 = vadd.f32 %v6281, %v6386
        %v6411 = vadd.f32 %v6282, %v6389
        %v6412 = vadd.f32 %v6283, %v6394
        %v6413 = vadd.f32 %v6284, %v6397
        %v6414 = vadd.f32 %v6285, %v6402
        %v6415 = vadd.f32 %v6286, %v6405
        %v6416 = vld [vmem:[%s6] sm:$0x1]
        %v6418 = vlaneseq
        %v6419 = vshrl.u32 %v6418, 7
        %v6420 = vsub.s32 0, %v6419
        %v6421 = vrot.slane %v6416, %v6420
        %v6423 = vadd.f32 %v6408, %v6421
        %v6424 = vadd.f32 %v6409, %v6421
        %v6425 = vadd.f32 %v6410, %v6421
        %v6426 = vadd.f32 %v6411, %v6421
        %v6427 = vadd.f32 %v6412, %v6421
        %v6428 = vadd.f32 %v6413, %v6421
        %v6429 = vadd.f32 %v6414, %v6421
        %v6430 = vadd.f32 %v6415, %v6421
        %v6431 = vmax.f32 %v6423, 0.0
        %v6432 = vmax.f32 %v6424, 0.0
        %v6433 = vmax.f32 %v6425, 0.0
        %v6434 = vmax.f32 %v6426, 0.0
        %v6435 = vmax.f32 %v6427, 0.0
        %v6436 = vmax.f32 %v6428, 0.0
        %v6437 = vmax.f32 %v6429, 0.0
        %v6438 = vmax.f32 %v6430, 0.0
        %6439 = vst.msk [vmem:[#allocation6] sm:$0xff] %vm5097, %v6431
        %6440 = vst.msk [vmem:[#allocation6 + $0x8] sm:$0xff] %vm5097, %v6432
        %6441 = vst.msk [vmem:[#allocation6 + $0x10] sm:$0xff] %vm5097, %v6433
        %6442 = vst.msk [vmem:[#allocation6 + $0x18] sm:$0xff] %vm5097, %v6434
        %6443 = vst.msk [vmem:[#allocation6 + $0x20] sm:$0xff] %vm5097, %v6435
        %6444 = vst.msk [vmem:[#allocation6 + $0x28] sm:$0xff] %vm5097, %v6436
        %6445 = vst.msk [vmem:[#allocation6 + $0x30] sm:$0xff] %vm5097, %v6437
        %6446 = vst.msk [vmem:[#allocation6 + $0x38] sm:$0xff] %vm5097, %v6438
        %v6447 = vld [vmem:[#allocation6] sm:$0xff]
        %v6448 = vld [vmem:[#allocation6 + $0x10] sm:$0xff]
        %v6449 = vld [vmem:[#allocation6 + $0x20] sm:$0xff]
        %v6450 = vld [vmem:[#allocation6 + $0x30] sm:$0xff]
        %s6451 = scalar_lea.vmem [#allocation6], 8
        %v6452 = vld [vmem:[%s6451] sm:$0xff]
        %v6453 = vld [vmem:[%s6451 + $0x10] sm:$0xff]
        %v6454 = vld [vmem:[%s6451 + $0x20] sm:$0xff]
        %v6455 = vld [vmem:[%s6451 + $0x30] sm:$0xff]
        %v6456 = vmax.f32 %v6447, %v6452
        %v6457 = vmax.f32 %v6448, %v6453
        %v6458 = vmax.f32 %v6449, %v6454
        %v6459 = vmax.f32 %v6450, %v6455
        %6460 = vst.msk [vmem:[#allocation9] sm:$0xff] %vm5097, %v6456
        %6461 = vst.msk [vmem:[#allocation9 + $0x8] sm:$0xff] %vm5097, %v6457
        %6462 = vst.msk [vmem:[#allocation9 + $0x10] sm:$0xff] %vm5097, %v6458
        %6463 = vst.msk [vmem:[#allocation9 + $0x18] sm:$0xff] %vm5097, %v6459
        %v6464 = vld [vmem:[#allocation9] ss:$2 sm:$0xff]
        %s6465 = scalar_lea.vmem [#allocation9], 16
        %v6466 = vld [vmem:[%s6465] ss:$2 sm:$0xff]
        %s6467 = scalar_lea.vmem [#allocation9], 1
        %v6468 = vld [vmem:[%s6467] ss:$2 sm:$0xff]
        %s6469 = scalar_lea.vmem [#allocation9], 17
        %v6470 = vld [vmem:[%s6469] ss:$2 sm:$0xff]
        %v6471 = vmax.f32 %v6464, %v6468
        %v6472 = vmax.f32 %v6466, %v6470
        %v6473 = vpack.c.bf16 %v6472, %v6471
        %v6474 = vld [vmem:[%s7] sm:$0xf]
        %v6475 = vld [vmem:[%s7 + $0x4] sm:$0xf]
        %v6476 = vld [vmem:[%s7 + $0x8] sm:$0xf]
        %v6477 = vld [vmem:[%s7 + $0xc] sm:$0xf]
        %v6478 = vld [vmem:[%s7 + $0x10] sm:$0xf]
        %v6479 = vld [vmem:[%s7 + $0x14] sm:$0xf]
        %v6480 = vld [vmem:[%s7 + $0x18] sm:$0xf]
        %v6481 = vld [vmem:[%s7 + $0x1c] sm:$0xf]
        %v6482 = vld [vmem:[%s7 + $0x20] sm:$0xf]
        %v6483 = vld [vmem:[%s7 + $0x24] sm:$0xf]
        %v6484 = vld [vmem:[%s7 + $0x28] sm:$0xf]
        %v6485 = vld [vmem:[%s7 + $0x2c] sm:$0xf]
        %v6486 = vld [vmem:[%s7 + $0x30] sm:$0xf]
        %v6487 = vld [vmem:[%s7 + $0x34] sm:$0xf]
        %v6488 = vld [vmem:[%s7 + $0x38] sm:$0xf]
        %v6489 = vld [vmem:[%s7 + $0x3c] sm:$0xf]
        %v6491 = vshrl.u32 %v6473, 16
        %v6501 = vunpack.c.l.b16 %v6482
        %v6502 = vunpack.c.l.b16 %v6483
        %v6503 = vunpack.c.l.b16 %v6484
        %v6504 = vunpack.c.l.b16 %v6485
        %v6505 = vunpack.c.l.b16 %v6486
        %v6506 = vunpack.c.l.b16 %v6487
        %v6507 = vunpack.c.l.b16 %v6488
        %v6508 = vunpack.c.l.b16 %v6489
        %v6509 = vpack.c.b16 %v6502, %v6501
        %v6510 = vpack.c.b16 %v6504, %v6503
        %v6511 = vpack.c.b16 %v6506, %v6505
        %v6512 = vpack.c.b16 %v6508, %v6507
        %v6518 = vsel %vm5097, %v6491, 0
        %6520 = vmatprep.subr.bf16.mxu0 0
        %6521 = vmatpush1.bf16.msra.mxu0 0
        %6522 = vmatprep.subr.bf16.mxu0 0
        %6523 = vmatpush1.bf16.msra.mxu0 0
        %6524 = vmatprep.subr.bf16.mxu0 0
        %6525 = vmatpush1.bf16.msra.mxu0 0
        %6526 = vmatprep.subr.bf16.mxu0 0
        %6527 = vmatpush1.bf16.msra.mxu0 0
        %6528 = vmatprep.subr.bf16.mxu0 0
        %6529 = vmatpush1.bf16.msra.mxu0 %v6512
        %6530 = vmatprep.subr.bf16.mxu0 0
        %6531 = vmatpush1.bf16.msra.mxu0 %v6511
        %6532 = vmatprep.subr.bf16.mxu0 0
        %6533 = vmatpush1.bf16.msra.mxu0 %v6510
        %6534 = vmatprep.subr.bf16.mxu0 0
        %6535 = vmatpush1.bf16.msra.mxu0 %v6509
        %6536 = vmatprep.subr.bf16.mxu0 0
        %6537 = vmatpush2.bf16.msra.mxu0 0
        %6538 = vmatprep.subr.bf16.mxu0 0
        %6539 = vmatpush2.bf16.msra.mxu0 0
        %6540 = vmatprep.subr.bf16.mxu0 0
        %6541 = vmatpush2.bf16.msra.mxu0 0
        %6542 = vmatprep.subr.bf16.mxu0 0
        %6543 = vmatpush2.bf16.msra.mxu0 0
        %6544 = vmatprep.subr.bf16.mxu0 0
        %6545 = vmatpush2.bf16.msra.mxu0 0
        %6546 = vmatprep.subr.bf16.mxu0 0
        %6547 = vmatpush2.bf16.msra.mxu0 0
        %6548 = vmatprep.subr.bf16.mxu0 0
        %6549 = vmatpush2.bf16.msra.mxu0 0
        %6550 = vmatprep.subr.bf16.mxu0 0
        %6551 = vmatpush2.bf16.msra.mxu0 0
        %6552 = vmatprep.mubr.bf16.mxu0 0
        %6553 = vmatmul.mubr.bf16.gmra.mxu0 %v6518
        %v6554 = vpop.f32.mrf.mxu0
        %v6555 = vadd.f32 0.0, %v6554
        %v6556 = vpop.f32.mrf.mxu0
        %v6557 = vpop.f32.mrf.mxu0
        %v6558 = vpop.f32.mrf.mxu0
        %6559 = vdwg.mxu0
        %v6568 = vunpack.c.l.b16 %v6474
        %v6569 = vunpack.c.l.b16 %v6475
        %v6570 = vunpack.c.l.b16 %v6476
        %v6571 = vunpack.c.l.b16 %v6477
        %v6572 = vunpack.c.l.b16 %v6478
        %v6573 = vunpack.c.l.b16 %v6479
        %v6574 = vunpack.c.l.b16 %v6480
        %v6575 = vunpack.c.l.b16 %v6481
        %v6576 = vpack.c.b16 %v6569, %v6568
        %v6577 = vpack.c.b16 %v6571, %v6570
        %v6578 = vpack.c.b16 %v6573, %v6572
        %v6579 = vpack.c.b16 %v6575, %v6574
        %v6584 = vsel %vm5097, %v6473, 0
        %6586 = vmatprep.subr.bf16.mxu0 0
        %6587 = vmatpush1.bf16.msra.mxu0 0
        %6588 = vmatprep.subr.bf16.mxu0 0
        %6589 = vmatpush1.bf16.msra.mxu0 0
        %6590 = vmatprep.subr.bf16.mxu0 0
        %6591 = vmatpush1.bf16.msra.mxu0 0
        %6592 = vmatprep.subr.bf16.mxu0 0
        %6593 = vmatpush1.bf16.msra.mxu0 0
        %6594 = vmatprep.subr.bf16.mxu0 0
        %6595 = vmatpush1.bf16.msra.mxu0 %v6579
        %6596 = vmatprep.subr.bf16.mxu0 0
        %6597 = vmatpush1.bf16.msra.mxu0 %v6578
        %6598 = vmatprep.subr.bf16.mxu0 0
        %6599 = vmatpush1.bf16.msra.mxu0 %v6577
        %6600 = vmatprep.subr.bf16.mxu0 0
        %6601 = vmatpush1.bf16.msra.mxu0 %v6576
        %6602 = vmatprep.subr.bf16.mxu0 0
        %6603 = vmatpush2.bf16.msra.mxu0 0
        %6604 = vmatprep.subr.bf16.mxu0 0
        %6605 = vmatpush2.bf16.msra.mxu0 0
        %6606 = vmatprep.subr.bf16.mxu0 0
        %6607 = vmatpush2.bf16.msra.mxu0 0
        %6608 = vmatprep.subr.bf16.mxu0 0
        %6609 = vmatpush2.bf16.msra.mxu0 0
        %6610 = vmatprep.subr.bf16.mxu0 0
        %6611 = vmatpush2.bf16.msra.mxu0 0
        %6612 = vmatprep.subr.bf16.mxu0 0
        %6613 = vmatpush2.bf16.msra.mxu0 0
        %6614 = vmatprep.subr.bf16.mxu0 0
        %6615 = vmatpush2.bf16.msra.mxu0 0
        %6616 = vmatprep.subr.bf16.mxu0 0
        %6617 = vmatpush2.bf16.msra.mxu0 0
        %6618 = vmatprep.mubr.bf16.mxu0 0
        %6619 = vmatmul.mubr.bf16.gmra.mxu0 %v6584
        %v6620 = vpop.f32.mrf.mxu0
        %v6621 = vadd.f32 %v6555, %v6620
        %v6622 = vpop.f32.mrf.mxu0
        %v6623 = vpop.f32.mrf.mxu0
        %v6624 = vpop.f32.mrf.mxu0
        %6625 = vdwg.mxu0
        %v6626 = vld [vmem:[%s7 + $0x40] sm:$0xf]
        %v6627 = vld [vmem:[%s7 + $0x44] sm:$0xf]
        %v6628 = vld [vmem:[%s7 + $0x48] sm:$0xf]
        %v6629 = vld [vmem:[%s7 + $0x4c] sm:$0xf]
        %v6630 = vld [vmem:[%s7 + $0x50] sm:$0xf]
        %v6631 = vld [vmem:[%s7 + $0x54] sm:$0xf]
        %v6632 = vld [vmem:[%s7 + $0x58] sm:$0xf]
        %v6633 = vld [vmem:[%s7 + $0x5c] sm:$0xf]
        %v6635 = vrot.slane %v6473, 1
        %v6644 = vunpack.c.l.b16 %v6626
        %v6645 = vunpack.c.l.b16 %v6627
        %v6646 = vunpack.c.l.b16 %v6628
        %v6647 = vunpack.c.l.b16 %v6629
        %v6648 = vunpack.c.l.b16 %v6630
        %v6649 = vunpack.c.l.b16 %v6631
        %v6650 = vunpack.c.l.b16 %v6632
        %v6651 = vunpack.c.l.b16 %v6633
        %v6652 = vpack.c.b16 %v6645, %v6644
        %v6653 = vpack.c.b16 %v6647, %v6646
        %v6654 = vpack.c.b16 %v6649, %v6648
        %v6655 = vpack.c.b16 %v6651, %v6650
        %v6661 = vsel %vm5097, %v6635, 0
        %6663 = vmatprep.subr.bf16.mxu0 0
        %6664 = vmatpush1.bf16.msra.mxu0 0
        %6665 = vmatprep.subr.bf16.mxu0 0
        %6666 = vmatpush1.bf16.msra.mxu0 0
        %6667 = vmatprep.subr.bf16.mxu0 0
        %6668 = vmatpush1.bf16.msra.mxu0 0
        %6669 = vmatprep.subr.bf16.mxu0 0
        %6670 = vmatpush1.bf16.msra.mxu0 0
        %6671 = vmatprep.subr.bf16.mxu0 0
        %6672 = vmatpush1.bf16.msra.mxu0 %v6655
        %6673 = vmatprep.subr.bf16.mxu0 0
        %6674 = vmatpush1.bf16.msra.mxu0 %v6654
        %6675 = vmatprep.subr.bf16.mxu0 0
        %6676 = vmatpush1.bf16.msra.mxu0 %v6653
        %6677 = vmatprep.subr.bf16.mxu0 0
        %6678 = vmatpush1.bf16.msra.mxu0 %v6652
        %6679 = vmatprep.subr.bf16.mxu0 0
        %6680 = vmatpush2.bf16.msra.mxu0 0
        %6681 = vmatprep.subr.bf16.mxu0 0
        %6682 = vmatpush2.bf16.msra.mxu0 0
        %6683 = vmatprep.subr.bf16.mxu0 0
        %6684 = vmatpush2.bf16.msra.mxu0 0
        %6685 = vmatprep.subr.bf16.mxu0 0
        %6686 = vmatpush2.bf16.msra.mxu0 0
        %6687 = vmatprep.subr.bf16.mxu0 0
        %6688 = vmatpush2.bf16.msra.mxu0 0
        %6689 = vmatprep.subr.bf16.mxu0 0
        %6690 = vmatpush2.bf16.msra.mxu0 0
        %6691 = vmatprep.subr.bf16.mxu0 0
        %6692 = vmatpush2.bf16.msra.mxu0 0
        %6693 = vmatprep.subr.bf16.mxu0 0
        %6694 = vmatpush2.bf16.msra.mxu0 0
        %6695 = vmatprep.mubr.bf16.mxu0 0
        %6696 = vmatmul.mubr.bf16.gmra.mxu0 %v6661
        %v6697 = vpop.f32.mrf.mxu0
        %v6698 = vadd.f32 0.0, %v6697
        %v6699 = vpop.f32.mrf.mxu0
        %v6700 = vpop.f32.mrf.mxu0
        %v6701 = vpop.f32.mrf.mxu0
        %6702 = vdwg.mxu0
        %v6703 = vadd.f32 %v6621, %v6698
        %v6704 = vld [vmem:[%s7 + $0x60] sm:$0xf]
        %v6705 = vld [vmem:[%s7 + $0x64] sm:$0xf]
        %v6706 = vld [vmem:[%s7 + $0x68] sm:$0xf]
        %v6707 = vld [vmem:[%s7 + $0x6c] sm:$0xf]
        %v6708 = vld [vmem:[%s7 + $0x70] sm:$0xf]
        %v6709 = vld [vmem:[%s7 + $0x74] sm:$0xf]
        %v6710 = vld [vmem:[%s7 + $0x78] sm:$0xf]
        %v6711 = vld [vmem:[%s7 + $0x7c] sm:$0xf]
        %v6712 = vrot.slane %v6491, 1
        %v6721 = vunpack.c.l.b16 %v6704
        %v6722 = vunpack.c.l.b16 %v6705
        %v6723 = vunpack.c.l.b16 %v6706
        %v6724 = vunpack.c.l.b16 %v6707
        %v6725 = vunpack.c.l.b16 %v6708
        %v6726 = vunpack.c.l.b16 %v6709
        %v6727 = vunpack.c.l.b16 %v6710
        %v6728 = vunpack.c.l.b16 %v6711
        %v6729 = vpack.c.b16 %v6722, %v6721
        %v6730 = vpack.c.b16 %v6724, %v6723
        %v6731 = vpack.c.b16 %v6726, %v6725
        %v6732 = vpack.c.b16 %v6728, %v6727
        %v6738 = vsel %vm5097, %v6712, 0
        %6740 = vmatprep.subr.bf16.mxu0 0
        %6741 = vmatpush1.bf16.msra.mxu0 0
        %6742 = vmatprep.subr.bf16.mxu0 0
        %6743 = vmatpush1.bf16.msra.mxu0 0
        %6744 = vmatprep.subr.bf16.mxu0 0
        %6745 = vmatpush1.bf16.msra.mxu0 0
        %6746 = vmatprep.subr.bf16.mxu0 0
        %6747 = vmatpush1.bf16.msra.mxu0 0
        %6748 = vmatprep.subr.bf16.mxu0 0
        %6749 = vmatpush1.bf16.msra.mxu0 %v6732
        %6750 = vmatprep.subr.bf16.mxu0 0
        %6751 = vmatpush1.bf16.msra.mxu0 %v6731
        %6752 = vmatprep.subr.bf16.mxu0 0
        %6753 = vmatpush1.bf16.msra.mxu0 %v6730
        %6754 = vmatprep.subr.bf16.mxu0 0
        %6755 = vmatpush1.bf16.msra.mxu0 %v6729
        %6756 = vmatprep.subr.bf16.mxu0 0
        %6757 = vmatpush2.bf16.msra.mxu0 0
        %6758 = vmatprep.subr.bf16.mxu0 0
        %6759 = vmatpush2.bf16.msra.mxu0 0
        %6760 = vmatprep.subr.bf16.mxu0 0
        %6761 = vmatpush2.bf16.msra.mxu0 0
        %6762 = vmatprep.subr.bf16.mxu0 0
        %6763 = vmatpush2.bf16.msra.mxu0 0
        %6764 = vmatprep.subr.bf16.mxu0 0
        %6765 = vmatpush2.bf16.msra.mxu0 0
        %6766 = vmatprep.subr.bf16.mxu0 0
        %6767 = vmatpush2.bf16.msra.mxu0 0
        %6768 = vmatprep.subr.bf16.mxu0 0
        %6769 = vmatpush2.bf16.msra.mxu0 0
        %6770 = vmatprep.subr.bf16.mxu0 0
        %6771 = vmatpush2.bf16.msra.mxu0 0
        %6772 = vmatprep.mubr.bf16.mxu0 0
        %6773 = vmatmul.mubr.bf16.gmra.mxu0 %v6738
        %v6774 = vpop.f32.mrf.mxu0
        %v6775 = vadd.f32 0.0, %v6774
        %v6776 = vpop.f32.mrf.mxu0
        %v6777 = vpop.f32.mrf.mxu0
        %v6778 = vpop.f32.mrf.mxu0
        %6779 = vdwg.mxu0
        %v6780 = vadd.f32 %v6703, %v6775
        %v6781 = vld [vmem:[%s7 + $0x80] sm:$0xf]
        %v6782 = vld [vmem:[%s7 + $0x84] sm:$0xf]
        %v6783 = vld [vmem:[%s7 + $0x88] sm:$0xf]
        %v6784 = vld [vmem:[%s7 + $0x8c] sm:$0xf]
        %v6785 = vld [vmem:[%s7 + $0x90] sm:$0xf]
        %v6786 = vld [vmem:[%s7 + $0x94] sm:$0xf]
        %v6787 = vld [vmem:[%s7 + $0x98] sm:$0xf]
        %v6788 = vld [vmem:[%s7 + $0x9c] sm:$0xf]
        %v6789 = vrot.slane %v6473, 2
        %v6798 = vunpack.c.l.b16 %v6781
        %v6799 = vunpack.c.l.b16 %v6782
        %v6800 = vunpack.c.l.b16 %v6783
        %v6801 = vunpack.c.l.b16 %v6784
        %v6802 = vunpack.c.l.b16 %v6785
        %v6803 = vunpack.c.l.b16 %v6786
        %v6804 = vunpack.c.l.b16 %v6787
        %v6805 = vunpack.c.l.b16 %v6788
        %v6806 = vpack.c.b16 %v6799, %v6798
        %v6807 = vpack.c.b16 %v6801, %v6800
        %v6808 = vpack.c.b16 %v6803, %v6802
        %v6809 = vpack.c.b16 %v6805, %v6804
        %v6815 = vsel %vm5097, %v6789, 0
        %6817 = vmatprep.subr.bf16.mxu0 0
        %6818 = vmatpush1.bf16.msra.mxu0 0
        %6819 = vmatprep.subr.bf16.mxu0 0
        %6820 = vmatpush1.bf16.msra.mxu0 0
        %6821 = vmatprep.subr.bf16.mxu0 0
        %6822 = vmatpush1.bf16.msra.mxu0 0
        %6823 = vmatprep.subr.bf16.mxu0 0
        %6824 = vmatpush1.bf16.msra.mxu0 0
        %6825 = vmatprep.subr.bf16.mxu0 0
        %6826 = vmatpush1.bf16.msra.mxu0 %v6809
        %6827 = vmatprep.subr.bf16.mxu0 0
        %6828 = vmatpush1.bf16.msra.mxu0 %v6808
        %6829 = vmatprep.subr.bf16.mxu0 0
        %6830 = vmatpush1.bf16.msra.mxu0 %v6807
        %6831 = vmatprep.subr.bf16.mxu0 0
        %6832 = vmatpush1.bf16.msra.mxu0 %v6806
        %6833 = vmatprep.subr.bf16.mxu0 0
        %6834 = vmatpush2.bf16.msra.mxu0 0
        %6835 = vmatprep.subr.bf16.mxu0 0
        %6836 = vmatpush2.bf16.msra.mxu0 0
        %6837 = vmatprep.subr.bf16.mxu0 0
        %6838 = vmatpush2.bf16.msra.mxu0 0
        %6839 = vmatprep.subr.bf16.mxu0 0
        %6840 = vmatpush2.bf16.msra.mxu0 0
        %6841 = vmatprep.subr.bf16.mxu0 0
        %6842 = vmatpush2.bf16.msra.mxu0 0
        %6843 = vmatprep.subr.bf16.mxu0 0
        %6844 = vmatpush2.bf16.msra.mxu0 0
        %6845 = vmatprep.subr.bf16.mxu0 0
        %6846 = vmatpush2.bf16.msra.mxu0 0
        %6847 = vmatprep.subr.bf16.mxu0 0
        %6848 = vmatpush2.bf16.msra.mxu0 0
        %6849 = vmatprep.mubr.bf16.mxu0 0
        %6850 = vmatmul.mubr.bf16.gmra.mxu0 %v6815
        %v6851 = vpop.f32.mrf.mxu0
        %v6852 = vadd.f32 0.0, %v6851
        %v6853 = vpop.f32.mrf.mxu0
        %v6854 = vpop.f32.mrf.mxu0
        %v6855 = vpop.f32.mrf.mxu0
        %6856 = vdwg.mxu0
        %v6857 = vadd.f32 %v6780, %v6852
        %v6858 = vld [vmem:[%s7 + $0xa0] sm:$0xf]
        %v6859 = vld [vmem:[%s7 + $0xa4] sm:$0xf]
        %v6860 = vld [vmem:[%s7 + $0xa8] sm:$0xf]
        %v6861 = vld [vmem:[%s7 + $0xac] sm:$0xf]
        %v6862 = vld [vmem:[%s7 + $0xb0] sm:$0xf]
        %v6863 = vld [vmem:[%s7 + $0xb4] sm:$0xf]
        %v6864 = vld [vmem:[%s7 + $0xb8] sm:$0xf]
        %v6865 = vld [vmem:[%s7 + $0xbc] sm:$0xf]
        %v6866 = vrot.slane %v6491, 2
        %v6875 = vunpack.c.l.b16 %v6858
        %v6876 = vunpack.c.l.b16 %v6859
        %v6877 = vunpack.c.l.b16 %v6860
        %v6878 = vunpack.c.l.b16 %v6861
        %v6879 = vunpack.c.l.b16 %v6862
        %v6880 = vunpack.c.l.b16 %v6863
        %v6881 = vunpack.c.l.b16 %v6864
        %v6882 = vunpack.c.l.b16 %v6865
        %v6883 = vpack.c.b16 %v6876, %v6875
        %v6884 = vpack.c.b16 %v6878, %v6877
        %v6885 = vpack.c.b16 %v6880, %v6879
        %v6886 = vpack.c.b16 %v6882, %v6881
        %v6892 = vsel %vm5097, %v6866, 0
        %6894 = vmatprep.subr.bf16.mxu0 0
        %6895 = vmatpush1.bf16.msra.mxu0 0
        %6896 = vmatprep.subr.bf16.mxu0 0
        %6897 = vmatpush1.bf16.msra.mxu0 0
        %6898 = vmatprep.subr.bf16.mxu0 0
        %6899 = vmatpush1.bf16.msra.mxu0 0
        %6900 = vmatprep.subr.bf16.mxu0 0
        %6901 = vmatpush1.bf16.msra.mxu0 0
        %6902 = vmatprep.subr.bf16.mxu0 0
        %6903 = vmatpush1.bf16.msra.mxu0 %v6886
        %6904 = vmatprep.subr.bf16.mxu0 0
        %6905 = vmatpush1.bf16.msra.mxu0 %v6885
        %6906 = vmatprep.subr.bf16.mxu0 0
        %6907 = vmatpush1.bf16.msra.mxu0 %v6884
        %6908 = vmatprep.subr.bf16.mxu0 0
        %6909 = vmatpush1.bf16.msra.mxu0 %v6883
        %6910 = vmatprep.subr.bf16.mxu0 0
        %6911 = vmatpush2.bf16.msra.mxu0 0
        %6912 = vmatprep.subr.bf16.mxu0 0
        %6913 = vmatpush2.bf16.msra.mxu0 0
        %6914 = vmatprep.subr.bf16.mxu0 0
        %6915 = vmatpush2.bf16.msra.mxu0 0
        %6916 = vmatprep.subr.bf16.mxu0 0
        %6917 = vmatpush2.bf16.msra.mxu0 0
        %6918 = vmatprep.subr.bf16.mxu0 0
        %6919 = vmatpush2.bf16.msra.mxu0 0
        %6920 = vmatprep.subr.bf16.mxu0 0
        %6921 = vmatpush2.bf16.msra.mxu0 0
        %6922 = vmatprep.subr.bf16.mxu0 0
        %6923 = vmatpush2.bf16.msra.mxu0 0
        %6924 = vmatprep.subr.bf16.mxu0 0
        %6925 = vmatpush2.bf16.msra.mxu0 0
        %6926 = vmatprep.mubr.bf16.mxu0 0
        %6927 = vmatmul.mubr.bf16.gmra.mxu0 %v6892
        %v6928 = vpop.f32.mrf.mxu0
        %v6929 = vadd.f32 0.0, %v6928
        %v6930 = vpop.f32.mrf.mxu0
        %v6931 = vpop.f32.mrf.mxu0
        %v6932 = vpop.f32.mrf.mxu0
        %6933 = vdwg.mxu0
        %v6934 = vadd.f32 %v6857, %v6929
        %v6935 = vld [vmem:[%s7 + $0xc0] sm:$0xf]
        %v6936 = vld [vmem:[%s7 + $0xc4] sm:$0xf]
        %v6937 = vld [vmem:[%s7 + $0xc8] sm:$0xf]
        %v6938 = vld [vmem:[%s7 + $0xcc] sm:$0xf]
        %v6939 = vld [vmem:[%s7 + $0xd0] sm:$0xf]
        %v6940 = vld [vmem:[%s7 + $0xd4] sm:$0xf]
        %v6941 = vld [vmem:[%s7 + $0xd8] sm:$0xf]
        %v6942 = vld [vmem:[%s7 + $0xdc] sm:$0xf]
        %v6943 = vrot.slane %v6473, 3
        %v6952 = vunpack.c.l.b16 %v6935
        %v6953 = vunpack.c.l.b16 %v6936
        %v6954 = vunpack.c.l.b16 %v6937
        %v6955 = vunpack.c.l.b16 %v6938
        %v6956 = vunpack.c.l.b16 %v6939
        %v6957 = vunpack.c.l.b16 %v6940
        %v6958 = vunpack.c.l.b16 %v6941
        %v6959 = vunpack.c.l.b16 %v6942
        %v6960 = vpack.c.b16 %v6953, %v6952
        %v6961 = vpack.c.b16 %v6955, %v6954
        %v6962 = vpack.c.b16 %v6957, %v6956
        %v6963 = vpack.c.b16 %v6959, %v6958
        %v6969 = vsel %vm5097, %v6943, 0
        %6971 = vmatprep.subr.bf16.mxu0 0
        %6972 = vmatpush1.bf16.msra.mxu0 0
        %6973 = vmatprep.subr.bf16.mxu0 0
        %6974 = vmatpush1.bf16.msra.mxu0 0
        %6975 = vmatprep.subr.bf16.mxu0 0
        %6976 = vmatpush1.bf16.msra.mxu0 0
        %6977 = vmatprep.subr.bf16.mxu0 0
        %6978 = vmatpush1.bf16.msra.mxu0 0
        %6979 = vmatprep.subr.bf16.mxu0 0
        %6980 = vmatpush1.bf16.msra.mxu0 %v6963
        %6981 = vmatprep.subr.bf16.mxu0 0
        %6982 = vmatpush1.bf16.msra.mxu0 %v6962
        %6983 = vmatprep.subr.bf16.mxu0 0
        %6984 = vmatpush1.bf16.msra.mxu0 %v6961
        %6985 = vmatprep.subr.bf16.mxu0 0
        %6986 = vmatpush1.bf16.msra.mxu0 %v6960
        %6987 = vmatprep.subr.bf16.mxu0 0
        %6988 = vmatpush2.bf16.msra.mxu0 0
        %6989 = vmatprep.subr.bf16.mxu0 0
        %6990 = vmatpush2.bf16.msra.mxu0 0
        %6991 = vmatprep.subr.bf16.mxu0 0
        %6992 = vmatpush2.bf16.msra.mxu0 0
        %6993 = vmatprep.subr.bf16.mxu0 0
        %6994 = vmatpush2.bf16.msra.mxu0 0
        %6995 = vmatprep.subr.bf16.mxu0 0
        %6996 = vmatpush2.bf16.msra.mxu0 0
        %6997 = vmatprep.subr.bf16.mxu0 0
        %6998 = vmatpush2.bf16.msra.mxu0 0
        %6999 = vmatprep.subr.bf16.mxu0 0
        %7000 = vmatpush2.bf16.msra.mxu0 0
        %7001 = vmatprep.subr.bf16.mxu0 0
        %7002 = vmatpush2.bf16.msra.mxu0 0
        %7003 = vmatprep.mubr.bf16.mxu0 0
        %7004 = vmatmul.mubr.bf16.gmra.mxu0 %v6969
        %v7005 = vpop.f32.mrf.mxu0
        %v7006 = vadd.f32 0.0, %v7005
        %v7007 = vpop.f32.mrf.mxu0
        %v7008 = vpop.f32.mrf.mxu0
        %v7009 = vpop.f32.mrf.mxu0
        %7010 = vdwg.mxu0
        %v7011 = vadd.f32 %v6934, %v7006
        %v7012 = vld [vmem:[%s7 + $0xe0] sm:$0xf]
        %v7013 = vld [vmem:[%s7 + $0xe4] sm:$0xf]
        %v7014 = vld [vmem:[%s7 + $0xe8] sm:$0xf]
        %v7015 = vld [vmem:[%s7 + $0xec] sm:$0xf]
        %v7016 = vld [vmem:[%s7 + $0xf0] sm:$0xf]
        %v7017 = vld [vmem:[%s7 + $0xf4] sm:$0xf]
        %v7018 = vld [vmem:[%s7 + $0xf8] sm:$0xf]
        %v7019 = vld [vmem:[%s7 + $0xfc] sm:$0xf]
        %v7020 = vrot.slane %v6491, 3
        %v7029 = vunpack.c.l.b16 %v7012
        %v7030 = vunpack.c.l.b16 %v7013
        %v7031 = vunpack.c.l.b16 %v7014
        %v7032 = vunpack.c.l.b16 %v7015
        %v7033 = vunpack.c.l.b16 %v7016
        %v7034 = vunpack.c.l.b16 %v7017
        %v7035 = vunpack.c.l.b16 %v7018
        %v7036 = vunpack.c.l.b16 %v7019
        %v7037 = vpack.c.b16 %v7030, %v7029
        %v7038 = vpack.c.b16 %v7032, %v7031
        %v7039 = vpack.c.b16 %v7034, %v7033
        %v7040 = vpack.c.b16 %v7036, %v7035
        %v7046 = vsel %vm5097, %v7020, 0
        %7048 = vmatprep.subr.bf16.mxu0 0
        %7049 = vmatpush1.bf16.msra.mxu0 0
        %7050 = vmatprep.subr.bf16.mxu0 0
        %7051 = vmatpush1.bf16.msra.mxu0 0
        %7052 = vmatprep.subr.bf16.mxu0 0
        %7053 = vmatpush1.bf16.msra.mxu0 0
        %7054 = vmatprep.subr.bf16.mxu0 0
        %7055 = vmatpush1.bf16.msra.mxu0 0
        %7056 = vmatprep.subr.bf16.mxu0 0
        %7057 = vmatpush1.bf16.msra.mxu0 %v7040
        %7058 = vmatprep.subr.bf16.mxu0 0
        %7059 = vmatpush1.bf16.msra.mxu0 %v7039
        %7060 = vmatprep.subr.bf16.mxu0 0
        %7061 = vmatpush1.bf16.msra.mxu0 %v7038
        %7062 = vmatprep.subr.bf16.mxu0 0
        %7063 = vmatpush1.bf16.msra.mxu0 %v7037
        %7064 = vmatprep.subr.bf16.mxu0 0
        %7065 = vmatpush2.bf16.msra.mxu0 0
        %7066 = vmatprep.subr.bf16.mxu0 0
        %7067 = vmatpush2.bf16.msra.mxu0 0
        %7068 = vmatprep.subr.bf16.mxu0 0
        %7069 = vmatpush2.bf16.msra.mxu0 0
        %7070 = vmatprep.subr.bf16.mxu0 0
        %7071 = vmatpush2.bf16.msra.mxu0 0
        %7072 = vmatprep.subr.bf16.mxu0 0
        %7073 = vmatpush2.bf16.msra.mxu0 0
        %7074 = vmatprep.subr.bf16.mxu0 0
        %7075 = vmatpush2.bf16.msra.mxu0 0
        %7076 = vmatprep.subr.bf16.mxu0 0
        %7077 = vmatpush2.bf16.msra.mxu0 0
        %7078 = vmatprep.subr.bf16.mxu0 0
        %7079 = vmatpush2.bf16.msra.mxu0 0
        %7080 = vmatprep.mubr.bf16.mxu0 0
        %7081 = vmatmul.mubr.bf16.gmra.mxu0 %v7046
        %v7082 = vpop.f32.mrf.mxu0
        %v7083 = vadd.f32 0.0, %v7082
        %v7084 = vpop.f32.mrf.mxu0
        %v7085 = vpop.f32.mrf.mxu0
        %v7086 = vpop.f32.mrf.mxu0
        %7087 = vdwg.mxu0
        %v7088 = vadd.f32 %v7011, %v7083
        %v7089 = vld [vmem:[%s7 + $0x100] sm:$0xf]
        %v7090 = vld [vmem:[%s7 + $0x104] sm:$0xf]
        %v7091 = vld [vmem:[%s7 + $0x108] sm:$0xf]
        %v7092 = vld [vmem:[%s7 + $0x10c] sm:$0xf]
        %v7093 = vld [vmem:[%s7 + $0x110] sm:$0xf]
        %v7094 = vld [vmem:[%s7 + $0x114] sm:$0xf]
        %v7095 = vld [vmem:[%s7 + $0x118] sm:$0xf]
        %v7096 = vld [vmem:[%s7 + $0x11c] sm:$0xf]
        %v7097 = vrot.slane %v6473, 4
        %v7106 = vunpack.c.l.b16 %v7089
        %v7107 = vunpack.c.l.b16 %v7090
        %v7108 = vunpack.c.l.b16 %v7091
        %v7109 = vunpack.c.l.b16 %v7092
        %v7110 = vunpack.c.l.b16 %v7093
        %v7111 = vunpack.c.l.b16 %v7094
        %v7112 = vunpack.c.l.b16 %v7095
        %v7113 = vunpack.c.l.b16 %v7096
        %v7114 = vpack.c.b16 %v7107, %v7106
        %v7115 = vpack.c.b16 %v7109, %v7108
        %v7116 = vpack.c.b16 %v7111, %v7110
        %v7117 = vpack.c.b16 %v7113, %v7112
        %v7123 = vsel %vm5097, %v7097, 0
        %7125 = vmatprep.subr.bf16.mxu0 0
        %7126 = vmatpush1.bf16.msra.mxu0 0
        %7127 = vmatprep.subr.bf16.mxu0 0
        %7128 = vmatpush1.bf16.msra.mxu0 0
        %7129 = vmatprep.subr.bf16.mxu0 0
        %7130 = vmatpush1.bf16.msra.mxu0 0
        %7131 = vmatprep.subr.bf16.mxu0 0
        %7132 = vmatpush1.bf16.msra.mxu0 0
        %7133 = vmatprep.subr.bf16.mxu0 0
        %7134 = vmatpush1.bf16.msra.mxu0 %v7117
        %7135 = vmatprep.subr.bf16.mxu0 0
        %7136 = vmatpush1.bf16.msra.mxu0 %v7116
        %7137 = vmatprep.subr.bf16.mxu0 0
        %7138 = vmatpush1.bf16.msra.mxu0 %v7115
        %7139 = vmatprep.subr.bf16.mxu0 0
        %7140 = vmatpush1.bf16.msra.mxu0 %v7114
        %7141 = vmatprep.subr.bf16.mxu0 0
        %7142 = vmatpush2.bf16.msra.mxu0 0
        %7143 = vmatprep.subr.bf16.mxu0 0
        %7144 = vmatpush2.bf16.msra.mxu0 0
        %7145 = vmatprep.subr.bf16.mxu0 0
        %7146 = vmatpush2.bf16.msra.mxu0 0
        %7147 = vmatprep.subr.bf16.mxu0 0
        %7148 = vmatpush2.bf16.msra.mxu0 0
        %7149 = vmatprep.subr.bf16.mxu0 0
        %7150 = vmatpush2.bf16.msra.mxu0 0
        %7151 = vmatprep.subr.bf16.mxu0 0
        %7152 = vmatpush2.bf16.msra.mxu0 0
        %7153 = vmatprep.subr.bf16.mxu0 0
        %7154 = vmatpush2.bf16.msra.mxu0 0
        %7155 = vmatprep.subr.bf16.mxu0 0
        %7156 = vmatpush2.bf16.msra.mxu0 0
        %7157 = vmatprep.mubr.bf16.mxu0 0
        %7158 = vmatmul.mubr.bf16.gmra.mxu0 %v7123
        %v7159 = vpop.f32.mrf.mxu0
        %v7160 = vadd.f32 0.0, %v7159
        %v7161 = vpop.f32.mrf.mxu0
        %v7162 = vpop.f32.mrf.mxu0
        %v7163 = vpop.f32.mrf.mxu0
        %7164 = vdwg.mxu0
        %v7165 = vadd.f32 %v7088, %v7160
        %v7166 = vld [vmem:[%s7 + $0x120] sm:$0xf]
        %v7167 = vld [vmem:[%s7 + $0x124] sm:$0xf]
        %v7168 = vld [vmem:[%s7 + $0x128] sm:$0xf]
        %v7169 = vld [vmem:[%s7 + $0x12c] sm:$0xf]
        %v7170 = vld [vmem:[%s7 + $0x130] sm:$0xf]
        %v7171 = vld [vmem:[%s7 + $0x134] sm:$0xf]
        %v7172 = vld [vmem:[%s7 + $0x138] sm:$0xf]
        %v7173 = vld [vmem:[%s7 + $0x13c] sm:$0xf]
        %v7174 = vrot.slane %v6491, 4
        %v7183 = vunpack.c.l.b16 %v7166
        %v7184 = vunpack.c.l.b16 %v7167
        %v7185 = vunpack.c.l.b16 %v7168
        %v7186 = vunpack.c.l.b16 %v7169
        %v7187 = vunpack.c.l.b16 %v7170
        %v7188 = vunpack.c.l.b16 %v7171
        %v7189 = vunpack.c.l.b16 %v7172
        %v7190 = vunpack.c.l.b16 %v7173
        %v7191 = vpack.c.b16 %v7184, %v7183
        %v7192 = vpack.c.b16 %v7186, %v7185
        %v7193 = vpack.c.b16 %v7188, %v7187
        %v7194 = vpack.c.b16 %v7190, %v7189
        %v7200 = vsel %vm5097, %v7174, 0
        %7202 = vmatprep.subr.bf16.mxu0 0
        %7203 = vmatpush1.bf16.msra.mxu0 0
        %7204 = vmatprep.subr.bf16.mxu0 0
        %7205 = vmatpush1.bf16.msra.mxu0 0
        %7206 = vmatprep.subr.bf16.mxu0 0
        %7207 = vmatpush1.bf16.msra.mxu0 0
        %7208 = vmatprep.subr.bf16.mxu0 0
        %7209 = vmatpush1.bf16.msra.mxu0 0
        %7210 = vmatprep.subr.bf16.mxu0 0
        %7211 = vmatpush1.bf16.msra.mxu0 %v7194
        %7212 = vmatprep.subr.bf16.mxu0 0
        %7213 = vmatpush1.bf16.msra.mxu0 %v7193
        %7214 = vmatprep.subr.bf16.mxu0 0
        %7215 = vmatpush1.bf16.msra.mxu0 %v7192
        %7216 = vmatprep.subr.bf16.mxu0 0
        %7217 = vmatpush1.bf16.msra.mxu0 %v7191
        %7218 = vmatprep.subr.bf16.mxu0 0
        %7219 = vmatpush2.bf16.msra.mxu0 0
        %7220 = vmatprep.subr.bf16.mxu0 0
        %7221 = vmatpush2.bf16.msra.mxu0 0
        %7222 = vmatprep.subr.bf16.mxu0 0
        %7223 = vmatpush2.bf16.msra.mxu0 0
        %7224 = vmatprep.subr.bf16.mxu0 0
        %7225 = vmatpush2.bf16.msra.mxu0 0
        %7226 = vmatprep.subr.bf16.mxu0 0
        %7227 = vmatpush2.bf16.msra.mxu0 0
        %7228 = vmatprep.subr.bf16.mxu0 0
        %7229 = vmatpush2.bf16.msra.mxu0 0
        %7230 = vmatprep.subr.bf16.mxu0 0
        %7231 = vmatpush2.bf16.msra.mxu0 0
        %7232 = vmatprep.subr.bf16.mxu0 0
        %7233 = vmatpush2.bf16.msra.mxu0 0
        %7234 = vmatprep.mubr.bf16.mxu0 0
        %7235 = vmatmul.mubr.bf16.gmra.mxu0 %v7200
        %v7236 = vpop.f32.mrf.mxu0
        %v7237 = vadd.f32 0.0, %v7236
        %v7238 = vpop.f32.mrf.mxu0
        %v7239 = vpop.f32.mrf.mxu0
        %v7240 = vpop.f32.mrf.mxu0
        %7241 = vdwg.mxu0
        %v7242 = vadd.f32 %v7165, %v7237
        %v7243 = vld [vmem:[%s7 + $0x140] sm:$0xf]
        %v7244 = vld [vmem:[%s7 + $0x144] sm:$0xf]
        %v7245 = vld [vmem:[%s7 + $0x148] sm:$0xf]
        %v7246 = vld [vmem:[%s7 + $0x14c] sm:$0xf]
        %v7247 = vld [vmem:[%s7 + $0x150] sm:$0xf]
        %v7248 = vld [vmem:[%s7 + $0x154] sm:$0xf]
        %v7249 = vld [vmem:[%s7 + $0x158] sm:$0xf]
        %v7250 = vld [vmem:[%s7 + $0x15c] sm:$0xf]
        %v7251 = vrot.slane %v6473, 5
        %v7260 = vunpack.c.l.b16 %v7243
        %v7261 = vunpack.c.l.b16 %v7244
        %v7262 = vunpack.c.l.b16 %v7245
        %v7263 = vunpack.c.l.b16 %v7246
        %v7264 = vunpack.c.l.b16 %v7247
        %v7265 = vunpack.c.l.b16 %v7248
        %v7266 = vunpack.c.l.b16 %v7249
        %v7267 = vunpack.c.l.b16 %v7250
        %v7268 = vpack.c.b16 %v7261, %v7260
        %v7269 = vpack.c.b16 %v7263, %v7262
        %v7270 = vpack.c.b16 %v7265, %v7264
        %v7271 = vpack.c.b16 %v7267, %v7266
        %v7277 = vsel %vm5097, %v7251, 0
        %7279 = vmatprep.subr.bf16.mxu0 0
        %7280 = vmatpush1.bf16.msra.mxu0 0
        %7281 = vmatprep.subr.bf16.mxu0 0
        %7282 = vmatpush1.bf16.msra.mxu0 0
        %7283 = vmatprep.subr.bf16.mxu0 0
        %7284 = vmatpush1.bf16.msra.mxu0 0
        %7285 = vmatprep.subr.bf16.mxu0 0
        %7286 = vmatpush1.bf16.msra.mxu0 0
        %7287 = vmatprep.subr.bf16.mxu0 0
        %7288 = vmatpush1.bf16.msra.mxu0 %v7271
        %7289 = vmatprep.subr.bf16.mxu0 0
        %7290 = vmatpush1.bf16.msra.mxu0 %v7270
        %7291 = vmatprep.subr.bf16.mxu0 0
        %7292 = vmatpush1.bf16.msra.mxu0 %v7269
        %7293 = vmatprep.subr.bf16.mxu0 0
        %7294 = vmatpush1.bf16.msra.mxu0 %v7268
        %7295 = vmatprep.subr.bf16.mxu0 0
        %7296 = vmatpush2.bf16.msra.mxu0 0
        %7297 = vmatprep.subr.bf16.mxu0 0
        %7298 = vmatpush2.bf16.msra.mxu0 0
        %7299 = vmatprep.subr.bf16.mxu0 0
        %7300 = vmatpush2.bf16.msra.mxu0 0
        %7301 = vmatprep.subr.bf16.mxu0 0
        %7302 = vmatpush2.bf16.msra.mxu0 0
        %7303 = vmatprep.subr.bf16.mxu0 0
        %7304 = vmatpush2.bf16.msra.mxu0 0
        %7305 = vmatprep.subr.bf16.mxu0 0
        %7306 = vmatpush2.bf16.msra.mxu0 0
        %7307 = vmatprep.subr.bf16.mxu0 0
        %7308 = vmatpush2.bf16.msra.mxu0 0
        %7309 = vmatprep.subr.bf16.mxu0 0
        %7310 = vmatpush2.bf16.msra.mxu0 0
        %7311 = vmatprep.mubr.bf16.mxu0 0
        %7312 = vmatmul.mubr.bf16.gmra.mxu0 %v7277
        %v7313 = vpop.f32.mrf.mxu0
        %v7314 = vadd.f32 0.0, %v7313
        %v7315 = vpop.f32.mrf.mxu0
        %v7316 = vpop.f32.mrf.mxu0
        %v7317 = vpop.f32.mrf.mxu0
        %7318 = vdwg.mxu0
        %v7319 = vadd.f32 %v7242, %v7314
        %v7320 = vld [vmem:[%s7 + $0x160] sm:$0xf]
        %v7321 = vld [vmem:[%s7 + $0x164] sm:$0xf]
        %v7322 = vld [vmem:[%s7 + $0x168] sm:$0xf]
        %v7323 = vld [vmem:[%s7 + $0x16c] sm:$0xf]
        %v7324 = vld [vmem:[%s7 + $0x170] sm:$0xf]
        %v7325 = vld [vmem:[%s7 + $0x174] sm:$0xf]
        %v7326 = vld [vmem:[%s7 + $0x178] sm:$0xf]
        %v7327 = vld [vmem:[%s7 + $0x17c] sm:$0xf]
        %v7328 = vrot.slane %v6491, 5
        %v7337 = vunpack.c.l.b16 %v7320
        %v7338 = vunpack.c.l.b16 %v7321
        %v7339 = vunpack.c.l.b16 %v7322
        %v7340 = vunpack.c.l.b16 %v7323
        %v7341 = vunpack.c.l.b16 %v7324
        %v7342 = vunpack.c.l.b16 %v7325
        %v7343 = vunpack.c.l.b16 %v7326
        %v7344 = vunpack.c.l.b16 %v7327
        %v7345 = vpack.c.b16 %v7338, %v7337
        %v7346 = vpack.c.b16 %v7340, %v7339
        %v7347 = vpack.c.b16 %v7342, %v7341
        %v7348 = vpack.c.b16 %v7344, %v7343
        %v7354 = vsel %vm5097, %v7328, 0
        %7356 = vmatprep.subr.bf16.mxu0 0
        %7357 = vmatpush1.bf16.msra.mxu0 0
        %7358 = vmatprep.subr.bf16.mxu0 0
        %7359 = vmatpush1.bf16.msra.mxu0 0
        %7360 = vmatprep.subr.bf16.mxu0 0
        %7361 = vmatpush1.bf16.msra.mxu0 0
        %7362 = vmatprep.subr.bf16.mxu0 0
        %7363 = vmatpush1.bf16.msra.mxu0 0
        %7364 = vmatprep.subr.bf16.mxu0 0
        %7365 = vmatpush1.bf16.msra.mxu0 %v7348
        %7366 = vmatprep.subr.bf16.mxu0 0
        %7367 = vmatpush1.bf16.msra.mxu0 %v7347
        %7368 = vmatprep.subr.bf16.mxu0 0
        %7369 = vmatpush1.bf16.msra.mxu0 %v7346
        %7370 = vmatprep.subr.bf16.mxu0 0
        %7371 = vmatpush1.bf16.msra.mxu0 %v7345
        %7372 = vmatprep.subr.bf16.mxu0 0
        %7373 = vmatpush2.bf16.msra.mxu0 0
        %7374 = vmatprep.subr.bf16.mxu0 0
        %7375 = vmatpush2.bf16.msra.mxu0 0
        %7376 = vmatprep.subr.bf16.mxu0 0
        %7377 = vmatpush2.bf16.msra.mxu0 0
        %7378 = vmatprep.subr.bf16.mxu0 0
        %7379 = vmatpush2.bf16.msra.mxu0 0
        %7380 = vmatprep.subr.bf16.mxu0 0
        %7381 = vmatpush2.bf16.msra.mxu0 0
        %7382 = vmatprep.subr.bf16.mxu0 0
        %7383 = vmatpush2.bf16.msra.mxu0 0
        %7384 = vmatprep.subr.bf16.mxu0 0
        %7385 = vmatpush2.bf16.msra.mxu0 0
        %7386 = vmatprep.subr.bf16.mxu0 0
        %7387 = vmatpush2.bf16.msra.mxu0 0
        %7388 = vmatprep.mubr.bf16.mxu0 0
        %7389 = vmatmul.mubr.bf16.gmra.mxu0 %v7354
        %v7390 = vpop.f32.mrf.mxu0
        %v7391 = vadd.f32 0.0, %v7390
        %v7392 = vpop.f32.mrf.mxu0
        %v7393 = vpop.f32.mrf.mxu0
        %v7394 = vpop.f32.mrf.mxu0
        %7395 = vdwg.mxu0
        %v7396 = vadd.f32 %v7319, %v7391
        %v7397 = vld [vmem:[%s7 + $0x180] sm:$0xf]
        %v7398 = vld [vmem:[%s7 + $0x184] sm:$0xf]
        %v7399 = vld [vmem:[%s7 + $0x188] sm:$0xf]
        %v7400 = vld [vmem:[%s7 + $0x18c] sm:$0xf]
        %v7401 = vld [vmem:[%s7 + $0x190] sm:$0xf]
        %v7402 = vld [vmem:[%s7 + $0x194] sm:$0xf]
        %v7403 = vld [vmem:[%s7 + $0x198] sm:$0xf]
        %v7404 = vld [vmem:[%s7 + $0x19c] sm:$0xf]
        %v7405 = vrot.slane %v6473, 6
        %v7414 = vunpack.c.l.b16 %v7397
        %v7415 = vunpack.c.l.b16 %v7398
        %v7416 = vunpack.c.l.b16 %v7399
        %v7417 = vunpack.c.l.b16 %v7400
        %v7418 = vunpack.c.l.b16 %v7401
        %v7419 = vunpack.c.l.b16 %v7402
        %v7420 = vunpack.c.l.b16 %v7403
        %v7421 = vunpack.c.l.b16 %v7404
        %v7422 = vpack.c.b16 %v7415, %v7414
        %v7423 = vpack.c.b16 %v7417, %v7416
        %v7424 = vpack.c.b16 %v7419, %v7418
        %v7425 = vpack.c.b16 %v7421, %v7420
        %v7431 = vsel %vm5097, %v7405, 0
        %7433 = vmatprep.subr.bf16.mxu0 0
        %7434 = vmatpush1.bf16.msra.mxu0 0
        %7435 = vmatprep.subr.bf16.mxu0 0
        %7436 = vmatpush1.bf16.msra.mxu0 0
        %7437 = vmatprep.subr.bf16.mxu0 0
        %7438 = vmatpush1.bf16.msra.mxu0 0
        %7439 = vmatprep.subr.bf16.mxu0 0
        %7440 = vmatpush1.bf16.msra.mxu0 0
        %7441 = vmatprep.subr.bf16.mxu0 0
        %7442 = vmatpush1.bf16.msra.mxu0 %v7425
        %7443 = vmatprep.subr.bf16.mxu0 0
        %7444 = vmatpush1.bf16.msra.mxu0 %v7424
        %7445 = vmatprep.subr.bf16.mxu0 0
        %7446 = vmatpush1.bf16.msra.mxu0 %v7423
        %7447 = vmatprep.subr.bf16.mxu0 0
        %7448 = vmatpush1.bf16.msra.mxu0 %v7422
        %7449 = vmatprep.subr.bf16.mxu0 0
        %7450 = vmatpush2.bf16.msra.mxu0 0
        %7451 = vmatprep.subr.bf16.mxu0 0
        %7452 = vmatpush2.bf16.msra.mxu0 0
        %7453 = vmatprep.subr.bf16.mxu0 0
        %7454 = vmatpush2.bf16.msra.mxu0 0
        %7455 = vmatprep.subr.bf16.mxu0 0
        %7456 = vmatpush2.bf16.msra.mxu0 0
        %7457 = vmatprep.subr.bf16.mxu0 0
        %7458 = vmatpush2.bf16.msra.mxu0 0
        %7459 = vmatprep.subr.bf16.mxu0 0
        %7460 = vmatpush2.bf16.msra.mxu0 0
        %7461 = vmatprep.subr.bf16.mxu0 0
        %7462 = vmatpush2.bf16.msra.mxu0 0
        %7463 = vmatprep.subr.bf16.mxu0 0
        %7464 = vmatpush2.bf16.msra.mxu0 0
        %7465 = vmatprep.mubr.bf16.mxu0 0
        %7466 = vmatmul.mubr.bf16.gmra.mxu0 %v7431
        %v7467 = vpop.f32.mrf.mxu0
        %v7468 = vadd.f32 0.0, %v7467
        %v7469 = vpop.f32.mrf.mxu0
        %v7470 = vpop.f32.mrf.mxu0
        %v7471 = vpop.f32.mrf.mxu0
        %7472 = vdwg.mxu0
        %v7473 = vadd.f32 %v7396, %v7468
        %v7474 = vld [vmem:[%s7 + $0x1a0] sm:$0xf]
        %v7475 = vld [vmem:[%s7 + $0x1a4] sm:$0xf]
        %v7476 = vld [vmem:[%s7 + $0x1a8] sm:$0xf]
        %v7477 = vld [vmem:[%s7 + $0x1ac] sm:$0xf]
        %v7478 = vld [vmem:[%s7 + $0x1b0] sm:$0xf]
        %v7479 = vld [vmem:[%s7 + $0x1b4] sm:$0xf]
        %v7480 = vld [vmem:[%s7 + $0x1b8] sm:$0xf]
        %v7481 = vld [vmem:[%s7 + $0x1bc] sm:$0xf]
        %v7482 = vrot.slane %v6491, 6
        %v7491 = vunpack.c.l.b16 %v7474
        %v7492 = vunpack.c.l.b16 %v7475
        %v7493 = vunpack.c.l.b16 %v7476
        %v7494 = vunpack.c.l.b16 %v7477
        %v7495 = vunpack.c.l.b16 %v7478
        %v7496 = vunpack.c.l.b16 %v7479
        %v7497 = vunpack.c.l.b16 %v7480
        %v7498 = vunpack.c.l.b16 %v7481
        %v7499 = vpack.c.b16 %v7492, %v7491
        %v7500 = vpack.c.b16 %v7494, %v7493
        %v7501 = vpack.c.b16 %v7496, %v7495
        %v7502 = vpack.c.b16 %v7498, %v7497
        %v7508 = vsel %vm5097, %v7482, 0
        %7510 = vmatprep.subr.bf16.mxu0 0
        %7511 = vmatpush1.bf16.msra.mxu0 0
        %7512 = vmatprep.subr.bf16.mxu0 0
        %7513 = vmatpush1.bf16.msra.mxu0 0
        %7514 = vmatprep.subr.bf16.mxu0 0
        %7515 = vmatpush1.bf16.msra.mxu0 0
        %7516 = vmatprep.subr.bf16.mxu0 0
        %7517 = vmatpush1.bf16.msra.mxu0 0
        %7518 = vmatprep.subr.bf16.mxu0 0
        %7519 = vmatpush1.bf16.msra.mxu0 %v7502
        %7520 = vmatprep.subr.bf16.mxu0 0
        %7521 = vmatpush1.bf16.msra.mxu0 %v7501
        %7522 = vmatprep.subr.bf16.mxu0 0
        %7523 = vmatpush1.bf16.msra.mxu0 %v7500
        %7524 = vmatprep.subr.bf16.mxu0 0
        %7525 = vmatpush1.bf16.msra.mxu0 %v7499
        %7526 = vmatprep.subr.bf16.mxu0 0
        %7527 = vmatpush2.bf16.msra.mxu0 0
        %7528 = vmatprep.subr.bf16.mxu0 0
        %7529 = vmatpush2.bf16.msra.mxu0 0
        %7530 = vmatprep.subr.bf16.mxu0 0
        %7531 = vmatpush2.bf16.msra.mxu0 0
        %7532 = vmatprep.subr.bf16.mxu0 0
        %7533 = vmatpush2.bf16.msra.mxu0 0
        %7534 = vmatprep.subr.bf16.mxu0 0
        %7535 = vmatpush2.bf16.msra.mxu0 0
        %7536 = vmatprep.subr.bf16.mxu0 0
        %7537 = vmatpush2.bf16.msra.mxu0 0
        %7538 = vmatprep.subr.bf16.mxu0 0
        %7539 = vmatpush2.bf16.msra.mxu0 0
        %7540 = vmatprep.subr.bf16.mxu0 0
        %7541 = vmatpush2.bf16.msra.mxu0 0
        %7542 = vmatprep.mubr.bf16.mxu0 0
        %7543 = vmatmul.mubr.bf16.gmra.mxu0 %v7508
        %v7544 = vpop.f32.mrf.mxu0
        %v7545 = vadd.f32 0.0, %v7544
        %v7546 = vpop.f32.mrf.mxu0
        %v7547 = vpop.f32.mrf.mxu0
        %v7548 = vpop.f32.mrf.mxu0
        %7549 = vdwg.mxu0
        %v7550 = vadd.f32 %v7473, %v7545
        %v7551 = vld [vmem:[%s7 + $0x1c0] sm:$0xf]
        %v7552 = vld [vmem:[%s7 + $0x1c4] sm:$0xf]
        %v7553 = vld [vmem:[%s7 + $0x1c8] sm:$0xf]
        %v7554 = vld [vmem:[%s7 + $0x1cc] sm:$0xf]
        %v7555 = vld [vmem:[%s7 + $0x1d0] sm:$0xf]
        %v7556 = vld [vmem:[%s7 + $0x1d4] sm:$0xf]
        %v7557 = vld [vmem:[%s7 + $0x1d8] sm:$0xf]
        %v7558 = vld [vmem:[%s7 + $0x1dc] sm:$0xf]
        %v7559 = vrot.slane %v6473, 7
        %v7568 = vunpack.c.l.b16 %v7551
        %v7569 = vunpack.c.l.b16 %v7552
        %v7570 = vunpack.c.l.b16 %v7553
        %v7571 = vunpack.c.l.b16 %v7554
        %v7572 = vunpack.c.l.b16 %v7555
        %v7573 = vunpack.c.l.b16 %v7556
        %v7574 = vunpack.c.l.b16 %v7557
        %v7575 = vunpack.c.l.b16 %v7558
        %v7576 = vpack.c.b16 %v7569, %v7568
        %v7577 = vpack.c.b16 %v7571, %v7570
        %v7578 = vpack.c.b16 %v7573, %v7572
        %v7579 = vpack.c.b16 %v7575, %v7574
        %v7585 = vsel %vm5097, %v7559, 0
        %7587 = vmatprep.subr.bf16.mxu0 0
        %7588 = vmatpush1.bf16.msra.mxu0 0
        %7589 = vmatprep.subr.bf16.mxu0 0
        %7590 = vmatpush1.bf16.msra.mxu0 0
        %7591 = vmatprep.subr.bf16.mxu0 0
        %7592 = vmatpush1.bf16.msra.mxu0 0
        %7593 = vmatprep.subr.bf16.mxu0 0
        %7594 = vmatpush1.bf16.msra.mxu0 0
        %7595 = vmatprep.subr.bf16.mxu0 0
        %7596 = vmatpush1.bf16.msra.mxu0 %v7579
        %7597 = vmatprep.subr.bf16.mxu0 0
        %7598 = vmatpush1.bf16.msra.mxu0 %v7578
        %7599 = vmatprep.subr.bf16.mxu0 0
        %7600 = vmatpush1.bf16.msra.mxu0 %v7577
        %7601 = vmatprep.subr.bf16.mxu0 0
        %7602 = vmatpush1.bf16.msra.mxu0 %v7576
        %7603 = vmatprep.subr.bf16.mxu0 0
        %7604 = vmatpush2.bf16.msra.mxu0 0
        %7605 = vmatprep.subr.bf16.mxu0 0
        %7606 = vmatpush2.bf16.msra.mxu0 0
        %7607 = vmatprep.subr.bf16.mxu0 0
        %7608 = vmatpush2.bf16.msra.mxu0 0
        %7609 = vmatprep.subr.bf16.mxu0 0
        %7610 = vmatpush2.bf16.msra.mxu0 0
        %7611 = vmatprep.subr.bf16.mxu0 0
        %7612 = vmatpush2.bf16.msra.mxu0 0
        %7613 = vmatprep.subr.bf16.mxu0 0
        %7614 = vmatpush2.bf16.msra.mxu0 0
        %7615 = vmatprep.subr.bf16.mxu0 0
        %7616 = vmatpush2.bf16.msra.mxu0 0
        %7617 = vmatprep.subr.bf16.mxu0 0
        %7618 = vmatpush2.bf16.msra.mxu0 0
        %7619 = vmatprep.mubr.bf16.mxu0 0
        %7620 = vmatmul.mubr.bf16.gmra.mxu0 %v7585
        %v7621 = vpop.f32.mrf.mxu0
        %v7622 = vadd.f32 0.0, %v7621
        %v7623 = vpop.f32.mrf.mxu0
        %v7624 = vpop.f32.mrf.mxu0
        %v7625 = vpop.f32.mrf.mxu0
        %7626 = vdwg.mxu0
        %v7627 = vadd.f32 %v7550, %v7622
        %v7628 = vld [vmem:[%s7 + $0x1e0] sm:$0xf]
        %v7629 = vld [vmem:[%s7 + $0x1e4] sm:$0xf]
        %v7630 = vld [vmem:[%s7 + $0x1e8] sm:$0xf]
        %v7631 = vld [vmem:[%s7 + $0x1ec] sm:$0xf]
        %v7632 = vld [vmem:[%s7 + $0x1f0] sm:$0xf]
        %v7633 = vld [vmem:[%s7 + $0x1f4] sm:$0xf]
        %v7634 = vld [vmem:[%s7 + $0x1f8] sm:$0xf]
        %v7635 = vld [vmem:[%s7 + $0x1fc] sm:$0xf]
        %v7636 = vrot.slane %v6491, 7
        %v7645 = vunpack.c.l.b16 %v7628
        %v7646 = vunpack.c.l.b16 %v7629
        %v7647 = vunpack.c.l.b16 %v7630
        %v7648 = vunpack.c.l.b16 %v7631
        %v7649 = vunpack.c.l.b16 %v7632
        %v7650 = vunpack.c.l.b16 %v7633
        %v7651 = vunpack.c.l.b16 %v7634
        %v7652 = vunpack.c.l.b16 %v7635
        %v7653 = vpack.c.b16 %v7646, %v7645
        %v7654 = vpack.c.b16 %v7648, %v7647
        %v7655 = vpack.c.b16 %v7650, %v7649
        %v7656 = vpack.c.b16 %v7652, %v7651
        %v7662 = vsel %vm5097, %v7636, 0
        %7664 = vmatprep.subr.bf16.mxu0 0
        %7665 = vmatpush1.bf16.msra.mxu0 0
        %7666 = vmatprep.subr.bf16.mxu0 0
        %7667 = vmatpush1.bf16.msra.mxu0 0
        %7668 = vmatprep.subr.bf16.mxu0 0
        %7669 = vmatpush1.bf16.msra.mxu0 0
        %7670 = vmatprep.subr.bf16.mxu0 0
        %7671 = vmatpush1.bf16.msra.mxu0 0
        %7672 = vmatprep.subr.bf16.mxu0 0
        %7673 = vmatpush1.bf16.msra.mxu0 %v7656
        %7674 = vmatprep.subr.bf16.mxu0 0
        %7675 = vmatpush1.bf16.msra.mxu0 %v7655
        %7676 = vmatprep.subr.bf16.mxu0 0
        %7677 = vmatpush1.bf16.msra.mxu0 %v7654
        %7678 = vmatprep.subr.bf16.mxu0 0
        %7679 = vmatpush1.bf16.msra.mxu0 %v7653
        %7680 = vmatprep.subr.bf16.mxu0 0
        %7681 = vmatpush2.bf16.msra.mxu0 0
        %7682 = vmatprep.subr.bf16.mxu0 0
        %7683 = vmatpush2.bf16.msra.mxu0 0
        %7684 = vmatprep.subr.bf16.mxu0 0
        %7685 = vmatpush2.bf16.msra.mxu0 0
        %7686 = vmatprep.subr.bf16.mxu0 0
        %7687 = vmatpush2.bf16.msra.mxu0 0
        %7688 = vmatprep.subr.bf16.mxu0 0
        %7689 = vmatpush2.bf16.msra.mxu0 0
        %7690 = vmatprep.subr.bf16.mxu0 0
        %7691 = vmatpush2.bf16.msra.mxu0 0
        %7692 = vmatprep.subr.bf16.mxu0 0
        %7693 = vmatpush2.bf16.msra.mxu0 0
        %7694 = vmatprep.subr.bf16.mxu0 0
        %7695 = vmatpush2.bf16.msra.mxu0 0
        %7696 = vmatprep.mubr.bf16.mxu0 0
        %7697 = vmatmul.mubr.bf16.gmra.mxu0 %v7662
        %v7698 = vpop.f32.mrf.mxu0
        %v7699 = vadd.f32 0.0, %v7698
        %v7700 = vpop.f32.mrf.mxu0
        %v7701 = vpop.f32.mrf.mxu0
        %v7702 = vpop.f32.mrf.mxu0
        %7703 = vdwg.mxu0
        %v7704 = vadd.f32 %v7627, %v7699
        %v7705 = vld [vmem:[%s8] sm:$0x1]
        %v7706 = vadd.f32 %v7704, %v7705
        %v7707 = vmax.f32 %v7706, 0.0
        %v7708 = vpack.c.bf16 %v7707, %v7707
        %v7709 = vld [vmem:[%s9] sm:$0xf]
        %v7710 = vld [vmem:[%s9 + $0x4] sm:$0xf]
        %v7711 = vld [vmem:[%s9 + $0x8] sm:$0xf]
        %v7712 = vld [vmem:[%s9 + $0xc] sm:$0xf]
        %v7713 = vld [vmem:[%s9 + $0x10] sm:$0xf]
        %v7714 = vld [vmem:[%s9 + $0x14] sm:$0xf]
        %v7715 = vld [vmem:[%s9 + $0x18] sm:$0xf]
        %v7716 = vld [vmem:[%s9 + $0x1c] sm:$0xf]
        %v7717 = vld [vmem:[%s10] sm:$0x1]
        %v7726 = vunpack.c.l.b16 %v7709
        %v7727 = vunpack.c.l.b16 %v7710
        %v7728 = vunpack.c.l.b16 %v7711
        %v7729 = vunpack.c.l.b16 %v7712
        %v7730 = vunpack.c.l.b16 %v7713
        %v7731 = vunpack.c.l.b16 %v7714
        %v7732 = vunpack.c.l.b16 %v7715
        %v7733 = vunpack.c.l.b16 %v7716
        %v7734 = vpack.c.b16 %v7727, %v7726
        %v7735 = vpack.c.b16 %v7729, %v7728
        %v7736 = vpack.c.b16 %v7731, %v7730
        %v7737 = vpack.c.b16 %v7733, %v7732
        %v7743 = vsel %vm5097, %v7708, 0
        %7745 = vmatprep.subr.bf16.mxu0 0
        %7746 = vmatpush1.bf16.msra.mxu0 0
        %7747 = vmatprep.subr.bf16.mxu0 0
        %7748 = vmatpush1.bf16.msra.mxu0 0
        %7749 = vmatprep.subr.bf16.mxu0 0
        %7750 = vmatpush1.bf16.msra.mxu0 0
        %7751 = vmatprep.subr.bf16.mxu0 0
        %7752 = vmatpush1.bf16.msra.mxu0 0
        %7753 = vmatprep.subr.bf16.mxu0 0
        %7754 = vmatpush1.bf16.msra.mxu0 %v7737
        %7755 = vmatprep.subr.bf16.mxu0 0
        %7756 = vmatpush1.bf16.msra.mxu0 %v7736
        %7757 = vmatprep.subr.bf16.mxu0 0
        %7758 = vmatpush1.bf16.msra.mxu0 %v7735
        %7759 = vmatprep.subr.bf16.mxu0 0
        %7760 = vmatpush1.bf16.msra.mxu0 %v7734
        %7761 = vmatprep.subr.bf16.mxu0 0
        %7762 = vmatpush2.bf16.msra.mxu0 0
        %7763 = vmatprep.subr.bf16.mxu0 0
        %7764 = vmatpush2.bf16.msra.mxu0 0
        %7765 = vmatprep.subr.bf16.mxu0 0
        %7766 = vmatpush2.bf16.msra.mxu0 0
        %7767 = vmatprep.subr.bf16.mxu0 0
        %7768 = vmatpush2.bf16.msra.mxu0 0
        %7769 = vmatprep.subr.bf16.mxu0 0
        %7770 = vmatpush2.bf16.msra.mxu0 0
        %7771 = vmatprep.subr.bf16.mxu0 0
        %7772 = vmatpush2.bf16.msra.mxu0 0
        %7773 = vmatprep.subr.bf16.mxu0 0
        %7774 = vmatpush2.bf16.msra.mxu0 0
        %7775 = vmatprep.subr.bf16.mxu0 0
        %7776 = vmatpush2.bf16.msra.mxu0 0
        %7777 = vmatprep.mubr.bf16.mxu0 0
        %7778 = vmatmul.mubr.bf16.gmra.mxu0 %v7743
        %v7779 = vpop.f32.mrf.mxu0
        %v7780 = vadd.f32 %v7717, %v7779
        %v7781 = vpop.f32.mrf.mxu0
        %v7782 = vpop.f32.mrf.mxu0
        %v7783 = vpop.f32.mrf.mxu0
        %7784 = vdwg.mxu0
        %vm7785 = vcmask 73728
        %7786 = vst.msk [vmem:[%s378] sm:$0x1] %vm7785, %v7780
        %s7787 = sand.u32 %s269, 1
        %s7788 = scalar_lea.sflag [#allocation11], %s7787
        %s7789 = sand.u32 %s269, 1
        %s7790 = scalar_lea.vmem [#allocation10], %s7789
        // Predicated region
        $region65: #{simple_cnn_forward.1} parent=63 // pred_check
          %p7791 = pneg %p279
        $region66: #{simple_cnn_forward.1} parent=63 // pred_check_branch
          %7793 = sbr.rel (%p7791) target = $region68
        $region67: #{simple_cnn_forward.1} parent=63 // pred_region
          %s7795 = ssub.s32 16, 16
          %7796 = vsyncadd %s7788, %s7795
          %s7797 = smul.addr %s25, 16
          %s7798 = scalar_lea.hbm %s11, %s7797
          %s7800 = sshll.u32 %s7790, 4
          %s7801 = int_to_ptr.vmem [resolvable:$true] %s7800
          %7803 = dma.vmem_to_hbm [thread:$0]  %s7801, 16, %s7798, %s7788
        $region68: #{simple_cnn_forward.1} parent=63 // pred_fallthru
          _
      $region64: #{simple_cnn_forward.1} parent=5 // pred_fallthru
        _
      %p7804 = scmp.le.s32.totalorder 2, %s20
      // Predicated region
      $region69: #{simple_cnn_forward.1} parent=5 // pred_check
        %p7805 = pneg %p7804
      $region70: #{simple_cnn_forward.1} parent=5 // pred_check_branch
        %7807 = sbr.rel (%p7805) target = $region72
      $region71: #{simple_cnn_forward.1} parent=5 // pred_region
        %s7808 = ssub.s32 %s20, 2
        // Predicated region
        $region73: #{simple_cnn_forward.1} parent=71 // pred_check
          %p7809 = pneg %p285
        $region74: #{simple_cnn_forward.1} parent=71 // pred_check_branch
          %7811 = sbr.rel (%p7809) target = $region76
        $region75: #{simple_cnn_forward.1} parent=71 // pred_region
          %s7812 = sand.u32 %s270, 1
          %s7813 = scalar_lea.sflag [#allocation11], %s7812
          %s7814 = sand.u32 %s270, 1
          %s7815 = scalar_lea.vmem [#allocation10], %s7814
          %7816 = dma.done %s7813, 16
        $region76: #{simple_cnn_forward.1} parent=71 // pred_fallthru
          _
      $region72: #{simple_cnn_forward.1} parent=5 // pred_fallthru
        _
    $region6: #{simple_cnn_forward.1} parent=1 // loop_footer
      %s24 = sadd.s32 1, %s20
    $region7: #{simple_cnn_forward.1} parent=1 // loop_footer_branch
      %19 = sbr.rel target = $region3
    $region8: #{simple_cnn_forward.1} parent=1 // loop_exit
      _
    %7817 = vsyncpa [#allocation11], 1
    %s7818 = scalar_lea.sflag [#allocation11], 1
    %7819 = vsyncpa %s7818, 1

</llo_original>
